<compile_context>
chip_gen: v7x
topology: tpu7x:2x2x1
jax: 0.10.0
libtpu: 0.0.40
codegen_flags: <defaults>
</compile_context>

<pallas_src>
import math

import jax
import jax.numpy as jnp
from jax import lax
from jax.experimental import pallas as pl
from jax.experimental.pallas import tpu as pltpu

# ---- small-shape config consistent with the module defaults -----------------
CLIP_DIM = 512        # CLIPFeatureProcessor input dim (hard-coded 512)
HIDDEN = 32           # hidden_dim
NUM_LAYER = 2         # num_layer
NUM_HEAD = 8          # num_attention_head
HEAD_DIM = HIDDEN // NUM_HEAD
FFN = 64              # ffn_dim
EPS = 1e-5            # layer_norm_eps
NUM_CLASS = 2         # -> single logit (num_class <= 2)

BATCH = 2
NUM_FEAT = 6          # number of tabular features
SEQ = NUM_FEAT + 1    # +1 for the CLS token
HS = NUM_HEAD * SEQ   # stacked (query, head) rows: row r = q*H + h

PARAM_ORDER = [
    "fp_w", "fp_b", "cls",
    "wqkv", "bqkv", "wo", "bo",
    "anw", "anb", "gate", "linw", "linb", "gow", "gob", "gnw", "gnb",
    "cnw", "cnb", "clw", "clb",
]
# per-layer vector params -> reshaped to (L, 1, dim) in the wrapper so the
# kernel can index them with a dynamic layer id on a leading (non-layout) axis.
PER_LAYER_VEC = ("bqkv", "bo", "anw", "anb", "gate", "linb", "gob", "gnw", "gnb")


def _round_up(n, m):
    return ((n + m - 1) // m) * m


def _layernorm(x, w, b):
    mu = jnp.mean(x, axis=-1, keepdims=True)
    var = jnp.mean((x - mu) ** 2, axis=-1, keepdims=True)
    return (x - mu) * lax.rsqrt(var + EPS) * w + b


def _linear(x3, w, b=None):
    # x3: (B, S, Din), w: (Din, Dout), b: (1, Dout) or None
    B, S, Din = x3.shape
    y = jnp.dot(x3.reshape(B * S, Din), w, preferred_element_type=jnp.float32)
    if b is not None:
        y = y + b
    return y.reshape(B, S, w.shape[-1])


def clip_classifier_kernel(
    x_ref, hmask_ref,
    fp_w_ref, fp_b_ref, cls_ref,
    wqkv_ref, bqkv_ref, wo_ref, bo_ref,
    anw_ref, anb_ref, gate_ref, linw_ref, linb_ref, gow_ref, gob_ref,
    gnw_ref, gnb_ref, cnw_ref, cnb_ref, clw_ref, clb_ref,
    out_ref,
):
    D, H, S, F = HIDDEN, NUM_HEAD, SEQ, NUM_FEAT
    hd = HEAD_DIM
    B = x_ref.shape[0] // F                 # batch tile (x block is (tb*F, C))
    scale = 1.0 / math.sqrt(hd)

    # ---- CLIPFeatureProcessor: Linear(512 -> D); bf16 inputs, f32 accumulate -
    h0 = jnp.dot(x_ref[...], fp_w_ref[...],
                 preferred_element_type=jnp.float32) + fp_b_ref[...]
    h0 = h0.reshape(B, F, D)

    # ---- CLSToken: prepend the learned CLS row (no scratch round trip) -------
    cls_row = jnp.broadcast_to(cls_ref[...].reshape(1, 1, D), (B, 1, D))
    emb = jnp.concatenate([cls_row, h0], axis=1)              # (B, S, D)

    # head-stacking constants, hoisted out of the layer loop
    hmask = hmask_ref[...]                   # (HS, D): row q*H + h keeps head h
    qmask = hmask * scale                    # fold 1/sqrt(head_dim) into mask

    # ---- GatedTransformerEncoder: NUM_LAYER identical gated layers -----------
    def layer(l, xin):
        xl = xin
        # fused QKV projection: one MXU matmul instead of three
        qkv = _linear(xl, wqkv_ref[l], bqkv_ref[l])            # (B, S, 3D)
        q = qkv[:, :, 0:D]
        k = qkv[:, :, D:2 * D]
        v = qkv[:, :, 2 * D:3 * D]

        # heads stacked on the row axis (query-major / head-minor): H == 8 so
        # the (B,S,H,D) <-> (B,S*H,D) reshapes are sublane-tile aligned (no
        # relayout) and D=32 stays lane-contiguous (no hd=4 lane slices).
        qs = jnp.broadcast_to(q[:, :, None, :], (B, S, H, D)).reshape(B, H * S, D)
        qs = qs * qmask[None]
        scores = jnp.einsum("bqd,bkd->bqk", qs, k,
                            preferred_element_type=jnp.float32)   # (B, HS, S)
        scores = scores - jnp.max(scores, axis=-1, keepdims=True)
        p = jnp.exp(scores)
        p = p * pl.reciprocal(jnp.sum(p, axis=-1, keepdims=True), approx=True)
        o = jnp.einsum("bqk,bkd->bqd", p, v,
                       preferred_element_type=jnp.float32)        # (B, HS, D)
        o = o * hmask[None]                     # keep each row's own head lanes
        z = _linear(o, wo_ref[l])               # out_proj applied per stacked row
        # head sum: pure dim split + sublane reduce (replaces the rsel einsum)
        attn = jnp.sum(z.reshape(B, S, H, D), axis=2) + bo_ref[l]  # (B, S, D)

        # x = LayerNorm(x + attention)
        xl = _layernorm(xl + attn, anw_ref[l], anb_ref[l])

        # gate branch: g = sigmoid(x @ w_gate); h = Linear(x); relu(g*h) -> Linear
        g = jax.nn.sigmoid(jnp.sum(xl * gate_ref[l], axis=-1, keepdims=True))
        hft = _linear(xl, linw_ref[l], linb_ref[l])               # (B, S, FFN)
        gout = _linear(jnp.maximum(g * hft, 0.0), gow_ref[l], gob_ref[l])
        return _layernorm(xl + gout, gnw_ref[l], gnb_ref[l])

    # fori_loop (not a static Python loop) bounds per-layer live ranges
    emb = lax.fori_loop(0, NUM_LAYER, layer, emb)

    # ---- classifier head: CLS row, LayerNorm, Linear(D -> 1) -----------------
    cls_out = _layernorm(emb[:, 0, :], cnw_ref[...], cnb_ref[...])    # (B, D)
    # Linear(D, 1) as multiply + lane reduce (avoids a 1-output-lane MXU matmul)
    logits = jnp.sum(cls_out * clw_ref[...], axis=-1, keepdims=True) + clb_ref[...]
    # lane-dense store: batch tile on the lane axis
    out_ref[...] = logits.T.reshape(1, 1, B).astype(out_ref.dtype)


def _const_spec(shape):
    zeros = (0,) * len(shape)
    return pl.BlockSpec(shape, lambda i, _z=zeros: _z)


def _vmem_limit_bytes():
    # generation-aware scoped-VMEM limit: 3/4 of physical (64 MiB on v7x,
    # 128 MiB on v5e/v6e), with a conservative fallback if the query fails.
    try:
        cap = int(pltpu.get_tpu_info().vmem_capacity_bytes)
    except Exception:
        cap = 64 << 20
    return max(32 << 20, min((cap * 3) // 4, 112 << 20))


def clip_classifier_forward(x, params, *, tb=None):
    B, F, C = x.shape
    assert F == NUM_FEAT and C == CLIP_DIM
    D, S, H = HIDDEN, SEQ, NUM_HEAD

    # ---- batch tiling --------------------------------------------------------
    b_pad = _round_up(B, 8)
    if tb is None:
        # >=128 amortizes the ~0.35us per-grid-step overhead (the kernel is
        # bandwidth/overhead bound on the x read) and keeps the logits store
        # lane-dense; capped at 256 so the lane-padded f32 attention buffers
        # (~100 KiB/example) stay inside v7x's 64 MiB VMEM.
        tb = min(256, b_pad)
        # prefer >=2 grid steps when the batch allows so both v7x TCs get work
        if b_pad // tb < 2 and b_pad >= 16:
            tb = _round_up(b_pad // 2, 8)
    tb = max(8, min(_round_up(tb, 8), b_pad))
    b_pad = _round_up(b_pad, tb)
    grid = b_pad // tb

    if b_pad != B:
        x = jnp.pad(x, ((0, b_pad - B), (0, 0), (0, 0)))
    # bf16 x halves the dominant HBM read; the first matmul accumulates in f32.
    x2d = x.reshape(b_pad * F, C).astype(jnp.bfloat16)

    # per-(query, head) lane mask: stacked row r = q*H + h keeps head h's lanes
    lane_head = jnp.arange(D, dtype=jnp.int32) // HEAD_DIM
    row_head = jnp.tile(jnp.arange(H, dtype=jnp.int32), S)
    hmask = (row_head[:, None] == lane_head[None, :]).astype(jnp.float32)  # (HS, D)

    plist = []
    for name in PARAM_ORDER:
        p = params[name]
        if name in PER_LAYER_VEC:
            p = p.reshape(NUM_LAYER, 1, -1)
        if name == "fp_w":
            p = p.astype(jnp.bfloat16)          # matches bf16 x
        plist.append(p)

    inputs = (x2d, hmask) + tuple(plist)
    in_specs = [pl.BlockSpec((tb * F, C), lambda i: (i, 0))]
    in_specs += [_const_spec(a.shape) for a in inputs[1:]]

    # advisory cost estimate
    flops_layer = (2 * S * D * 3 * D + 2 * HS * D * S + 2 * HS * S * D
                   + 2 * HS * D * D + 2 * S * D * FFN + 2 * S * FFN * D)
    flops = int(b_pad * (2 * F * C * D + NUM_LAYER * flops_layer + 2 * D))
    transcendentals = int(b_pad * (NUM_LAYER * (HS * S + S) + 1))
    bytes_accessed = int(sum(a.size * a.dtype.itemsize for a in inputs) + b_pad * 4)

    out = pl.pallas_call(
        clip_classifier_kernel,
        out_shape=jax.ShapeDtypeStruct((grid, 1, tb), jnp.float32),
        grid=(grid,),
        in_specs=in_specs,
        out_specs=pl.BlockSpec((1, 1, tb), lambda i: (i, 0, 0)),
        compiler_params=pltpu.CompilerParams(
            dimension_semantics=("parallel",),
            vmem_limit_bytes=_vmem_limit_bytes()),
        cost_estimate=pl.CostEstimate(
            flops=flops, transcendentals=transcendentals,
            bytes_accessed=bytes_accessed),
    )(*inputs)

    # padded rows are garbage by construction -> slice them off
    return out.reshape(b_pad, 1)[:B]


def init_params(key):
    D, C, L, F_FFN = HIDDEN, CLIP_DIM, NUM_LAYER, FFN
    keys = iter(jax.random.split(key, 32))

    def u(shape, s=0.05):
        return jax.random.uniform(next(keys), shape, jnp.float32, -s, s)

    b = 1.0 / math.sqrt(D)
    return {
        # CLIPFeatureProcessor ~ Linear(512 -> D)
        "fp_w": u((C, D)), "fp_b": u((1, D)),
        # CLSToken: uniform(-1/sqrt(D), 1/sqrt(D))
        "cls": jax.random.uniform(next(keys), (1, D), jnp.float32, -b, b),
        # per-layer MHA (fused QKV, stacked over layers)
        "wqkv": u((L, D, 3 * D)), "bqkv": u((L, 3 * D)),
        "wo": u((L, D, D)), "bo": u((L, D)),
        # attention_norm
        "anw": jnp.ones((L, D), jnp.float32), "anb": jnp.zeros((L, D), jnp.float32),
        # gate (Linear(D,1,bias=False)), linear (D->FFN), gate_out (FFN->D)
        "gate": u((L, D)),
        "linw": u((L, D, F_FFN)), "linb": u((L, F_FFN)),
        "gow": u((L, F_FFN, D)), "gob": u((L, D)),
        # gate_norm
        "gnw": jnp.ones((L, D), jnp.float32), "gnb": jnp.zeros((L, D), jnp.float32),
        # classifier: LayerNorm(D) + Linear(D, 1)
        "cnw": jnp.ones((1, D), jnp.float32), "cnb": jnp.zeros((1, D), jnp.float32),
        "clw": u((1, D)), "clb": u((1, 1)),
    }


def clip_classifier_reference(x, params):
    """Pure-JAX reference (same bf16 first projection as the kernel)."""
    D, H, S, F = HIDDEN, NUM_HEAD, SEQ, NUM_FEAT
    hd = HEAD_DIM
    hp = lax.Precision.HIGHEST
    B = x.shape[0]

    h0 = jnp.dot(x.reshape(B * F, CLIP_DIM).astype(jnp.bfloat16),
                 params["fp_w"].astype(jnp.bfloat16),
                 preferred_element_type=jnp.float32) + params["fp_b"]
    h0 = h0.reshape(B, F, D)
    cls = jnp.broadcast_to(params["cls"].reshape(1, 1, D), (B, 1, D))
    e = jnp.concatenate([cls, h0], axis=1)

    def ln(t, w, b):
        mu = t.mean(-1, keepdims=True)
        var = ((t - mu) ** 2).mean(-1, keepdims=True)
        return (t - mu) / jnp.sqrt(var + EPS) * w + b

    for l in range(NUM_LAYER):
        xl = e
        qkv = jnp.einsum("bsd,df->bsf", xl, params["wqkv"][l],
                         precision=hp) + params["bqkv"][l]
        q, k, v = qkv[..., :D], qkv[..., D:2 * D], qkv[..., 2 * D:]
        qh = q.reshape(B, S, H, hd).transpose(0, 2, 1, 3)
        kh = k.reshape(B, S, H, hd).transpose(0, 2, 1, 3)
        vh = v.reshape(B, S, H, hd).transpose(0, 2, 1, 3)
        sc = jnp.einsum("bhqe,bhke->bhqk", qh, kh, precision=hp) / math.sqrt(hd)
        p = jax.nn.softmax(sc, axis=-1)
        oh = jnp.einsum("bhqk,bhke->bhqe", p, vh, precision=hp)
        o = oh.transpose(0, 2, 1, 3).reshape(B, S, D)
        attn = jnp.einsum("bsd,de->bse", o, params["wo"][l],
                          precision=hp) + params["bo"][l]
        xl = ln(xl + attn, params["anw"][l], params["anb"][l])
        g = jax.nn.sigmoid(jnp.einsum("bsd,d->bs", xl, params["gate"][l],
                                      precision=hp))[..., None]
        hft = jnp.einsum("bsd,df->bsf", xl, params["linw"][l],
                         precision=hp) + params["linb"][l]
        gout = jnp.einsum("bsf,fd->bsd", jnp.maximum(g * hft, 0.0),
                          params["gow"][l], precision=hp) + params["gob"][l]
        e = ln(xl + gout, params["gnw"][l], params["gnb"][l])

    cls_out = ln(e[:, 0, :], params["cnw"][0], params["cnb"][0])
    return (jnp.dot(cls_out, params["clw"][0], precision=hp)[:, None]
            + params["clb"][0])


if __name__ == "__main__":
    key = jax.random.PRNGKey(0)
    k_x, k_p = jax.random.split(key)
    # x = per-feature CLIP embeddings (output of CLIPFeatureExtractor)
    x = jax.random.normal(k_x, (BATCH, NUM_FEAT, CLIP_DIM), jnp.float32)
    params = init_params(k_p)

    logits = clip_classifier_forward(x, params)
    jax.block_until_ready(logits)
    assert logits.shape == (BATCH, 1) and logits.dtype == jnp.float32
    assert bool(jnp.all(jnp.isfinite(logits)))

    # loose sanity check vs a pure-JAX reference (bf16 first matmul + EUP
    # approximate reciprocal are the only intentional numeric deviations)
    ref = clip_classifier_reference(x, params)
    err = float(jnp.max(jnp.abs(logits - ref)))
    assert err < 5e-2, f"kernel vs reference max abs err {err}"
    print("KERNEL_OK")
</pallas_src>

<mosaic_0001>
module attributes {stable_mosaic.version = 11 : i64} {
  func.func @clip_classifier_kernel(%arg0: i32, %arg1: memref<48x512xbf16, #tpu.memory_space<vmem>>, %arg2: memref<56x32xf32, #tpu.memory_space<vmem>>, %arg3: memref<512x32xbf16, #tpu.memory_space<vmem>>, %arg4: memref<1x32xf32, #tpu.memory_space<vmem>>, %arg5: memref<1x32xf32, #tpu.memory_space<vmem>>, %arg6: memref<2x32x96xf32, #tpu.memory_space<vmem>>, %arg7: memref<2x1x96xf32, #tpu.memory_space<vmem>>, %arg8: memref<2x32x32xf32, #tpu.memory_space<vmem>>, %arg9: memref<2x1x32xf32, #tpu.memory_space<vmem>>, %arg10: memref<2x1x32xf32, #tpu.memory_space<vmem>>, %arg11: memref<2x1x32xf32, #tpu.memory_space<vmem>>, %arg12: memref<2x1x32xf32, #tpu.memory_space<vmem>>, %arg13: memref<2x32x64xf32, #tpu.memory_space<vmem>>, %arg14: memref<2x1x64xf32, #tpu.memory_space<vmem>>, %arg15: memref<2x64x32xf32, #tpu.memory_space<vmem>>, %arg16: memref<2x1x32xf32, #tpu.memory_space<vmem>>, %arg17: memref<2x1x32xf32, #tpu.memory_space<vmem>>, %arg18: memref<2x1x32xf32, #tpu.memory_space<vmem>>, %arg19: memref<1x32xf32, #tpu.memory_space<vmem>>, %arg20: memref<1x32xf32, #tpu.memory_space<vmem>>, %arg21: memref<1x32xf32, #tpu.memory_space<vmem>>, %arg22: memref<1x1xf32, #tpu.memory_space<vmem>>, %arg23: memref<1x1x8xf32, #tpu.memory_space<vmem>>) attributes {dimension_semantics = [#tpu.dimension_semantics<parallel>], iteration_bounds = array<i64: 1>, scalar_prefetch = 0 : i64, scratch_operands = 0 : i64, tpu.core_type = #tpu.core_type<tc>, window_params = [{transform_indices = @transform_0, window_bounds = array<i64: 48, 512>}, {pipeline_mode = #tpu.pipeline_mode<synchronous>, transform_indices = @transform_1, window_bounds = array<i64: 56, 32>}, {pipeline_mode = #tpu.pipeline_mode<synchronous>, transform_indices = @transform_2, window_bounds = array<i64: 512, 32>}, {pipeline_mode = #tpu.pipeline_mode<synchronous>, transform_indices = @transform_3, window_bounds = array<i64: 1, 32>}, {pipeline_mode = #tpu.pipeline_mode<synchronous>, transform_indices = @transform_4, window_bounds = array<i64: 1, 32>}, {pipeline_mode = #tpu.pipeline_mode<synchronous>, transform_indices = @transform_5, window_bounds = array<i64: 2, 32, 96>}, {pipeline_mode = #tpu.pipeline_mode<synchronous>, transform_indices = @transform_6, window_bounds = array<i64: 2, 1, 96>}, {pipeline_mode = #tpu.pipeline_mode<synchronous>, transform_indices = @transform_7, window_bounds = array<i64: 2, 32, 32>}, {pipeline_mode = #tpu.pipeline_mode<synchronous>, transform_indices = @transform_8, window_bounds = array<i64: 2, 1, 32>}, {pipeline_mode = #tpu.pipeline_mode<synchronous>, transform_indices = @transform_9, window_bounds = array<i64: 2, 1, 32>}, {pipeline_mode = #tpu.pipeline_mode<synchronous>, transform_indices = @transform_10, window_bounds = array<i64: 2, 1, 32>}, {pipeline_mode = #tpu.pipeline_mode<synchronous>, transform_indices = @transform_11, window_bounds = array<i64: 2, 1, 32>}, {pipeline_mode = #tpu.pipeline_mode<synchronous>, transform_indices = @transform_12, window_bounds = array<i64: 2, 32, 64>}, {pipeline_mode = #tpu.pipeline_mode<synchronous>, transform_indices = @transform_13, window_bounds = array<i64: 2, 1, 64>}, {pipeline_mode = #tpu.pipeline_mode<synchronous>, transform_indices = @transform_14, window_bounds = array<i64: 2, 64, 32>}, {pipeline_mode = #tpu.pipeline_mode<synchronous>, transform_indices = @transform_15, window_bounds = array<i64: 2, 1, 32>}, {pipeline_mode = #tpu.pipeline_mode<synchronous>, transform_indices = @transform_16, window_bounds = array<i64: 2, 1, 32>}, {pipeline_mode = #tpu.pipeline_mode<synchronous>, transform_indices = @transform_17, window_bounds = array<i64: 2, 1, 32>}, {pipeline_mode = #tpu.pipeline_mode<synchronous>, transform_indices = @transform_18, window_bounds = array<i64: 1, 32>}, {pipeline_mode = #tpu.pipeline_mode<synchronous>, transform_indices = @transform_19, window_bounds = array<i64: 1, 32>}, {pipeline_mode = #tpu.pipeline_mode<synchronous>, transform_indices = @transform_20, window_bounds = array<i64: 1, 32>}, {pipeline_mode = #tpu.pipeline_mode<synchronous>, transform_indices = @transform_21, window_bounds = array<i64: 1, 1>}, {transform_indices = @transform_22, window_bounds = array<i64: 1, 1, 8>}]} {
    %c0 = arith.constant 0 : index
    %c0_0 = arith.constant 0 : index
    %0 = vector.load %arg1[%c0, %c0_0] : memref<48x512xbf16, #tpu.memory_space<vmem>>, vector<48x512xbf16>
    %c0_1 = arith.constant 0 : index
    %c0_2 = arith.constant 0 : index
    %1 = vector.load %arg3[%c0_1, %c0_2] : memref<512x32xbf16, #tpu.memory_space<vmem>>, vector<512x32xbf16>
    %cst = arith.constant dense<0.000000e+00> : vector<48x32xf32>
    %2 = tpu.matmul %0, %1, %cst {dimension_numbers = #tpu.dot_dimension_numbers<[1], [0], [0], [1], [0, 0, 1, 1], [], []>} : vector<48x512xbf16>, vector<512x32xbf16>, vector<48x32xf32> -> vector<48x32xf32>
    %c0_3 = arith.constant 0 : index
    %c0_4 = arith.constant 0 : index
    %3 = vector.load %arg4[%c0_3, %c0_4] : memref<1x32xf32, #tpu.memory_space<vmem>>, vector<1x32xf32>
    %4 = vector.broadcast %3 : vector<1x32xf32> to vector<48x32xf32>
    %5 = arith.addf %2, %4 : vector<48x32xf32>
    %6 = vector.shape_cast %5 : vector<48x32xf32> to vector<8x6x32xf32>
    %c0_5 = arith.constant 0 : index
    %c0_6 = arith.constant 0 : index
    %7 = vector.load %arg5[%c0_5, %c0_6] : memref<1x32xf32, #tpu.memory_space<vmem>>, vector<1x32xf32>
    %8 = vector.shape_cast %7 : vector<1x32xf32> to vector<1x1x32xf32>
    %9 = vector.shape_cast %8 : vector<1x1x32xf32> to vector<1x1x32xf32>
    %10 = vector.broadcast %9 : vector<1x1x32xf32> to vector<8x1x32xf32>
    %11 = tpu.concatenate %10, %6 in 1 : vector<8x1x32xf32>, vector<8x6x32xf32> -> vector<8x7x32xf32>
    %c0_7 = arith.constant 0 : index
    %c0_8 = arith.constant 0 : index
    %12 = vector.load %arg2[%c0_7, %c0_8] : memref<56x32xf32, #tpu.memory_space<vmem>>, vector<56x32xf32>
    %cst_9 = arith.constant 5.000000e-01 : f32
    %13 = vector.broadcast %cst_9 : f32 to vector<56x32xf32>
    %14 = arith.mulf %12, %13 : vector<56x32xf32>
    %c0_i32 = arith.constant 0 : i32
    %c2_i32 = arith.constant 2 : i32
    %15 = arith.addi %c0_i32, %c2_i32 : i32
    %c1_i32 = arith.constant 1 : i32
    %16 = scf.for %arg24 = %c0_i32 to %15 step %c1_i32 iter_args(%arg25 = %11) -> (vector<8x7x32xf32>)  : i32 {
      %54 = arith.index_cast %arg24 : i32 to index
      %c0_28 = arith.constant 0 : index
      %c0_29 = arith.constant 0 : index
      %55 = vector.load %arg6[%54, %c0_28, %c0_29] : memref<2x32x96xf32, #tpu.memory_space<vmem>>, vector<1x32x96xf32>
      %56 = vector.shape_cast %55 : vector<1x32x96xf32> to vector<32x96xf32>
      %57 = arith.index_cast %arg24 : i32 to index
      %c0_30 = arith.constant 0 : index
      %c0_31 = arith.constant 0 : index
      %58 = vector.load %arg7[%57, %c0_30, %c0_31] : memref<2x1x96xf32, #tpu.memory_space<vmem>>, vector<1x1x96xf32>
      %59 = vector.shape_cast %58 : vector<1x1x96xf32> to vector<1x96xf32>
      %60 = vector.shape_cast %arg25 : vector<8x7x32xf32> to vector<56x32xf32>
      %cst_32 = arith.constant dense<0.000000e+00> : vector<56x96xf32>
      %61 = tpu.matmul %60, %56, %cst_32 {dimension_numbers = #tpu.dot_dimension_numbers<[1], [0], [0], [1], [0, 0, 1, 1], [], []>} : vector<56x32xf32>, vector<32x96xf32>, vector<56x96xf32> -> vector<56x96xf32>
      %62 = vector.broadcast %59 : vector<1x96xf32> to vector<56x96xf32>
      %63 = arith.addf %61, %62 : vector<56x96xf32>
      %64 = vector.shape_cast %63 : vector<56x96xf32> to vector<8x7x96xf32>
      %65 = vector.extract_strided_slice %64 {offsets = [0, 0, 0], sizes = [8, 7, 32], strides = [1, 1, 1]} : vector<8x7x96xf32> to vector<8x7x32xf32>
      %66 = vector.extract_strided_slice %64 {offsets = [0, 0, 32], sizes = [8, 7, 32], strides = [1, 1, 1]} : vector<8x7x96xf32> to vector<8x7x32xf32>
      %67 = vector.extract_strided_slice %64 {offsets = [0, 0, 64], sizes = [8, 7, 32], strides = [1, 1, 1]} : vector<8x7x96xf32> to vector<8x7x32xf32>
      %68 = vector.shape_cast %65 : vector<8x7x32xf32> to vector<8x7x1x32xf32>
      %69 = vector.shape_cast %68 : vector<8x7x1x32xf32> to vector<8x7x1x32xf32>
      %70 = vector.broadcast %69 : vector<8x7x1x32xf32> to vector<8x7x8x32xf32>
      %71 = vector.shape_cast %70 : vector<8x7x8x32xf32> to vector<8x56x32xf32>
      %72 = vector.shape_cast %14 : vector<56x32xf32> to vector<1x56x32xf32>
      %73 = vector.broadcast %72 : vector<1x56x32xf32> to vector<8x56x32xf32>
      %74 = arith.mulf %71, %73 : vector<8x56x32xf32>
      "tpu.trace_start"() <{level = 10 : i32, message = "bqd,bkd->bqk"}> : () -> ()
      %cst_33 = arith.constant dense<0.000000e+00> : vector<8x56x7xf32>
      %75 = tpu.matmul %74, %66, %cst_33 {dimension_numbers = #tpu.dot_dimension_numbers<[2], [2], [1], [1], [0, 0, 0, 1, 1, 1], [0], [0]>} : vector<8x56x32xf32>, vector<8x7x32xf32>, vector<8x56x7xf32> -> vector<8x56x7xf32>
      "tpu.trace_stop"() : () -> ()
      %cst_34 = arith.constant dense<0xFF800000> : vector<8x56xf32>
      %76 = vector.multi_reduction <maximumf>, %75, %cst_34 [2] : vector<8x56x7xf32> to vector<8x56xf32>
      %77 = vector.shape_cast %76 : vector<8x56xf32> to vector<8x56x1xf32>
      %78 = vector.broadcast %77 : vector<8x56x1xf32> to vector<8x56x7xf32>
      %79 = arith.subf %75, %78 : vector<8x56x7xf32>
      %80 = math.exp %79 : vector<8x56x7xf32>
      %cst_35 = arith.constant dense<0.000000e+00> : vector<8x56xf32>
      %81 = vector.multi_reduction <add>, %80, %cst_35 [2] : vector<8x56x7xf32> to vector<8x56xf32>
      %82 = vector.shape_cast %81 : vector<8x56xf32> to vector<8x56x1xf32>
      %83 = tpu.reciprocal %82 {approx = true} : vector<8x56x1xf32> -> vector<8x56x1xf32>
      %84 = vector.broadcast %83 : vector<8x56x1xf32> to vector<8x56x7xf32>
      %85 = arith.mulf %80, %84 : vector<8x56x7xf32>
      "tpu.trace_start"() <{level = 10 : i32, message = "bqk,bkd->bqd"}> : () -> ()
      %cst_36 = arith.constant dense<0.000000e+00> : vector<8x56x32xf32>
      %86 = tpu.matmul %85, %67, %cst_36 {dimension_numbers = #tpu.dot_dimension_numbers<[2], [1], [1], [2], [0, 0, 0, 1, 1, 2], [0], [0]>} : vector<8x56x7xf32>, vector<8x7x32xf32>, vector<8x56x32xf32> -> vector<8x56x32xf32>
      "tpu.trace_stop"() : () -> ()
      %87 = vector.shape_cast %12 : vector<56x32xf32> to vector<1x56x32xf32>
      %88 = vector.broadcast %87 : vector<1x56x32xf32> to vector<8x56x32xf32>
      %89 = arith.mulf %86, %88 : vector<8x56x32xf32>
      %90 = arith.index_cast %arg24 : i32 to index
      %c0_37 = arith.constant 0 : index
      %c0_38 = arith.constant 0 : index
      %91 = vector.load %arg8[%90, %c0_37, %c0_38] : memref<2x32x32xf32, #tpu.memory_space<vmem>>, vector<1x32x32xf32>
      %92 = vector.shape_cast %91 : vector<1x32x32xf32> to vector<32x32xf32>
      %93 = vector.shape_cast %89 : vector<8x56x32xf32> to vector<448x32xf32>
      %cst_39 = arith.constant dense<0.000000e+00> : vector<448x32xf32>
      %94 = tpu.matmul %93, %92, %cst_39 {dimension_numbers = #tpu.dot_dimension_numbers<[1], [0], [0], [1], [0, 0, 1, 1], [], []>} : vector<448x32xf32>, vector<32x32xf32>, vector<448x32xf32> -> vector<448x32xf32>
      %95 = vector.shape_cast %94 : vector<448x32xf32> to vector<8x56x32xf32>
      %96 = vector.shape_cast %95 : vector<8x56x32xf32> to vector<8x7x8x32xf32>
      %cst_40 = arith.constant dense<0.000000e+00> : vector<8x7x32xf32>
      %97 = vector.multi_reduction <add>, %96, %cst_40 [2] : vector<8x7x8x32xf32> to vector<8x7x32xf32>
      %98 = arith.index_cast %arg24 : i32 to index
      %c0_41 = arith.constant 0 : index
      %c0_42 = arith.constant 0 : index
      %99 = vector.load %arg9[%98, %c0_41, %c0_42] : memref<2x1x32xf32, #tpu.memory_space<vmem>>, vector<1x1x32xf32>
      %100 = vector.shape_cast %99 : vector<1x1x32xf32> to vector<1x32xf32>
      %101 = vector.shape_cast %100 : vector<1x32xf32> to vector<1x1x32xf32>
      %102 = vector.broadcast %101 : vector<1x1x32xf32> to vector<8x7x32xf32>
      %103 = arith.addf %97, %102 : vector<8x7x32xf32>
      %104 = arith.addf %arg25, %103 : vector<8x7x32xf32>
      %105 = arith.index_cast %arg24 : i32 to index
      %c0_43 = arith.constant 0 : index
      %c0_44 = arith.constant 0 : index
      %106 = vector.load %arg10[%105, %c0_43, %c0_44] : memref<2x1x32xf32, #tpu.memory_space<vmem>>, vector<1x1x32xf32>
      %107 = vector.shape_cast %106 : vector<1x1x32xf32> to vector<1x32xf32>
      %108 = arith.index_cast %arg24 : i32 to index
      %c0_45 = arith.constant 0 : index
      %c0_46 = arith.constant 0 : index
      %109 = vector.load %arg11[%108, %c0_45, %c0_46] : memref<2x1x32xf32, #tpu.memory_space<vmem>>, vector<1x1x32xf32>
      %110 = vector.shape_cast %109 : vector<1x1x32xf32> to vector<1x32xf32>
      %cst_47 = arith.constant dense<0.000000e+00> : vector<8x7xf32>
      %111 = vector.multi_reduction <add>, %104, %cst_47 [2] : vector<8x7x32xf32> to vector<8x7xf32>
      %112 = vector.shape_cast %111 : vector<8x7xf32> to vector<8x7x1xf32>
      %cst_48 = arith.constant 3.200000e+01 : f32
      %113 = vector.broadcast %cst_48 : f32 to vector<8x7x1xf32>
      %114 = arith.divf %112, %113 : vector<8x7x1xf32>
      %115 = vector.broadcast %114 : vector<8x7x1xf32> to vector<8x7x32xf32>
      %116 = arith.subf %104, %115 : vector<8x7x32xf32>
      %117 = arith.mulf %116, %116 : vector<8x7x32xf32>
      %cst_49 = arith.constant dense<0.000000e+00> : vector<8x7xf32>
      %118 = vector.multi_reduction <add>, %117, %cst_49 [2] : vector<8x7x32xf32> to vector<8x7xf32>
      %119 = vector.shape_cast %118 : vector<8x7xf32> to vector<8x7x1xf32>
      %cst_50 = arith.constant 3.200000e+01 : f32
      %120 = vector.broadcast %cst_50 : f32 to vector<8x7x1xf32>
      %121 = arith.divf %119, %120 : vector<8x7x1xf32>
      %122 = vector.broadcast %114 : vector<8x7x1xf32> to vector<8x7x32xf32>
      %123 = arith.subf %104, %122 : vector<8x7x32xf32>
      %cst_51 = arith.constant 9.99999974E-6 : f32
      %124 = vector.broadcast %cst_51 : f32 to vector<8x7x1xf32>
      %125 = arith.addf %121, %124 : vector<8x7x1xf32>
      %126 = math.rsqrt %125 : vector<8x7x1xf32>
      %127 = vector.broadcast %126 : vector<8x7x1xf32> to vector<8x7x32xf32>
      %128 = arith.mulf %123, %127 : vector<8x7x32xf32>
      %129 = vector.shape_cast %107 : vector<1x32xf32> to vector<1x1x32xf32>
      %130 = vector.broadcast %129 : vector<1x1x32xf32> to vector<8x7x32xf32>
      %131 = arith.mulf %128, %130 : vector<8x7x32xf32>
      %132 = vector.shape_cast %110 : vector<1x32xf32> to vector<1x1x32xf32>
      %133 = vector.broadcast %132 : vector<1x1x32xf32> to vector<8x7x32xf32>
      %134 = arith.addf %131, %133 : vector<8x7x32xf32>
      %135 = arith.index_cast %arg24 : i32 to index
      %c0_52 = arith.constant 0 : index
      %c0_53 = arith.constant 0 : index
      %136 = vector.load %arg12[%135, %c0_52, %c0_53] : memref<2x1x32xf32, #tpu.memory_space<vmem>>, vector<1x1x32xf32>
      %137 = vector.shape_cast %136 : vector<1x1x32xf32> to vector<1x32xf32>
      %138 = vector.shape_cast %137 : vector<1x32xf32> to vector<1x1x32xf32>
      %139 = vector.broadcast %138 : vector<1x1x32xf32> to vector<8x7x32xf32>
      %140 = arith.mulf %134, %139 : vector<8x7x32xf32>
      %cst_54 = arith.constant dense<0.000000e+00> : vector<8x7xf32>
      %141 = vector.multi_reduction <add>, %140, %cst_54 [2] : vector<8x7x32xf32> to vector<8x7xf32>
      %142 = vector.shape_cast %141 : vector<8x7xf32> to vector<8x7x1xf32>
      %143 = arith.negf %142 : vector<8x7x1xf32>
      %144 = math.exp %143 : vector<8x7x1xf32>
      %cst_55 = arith.constant 1.000000e+00 : f32
      %145 = vector.broadcast %cst_55 : f32 to vector<8x7x1xf32>
      %146 = arith.addf %145, %144 : vector<8x7x1xf32>
      %147 = arith.divf %145, %146 : vector<8x7x1xf32>
      %148 = arith.index_cast %arg24 : i32 to index
      %c0_56 = arith.constant 0 : index
      %c0_57 = arith.constant 0 : index
      %149 = vector.load %arg13[%148, %c0_56, %c0_57] : memref<2x32x64xf32, #tpu.memory_space<vmem>>, vector<1x32x64xf32>
      %150 = vector.shape_cast %149 : vector<1x32x64xf32> to vector<32x64xf32>
      %151 = arith.index_cast %arg24 : i32 to index
      %c0_58 = arith.constant 0 : index
      %c0_59 = arith.constant 0 : index
      %152 = vector.load %arg14[%151, %c0_58, %c0_59] : memref<2x1x64xf32, #tpu.memory_space<vmem>>, vector<1x1x64xf32>
      %153 = vector.shape_cast %152 : vector<1x1x64xf32> to vector<1x64xf32>
      %154 = vector.shape_cast %134 : vector<8x7x32xf32> to vector<56x32xf32>
      %cst_60 = arith.constant dense<0.000000e+00> : vector<56x64xf32>
      %155 = tpu.matmul %154, %150, %cst_60 {dimension_numbers = #tpu.dot_dimension_numbers<[1], [0], [0], [1], [0, 0, 1, 1], [], []>} : vector<56x32xf32>, vector<32x64xf32>, vector<56x64xf32> -> vector<56x64xf32>
      %156 = vector.broadcast %153 : vector<1x64xf32> to vector<56x64xf32>
      %157 = arith.addf %155, %156 : vector<56x64xf32>
      %158 = vector.shape_cast %157 : vector<56x64xf32> to vector<8x7x64xf32>
      %159 = vector.broadcast %147 : vector<8x7x1xf32> to vector<8x7x64xf32>
      %160 = arith.mulf %159, %158 : vector<8x7x64xf32>
      %cst_61 = arith.constant 0.000000e+00 : f32
      %161 = vector.broadcast %cst_61 : f32 to vector<8x7x64xf32>
      %162 = arith.maximumf %160, %161 : vector<8x7x64xf32>
      %163 = arith.index_cast %arg24 : i32 to index
      %c0_62 = arith.constant 0 : index
      %c0_63 = arith.constant 0 : index
      %164 = vector.load %arg15[%163, %c0_62, %c0_63] : memref<2x64x32xf32, #tpu.memory_space<vmem>>, vector<1x64x32xf32>
      %165 = vector.shape_cast %164 : vector<1x64x32xf32> to vector<64x32xf32>
      %166 = arith.index_cast %arg24 : i32 to index
      %c0_64 = arith.constant 0 : index
      %c0_65 = arith.constant 0 : index
      %167 = vector.load %arg16[%166, %c0_64, %c0_65] : memref<2x1x32xf32, #tpu.memory_space<vmem>>, vector<1x1x32xf32>
      %168 = vector.shape_cast %167 : vector<1x1x32xf32> to vector<1x32xf32>
      %169 = vector.shape_cast %162 : vector<8x7x64xf32> to vector<56x64xf32>
      %cst_66 = arith.constant dense<0.000000e+00> : vector<56x32xf32>
      %170 = tpu.matmul %169, %165, %cst_66 {dimension_numbers = #tpu.dot_dimension_numbers<[1], [0], [0], [1], [0, 0, 1, 1], [], []>} : vector<56x64xf32>, vector<64x32xf32>, vector<56x32xf32> -> vector<56x32xf32>
      %171 = vector.broadcast %168 : vector<1x32xf32> to vector<56x32xf32>
      %172 = arith.addf %170, %171 : vector<56x32xf32>
      %173 = vector.shape_cast %172 : vector<56x32xf32> to vector<8x7x32xf32>
      %174 = arith.addf %134, %173 : vector<8x7x32xf32>
      %175 = arith.index_cast %arg24 : i32 to index
      %c0_67 = arith.constant 0 : index
      %c0_68 = arith.constant 0 : index
      %176 = vector.load %arg17[%175, %c0_67, %c0_68] : memref<2x1x32xf32, #tpu.memory_space<vmem>>, vector<1x1x32xf32>
      %177 = vector.shape_cast %176 : vector<1x1x32xf32> to vector<1x32xf32>
      %178 = arith.index_cast %arg24 : i32 to index
      %c0_69 = arith.constant 0 : index
      %c0_70 = arith.constant 0 : index
      %179 = vector.load %arg18[%178, %c0_69, %c0_70] : memref<2x1x32xf32, #tpu.memory_space<vmem>>, vector<1x1x32xf32>
      %180 = vector.shape_cast %179 : vector<1x1x32xf32> to vector<1x32xf32>
      %cst_71 = arith.constant dense<0.000000e+00> : vector<8x7xf32>
      %181 = vector.multi_reduction <add>, %174, %cst_71 [2] : vector<8x7x32xf32> to vector<8x7xf32>
      %182 = vector.shape_cast %181 : vector<8x7xf32> to vector<8x7x1xf32>
      %cst_72 = arith.constant 3.200000e+01 : f32
      %183 = vector.broadcast %cst_72 : f32 to vector<8x7x1xf32>
      %184 = arith.divf %182, %183 : vector<8x7x1xf32>
      %185 = vector.broadcast %184 : vector<8x7x1xf32> to vector<8x7x32xf32>
      %186 = arith.subf %174, %185 : vector<8x7x32xf32>
      %187 = arith.mulf %186, %186 : vector<8x7x32xf32>
      %cst_73 = arith.constant dense<0.000000e+00> : vector<8x7xf32>
      %188 = vector.multi_reduction <add>, %187, %cst_73 [2] : vector<8x7x32xf32> to vector<8x7xf32>
      %189 = vector.shape_cast %188 : vector<8x7xf32> to vector<8x7x1xf32>
      %cst_74 = arith.constant 3.200000e+01 : f32
      %190 = vector.broadcast %cst_74 : f32 to vector<8x7x1xf32>
      %191 = arith.divf %189, %190 : vector<8x7x1xf32>
      %192 = vector.broadcast %184 : vector<8x7x1xf32> to vector<8x7x32xf32>
      %193 = arith.subf %174, %192 : vector<8x7x32xf32>
      %cst_75 = arith.constant 9.99999974E-6 : f32
      %194 = vector.broadcast %cst_75 : f32 to vector<8x7x1xf32>
      %195 = arith.addf %191, %194 : vector<8x7x1xf32>
      %196 = math.rsqrt %195 : vector<8x7x1xf32>
      %197 = vector.broadcast %196 : vector<8x7x1xf32> to vector<8x7x32xf32>
      %198 = arith.mulf %193, %197 : vector<8x7x32xf32>
      %199 = vector.shape_cast %177 : vector<1x32xf32> to vector<1x1x32xf32>
      %200 = vector.broadcast %199 : vector<1x1x32xf32> to vector<8x7x32xf32>
      %201 = arith.mulf %198, %200 : vector<8x7x32xf32>
      %202 = vector.shape_cast %180 : vector<1x32xf32> to vector<1x1x32xf32>
      %203 = vector.broadcast %202 : vector<1x1x32xf32> to vector<8x7x32xf32>
      %204 = arith.addf %201, %203 : vector<8x7x32xf32>
      scf.yield %204 : vector<8x7x32xf32>
    }
    %c2_i32_10 = arith.constant 2 : i32
    %17 = vector.extract_strided_slice %16 {offsets = [0, 0, 0], sizes = [8, 1, 32], strides = [1, 1, 1]} : vector<8x7x32xf32> to vector<8x1x32xf32>
    %18 = vector.shape_cast %17 : vector<8x1x32xf32> to vector<8x32xf32>
    %c0_11 = arith.constant 0 : index
    %c0_12 = arith.constant 0 : index
    %19 = vector.load %arg19[%c0_11, %c0_12] : memref<1x32xf32, #tpu.memory_space<vmem>>, vector<1x32xf32>
    %c0_13 = arith.constant 0 : index
    %c0_14 = arith.constant 0 : index
    %20 = vector.load %arg20[%c0_13, %c0_14] : memref<1x32xf32, #tpu.memory_space<vmem>>, vector<1x32xf32>
    %cst_15 = arith.constant dense<0.000000e+00> : vector<8xf32>
    %21 = vector.multi_reduction <add>, %18, %cst_15 [1] : vector<8x32xf32> to vector<8xf32>
    %22 = vector.shape_cast %21 : vector<8xf32> to vector<8x1xf32>
    %cst_16 = arith.constant 3.200000e+01 : f32
    %23 = vector.broadcast %cst_16 : f32 to vector<8x1xf32>
    %24 = arith.divf %22, %23 : vector<8x1xf32>
    %25 = vector.broadcast %24 : vector<8x1xf32> to vector<8x32xf32>
    %26 = arith.subf %18, %25 : vector<8x32xf32>
    %27 = arith.mulf %26, %26 : vector<8x32xf32>
    %cst_17 = arith.constant dense<0.000000e+00> : vector<8xf32>
    %28 = vector.multi_reduction <add>, %27, %cst_17 [1] : vector<8x32xf32> to vector<8xf32>
    %29 = vector.shape_cast %28 : vector<8xf32> to vector<8x1xf32>
    %cst_18 = arith.constant 3.200000e+01 : f32
    %30 = vector.broadcast %cst_18 : f32 to vector<8x1xf32>
    %31 = arith.divf %29, %30 : vector<8x1xf32>
    %32 = vector.broadcast %24 : vector<8x1xf32> to vector<8x32xf32>
    %33 = arith.subf %18, %32 : vector<8x32xf32>
    %cst_19 = arith.constant 9.99999974E-6 : f32
    %34 = vector.broadcast %cst_19 : f32 to vector<8x1xf32>
    %35 = arith.addf %31, %34 : vector<8x1xf32>
    %36 = math.rsqrt %35 : vector<8x1xf32>
    %37 = vector.broadcast %36 : vector<8x1xf32> to vector<8x32xf32>
    %38 = arith.mulf %33, %37 : vector<8x32xf32>
    %39 = vector.broadcast %19 : vector<1x32xf32> to vector<8x32xf32>
    %40 = arith.mulf %38, %39 : vector<8x32xf32>
    %41 = vector.broadcast %20 : vector<1x32xf32> to vector<8x32xf32>
    %42 = arith.addf %40, %41 : vector<8x32xf32>
    %c0_20 = arith.constant 0 : index
    %c0_21 = arith.constant 0 : index
    %43 = vector.load %arg21[%c0_20, %c0_21] : memref<1x32xf32, #tpu.memory_space<vmem>>, vector<1x32xf32>
    %44 = vector.broadcast %43 : vector<1x32xf32> to vector<8x32xf32>
    %45 = arith.mulf %42, %44 : vector<8x32xf32>
    %cst_22 = arith.constant dense<0.000000e+00> : vector<8xf32>
    %46 = vector.multi_reduction <add>, %45, %cst_22 [1] : vector<8x32xf32> to vector<8xf32>
    %47 = vector.shape_cast %46 : vector<8xf32> to vector<8x1xf32>
    %c0_23 = arith.constant 0 : index
    %c0_24 = arith.constant 0 : index
    %48 = vector.load %arg22[%c0_23, %c0_24] : memref<1x1xf32, #tpu.memory_space<vmem>>, vector<1x1xf32>
    %49 = vector.broadcast %48 : vector<1x1xf32> to vector<8x1xf32>
    %50 = arith.addf %47, %49 : vector<8x1xf32>
    %51 = tpu.transpose %50, [1, 0] : vector<8x1xf32> -> vector<1x8xf32>
    %52 = vector.shape_cast %51 : vector<1x8xf32> to vector<1x1x8xf32>
    %c0_25 = arith.constant 0 : index
    %c0_26 = arith.constant 0 : index
    %c0_27 = arith.constant 0 : index
    %53 = vector.load %arg23[%c0_25, %c0_26, %c0_27] : memref<1x1x8xf32, #tpu.memory_space<vmem>>, vector<1x1x8xf32>
    tpu.vector_store %arg23[%c0_25, %c0_26, %c0_27], %52 {strides = array<i32>} : memref<1x1x8xf32, #tpu.memory_space<vmem>>, vector<1x1x8xf32>,
    return
  }
  func.func @transform_0(%arg0: i32) -> (i32, i32) {
    %c0_i32 = arith.constant 0 : i32
    %c0_i32_0 = arith.constant 0 : i32
    return %arg0, %c0_i32 : i32, i32
  }
  func.func @transform_1(%arg0: i32) -> (i32, i32) {
    %c0_i32 = arith.constant 0 : i32
    %c0_i32_0 = arith.constant 0 : i32
    %c0_i32_1 = arith.constant 0 : i32
    return %c0_i32, %c0_i32_0 : i32, i32
  }
  func.func @transform_2(%arg0: i32) -> (i32, i32) {
    %c0_i32 = arith.constant 0 : i32
    %c0_i32_0 = arith.constant 0 : i32
    %c0_i32_1 = arith.constant 0 : i32
    return %c0_i32, %c0_i32_0 : i32, i32
  }
  func.func @transform_3(%arg0: i32) -> (i32, i32) {
    %c0_i32 = arith.constant 0 : i32
    %c0_i32_0 = arith.constant 0 : i32
    %c0_i32_1 = arith.constant 0 : i32
    return %c0_i32, %c0_i32_0 : i32, i32
  }
  func.func @transform_4(%arg0: i32) -> (i32, i32) {
    %c0_i32 = arith.constant 0 : i32
    %c0_i32_0 = arith.constant 0 : i32
    %c0_i32_1 = arith.constant 0 : i32
    return %c0_i32, %c0_i32_0 : i32, i32
  }
  func.func @transform_5(%arg0: i32) -> (i32, i32, i32) {
    %c0_i32 = arith.constant 0 : i32
    %c0_i32_0 = arith.constant 0 : i32
    %c0_i32_1 = arith.constant 0 : i32
    %c0_i32_2 = arith.constant 0 : i32
    return %c0_i32, %c0_i32_0, %c0_i32_1 : i32, i32, i32
  }
  func.func @transform_6(%arg0: i32) -> (i32, i32, i32) {
    %c0_i32 = arith.constant 0 : i32
    %c0_i32_0 = arith.constant 0 : i32
    %c0_i32_1 = arith.constant 0 : i32
    %c0_i32_2 = arith.constant 0 : i32
    return %c0_i32, %c0_i32_0, %c0_i32_1 : i32, i32, i32
  }
  func.func @transform_7(%arg0: i32) -> (i32, i32, i32) {
    %c0_i32 = arith.constant 0 : i32
    %c0_i32_0 = arith.constant 0 : i32
    %c0_i32_1 = arith.constant 0 : i32
    %c0_i32_2 = arith.constant 0 : i32
    return %c0_i32, %c0_i32_0, %c0_i32_1 : i32, i32, i32
  }
  func.func @transform_8(%arg0: i32) -> (i32, i32, i32) {
    %c0_i32 = arith.constant 0 : i32
    %c0_i32_0 = arith.constant 0 : i32
    %c0_i32_1 = arith.constant 0 : i32
    %c0_i32_2 = arith.constant 0 : i32
    return %c0_i32, %c0_i32_0, %c0_i32_1 : i32, i32, i32
  }
  func.func @transform_9(%arg0: i32) -> (i32, i32, i32) {
    %c0_i32 = arith.constant 0 : i32
    %c0_i32_0 = arith.constant 0 : i32
    %c0_i32_1 = arith.constant 0 : i32
    %c0_i32_2 = arith.constant 0 : i32
    return %c0_i32, %c0_i32_0, %c0_i32_1 : i32, i32, i32
  }
  func.func @transform_10(%arg0: i32) -> (i32, i32, i32) {
    %c0_i32 = arith.constant 0 : i32
    %c0_i32_0 = arith.constant 0 : i32
    %c0_i32_1 = arith.constant 0 : i32
    %c0_i32_2 = arith.constant 0 : i32
    return %c0_i32, %c0_i32_0, %c0_i32_1 : i32, i32, i32
  }
  func.func @transform_11(%arg0: i32) -> (i32, i32, i32) {
    %c0_i32 = arith.constant 0 : i32
    %c0_i32_0 = arith.constant 0 : i32
    %c0_i32_1 = arith.constant 0 : i32
    %c0_i32_2 = arith.constant 0 : i32
    return %c0_i32, %c0_i32_0, %c0_i32_1 : i32, i32, i32
  }
  func.func @transform_12(%arg0: i32) -> (i32, i32, i32) {
    %c0_i32 = arith.constant 0 : i32
    %c0_i32_0 = arith.constant 0 : i32
    %c0_i32_1 = arith.constant 0 : i32
    %c0_i32_2 = arith.constant 0 : i32
    return %c0_i32, %c0_i32_0, %c0_i32_1 : i32, i32, i32
  }
  func.func @transform_13(%arg0: i32) -> (i32, i32, i32) {
    %c0_i32 = arith.constant 0 : i32
    %c0_i32_0 = arith.constant 0 : i32
    %c0_i32_1 = arith.constant 0 : i32
    %c0_i32_2 = arith.constant 0 : i32
    return %c0_i32, %c0_i32_0, %c0_i32_1 : i32, i32, i32
  }
  func.func @transform_14(%arg0: i32) -> (i32, i32, i32) {
    %c0_i32 = arith.constant 0 : i32
    %c0_i32_0 = arith.constant 0 : i32
    %c0_i32_1 = arith.constant 0 : i32
    %c0_i32_2 = arith.constant 0 : i32
    return %c0_i32, %c0_i32_0, %c0_i32_1 : i32, i32, i32
  }
  func.func @transform_15(%arg0: i32) -> (i32, i32, i32) {
    %c0_i32 = arith.constant 0 : i32
    %c0_i32_0 = arith.constant 0 : i32
    %c0_i32_1 = arith.constant 0 : i32
    %c0_i32_2 = arith.constant 0 : i32
    return %c0_i32, %c0_i32_0, %c0_i32_1 : i32, i32, i32
  }
  func.func @transform_16(%arg0: i32) -> (i32, i32, i32) {
    %c0_i32 = arith.constant 0 : i32
    %c0_i32_0 = arith.constant 0 : i32
    %c0_i32_1 = arith.constant 0 : i32
    %c0_i32_2 = arith.constant 0 : i32
    return %c0_i32, %c0_i32_0, %c0_i32_1 : i32, i32, i32
  }
  func.func @transform_17(%arg0: i32) -> (i32, i32, i32) {
    %c0_i32 = arith.constant 0 : i32
    %c0_i32_0 = arith.constant 0 : i32
    %c0_i32_1 = arith.constant 0 : i32
    %c0_i32_2 = arith.constant 0 : i32
    return %c0_i32, %c0_i32_0, %c0_i32_1 : i32, i32, i32
  }
  func.func @transform_18(%arg0: i32) -> (i32, i32) {
    %c0_i32 = arith.constant 0 : i32
    %c0_i32_0 = arith.constant 0 : i32
    %c0_i32_1 = arith.constant 0 : i32
    return %c0_i32, %c0_i32_0 : i32, i32
  }
  func.func @transform_19(%arg0: i32) -> (i32, i32) {
    %c0_i32 = arith.constant 0 : i32
    %c0_i32_0 = arith.constant 0 : i32
    %c0_i32_1 = arith.constant 0 : i32
    return %c0_i32, %c0_i32_0 : i32, i32
  }
  func.func @transform_20(%arg0: i32) -> (i32, i32) {
    %c0_i32 = arith.constant 0 : i32
    %c0_i32_0 = arith.constant 0 : i32
    %c0_i32_1 = arith.constant 0 : i32
    return %c0_i32, %c0_i32_0 : i32, i32
  }
  func.func @transform_21(%arg0: i32) -> (i32, i32) {
    %c0_i32 = arith.constant 0 : i32
    %c0_i32_0 = arith.constant 0 : i32
    %c0_i32_1 = arith.constant 0 : i32
    return %c0_i32, %c0_i32_0 : i32, i32
  }
  func.func @transform_22(%arg0: i32) -> (i32, i32, i32) {
    %c0_i32 = arith.constant 0 : i32
    %c0_i32_0 = arith.constant 0 : i32
    %c0_i32_1 = arith.constant 0 : i32
    return %arg0, %c0_i32, %c0_i32_0 : i32, i32, i32
  }
}

</mosaic_0001>

<llo_original>
// kernel: tpu_custom_call.1
$region0: #{tpu_custom_call.1}
  #allocation0 [shape = 'u32[]', space=smem, size = 0x4, offset = 0x4, fixed_abs, tag = 'smem constant byte address 0x4 - core index']
  #allocation1 [shape = 'u32[144,128]{1,0:T(1,128)}', space=vmem, size = 0x12000, scoped, tag = 'internal scratch']
  #allocation2 [shape = 'f32[1,1]{1,0:T(1,128)S(1)}', space=vmem, size = 0x200, scoped, tag = 'scoped memory for tpu_custom_call.1']
  %s0 = inlined_call_operand.vmem [shape: bf16[48,512], index: 0, kind: input, shape index: {}]
  %s1 = inlined_call_operand.vmem [shape: f32[56,32], index: 1, kind: input, shape index: {}]
  %s2 = inlined_call_operand.vmem [shape: bf16[512,32], index: 2, kind: input, shape index: {}]
  %s3 = inlined_call_operand.vmem [shape: f32[1,32], index: 3, kind: input, shape index: {}]
  %s4 = inlined_call_operand.vmem [shape: f32[1,32], index: 4, kind: input, shape index: {}]
  %s5 = inlined_call_operand.vmem [shape: f32[2,32,96], index: 5, kind: input, shape index: {}]
  %s6 = inlined_call_operand.vmem [shape: f32[2,1,96], index: 6, kind: input, shape index: {}]
  %s7 = inlined_call_operand.vmem [shape: f32[2,32,32], index: 7, kind: input, shape index: {}]
  %s8 = inlined_call_operand.vmem [shape: f32[2,1,32], index: 8, kind: input, shape index: {}]
  %s9 = inlined_call_operand.vmem [shape: f32[2,1,32], index: 9, kind: input, shape index: {}]
  %s10 = inlined_call_operand.vmem [shape: f32[2,1,32], index: 10, kind: input, shape index: {}]
  %s11 = inlined_call_operand.vmem [shape: f32[2,1,32], index: 11, kind: input, shape index: {}]
  %s12 = inlined_call_operand.vmem [shape: f32[2,32,64], index: 12, kind: input, shape index: {}]
  %s13 = inlined_call_operand.vmem [shape: f32[2,1,64], index: 13, kind: input, shape index: {}]
  %s14 = inlined_call_operand.vmem [shape: f32[2,64,32], index: 14, kind: input, shape index: {}]
  %s15 = inlined_call_operand.vmem [shape: f32[2,1,32], index: 15, kind: input, shape index: {}]
  %s16 = inlined_call_operand.vmem [shape: f32[2,1,32], index: 16, kind: input, shape index: {}]
  %s17 = inlined_call_operand.vmem [shape: f32[2,1,32], index: 17, kind: input, shape index: {}]
  %s18 = inlined_call_operand.vmem [shape: f32[1,32], index: 18, kind: input, shape index: {}]
  %s19 = inlined_call_operand.vmem [shape: f32[1,32], index: 19, kind: input, shape index: {}]
  %s20 = inlined_call_operand.vmem [shape: f32[1,32], index: 20, kind: input, shape index: {}]
  %s21 = inlined_call_operand.<no memory space> [shape: f32[1,1], index: 21, kind: input, shape index: {}]
  %s22 = inlined_call_operand.hbm [shape: f32[1,1,8], index: 22, kind: output, shape index: {}]
  %s23 = sld [smem:[#allocation0]]
  $region105: #{tpu_custom_call.1} parent=0
    _
  %s25 = ssub.s32 1, %s23
  %s26 = scalar_select 0, %s25, %s23
  %v27 = vstv %s21
  %28 = vst [vmem:[#allocation2] sm:$0x1] %v27
  $region1: #{tpu_custom_call.1} parent=0
    #allocation3 [shape = 'u8[512]{0}', space=vmem, size = 0x400, scoped, tag = 'output window, operand 0, single buffered']
    #allocation4 [shape = 's32[1]{0}', space=sflag, size = 0x4, scoped, tag = 'scoped memory for tpu_custom_call.1']
    %29 = vsyncpa [#allocation4], 0
    // Predicated region
    $region2: #{tpu_custom_call.1} parent=1 // pred_check
      _
    $region3: #{tpu_custom_call.1} parent=1 // pred_check_branch
      %31 = sbr.rel (0) target = $region5
    $region4: #{tpu_custom_call.1} parent=1 // pred_region
      _
    $region5: #{tpu_custom_call.1} parent=1 // pred_fallthru
      _
    // Predicated region
    $region6: #{tpu_custom_call.1} parent=1 // pred_check
      _
    $region7: #{tpu_custom_call.1} parent=1 // pred_check_branch
      %33 = sbr.rel (0) target = $region9
    $region8: #{tpu_custom_call.1} parent=1 // pred_region
      _
    $region9: #{tpu_custom_call.1} parent=1 // pred_fallthru
      _
    // Predicated region
    $region10: #{tpu_custom_call.1} parent=1 // pred_check
      _
    $region11: #{tpu_custom_call.1} parent=1 // pred_check_branch
      %35 = sbr.rel (0) target = $region13
    $region12: #{tpu_custom_call.1} parent=1 // pred_region
      _
    $region13: #{tpu_custom_call.1} parent=1 // pred_fallthru
      _
    // Predicated region
    $region14: #{tpu_custom_call.1} parent=1 // pred_check
      _
    $region15: #{tpu_custom_call.1} parent=1 // pred_check_branch
      %37 = sbr.rel (0) target = $region17
    $region16: #{tpu_custom_call.1} parent=1 // pred_region
      _
    $region17: #{tpu_custom_call.1} parent=1 // pred_fallthru
      _
    // Predicated region
    $region18: #{tpu_custom_call.1} parent=1 // pred_check
      _
    $region19: #{tpu_custom_call.1} parent=1 // pred_check_branch
      %39 = sbr.rel (0) target = $region21
    $region20: #{tpu_custom_call.1} parent=1 // pred_region
      _
    $region21: #{tpu_custom_call.1} parent=1 // pred_fallthru
      _
    // Predicated region
    $region22: #{tpu_custom_call.1} parent=1 // pred_check
      _
    $region23: #{tpu_custom_call.1} parent=1 // pred_check_branch
      %41 = sbr.rel (0) target = $region25
    $region24: #{tpu_custom_call.1} parent=1 // pred_region
      _
    $region25: #{tpu_custom_call.1} parent=1 // pred_fallthru
      _
    // Predicated region
    $region26: #{tpu_custom_call.1} parent=1 // pred_check
      _
    $region27: #{tpu_custom_call.1} parent=1 // pred_check_branch
      %43 = sbr.rel (0) target = $region29
    $region28: #{tpu_custom_call.1} parent=1 // pred_region
      _
    $region29: #{tpu_custom_call.1} parent=1 // pred_fallthru
      _
    // Predicated region
    $region30: #{tpu_custom_call.1} parent=1 // pred_check
      _
    $region31: #{tpu_custom_call.1} parent=1 // pred_check_branch
      %45 = sbr.rel (0) target = $region33
    $region32: #{tpu_custom_call.1} parent=1 // pred_region
      _
    $region33: #{tpu_custom_call.1} parent=1 // pred_fallthru
      _
    // Predicated region
    $region34: #{tpu_custom_call.1} parent=1 // pred_check
      _
    $region35: #{tpu_custom_call.1} parent=1 // pred_check_branch
      %47 = sbr.rel (0) target = $region37
    $region36: #{tpu_custom_call.1} parent=1 // pred_region
      _
    $region37: #{tpu_custom_call.1} parent=1 // pred_fallthru
      _
    // Predicated region
    $region38: #{tpu_custom_call.1} parent=1 // pred_check
      _
    $region39: #{tpu_custom_call.1} parent=1 // pred_check_branch
      %49 = sbr.rel (0) target = $region41
    $region40: #{tpu_custom_call.1} parent=1 // pred_region
      _
    $region41: #{tpu_custom_call.1} parent=1 // pred_fallthru
      _
    // Predicated region
    $region42: #{tpu_custom_call.1} parent=1 // pred_check
      _
    $region43: #{tpu_custom_call.1} parent=1 // pred_check_branch
      %51 = sbr.rel (0) target = $region45
    $region44: #{tpu_custom_call.1} parent=1 // pred_region
      _
    $region45: #{tpu_custom_call.1} parent=1 // pred_fallthru
      _
    // Predicated region
    $region46: #{tpu_custom_call.1} parent=1 // pred_check
      _
    $region47: #{tpu_custom_call.1} parent=1 // pred_check_branch
      %53 = sbr.rel (0) target = $region49
    $region48: #{tpu_custom_call.1} parent=1 // pred_region
      _
    $region49: #{tpu_custom_call.1} parent=1 // pred_fallthru
      _
    // Predicated region
    $region50: #{tpu_custom_call.1} parent=1 // pred_check
      _
    $region51: #{tpu_custom_call.1} parent=1 // pred_check_branch
      %55 = sbr.rel (0) target = $region53
    $region52: #{tpu_custom_call.1} parent=1 // pred_region
      _
    $region53: #{tpu_custom_call.1} parent=1 // pred_fallthru
      _
    // Predicated region
    $region54: #{tpu_custom_call.1} parent=1 // pred_check
      _
    $region55: #{tpu_custom_call.1} parent=1 // pred_check_branch
      %57 = sbr.rel (0) target = $region57
    $region56: #{tpu_custom_call.1} parent=1 // pred_region
      _
    $region57: #{tpu_custom_call.1} parent=1 // pred_fallthru
      _
    // Predicated region
    $region58: #{tpu_custom_call.1} parent=1 // pred_check
      _
    $region59: #{tpu_custom_call.1} parent=1 // pred_check_branch
      %59 = sbr.rel (0) target = $region61
    $region60: #{tpu_custom_call.1} parent=1 // pred_region
      _
    $region61: #{tpu_custom_call.1} parent=1 // pred_fallthru
      _
    // Predicated region
    $region62: #{tpu_custom_call.1} parent=1 // pred_check
      _
    $region63: #{tpu_custom_call.1} parent=1 // pred_check_branch
      %61 = sbr.rel (0) target = $region65
    $region64: #{tpu_custom_call.1} parent=1 // pred_region
      _
    $region65: #{tpu_custom_call.1} parent=1 // pred_fallthru
      _
    // Predicated region
    $region66: #{tpu_custom_call.1} parent=1 // pred_check
      _
    $region67: #{tpu_custom_call.1} parent=1 // pred_check_branch
      %63 = sbr.rel (0) target = $region69
    $region68: #{tpu_custom_call.1} parent=1 // pred_region
      _
    $region69: #{tpu_custom_call.1} parent=1 // pred_fallthru
      _
    // Predicated region
    $region70: #{tpu_custom_call.1} parent=1 // pred_check
      _
    $region71: #{tpu_custom_call.1} parent=1 // pred_check_branch
      %65 = sbr.rel (0) target = $region73
    $region72: #{tpu_custom_call.1} parent=1 // pred_region
      _
    $region73: #{tpu_custom_call.1} parent=1 // pred_fallthru
      _
    // Predicated region
    $region74: #{tpu_custom_call.1} parent=1 // pred_check
      _
    $region75: #{tpu_custom_call.1} parent=1 // pred_check_branch
      %67 = sbr.rel (0) target = $region77
    $region76: #{tpu_custom_call.1} parent=1 // pred_region
      _
    $region77: #{tpu_custom_call.1} parent=1 // pred_fallthru
      _
    // Predicated region
    $region78: #{tpu_custom_call.1} parent=1 // pred_check
      _
    $region79: #{tpu_custom_call.1} parent=1 // pred_check_branch
      %69 = sbr.rel (0) target = $region81
    $region80: #{tpu_custom_call.1} parent=1 // pred_region
      _
    $region81: #{tpu_custom_call.1} parent=1 // pred_fallthru
      _
    // Predicated region
    $region82: #{tpu_custom_call.1} parent=1 // pred_check
      _
    $region83: #{tpu_custom_call.1} parent=1 // pred_check_branch
      %71 = sbr.rel (0) target = $region85
    $region84: #{tpu_custom_call.1} parent=1 // pred_region
      _
    $region85: #{tpu_custom_call.1} parent=1 // pred_fallthru
      _
    // Predicated region
    $region86: #{tpu_custom_call.1} parent=1 // pred_check
      _
    $region87: #{tpu_custom_call.1} parent=1 // pred_check_branch
      %73 = sbr.rel (0) target = $region89
    $region88: #{tpu_custom_call.1} parent=1 // pred_region
      _
    $region89: #{tpu_custom_call.1} parent=1 // pred_fallthru
      _
    %v75 = vld [vmem:[%s0] sm:$0xff]
    %v76 = vld [vmem:[%s0 + $0x8] sm:$0xff]
    %v77 = vld [vmem:[%s0 + $0x10] sm:$0xff]
    %v78 = vld [vmem:[%s0 + $0x18] sm:$0xff]
    %v79 = vld [vmem:[%s0 + $0x20] sm:$0xff]
    %v80 = vld [vmem:[%s0 + $0x28] sm:$0xff]
    %v81 = vld [vmem:[%s0 + $0x30] sm:$0xff]
    %v82 = vld [vmem:[%s0 + $0x38] sm:$0xff]
    %v83 = vld [vmem:[%s0 + $0x40] sm:$0xff]
    %v84 = vld [vmem:[%s0 + $0x48] sm:$0xff]
    %v85 = vld [vmem:[%s0 + $0x50] sm:$0xff]
    %v86 = vld [vmem:[%s0 + $0x58] sm:$0xff]
    %v87 = vld [vmem:[%s2] sm:$0xf]
    %v88 = vld [vmem:[%s2 + $0x4] sm:$0xf]
    %v89 = vld [vmem:[%s2 + $0x8] sm:$0xf]
    %v90 = vld [vmem:[%s2 + $0xc] sm:$0xf]
    %v91 = vld [vmem:[%s2 + $0x10] sm:$0xf]
    %v92 = vld [vmem:[%s2 + $0x14] sm:$0xf]
    %v93 = vld [vmem:[%s2 + $0x18] sm:$0xf]
    %v94 = vld [vmem:[%s2 + $0x1c] sm:$0xf]
    %v95 = vld [vmem:[%s2 + $0x20] sm:$0xf]
    %v96 = vld [vmem:[%s2 + $0x24] sm:$0xf]
    %v97 = vld [vmem:[%s2 + $0x28] sm:$0xf]
    %v98 = vld [vmem:[%s2 + $0x2c] sm:$0xf]
    %v99 = vld [vmem:[%s2 + $0x30] sm:$0xf]
    %v100 = vld [vmem:[%s2 + $0x34] sm:$0xf]
    %v101 = vld [vmem:[%s2 + $0x38] sm:$0xf]
    %v102 = vld [vmem:[%s2 + $0x3c] sm:$0xf]
    %v103 = vld [vmem:[%s2 + $0x40] sm:$0xf]
    %v104 = vld [vmem:[%s2 + $0x44] sm:$0xf]
    %v105 = vld [vmem:[%s2 + $0x48] sm:$0xf]
    %v106 = vld [vmem:[%s2 + $0x4c] sm:$0xf]
    %v107 = vld [vmem:[%s2 + $0x50] sm:$0xf]
    %v108 = vld [vmem:[%s2 + $0x54] sm:$0xf]
    %v109 = vld [vmem:[%s2 + $0x58] sm:$0xf]
    %v110 = vld [vmem:[%s2 + $0x5c] sm:$0xf]
    %v111 = vld [vmem:[%s2 + $0x60] sm:$0xf]
    %v112 = vld [vmem:[%s2 + $0x64] sm:$0xf]
    %v113 = vld [vmem:[%s2 + $0x68] sm:$0xf]
    %v114 = vld [vmem:[%s2 + $0x6c] sm:$0xf]
    %v115 = vld [vmem:[%s2 + $0x70] sm:$0xf]
    %v116 = vld [vmem:[%s2 + $0x74] sm:$0xf]
    %v117 = vld [vmem:[%s2 + $0x78] sm:$0xf]
    %v118 = vld [vmem:[%s2 + $0x7c] sm:$0xf]
    %v119 = vld [vmem:[%s2 + $0x80] sm:$0xf]
    %v120 = vld [vmem:[%s2 + $0x84] sm:$0xf]
    %v121 = vld [vmem:[%s2 + $0x88] sm:$0xf]
    %v122 = vld [vmem:[%s2 + $0x8c] sm:$0xf]
    %v123 = vld [vmem:[%s2 + $0x90] sm:$0xf]
    %v124 = vld [vmem:[%s2 + $0x94] sm:$0xf]
    %v125 = vld [vmem:[%s2 + $0x98] sm:$0xf]
    %v126 = vld [vmem:[%s2 + $0x9c] sm:$0xf]
    %v127 = vld [vmem:[%s2 + $0xa0] sm:$0xf]
    %v128 = vld [vmem:[%s2 + $0xa4] sm:$0xf]
    %v129 = vld [vmem:[%s2 + $0xa8] sm:$0xf]
    %v130 = vld [vmem:[%s2 + $0xac] sm:$0xf]
    %v131 = vld [vmem:[%s2 + $0xb0] sm:$0xf]
    %v132 = vld [vmem:[%s2 + $0xb4] sm:$0xf]
    %v133 = vld [vmem:[%s2 + $0xb8] sm:$0xf]
    %v134 = vld [vmem:[%s2 + $0xbc] sm:$0xf]
    %v135 = vld [vmem:[%s2 + $0xc0] sm:$0xf]
    %v136 = vld [vmem:[%s2 + $0xc4] sm:$0xf]
    %v137 = vld [vmem:[%s2 + $0xc8] sm:$0xf]
    %v138 = vld [vmem:[%s2 + $0xcc] sm:$0xf]
    %v139 = vld [vmem:[%s2 + $0xd0] sm:$0xf]
    %v140 = vld [vmem:[%s2 + $0xd4] sm:$0xf]
    %v141 = vld [vmem:[%s2 + $0xd8] sm:$0xf]
    %v142 = vld [vmem:[%s2 + $0xdc] sm:$0xf]
    %v143 = vld [vmem:[%s2 + $0xe0] sm:$0xf]
    %v144 = vld [vmem:[%s2 + $0xe4] sm:$0xf]
    %v145 = vld [vmem:[%s2 + $0xe8] sm:$0xf]
    %v146 = vld [vmem:[%s2 + $0xec] sm:$0xf]
    %v147 = vld [vmem:[%s2 + $0xf0] sm:$0xf]
    %v148 = vld [vmem:[%s2 + $0xf4] sm:$0xf]
    %v149 = vld [vmem:[%s2 + $0xf8] sm:$0xf]
    %v150 = vld [vmem:[%s2 + $0xfc] sm:$0xf]
    %v151 = vld [vmem:[%s3] sm:$0x1]
    %v153 = vlaneseq
    %v154 = vshrl.u32 %v153, 7
    %v155 = vsub.s32 0, %v154
    %v156 = vrot.slane %v151, %v155
    %v170 = vunpack.c.l.b16 %v75
    %v171 = vunpack.c.h.b16 %v75
    %v172 = vunpack.c.l.b16 %v76
    %v173 = vunpack.c.h.b16 %v76
    %v174 = vunpack.c.l.b16 %v77
    %v175 = vunpack.c.h.b16 %v77
    %v176 = vunpack.c.l.b16 %v78
    %v177 = vunpack.c.h.b16 %v78
    %v178 = vunpack.c.l.b16 %v79
    %v179 = vunpack.c.h.b16 %v79
    %v180 = vunpack.c.l.b16 %v80
    %v181 = vunpack.c.h.b16 %v80
    %v182 = vunpack.c.l.b16 %v81
    %v183 = vunpack.c.h.b16 %v81
    %v184 = vunpack.c.l.b16 %v82
    %v185 = vunpack.c.h.b16 %v82
    %v186 = vunpack.c.l.b16 %v83
    %v187 = vunpack.c.h.b16 %v83
    %v188 = vunpack.c.l.b16 %v84
    %v189 = vunpack.c.h.b16 %v84
    %v190 = vunpack.c.l.b16 %v85
    %v191 = vunpack.c.h.b16 %v85
    %v192 = vunpack.c.l.b16 %v86
    %v193 = vunpack.c.h.b16 %v86
    %v194 = vpack.c.b16 %v174, %v170
    %v195 = vpack.c.b16 %v175, %v171
    %v196 = vpack.c.b16 %v176, %v172
    %v197 = vpack.c.b16 %v177, %v173
    %v198 = vpack.c.b16 %v182, %v178
    %v199 = vpack.c.b16 %v183, %v179
    %v200 = vpack.c.b16 %v184, %v180
    %v201 = vpack.c.b16 %v185, %v181
    %v202 = vpack.c.b16 %v190, %v186
    %v203 = vpack.c.b16 %v191, %v187
    %v204 = vpack.c.b16 %v192, %v188
    %v205 = vpack.c.b16 %v193, %v189
    %v282 = vunpack.c.l.b16 %v87
    %v283 = vunpack.c.l.b16 %v88
    %v284 = vunpack.c.l.b16 %v89
    %v285 = vunpack.c.l.b16 %v90
    %v286 = vunpack.c.l.b16 %v91
    %v287 = vunpack.c.l.b16 %v92
    %v288 = vunpack.c.l.b16 %v93
    %v289 = vunpack.c.l.b16 %v94
    %v290 = vunpack.c.l.b16 %v95
    %v291 = vunpack.c.l.b16 %v96
    %v292 = vunpack.c.l.b16 %v97
    %v293 = vunpack.c.l.b16 %v98
    %v294 = vunpack.c.l.b16 %v99
    %v295 = vunpack.c.l.b16 %v100
    %v296 = vunpack.c.l.b16 %v101
    %v297 = vunpack.c.l.b16 %v102
    %v298 = vunpack.c.l.b16 %v103
    %v299 = vunpack.c.l.b16 %v104
    %v300 = vunpack.c.l.b16 %v105
    %v301 = vunpack.c.l.b16 %v106
    %v302 = vunpack.c.l.b16 %v107
    %v303 = vunpack.c.l.b16 %v108
    %v304 = vunpack.c.l.b16 %v109
    %v305 = vunpack.c.l.b16 %v110
    %v306 = vunpack.c.l.b16 %v111
    %v307 = vunpack.c.l.b16 %v112
    %v308 = vunpack.c.l.b16 %v113
    %v309 = vunpack.c.l.b16 %v114
    %v310 = vunpack.c.l.b16 %v115
    %v311 = vunpack.c.l.b16 %v116
    %v312 = vunpack.c.l.b16 %v117
    %v313 = vunpack.c.l.b16 %v118
    %v314 = vunpack.c.l.b16 %v119
    %v315 = vunpack.c.l.b16 %v120
    %v316 = vunpack.c.l.b16 %v121
    %v317 = vunpack.c.l.b16 %v122
    %v318 = vunpack.c.l.b16 %v123
    %v319 = vunpack.c.l.b16 %v124
    %v320 = vunpack.c.l.b16 %v125
    %v321 = vunpack.c.l.b16 %v126
    %v322 = vunpack.c.l.b16 %v127
    %v323 = vunpack.c.l.b16 %v128
    %v324 = vunpack.c.l.b16 %v129
    %v325 = vunpack.c.l.b16 %v130
    %v326 = vunpack.c.l.b16 %v131
    %v327 = vunpack.c.l.b16 %v132
    %v328 = vunpack.c.l.b16 %v133
    %v329 = vunpack.c.l.b16 %v134
    %v330 = vunpack.c.l.b16 %v135
    %v331 = vunpack.c.l.b16 %v136
    %v332 = vunpack.c.l.b16 %v137
    %v333 = vunpack.c.l.b16 %v138
    %v334 = vunpack.c.l.b16 %v139
    %v335 = vunpack.c.l.b16 %v140
    %v336 = vunpack.c.l.b16 %v141
    %v337 = vunpack.c.l.b16 %v142
    %v338 = vunpack.c.l.b16 %v143
    %v339 = vunpack.c.l.b16 %v144
    %v340 = vunpack.c.l.b16 %v145
    %v341 = vunpack.c.l.b16 %v146
    %v342 = vunpack.c.l.b16 %v147
    %v343 = vunpack.c.l.b16 %v148
    %v344 = vunpack.c.l.b16 %v149
    %v345 = vunpack.c.l.b16 %v150
    %v346 = vpack.c.b16 %v283, %v282
    %v347 = vpack.c.b16 %v285, %v284
    %v348 = vpack.c.b16 %v287, %v286
    %v349 = vpack.c.b16 %v289, %v288
    %v350 = vpack.c.b16 %v291, %v290
    %v351 = vpack.c.b16 %v293, %v292
    %v352 = vpack.c.b16 %v295, %v294
    %v353 = vpack.c.b16 %v297, %v296
    %v354 = vpack.c.b16 %v299, %v298
    %v355 = vpack.c.b16 %v301, %v300
    %v356 = vpack.c.b16 %v303, %v302
    %v357 = vpack.c.b16 %v305, %v304
    %v358 = vpack.c.b16 %v307, %v306
    %v359 = vpack.c.b16 %v309, %v308
    %v360 = vpack.c.b16 %v311, %v310
    %v361 = vpack.c.b16 %v313, %v312
    %v362 = vpack.c.b16 %v315, %v314
    %v363 = vpack.c.b16 %v317, %v316
    %v364 = vpack.c.b16 %v319, %v318
    %v365 = vpack.c.b16 %v321, %v320
    %v366 = vpack.c.b16 %v323, %v322
    %v367 = vpack.c.b16 %v325, %v324
    %v368 = vpack.c.b16 %v327, %v326
    %v369 = vpack.c.b16 %v329, %v328
    %v370 = vpack.c.b16 %v331, %v330
    %v371 = vpack.c.b16 %v333, %v332
    %v372 = vpack.c.b16 %v335, %v334
    %v373 = vpack.c.b16 %v337, %v336
    %v374 = vpack.c.b16 %v339, %v338
    %v375 = vpack.c.b16 %v341, %v340
    %v376 = vpack.c.b16 %v343, %v342
    %v377 = vpack.c.b16 %v345, %v344
    %410 = vmatprep.subr.bf16.mxu0 0
    %411 = vmatpush1.bf16.msra.mxu0 %v346
    %412 = vmatprep.subr.bf16.mxu0 0
    %413 = vmatpush1.bf16.msra.mxu0 %v347
    %414 = vmatprep.subr.bf16.mxu0 0
    %415 = vmatpush1.bf16.msra.mxu0 %v348
    %416 = vmatprep.subr.bf16.mxu0 0
    %417 = vmatpush1.bf16.msra.mxu0 %v349
    %418 = vmatprep.subr.bf16.mxu0 0
    %419 = vmatpush1.bf16.msra.mxu0 %v350
    %420 = vmatprep.subr.bf16.mxu0 0
    %421 = vmatpush1.bf16.msra.mxu0 %v351
    %422 = vmatprep.subr.bf16.mxu0 0
    %423 = vmatpush1.bf16.msra.mxu0 %v352
    %424 = vmatprep.subr.bf16.mxu0 0
    %425 = vmatpush1.bf16.msra.mxu0 %v353
    %426 = vmatprep.subr.bf16.mxu0 0
    %427 = vmatpush1.bf16.msra.mxu0 %v354
    %428 = vmatprep.subr.bf16.mxu0 0
    %429 = vmatpush1.bf16.msra.mxu0 %v355
    %430 = vmatprep.subr.bf16.mxu0 0
    %431 = vmatpush1.bf16.msra.mxu0 %v356
    %432 = vmatprep.subr.bf16.mxu0 0
    %433 = vmatpush1.bf16.msra.mxu0 %v357
    %434 = vmatprep.subr.bf16.mxu0 0
    %435 = vmatpush1.bf16.msra.mxu0 %v358
    %436 = vmatprep.subr.bf16.mxu0 0
    %437 = vmatpush1.bf16.msra.mxu0 %v359
    %438 = vmatprep.subr.bf16.mxu0 0
    %439 = vmatpush1.bf16.msra.mxu0 %v360
    %440 = vmatprep.subr.bf16.mxu0 0
    %441 = vmatpush1.bf16.msra.mxu0 %v361
    %442 = vmatprep.mubr.bf16.mxu0 %v195
    %443 = vmatmul.mubr.bf16.gmra.mrb[0].mxu0 %v194
    %v444 = vpop.f32.mrb[0].mxu0
    %v445 = vadd.f32 %v156, %v444
    %v446 = vpop.f32.mrb[0].mxu0
    %v447 = vpop.f32.mrb[0].mxu0
    %v448 = vadd.f32 %v156, %v447
    %v449 = vpop.f32.mrb[0].mxu0
    %450 = vmatprep.mubr.bf16.mxu0 %v199
    %451 = vmatmul.mubr.bf16.gmra.mrb[0].mxu0 %v198
    %v452 = vpop.f32.mrb[0].mxu0
    %v453 = vadd.f32 %v156, %v452
    %v454 = vpop.f32.mrb[0].mxu0
    %v455 = vpop.f32.mrb[0].mxu0
    %v456 = vadd.f32 %v156, %v455
    %v457 = vpop.f32.mrb[0].mxu0
    %458 = vmatprep.mubr.bf16.mxu0 %v203
    %459 = vmatmul.mubr.bf16.gmra.mrb[0].mxu0 %v202
    %v460 = vpop.f32.mrb[0].mxu0
    %v461 = vadd.f32 %v156, %v460
    %v462 = vpop.f32.mrb[0].mxu0
    %v463 = vpop.f32.mrb[0].mxu0
    %v464 = vadd.f32 %v156, %v463
    %v465 = vpop.f32.mrb[0].mxu0
    %466 = vdwg.mxu0
    %467 = vmatprep.subr.bf16.mxu0 0
    %468 = vmatpush1.bf16.msra.mxu0 %v362
    %469 = vmatprep.subr.bf16.mxu0 0
    %470 = vmatpush1.bf16.msra.mxu0 %v363
    %471 = vmatprep.subr.bf16.mxu0 0
    %472 = vmatpush1.bf16.msra.mxu0 %v364
    %473 = vmatprep.subr.bf16.mxu0 0
    %474 = vmatpush1.bf16.msra.mxu0 %v365
    %475 = vmatprep.subr.bf16.mxu0 0
    %476 = vmatpush1.bf16.msra.mxu0 %v366
    %477 = vmatprep.subr.bf16.mxu0 0
    %478 = vmatpush1.bf16.msra.mxu0 %v367
    %479 = vmatprep.subr.bf16.mxu0 0
    %480 = vmatpush1.bf16.msra.mxu0 %v368
    %481 = vmatprep.subr.bf16.mxu0 0
    %482 = vmatpush1.bf16.msra.mxu0 %v369
    %483 = vmatprep.subr.bf16.mxu0 0
    %484 = vmatpush1.bf16.msra.mxu0 %v370
    %485 = vmatprep.subr.bf16.mxu0 0
    %486 = vmatpush1.bf16.msra.mxu0 %v371
    %487 = vmatprep.subr.bf16.mxu0 0
    %488 = vmatpush1.bf16.msra.mxu0 %v372
    %489 = vmatprep.subr.bf16.mxu0 0
    %490 = vmatpush1.bf16.msra.mxu0 %v373
    %491 = vmatprep.subr.bf16.mxu0 0
    %492 = vmatpush1.bf16.msra.mxu0 %v374
    %493 = vmatprep.subr.bf16.mxu0 0
    %494 = vmatpush1.bf16.msra.mxu0 %v375
    %495 = vmatprep.subr.bf16.mxu0 0
    %496 = vmatpush1.bf16.msra.mxu0 %v376
    %497 = vmatprep.subr.bf16.mxu0 0
    %498 = vmatpush1.bf16.msra.mxu0 %v377
    %499 = vmatprep.mubr.bf16.mxu0 %v197
    %500 = vmatmul.mubr.bf16.gmra.mrb[0].mxu0 %v196
    %v501 = vpop.f32.mrb[0].mxu0
    %v502 = vadd.f32 %v445, %v501
    %v503 = vpop.f32.mrb[0].mxu0
    %v504 = vpop.f32.mrb[0].mxu0
    %v505 = vadd.f32 %v448, %v504
    %v506 = vpop.f32.mrb[0].mxu0
    %507 = vmatprep.mubr.bf16.mxu0 %v201
    %508 = vmatmul.mubr.bf16.gmra.mrb[0].mxu0 %v200
    %v509 = vpop.f32.mrb[0].mxu0
    %v510 = vadd.f32 %v453, %v509
    %v511 = vpop.f32.mrb[0].mxu0
    %v512 = vpop.f32.mrb[0].mxu0
    %v513 = vadd.f32 %v456, %v512
    %v514 = vpop.f32.mrb[0].mxu0
    %515 = vmatprep.mubr.bf16.mxu0 %v205
    %516 = vmatmul.mubr.bf16.gmra.mrb[0].mxu0 %v204
    %v517 = vpop.f32.mrb[0].mxu0
    %v518 = vadd.f32 %v461, %v517
    %v519 = vpop.f32.mrb[0].mxu0
    %v520 = vpop.f32.mrb[0].mxu0
    %v521 = vadd.f32 %v464, %v520
    %v522 = vpop.f32.mrb[0].mxu0
    %523 = vdwg.mxu0
    %v530 = vcombine.high %v502, %v502
    %v532 = vunpack.c.l.s4 1983009808
    %v533 = vunpack.c.0.s8 %v532
    %v534 = vlaneseq
    %v535 = vshrl.u32 %v534, 7
    %v536 = vsub.s32 %v533, %v535
    %v537 = vrot.slane %v502, %v536
    %v539 = vunpack.c.l.s4 1983009808
    %v540 = vunpack.c.0.s8 %v539
    %v541 = vlaneseq
    %v542 = vshrl.u32 %v541, 7
    %v543 = vsub.s32 %v540, %v542
    %v544 = vrot.slane %v530, %v543
    %v545 = vcombine.high %v537, %v537
    %v546 = vcombine.high %v544, %v544
    %v547 = vcombine.high %v505, %v505
    %v549 = vunpack.c.l.s4 1983009808
    %v550 = vunpack.c.0.s8 %v549
    %v551 = vlaneseq
    %v552 = vshrl.u32 %v551, 7
    %v553 = vsub.s32 %v550, %v552
    %v554 = vrot.slane %v505, %v553
    %v556 = vunpack.c.l.s4 1983009808
    %v557 = vunpack.c.0.s8 %v556
    %v558 = vlaneseq
    %v559 = vshrl.u32 %v558, 7
    %v560 = vsub.s32 %v557, %v559
    %v561 = vrot.slane %v547, %v560
    %v562 = vcombine.high %v554, %v554
    %v563 = vcombine.high %v561, %v561
    %v564 = vcombine.high %v510, %v510
    %v566 = vunpack.c.l.s4 1983009808
    %v567 = vunpack.c.0.s8 %v566
    %v568 = vlaneseq
    %v569 = vshrl.u32 %v568, 7
    %v570 = vsub.s32 %v567, %v569
    %v571 = vrot.slane %v510, %v570
    %v573 = vunpack.c.l.s4 1983009808
    %v574 = vunpack.c.0.s8 %v573
    %v575 = vlaneseq
    %v576 = vshrl.u32 %v575, 7
    %v577 = vsub.s32 %v574, %v576
    %v578 = vrot.slane %v564, %v577
    %v579 = vcombine.high %v571, %v571
    %v580 = vcombine.high %v578, %v578
    %v581 = vcombine.high %v513, %v513
    %v583 = vunpack.c.l.s4 1983009808
    %v584 = vunpack.c.0.s8 %v583
    %v585 = vlaneseq
    %v586 = vshrl.u32 %v585, 7
    %v587 = vsub.s32 %v584, %v586
    %v588 = vrot.slane %v513, %v587
    %v590 = vunpack.c.l.s4 1983009808
    %v591 = vunpack.c.0.s8 %v590
    %v592 = vlaneseq
    %v593 = vshrl.u32 %v592, 7
    %v594 = vsub.s32 %v591, %v593
    %v595 = vrot.slane %v581, %v594
    %v596 = vcombine.high %v588, %v588
    %v597 = vcombine.high %v595, %v595
    %v598 = vcombine.high %v518, %v518
    %v600 = vunpack.c.l.s4 1983009808
    %v601 = vunpack.c.0.s8 %v600
    %v602 = vlaneseq
    %v603 = vshrl.u32 %v602, 7
    %v604 = vsub.s32 %v601, %v603
    %v605 = vrot.slane %v518, %v604
    %v607 = vunpack.c.l.s4 1983009808
    %v608 = vunpack.c.0.s8 %v607
    %v609 = vlaneseq
    %v610 = vshrl.u32 %v609, 7
    %v611 = vsub.s32 %v608, %v610
    %v612 = vrot.slane %v598, %v611
    %v613 = vcombine.high %v605, %v605
    %v614 = vcombine.high %v612, %v612
    %v615 = vcombine.high %v521, %v521
    %v617 = vunpack.c.l.s4 1983009808
    %v618 = vunpack.c.0.s8 %v617
    %v619 = vlaneseq
    %v620 = vshrl.u32 %v619, 7
    %v621 = vsub.s32 %v618, %v620
    %v622 = vrot.slane %v521, %v621
    %v624 = vunpack.c.l.s4 1983009808
    %v625 = vunpack.c.0.s8 %v624
    %v626 = vlaneseq
    %v627 = vshrl.u32 %v626, 7
    %v628 = vsub.s32 %v625, %v627
    %v629 = vrot.slane %v615, %v628
    %v630 = vcombine.high %v622, %v622
    %v631 = vcombine.high %v629, %v629
    %v632 = vld [vmem:[%s4] sm:$0x1]
    %v633 = vcombine.low %v537, %v545
    %v635 = vunpack.c.l.s4 1983009808
    %v636 = vunpack.c.0.s8 %v635
    %v637 = vlaneseq
    %v638 = vshrl.u32 %v637, 7
    %v639 = vsub.s32 %v636, %v638
    %v640 = vrot.slane %v633, %v639
    %v642 = vunpack.c.l.s4 1983009808
    %v643 = vunpack.c.0.s8 %v642
    %v644 = vlaneseq
    %v645 = vshrl.u32 %v644, 7
    %v646 = vsub.s32 %v643, %v645
    %v647 = vrot.slane %v544, %v646
    %v648 = vcombine.low %v640, %v647
    %v649 = vcombine.low %v546, %v554
    %v651 = vunpack.c.l.s4 1983009808
    %v652 = vunpack.c.0.s8 %v651
    %v653 = vlaneseq
    %v654 = vshrl.u32 %v653, 7
    %v655 = vsub.s32 %v652, %v654
    %v656 = vrot.slane %v649, %v655
    %v658 = vunpack.c.l.s4 1983009808
    %v659 = vunpack.c.0.s8 %v658
    %v660 = vlaneseq
    %v661 = vshrl.u32 %v660, 7
    %v662 = vsub.s32 %v659, %v661
    %v663 = vrot.slane %v562, %v662
    %v664 = vcombine.low %v656, %v663
    %v665 = vcombine.low %v561, %v563
    %v667 = vunpack.c.l.s4 1983009808
    %v668 = vunpack.c.0.s8 %v667
    %v669 = vlaneseq
    %v670 = vshrl.u32 %v669, 7
    %v671 = vsub.s32 %v668, %v670
    %v672 = vrot.slane %v665, %v671
    %v674 = vunpack.c.l.s4 1983009808
    %v675 = vunpack.c.0.s8 %v674
    %v676 = vlaneseq
    %v677 = vshrl.u32 %v676, 7
    %v678 = vsub.s32 %v675, %v677
    %v679 = vrot.slane %v571, %v678
    %v680 = vcombine.low %v672, %v679
    %v681 = vcombine.low %v579, %v578
    %v683 = vunpack.c.l.s4 1983009808
    %v684 = vunpack.c.0.s8 %v683
    %v685 = vlaneseq
    %v686 = vshrl.u32 %v685, 7
    %v687 = vsub.s32 %v684, %v686
    %v688 = vrot.slane %v681, %v687
    %v690 = vunpack.c.l.s4 1983009808
    %v691 = vunpack.c.0.s8 %v690
    %v692 = vlaneseq
    %v693 = vshrl.u32 %v692, 7
    %v694 = vsub.s32 %v691, %v693
    %v695 = vrot.slane %v580, %v694
    %v696 = vcombine.low %v688, %v695
    %v697 = vcombine.low %v588, %v596
    %v699 = vunpack.c.l.s4 1983009808
    %v700 = vunpack.c.0.s8 %v699
    %v701 = vlaneseq
    %v702 = vshrl.u32 %v701, 7
    %v703 = vsub.s32 %v700, %v702
    %v704 = vrot.slane %v697, %v703
    %v706 = vunpack.c.l.s4 1983009808
    %v707 = vunpack.c.0.s8 %v706
    %v708 = vlaneseq
    %v709 = vshrl.u32 %v708, 7
    %v710 = vsub.s32 %v707, %v709
    %v711 = vrot.slane %v595, %v710
    %v712 = vcombine.low %v704, %v711
    %v713 = vcombine.low %v597, %v605
    %v715 = vunpack.c.l.s4 1983009808
    %v716 = vunpack.c.0.s8 %v715
    %v717 = vlaneseq
    %v718 = vshrl.u32 %v717, 7
    %v719 = vsub.s32 %v716, %v718
    %v720 = vrot.slane %v713, %v719
    %v722 = vunpack.c.l.s4 1983009808
    %v723 = vunpack.c.0.s8 %v722
    %v724 = vlaneseq
    %v725 = vshrl.u32 %v724, 7
    %v726 = vsub.s32 %v723, %v725
    %v727 = vrot.slane %v613, %v726
    %v728 = vcombine.low %v720, %v727
    %v729 = vcombine.low %v612, %v614
    %v731 = vunpack.c.l.s4 1983009808
    %v732 = vunpack.c.0.s8 %v731
    %v733 = vlaneseq
    %v734 = vshrl.u32 %v733, 7
    %v735 = vsub.s32 %v732, %v734
    %v736 = vrot.slane %v729, %v735
    %v738 = vunpack.c.l.s4 1983009808
    %v739 = vunpack.c.0.s8 %v738
    %v740 = vlaneseq
    %v741 = vshrl.u32 %v740, 7
    %v742 = vsub.s32 %v739, %v741
    %v743 = vrot.slane %v622, %v742
    %v744 = vcombine.low %v736, %v743
    %v745 = vcombine.low %v630, %v629
    %v747 = vunpack.c.l.s4 1983009808
    %v748 = vunpack.c.0.s8 %v747
    %v749 = vlaneseq
    %v750 = vshrl.u32 %v749, 7
    %v751 = vsub.s32 %v748, %v750
    %v752 = vrot.slane %v745, %v751
    %v754 = vunpack.c.l.s4 1983009808
    %v755 = vunpack.c.0.s8 %v754
    %v756 = vlaneseq
    %v757 = vshrl.u32 %v756, 7
    %v758 = vsub.s32 %v755, %v757
    %v759 = vrot.slane %v631, %v758
    %v760 = vcombine.low %v752, %v759
    %v761 = vrot.slane %v648, 7
    %v762 = vrot.slane %v664, 7
    %v763 = vrot.slane %v680, 7
    %v764 = vrot.slane %v696, 7
    %v765 = vrot.slane %v712, 7
    %v766 = vrot.slane %v728, 7
    %v767 = vrot.slane %v744, 7
    %v768 = vrot.slane %v760, 7
    %vm777 = vcmask 1040384
    %v778 = vsel %vm777, %v632, %v761
    %v779 = vsel %vm777, %v632, %v762
    %v780 = vsel %vm777, %v632, %v763
    %v781 = vsel %vm777, %v632, %v764
    %v782 = vsel %vm777, %v632, %v765
    %v783 = vsel %vm777, %v632, %v766
    %v784 = vsel %vm777, %v632, %v767
    %v785 = vsel %vm777, %v632, %v768
    %v786 = vld [vmem:[%s1] sm:$0xff]
    %v787 = vld [vmem:[%s1 + $0x8] sm:$0xff]
    %v788 = vld [vmem:[%s1 + $0x10] sm:$0xff]
    %v789 = vld [vmem:[%s1 + $0x18] sm:$0xff]
    %v790 = vld [vmem:[%s1 + $0x20] sm:$0xff]
    %v791 = vld [vmem:[%s1 + $0x28] sm:$0xff]
    %v792 = vld [vmem:[%s1 + $0x30] sm:$0xff]
    %v793 = vmul.f32 %v786, 0.5
    %v794 = vmul.f32 %v787, 0.5
    %v795 = vmul.f32 %v788, 0.5
    %v796 = vmul.f32 %v789, 0.5
    %v797 = vmul.f32 %v790, 0.5
    %v798 = vmul.f32 %v791, 0.5
    %v799 = vmul.f32 %v792, 0.5
    loop: start=0, step=1, limit=2
    $region90: #{tpu_custom_call.1} parent=1 // loop_pre_header
      _
    $region91: #{tpu_custom_call.1} parent=1 // loop_header
      %s801 = sphi 0, %s805
      %p802 = scmp.ge.s32.totalorder %s801, 2
      %v806 = vphi %v778, %v10162
      %v807 = vphi %v779, %v10163
      %v808 = vphi %v780, %v10164
      %v809 = vphi %v781, %v10165
      %v810 = vphi %v782, %v10166
      %v811 = vphi %v783, %v10167
      %v812 = vphi %v784, %v10168
      %v813 = vphi %v785, %v10169
    $region92: #{tpu_custom_call.1} parent=1 // loop_header_branch
      %804 = sbr.rel (%p802) target = $region96
    $region93: #{tpu_custom_call.1} parent=1 // loop_body
      %s814 = smul.u32 %s801, 32
      %s815 = scalar_lea.vmem %s5, %s814
      %v816 = vld [vmem:[%s815] sm:$0xff]
      %v817 = vld [vmem:[%s815 + $0x8] sm:$0xff]
      %v818 = vld [vmem:[%s815 + $0x10] sm:$0xff]
      %v819 = vld [vmem:[%s815 + $0x18] sm:$0xff]
      %s820 = scalar_lea.vmem %s6, %s801
      %v821 = vld [vmem:[%s820] sm:$0x1]
      %v830 = vcombine.high %v806, %v806
      %v832 = vunpack.c.l.s4 1966171168
      %v833 = vunpack.c.0.s8 %v832
      %v834 = vlaneseq
      %v835 = vshrl.u32 %v834, 7
      %v836 = vsub.s32 %v833, %v835
      %v837 = vrot.slane %v806, %v836
      %v839 = vunpack.c.l.s4 1966171168
      %v840 = vunpack.c.0.s8 %v839
      %v841 = vlaneseq
      %v842 = vshrl.u32 %v841, 7
      %v843 = vsub.s32 %v840, %v842
      %v844 = vrot.slane %v830, %v843
      %v845 = vcombine.high %v837, %v837
      %v846 = vcombine.high %v844, %v844
      %v848 = vunpack.c.l.s4 1966171168
      %v849 = vunpack.c.0.s8 %v848
      %v850 = vlaneseq
      %v851 = vshrl.u32 %v850, 7
      %v852 = vsub.s32 %v849, %v851
      %v853 = vrot.slane %v837, %v852
      %v855 = vunpack.c.l.s4 1966171168
      %v856 = vunpack.c.0.s8 %v855
      %v857 = vlaneseq
      %v858 = vshrl.u32 %v857, 7
      %v859 = vsub.s32 %v856, %v858
      %v860 = vrot.slane %v844, %v859
      %v862 = vunpack.c.l.s4 1966171168
      %v863 = vunpack.c.0.s8 %v862
      %v864 = vlaneseq
      %v865 = vshrl.u32 %v864, 7
      %v866 = vsub.s32 %v863, %v865
      %v867 = vrot.slane %v845, %v866
      %v869 = vunpack.c.l.s4 1966171168
      %v870 = vunpack.c.0.s8 %v869
      %v871 = vlaneseq
      %v872 = vshrl.u32 %v871, 7
      %v873 = vsub.s32 %v870, %v872
      %v874 = vrot.slane %v846, %v873
      %v875 = vcombine.high %v853, %v853
      %v876 = vcombine.high %v860, %v860
      %v877 = vcombine.high %v867, %v867
      %v878 = vcombine.high %v807, %v807
      %v880 = vunpack.c.l.s4 1966171168
      %v881 = vunpack.c.0.s8 %v880
      %v882 = vlaneseq
      %v883 = vshrl.u32 %v882, 7
      %v884 = vsub.s32 %v881, %v883
      %v885 = vrot.slane %v807, %v884
      %v887 = vunpack.c.l.s4 1966171168
      %v888 = vunpack.c.0.s8 %v887
      %v889 = vlaneseq
      %v890 = vshrl.u32 %v889, 7
      %v891 = vsub.s32 %v888, %v890
      %v892 = vrot.slane %v878, %v891
      %v893 = vcombine.high %v885, %v885
      %v894 = vcombine.high %v892, %v892
      %v896 = vunpack.c.l.s4 1966171168
      %v897 = vunpack.c.0.s8 %v896
      %v898 = vlaneseq
      %v899 = vshrl.u32 %v898, 7
      %v900 = vsub.s32 %v897, %v899
      %v901 = vrot.slane %v885, %v900
      %v903 = vunpack.c.l.s4 1966171168
      %v904 = vunpack.c.0.s8 %v903
      %v905 = vlaneseq
      %v906 = vshrl.u32 %v905, 7
      %v907 = vsub.s32 %v904, %v906
      %v908 = vrot.slane %v892, %v907
      %v910 = vunpack.c.l.s4 1966171168
      %v911 = vunpack.c.0.s8 %v910
      %v912 = vlaneseq
      %v913 = vshrl.u32 %v912, 7
      %v914 = vsub.s32 %v911, %v913
      %v915 = vrot.slane %v893, %v914
      %v917 = vunpack.c.l.s4 1966171168
      %v918 = vunpack.c.0.s8 %v917
      %v919 = vlaneseq
      %v920 = vshrl.u32 %v919, 7
      %v921 = vsub.s32 %v918, %v920
      %v922 = vrot.slane %v894, %v921
      %v923 = vcombine.high %v901, %v901
      %v924 = vcombine.high %v908, %v908
      %v925 = vcombine.high %v915, %v915
      %v926 = vcombine.high %v808, %v808
      %v928 = vunpack.c.l.s4 1966171168
      %v929 = vunpack.c.0.s8 %v928
      %v930 = vlaneseq
      %v931 = vshrl.u32 %v930, 7
      %v932 = vsub.s32 %v929, %v931
      %v933 = vrot.slane %v808, %v932
      %v935 = vunpack.c.l.s4 1966171168
      %v936 = vunpack.c.0.s8 %v935
      %v937 = vlaneseq
      %v938 = vshrl.u32 %v937, 7
      %v939 = vsub.s32 %v936, %v938
      %v940 = vrot.slane %v926, %v939
      %v941 = vcombine.high %v933, %v933
      %v942 = vcombine.high %v940, %v940
      %v944 = vunpack.c.l.s4 1966171168
      %v945 = vunpack.c.0.s8 %v944
      %v946 = vlaneseq
      %v947 = vshrl.u32 %v946, 7
      %v948 = vsub.s32 %v945, %v947
      %v949 = vrot.slane %v933, %v948
      %v951 = vunpack.c.l.s4 1966171168
      %v952 = vunpack.c.0.s8 %v951
      %v953 = vlaneseq
      %v954 = vshrl.u32 %v953, 7
      %v955 = vsub.s32 %v952, %v954
      %v956 = vrot.slane %v940, %v955
      %v958 = vunpack.c.l.s4 1966171168
      %v959 = vunpack.c.0.s8 %v958
      %v960 = vlaneseq
      %v961 = vshrl.u32 %v960, 7
      %v962 = vsub.s32 %v959, %v961
      %v963 = vrot.slane %v941, %v962
      %v965 = vunpack.c.l.s4 1966171168
      %v966 = vunpack.c.0.s8 %v965
      %v967 = vlaneseq
      %v968 = vshrl.u32 %v967, 7
      %v969 = vsub.s32 %v966, %v968
      %v970 = vrot.slane %v942, %v969
      %v971 = vcombine.high %v949, %v949
      %v972 = vcombine.high %v956, %v956
      %v973 = vcombine.high %v963, %v963
      %v974 = vcombine.high %v809, %v809
      %v976 = vunpack.c.l.s4 1966171168
      %v977 = vunpack.c.0.s8 %v976
      %v978 = vlaneseq
      %v979 = vshrl.u32 %v978, 7
      %v980 = vsub.s32 %v977, %v979
      %v981 = vrot.slane %v809, %v980
      %v983 = vunpack.c.l.s4 1966171168
      %v984 = vunpack.c.0.s8 %v983
      %v985 = vlaneseq
      %v986 = vshrl.u32 %v985, 7
      %v987 = vsub.s32 %v984, %v986
      %v988 = vrot.slane %v974, %v987
      %v989 = vcombine.high %v981, %v981
      %v990 = vcombine.high %v988, %v988
      %v992 = vunpack.c.l.s4 1966171168
      %v993 = vunpack.c.0.s8 %v992
      %v994 = vlaneseq
      %v995 = vshrl.u32 %v994, 7
      %v996 = vsub.s32 %v993, %v995
      %v997 = vrot.slane %v981, %v996
      %v999 = vunpack.c.l.s4 1966171168
      %v1000 = vunpack.c.0.s8 %v999
      %v1001 = vlaneseq
      %v1002 = vshrl.u32 %v1001, 7
      %v1003 = vsub.s32 %v1000, %v1002
      %v1004 = vrot.slane %v988, %v1003
      %v1006 = vunpack.c.l.s4 1966171168
      %v1007 = vunpack.c.0.s8 %v1006
      %v1008 = vlaneseq
      %v1009 = vshrl.u32 %v1008, 7
      %v1010 = vsub.s32 %v1007, %v1009
      %v1011 = vrot.slane %v989, %v1010
      %v1013 = vunpack.c.l.s4 1966171168
      %v1014 = vunpack.c.0.s8 %v1013
      %v1015 = vlaneseq
      %v1016 = vshrl.u32 %v1015, 7
      %v1017 = vsub.s32 %v1014, %v1016
      %v1018 = vrot.slane %v990, %v1017
      %v1019 = vcombine.high %v997, %v997
      %v1020 = vcombine.high %v1004, %v1004
      %v1021 = vcombine.high %v1011, %v1011
      %v1022 = vcombine.high %v810, %v810
      %v1024 = vunpack.c.l.s4 1966171168
      %v1025 = vunpack.c.0.s8 %v1024
      %v1026 = vlaneseq
      %v1027 = vshrl.u32 %v1026, 7
      %v1028 = vsub.s32 %v1025, %v1027
      %v1029 = vrot.slane %v810, %v1028
      %v1031 = vunpack.c.l.s4 1966171168
      %v1032 = vunpack.c.0.s8 %v1031
      %v1033 = vlaneseq
      %v1034 = vshrl.u32 %v1033, 7
      %v1035 = vsub.s32 %v1032, %v1034
      %v1036 = vrot.slane %v1022, %v1035
      %v1037 = vcombine.high %v1029, %v1029
      %v1038 = vcombine.high %v1036, %v1036
      %v1040 = vunpack.c.l.s4 1966171168
      %v1041 = vunpack.c.0.s8 %v1040
      %v1042 = vlaneseq
      %v1043 = vshrl.u32 %v1042, 7
      %v1044 = vsub.s32 %v1041, %v1043
      %v1045 = vrot.slane %v1029, %v1044
      %v1047 = vunpack.c.l.s4 1966171168
      %v1048 = vunpack.c.0.s8 %v1047
      %v1049 = vlaneseq
      %v1050 = vshrl.u32 %v1049, 7
      %v1051 = vsub.s32 %v1048, %v1050
      %v1052 = vrot.slane %v1036, %v1051
      %v1054 = vunpack.c.l.s4 1966171168
      %v1055 = vunpack.c.0.s8 %v1054
      %v1056 = vlaneseq
      %v1057 = vshrl.u32 %v1056, 7
      %v1058 = vsub.s32 %v1055, %v1057
      %v1059 = vrot.slane %v1037, %v1058
      %v1061 = vunpack.c.l.s4 1966171168
      %v1062 = vunpack.c.0.s8 %v1061
      %v1063 = vlaneseq
      %v1064 = vshrl.u32 %v1063, 7
      %v1065 = vsub.s32 %v1062, %v1064
      %v1066 = vrot.slane %v1038, %v1065
      %v1067 = vcombine.high %v1045, %v1045
      %v1068 = vcombine.high %v1052, %v1052
      %v1069 = vcombine.high %v1059, %v1059
      %v1070 = vcombine.high %v811, %v811
      %v1072 = vunpack.c.l.s4 1966171168
      %v1073 = vunpack.c.0.s8 %v1072
      %v1074 = vlaneseq
      %v1075 = vshrl.u32 %v1074, 7
      %v1076 = vsub.s32 %v1073, %v1075
      %v1077 = vrot.slane %v811, %v1076
      %v1079 = vunpack.c.l.s4 1966171168
      %v1080 = vunpack.c.0.s8 %v1079
      %v1081 = vlaneseq
      %v1082 = vshrl.u32 %v1081, 7
      %v1083 = vsub.s32 %v1080, %v1082
      %v1084 = vrot.slane %v1070, %v1083
      %v1085 = vcombine.high %v1077, %v1077
      %v1086 = vcombine.high %v1084, %v1084
      %v1088 = vunpack.c.l.s4 1966171168
      %v1089 = vunpack.c.0.s8 %v1088
      %v1090 = vlaneseq
      %v1091 = vshrl.u32 %v1090, 7
      %v1092 = vsub.s32 %v1089, %v1091
      %v1093 = vrot.slane %v1077, %v1092
      %v1095 = vunpack.c.l.s4 1966171168
      %v1096 = vunpack.c.0.s8 %v1095
      %v1097 = vlaneseq
      %v1098 = vshrl.u32 %v1097, 7
      %v1099 = vsub.s32 %v1096, %v1098
      %v1100 = vrot.slane %v1084, %v1099
      %v1102 = vunpack.c.l.s4 1966171168
      %v1103 = vunpack.c.0.s8 %v1102
      %v1104 = vlaneseq
      %v1105 = vshrl.u32 %v1104, 7
      %v1106 = vsub.s32 %v1103, %v1105
      %v1107 = vrot.slane %v1085, %v1106
      %v1109 = vunpack.c.l.s4 1966171168
      %v1110 = vunpack.c.0.s8 %v1109
      %v1111 = vlaneseq
      %v1112 = vshrl.u32 %v1111, 7
      %v1113 = vsub.s32 %v1110, %v1112
      %v1114 = vrot.slane %v1086, %v1113
      %v1115 = vcombine.high %v1093, %v1093
      %v1116 = vcombine.high %v1100, %v1100
      %v1117 = vcombine.high %v1107, %v1107
      %v1118 = vcombine.high %v812, %v812
      %v1120 = vunpack.c.l.s4 1966171168
      %v1121 = vunpack.c.0.s8 %v1120
      %v1122 = vlaneseq
      %v1123 = vshrl.u32 %v1122, 7
      %v1124 = vsub.s32 %v1121, %v1123
      %v1125 = vrot.slane %v812, %v1124
      %v1127 = vunpack.c.l.s4 1966171168
      %v1128 = vunpack.c.0.s8 %v1127
      %v1129 = vlaneseq
      %v1130 = vshrl.u32 %v1129, 7
      %v1131 = vsub.s32 %v1128, %v1130
      %v1132 = vrot.slane %v1118, %v1131
      %v1133 = vcombine.high %v1125, %v1125
      %v1134 = vcombine.high %v1132, %v1132
      %v1136 = vunpack.c.l.s4 1966171168
      %v1137 = vunpack.c.0.s8 %v1136
      %v1138 = vlaneseq
      %v1139 = vshrl.u32 %v1138, 7
      %v1140 = vsub.s32 %v1137, %v1139
      %v1141 = vrot.slane %v1125, %v1140
      %v1143 = vunpack.c.l.s4 1966171168
      %v1144 = vunpack.c.0.s8 %v1143
      %v1145 = vlaneseq
      %v1146 = vshrl.u32 %v1145, 7
      %v1147 = vsub.s32 %v1144, %v1146
      %v1148 = vrot.slane %v1132, %v1147
      %v1150 = vunpack.c.l.s4 1966171168
      %v1151 = vunpack.c.0.s8 %v1150
      %v1152 = vlaneseq
      %v1153 = vshrl.u32 %v1152, 7
      %v1154 = vsub.s32 %v1151, %v1153
      %v1155 = vrot.slane %v1133, %v1154
      %v1157 = vunpack.c.l.s4 1966171168
      %v1158 = vunpack.c.0.s8 %v1157
      %v1159 = vlaneseq
      %v1160 = vshrl.u32 %v1159, 7
      %v1161 = vsub.s32 %v1158, %v1160
      %v1162 = vrot.slane %v1134, %v1161
      %v1163 = vcombine.high %v1141, %v1141
      %v1164 = vcombine.high %v1148, %v1148
      %v1165 = vcombine.high %v1155, %v1155
      %v1166 = vcombine.high %v813, %v813
      %v1168 = vunpack.c.l.s4 1966171168
      %v1169 = vunpack.c.0.s8 %v1168
      %v1170 = vlaneseq
      %v1171 = vshrl.u32 %v1170, 7
      %v1172 = vsub.s32 %v1169, %v1171
      %v1173 = vrot.slane %v813, %v1172
      %v1175 = vunpack.c.l.s4 1966171168
      %v1176 = vunpack.c.0.s8 %v1175
      %v1177 = vlaneseq
      %v1178 = vshrl.u32 %v1177, 7
      %v1179 = vsub.s32 %v1176, %v1178
      %v1180 = vrot.slane %v1166, %v1179
      %v1181 = vcombine.high %v1173, %v1173
      %v1182 = vcombine.high %v1180, %v1180
      %v1184 = vunpack.c.l.s4 1966171168
      %v1185 = vunpack.c.0.s8 %v1184
      %v1186 = vlaneseq
      %v1187 = vshrl.u32 %v1186, 7
      %v1188 = vsub.s32 %v1185, %v1187
      %v1189 = vrot.slane %v1173, %v1188
      %v1191 = vunpack.c.l.s4 1966171168
      %v1192 = vunpack.c.0.s8 %v1191
      %v1193 = vlaneseq
      %v1194 = vshrl.u32 %v1193, 7
      %v1195 = vsub.s32 %v1192, %v1194
      %v1196 = vrot.slane %v1180, %v1195
      %v1198 = vunpack.c.l.s4 1966171168
      %v1199 = vunpack.c.0.s8 %v1198
      %v1200 = vlaneseq
      %v1201 = vshrl.u32 %v1200, 7
      %v1202 = vsub.s32 %v1199, %v1201
      %v1203 = vrot.slane %v1181, %v1202
      %v1205 = vunpack.c.l.s4 1966171168
      %v1206 = vunpack.c.0.s8 %v1205
      %v1207 = vlaneseq
      %v1208 = vshrl.u32 %v1207, 7
      %v1209 = vsub.s32 %v1206, %v1208
      %v1210 = vrot.slane %v1182, %v1209
      %v1211 = vcombine.high %v1189, %v1189
      %v1212 = vcombine.high %v1196, %v1196
      %v1213 = vcombine.high %v1203, %v1203
      %v1215 = vlaneseq
      %v1216 = vshrl.u32 %v1215, 7
      %v1217 = vsub.s32 0, %v1216
      %v1218 = vrot.slane %v821, %v1217
      %v1220 = vcombine.low %v853, %v867
      %v1221 = vcombine.low %v875, %v877
      %v1222 = vcombine.low %v860, %v874
      %v1223 = vcombine.low %v876, %v901
      %v1225 = vunpack.c.l.s4 1966171168
      %v1226 = vunpack.c.0.s8 %v1225
      %v1227 = vlaneseq
      %v1228 = vshrl.u32 %v1227, 7
      %v1229 = vsub.s32 %v1226, %v1228
      %v1230 = vrot.slane %v1220, %v1229
      %v1232 = vunpack.c.l.s4 1966171168
      %v1233 = vunpack.c.0.s8 %v1232
      %v1234 = vlaneseq
      %v1235 = vshrl.u32 %v1234, 7
      %v1236 = vsub.s32 %v1233, %v1235
      %v1237 = vrot.slane %v1221, %v1236
      %v1239 = vunpack.c.l.s4 1966171168
      %v1240 = vunpack.c.0.s8 %v1239
      %v1241 = vlaneseq
      %v1242 = vshrl.u32 %v1241, 7
      %v1243 = vsub.s32 %v1240, %v1242
      %v1244 = vrot.slane %v1222, %v1243
      %v1246 = vunpack.c.l.s4 1966171168
      %v1247 = vunpack.c.0.s8 %v1246
      %v1248 = vlaneseq
      %v1249 = vshrl.u32 %v1248, 7
      %v1250 = vsub.s32 %v1247, %v1249
      %v1251 = vrot.slane %v1223, %v1250
      %v1252 = vcombine.low %v1230, %v1237
      %v1253 = vcombine.low %v1244, %v1251
      %v1255 = vunpack.c.l.s4 1966171168
      %v1256 = vunpack.c.0.s8 %v1255
      %v1257 = vlaneseq
      %v1258 = vshrl.u32 %v1257, 7
      %v1259 = vsub.s32 %v1256, %v1258
      %v1260 = vrot.slane %v1252, %v1259
      %v1262 = vunpack.c.l.s4 1966171168
      %v1263 = vunpack.c.0.s8 %v1262
      %v1264 = vlaneseq
      %v1265 = vshrl.u32 %v1264, 7
      %v1266 = vsub.s32 %v1263, %v1265
      %v1267 = vrot.slane %v1253, %v1266
      %v1268 = vcombine.low %v1260, %v1267
      %v1269 = vcombine.low %v915, %v923
      %v1270 = vcombine.low %v925, %v908
      %v1271 = vcombine.low %v922, %v924
      %v1272 = vcombine.low %v949, %v963
      %v1274 = vunpack.c.l.s4 1966171168
      %v1275 = vunpack.c.0.s8 %v1274
      %v1276 = vlaneseq
      %v1277 = vshrl.u32 %v1276, 7
      %v1278 = vsub.s32 %v1275, %v1277
      %v1279 = vrot.slane %v1269, %v1278
      %v1281 = vunpack.c.l.s4 1966171168
      %v1282 = vunpack.c.0.s8 %v1281
      %v1283 = vlaneseq
      %v1284 = vshrl.u32 %v1283, 7
      %v1285 = vsub.s32 %v1282, %v1284
      %v1286 = vrot.slane %v1270, %v1285
      %v1288 = vunpack.c.l.s4 1966171168
      %v1289 = vunpack.c.0.s8 %v1288
      %v1290 = vlaneseq
      %v1291 = vshrl.u32 %v1290, 7
      %v1292 = vsub.s32 %v1289, %v1291
      %v1293 = vrot.slane %v1271, %v1292
      %v1295 = vunpack.c.l.s4 1966171168
      %v1296 = vunpack.c.0.s8 %v1295
      %v1297 = vlaneseq
      %v1298 = vshrl.u32 %v1297, 7
      %v1299 = vsub.s32 %v1296, %v1298
      %v1300 = vrot.slane %v1272, %v1299
      %v1301 = vcombine.low %v1279, %v1286
      %v1302 = vcombine.low %v1293, %v1300
      %v1304 = vunpack.c.l.s4 1966171168
      %v1305 = vunpack.c.0.s8 %v1304
      %v1306 = vlaneseq
      %v1307 = vshrl.u32 %v1306, 7
      %v1308 = vsub.s32 %v1305, %v1307
      %v1309 = vrot.slane %v1301, %v1308
      %v1311 = vunpack.c.l.s4 1966171168
      %v1312 = vunpack.c.0.s8 %v1311
      %v1313 = vlaneseq
      %v1314 = vshrl.u32 %v1313, 7
      %v1315 = vsub.s32 %v1312, %v1314
      %v1316 = vrot.slane %v1302, %v1315
      %v1317 = vcombine.low %v1309, %v1316
      %v1318 = vcombine.low %v971, %v973
      %v1319 = vcombine.low %v956, %v970
      %v1320 = vcombine.low %v972, %v997
      %v1321 = vcombine.low %v1011, %v1019
      %v1323 = vunpack.c.l.s4 1966171168
      %v1324 = vunpack.c.0.s8 %v1323
      %v1325 = vlaneseq
      %v1326 = vshrl.u32 %v1325, 7
      %v1327 = vsub.s32 %v1324, %v1326
      %v1328 = vrot.slane %v1318, %v1327
      %v1330 = vunpack.c.l.s4 1966171168
      %v1331 = vunpack.c.0.s8 %v1330
      %v1332 = vlaneseq
      %v1333 = vshrl.u32 %v1332, 7
      %v1334 = vsub.s32 %v1331, %v1333
      %v1335 = vrot.slane %v1319, %v1334
      %v1337 = vunpack.c.l.s4 1966171168
      %v1338 = vunpack.c.0.s8 %v1337
      %v1339 = vlaneseq
      %v1340 = vshrl.u32 %v1339, 7
      %v1341 = vsub.s32 %v1338, %v1340
      %v1342 = vrot.slane %v1320, %v1341
      %v1344 = vunpack.c.l.s4 1966171168
      %v1345 = vunpack.c.0.s8 %v1344
      %v1346 = vlaneseq
      %v1347 = vshrl.u32 %v1346, 7
      %v1348 = vsub.s32 %v1345, %v1347
      %v1349 = vrot.slane %v1321, %v1348
      %v1350 = vcombine.low %v1328, %v1335
      %v1351 = vcombine.low %v1342, %v1349
      %v1353 = vunpack.c.l.s4 1966171168
      %v1354 = vunpack.c.0.s8 %v1353
      %v1355 = vlaneseq
      %v1356 = vshrl.u32 %v1355, 7
      %v1357 = vsub.s32 %v1354, %v1356
      %v1358 = vrot.slane %v1350, %v1357
      %v1360 = vunpack.c.l.s4 1966171168
      %v1361 = vunpack.c.0.s8 %v1360
      %v1362 = vlaneseq
      %v1363 = vshrl.u32 %v1362, 7
      %v1364 = vsub.s32 %v1361, %v1363
      %v1365 = vrot.slane %v1351, %v1364
      %v1366 = vcombine.low %v1358, %v1365
      %v1367 = vcombine.low %v1021, %v1004
      %v1368 = vcombine.low %v1018, %v1020
      %v1369 = vcombine.low %v1045, %v1059
      %v1370 = vcombine.low %v1067, %v1069
      %v1372 = vunpack.c.l.s4 1966171168
      %v1373 = vunpack.c.0.s8 %v1372
      %v1374 = vlaneseq
      %v1375 = vshrl.u32 %v1374, 7
      %v1376 = vsub.s32 %v1373, %v1375
      %v1377 = vrot.slane %v1367, %v1376
      %v1379 = vunpack.c.l.s4 1966171168
      %v1380 = vunpack.c.0.s8 %v1379
      %v1381 = vlaneseq
      %v1382 = vshrl.u32 %v1381, 7
      %v1383 = vsub.s32 %v1380, %v1382
      %v1384 = vrot.slane %v1368, %v1383
      %v1386 = vunpack.c.l.s4 1966171168
      %v1387 = vunpack.c.0.s8 %v1386
      %v1388 = vlaneseq
      %v1389 = vshrl.u32 %v1388, 7
      %v1390 = vsub.s32 %v1387, %v1389
      %v1391 = vrot.slane %v1369, %v1390
      %v1393 = vunpack.c.l.s4 1966171168
      %v1394 = vunpack.c.0.s8 %v1393
      %v1395 = vlaneseq
      %v1396 = vshrl.u32 %v1395, 7
      %v1397 = vsub.s32 %v1394, %v1396
      %v1398 = vrot.slane %v1370, %v1397
      %v1399 = vcombine.low %v1377, %v1384
      %v1400 = vcombine.low %v1391, %v1398
      %v1402 = vunpack.c.l.s4 1966171168
      %v1403 = vunpack.c.0.s8 %v1402
      %v1404 = vlaneseq
      %v1405 = vshrl.u32 %v1404, 7
      %v1406 = vsub.s32 %v1403, %v1405
      %v1407 = vrot.slane %v1399, %v1406
      %v1409 = vunpack.c.l.s4 1966171168
      %v1410 = vunpack.c.0.s8 %v1409
      %v1411 = vlaneseq
      %v1412 = vshrl.u32 %v1411, 7
      %v1413 = vsub.s32 %v1410, %v1412
      %v1414 = vrot.slane %v1400, %v1413
      %v1415 = vcombine.low %v1407, %v1414
      %v1416 = vcombine.low %v1052, %v1066
      %v1417 = vcombine.low %v1068, %v1093
      %v1418 = vcombine.low %v1107, %v1115
      %v1419 = vcombine.low %v1117, %v1100
      %v1421 = vunpack.c.l.s4 1966171168
      %v1422 = vunpack.c.0.s8 %v1421
      %v1423 = vlaneseq
      %v1424 = vshrl.u32 %v1423, 7
      %v1425 = vsub.s32 %v1422, %v1424
      %v1426 = vrot.slane %v1416, %v1425
      %v1428 = vunpack.c.l.s4 1966171168
      %v1429 = vunpack.c.0.s8 %v1428
      %v1430 = vlaneseq
      %v1431 = vshrl.u32 %v1430, 7
      %v1432 = vsub.s32 %v1429, %v1431
      %v1433 = vrot.slane %v1417, %v1432
      %v1435 = vunpack.c.l.s4 1966171168
      %v1436 = vunpack.c.0.s8 %v1435
      %v1437 = vlaneseq
      %v1438 = vshrl.u32 %v1437, 7
      %v1439 = vsub.s32 %v1436, %v1438
      %v1440 = vrot.slane %v1418, %v1439
      %v1442 = vunpack.c.l.s4 1966171168
      %v1443 = vunpack.c.0.s8 %v1442
      %v1444 = vlaneseq
      %v1445 = vshrl.u32 %v1444, 7
      %v1446 = vsub.s32 %v1443, %v1445
      %v1447 = vrot.slane %v1419, %v1446
      %v1448 = vcombine.low %v1426, %v1433
      %v1449 = vcombine.low %v1440, %v1447
      %v1451 = vunpack.c.l.s4 1966171168
      %v1452 = vunpack.c.0.s8 %v1451
      %v1453 = vlaneseq
      %v1454 = vshrl.u32 %v1453, 7
      %v1455 = vsub.s32 %v1452, %v1454
      %v1456 = vrot.slane %v1448, %v1455
      %v1458 = vunpack.c.l.s4 1966171168
      %v1459 = vunpack.c.0.s8 %v1458
      %v1460 = vlaneseq
      %v1461 = vshrl.u32 %v1460, 7
      %v1462 = vsub.s32 %v1459, %v1461
      %v1463 = vrot.slane %v1449, %v1462
      %v1464 = vcombine.low %v1456, %v1463
      %v1465 = vcombine.low %v1114, %v1116
      %v1466 = vcombine.low %v1141, %v1155
      %v1467 = vcombine.low %v1163, %v1165
      %v1468 = vcombine.low %v1148, %v1162
      %v1470 = vunpack.c.l.s4 1966171168
      %v1471 = vunpack.c.0.s8 %v1470
      %v1472 = vlaneseq
      %v1473 = vshrl.u32 %v1472, 7
      %v1474 = vsub.s32 %v1471, %v1473
      %v1475 = vrot.slane %v1465, %v1474
      %v1477 = vunpack.c.l.s4 1966171168
      %v1478 = vunpack.c.0.s8 %v1477
      %v1479 = vlaneseq
      %v1480 = vshrl.u32 %v1479, 7
      %v1481 = vsub.s32 %v1478, %v1480
      %v1482 = vrot.slane %v1466, %v1481
      %v1484 = vunpack.c.l.s4 1966171168
      %v1485 = vunpack.c.0.s8 %v1484
      %v1486 = vlaneseq
      %v1487 = vshrl.u32 %v1486, 7
      %v1488 = vsub.s32 %v1485, %v1487
      %v1489 = vrot.slane %v1467, %v1488
      %v1491 = vunpack.c.l.s4 1966171168
      %v1492 = vunpack.c.0.s8 %v1491
      %v1493 = vlaneseq
      %v1494 = vshrl.u32 %v1493, 7
      %v1495 = vsub.s32 %v1492, %v1494
      %v1496 = vrot.slane %v1468, %v1495
      %v1497 = vcombine.low %v1475, %v1482
      %v1498 = vcombine.low %v1489, %v1496
      %v1500 = vunpack.c.l.s4 1966171168
      %v1501 = vunpack.c.0.s8 %v1500
      %v1502 = vlaneseq
      %v1503 = vshrl.u32 %v1502, 7
      %v1504 = vsub.s32 %v1501, %v1503
      %v1505 = vrot.slane %v1497, %v1504
      %v1507 = vunpack.c.l.s4 1966171168
      %v1508 = vunpack.c.0.s8 %v1507
      %v1509 = vlaneseq
      %v1510 = vshrl.u32 %v1509, 7
      %v1511 = vsub.s32 %v1508, %v1510
      %v1512 = vrot.slane %v1498, %v1511
      %v1513 = vcombine.low %v1505, %v1512
      %v1514 = vcombine.low %v1164, %v1189
      %v1515 = vcombine.low %v1203, %v1211
      %v1516 = vcombine.low %v1213, %v1196
      %v1517 = vcombine.low %v1210, %v1212
      %v1519 = vunpack.c.l.s4 1966171168
      %v1520 = vunpack.c.0.s8 %v1519
      %v1521 = vlaneseq
      %v1522 = vshrl.u32 %v1521, 7
      %v1523 = vsub.s32 %v1520, %v1522
      %v1524 = vrot.slane %v1514, %v1523
      %v1526 = vunpack.c.l.s4 1966171168
      %v1527 = vunpack.c.0.s8 %v1526
      %v1528 = vlaneseq
      %v1529 = vshrl.u32 %v1528, 7
      %v1530 = vsub.s32 %v1527, %v1529
      %v1531 = vrot.slane %v1515, %v1530
      %v1533 = vunpack.c.l.s4 1966171168
      %v1534 = vunpack.c.0.s8 %v1533
      %v1535 = vlaneseq
      %v1536 = vshrl.u32 %v1535, 7
      %v1537 = vsub.s32 %v1534, %v1536
      %v1538 = vrot.slane %v1516, %v1537
      %v1540 = vunpack.c.l.s4 1966171168
      %v1541 = vunpack.c.0.s8 %v1540
      %v1542 = vlaneseq
      %v1543 = vshrl.u32 %v1542, 7
      %v1544 = vsub.s32 %v1541, %v1543
      %v1545 = vrot.slane %v1517, %v1544
      %v1546 = vcombine.low %v1524, %v1531
      %v1547 = vcombine.low %v1538, %v1545
      %v1549 = vunpack.c.l.s4 1966171168
      %v1550 = vunpack.c.0.s8 %v1549
      %v1551 = vlaneseq
      %v1552 = vshrl.u32 %v1551, 7
      %v1553 = vsub.s32 %v1550, %v1552
      %v1554 = vrot.slane %v1546, %v1553
      %v1556 = vunpack.c.l.s4 1966171168
      %v1557 = vunpack.c.0.s8 %v1556
      %v1558 = vlaneseq
      %v1559 = vshrl.u32 %v1558, 7
      %v1560 = vsub.s32 %v1557, %v1559
      %v1561 = vrot.slane %v1547, %v1560
      %v1562 = vcombine.low %v1554, %v1561
      %vm1563 = vcmask 261120
      %v1564 = vsel %vm1563, %v1268, 0
      %v1566 = vsel %vm1563, %v1317, 0
      %v1568 = vsel %vm1563, %v1366, 0
      %v1570 = vsel %vm1563, %v1415, 0
      %v1572 = vsel %vm1563, %v1464, 0
      %v1574 = vsel %vm1563, %v1513, 0
      %v1576 = vsel %vm1563, %v1562, 0
      %1578 = vmatprep.subr.mxu0 0.0
      %1579 = vmatpush1.msra.mxu0 %v816
      %1580 = vmatprep.subr.mxu0 0.0
      %1581 = vmatpush1.msra.mxu0 %v817
      %1582 = vmatprep.subr.mxu0 0.0
      %1583 = vmatpush1.msra.mxu0 %v818
      %1584 = vmatprep.subr.mxu0 0.0
      %1585 = vmatpush1.msra.mxu0 %v819
      %1586 = vmatprep.subr.mxu0 0.0
      %1587 = vmatpush1.msra.mxu0 0.0
      %1588 = vmatprep.subr.mxu0 0.0
      %1589 = vmatpush1.msra.mxu0 0.0
      %1590 = vmatprep.subr.mxu0 0.0
      %1591 = vmatpush1.msra.mxu0 0.0
      %1592 = vmatprep.subr.mxu0 0.0
      %1593 = vmatpush1.msra.mxu0 0.0
      %1594 = vmatprep.subr.mxu0 0.0
      %1595 = vmatpush1.msra.mxu0 0.0
      %1596 = vmatprep.subr.mxu0 0.0
      %1597 = vmatpush1.msra.mxu0 0.0
      %1598 = vmatprep.subr.mxu0 0.0
      %1599 = vmatpush1.msra.mxu0 0.0
      %1600 = vmatprep.subr.mxu0 0.0
      %1601 = vmatpush1.msra.mxu0 0.0
      %1602 = vmatprep.subr.mxu0 0.0
      %1603 = vmatpush1.msra.mxu0 0.0
      %1604 = vmatprep.subr.mxu0 0.0
      %1605 = vmatpush1.msra.mxu0 0.0
      %1606 = vmatprep.subr.mxu0 0.0
      %1607 = vmatpush1.msra.mxu0 0.0
      %1608 = vmatprep.subr.mxu0 0.0
      %1609 = vmatpush1.msra.mxu0 0.0
      %1610 = vmatprep.subr.mxu0 0.0
      %1611 = vmatpush1.msra.mxu0 0.0
      %1612 = vmatprep.subr.mxu0 0.0
      %1613 = vmatpush1.msra.mxu0 0.0
      %1614 = vmatprep.subr.mxu0 0.0
      %1615 = vmatpush1.msra.mxu0 0.0
      %1616 = vmatprep.subr.mxu0 0.0
      %1617 = vmatpush1.msra.mxu0 0.0
      %1618 = vmatprep.subr.mxu0 0.0
      %1619 = vmatpush1.msra.mxu0 0.0
      %1620 = vmatprep.subr.mxu0 0.0
      %1621 = vmatpush1.msra.mxu0 0.0
      %1622 = vmatprep.subr.mxu0 0.0
      %1623 = vmatpush1.msra.mxu0 0.0
      %1624 = vmatprep.subr.mxu0 0.0
      %1625 = vmatpush1.msra.mxu0 0.0
      %1626 = vmatprep.subr.mxu0 0.0
      %1627 = vmatpush1.msra.mxu0 0.0
      %1628 = vmatprep.subr.mxu0 0.0
      %1629 = vmatpush1.msra.mxu0 0.0
      %1630 = vmatprep.subr.mxu0 0.0
      %1631 = vmatpush1.msra.mxu0 0.0
      %1632 = vmatprep.subr.mxu0 0.0
      %1633 = vmatpush1.msra.mxu0 0.0
      %1634 = vmatprep.subr.mxu0 0.0
      %1635 = vmatpush1.msra.mxu0 0.0
      %1636 = vmatprep.subr.mxu0 0.0
      %1637 = vmatpush1.msra.mxu0 0.0
      %1638 = vmatprep.subr.mxu0 0.0
      %1639 = vmatpush1.msra.mxu0 0.0
      %1640 = vmatprep.subr.mxu0 0.0
      %1641 = vmatpush1.msra.mxu0 0.0
      %1642 = vmatprep.mubr.f32.mxu0 0.0
      %1643 = vmatmul.mubr.f32.gmra.mrb[0].mxu0 %v1564
      %v1644 = vpop.f32.mrb[0].mxu0
      %v1645 = vadd.f32 %v1218, %v1644
      %v1646 = vpop.f32.mrb[0].mxu0
      %1647 = vmatprep.mubr.f32.mxu0 0.0
      %1648 = vmatmul.mubr.f32.gmra.mrb[0].mxu0 %v1566
      %v1649 = vpop.f32.mrb[0].mxu0
      %v1650 = vadd.f32 %v1218, %v1649
      %v1651 = vpop.f32.mrb[0].mxu0
      %1652 = vmatprep.mubr.f32.mxu0 0.0
      %1653 = vmatmul.mubr.f32.gmra.mrb[0].mxu0 %v1568
      %v1654 = vpop.f32.mrb[0].mxu0
      %v1655 = vadd.f32 %v1218, %v1654
      %v1656 = vpop.f32.mrb[0].mxu0
      %1657 = vmatprep.mubr.f32.mxu0 0.0
      %1658 = vmatmul.mubr.f32.gmra.mrb[0].mxu0 %v1570
      %v1659 = vpop.f32.mrb[0].mxu0
      %v1660 = vadd.f32 %v1218, %v1659
      %v1661 = vpop.f32.mrb[0].mxu0
      %1662 = vmatprep.mubr.f32.mxu0 0.0
      %1663 = vmatmul.mubr.f32.gmra.mrb[0].mxu0 %v1572
      %v1664 = vpop.f32.mrb[0].mxu0
      %v1665 = vadd.f32 %v1218, %v1664
      %v1666 = vpop.f32.mrb[0].mxu0
      %1667 = vmatprep.mubr.f32.mxu0 0.0
      %1668 = vmatmul.mubr.f32.gmra.mrb[0].mxu0 %v1574
      %v1669 = vpop.f32.mrb[0].mxu0
      %v1670 = vadd.f32 %v1218, %v1669
      %v1671 = vpop.f32.mrb[0].mxu0
      %1672 = vmatprep.mubr.f32.mxu0 0.0
      %1673 = vmatmul.mubr.f32.gmra.mrb[0].mxu0 %v1576
      %v1674 = vpop.f32.mrb[0].mxu0
      %v1675 = vadd.f32 %v1218, %v1674
      %v1676 = vpop.f32.mrb[0].mxu0
      %1677 = vdwg.mxu0
      %v1685 = vcombine.high %v1645, %v1645
      %v1687 = vunpack.c.l.s4 1966171168
      %v1688 = vunpack.c.0.s8 %v1687
      %v1689 = vlaneseq
      %v1690 = vshrl.u32 %v1689, 7
      %v1691 = vsub.s32 %v1688, %v1690
      %v1692 = vrot.slane %v1645, %v1691
      %v1694 = vunpack.c.l.s4 1966171168
      %v1695 = vunpack.c.0.s8 %v1694
      %v1696 = vlaneseq
      %v1697 = vshrl.u32 %v1696, 7
      %v1698 = vsub.s32 %v1695, %v1697
      %v1699 = vrot.slane %v1685, %v1698
      %v1700 = vcombine.high %v1692, %v1692
      %v1701 = vcombine.high %v1699, %v1699
      %v1703 = vunpack.c.l.s4 1966171168
      %v1704 = vunpack.c.0.s8 %v1703
      %v1705 = vlaneseq
      %v1706 = vshrl.u32 %v1705, 7
      %v1707 = vsub.s32 %v1704, %v1706
      %v1708 = vrot.slane %v1692, %v1707
      %v1710 = vunpack.c.l.s4 1966171168
      %v1711 = vunpack.c.0.s8 %v1710
      %v1712 = vlaneseq
      %v1713 = vshrl.u32 %v1712, 7
      %v1714 = vsub.s32 %v1711, %v1713
      %v1715 = vrot.slane %v1699, %v1714
      %v1717 = vunpack.c.l.s4 1966171168
      %v1718 = vunpack.c.0.s8 %v1717
      %v1719 = vlaneseq
      %v1720 = vshrl.u32 %v1719, 7
      %v1721 = vsub.s32 %v1718, %v1720
      %v1722 = vrot.slane %v1700, %v1721
      %v1724 = vunpack.c.l.s4 1966171168
      %v1725 = vunpack.c.0.s8 %v1724
      %v1726 = vlaneseq
      %v1727 = vshrl.u32 %v1726, 7
      %v1728 = vsub.s32 %v1725, %v1727
      %v1729 = vrot.slane %v1701, %v1728
      %v1730 = vcombine.high %v1708, %v1708
      %v1731 = vcombine.high %v1715, %v1715
      %v1732 = vcombine.high %v1722, %v1722
      %v1733 = vcombine.high %v1729, %v1729
      %v1734 = vcombine.high %v1650, %v1650
      %v1736 = vunpack.c.l.s4 1966171168
      %v1737 = vunpack.c.0.s8 %v1736
      %v1738 = vlaneseq
      %v1739 = vshrl.u32 %v1738, 7
      %v1740 = vsub.s32 %v1737, %v1739
      %v1741 = vrot.slane %v1650, %v1740
      %v1743 = vunpack.c.l.s4 1966171168
      %v1744 = vunpack.c.0.s8 %v1743
      %v1745 = vlaneseq
      %v1746 = vshrl.u32 %v1745, 7
      %v1747 = vsub.s32 %v1744, %v1746
      %v1748 = vrot.slane %v1734, %v1747
      %v1749 = vcombine.high %v1741, %v1741
      %v1750 = vcombine.high %v1748, %v1748
      %v1752 = vunpack.c.l.s4 1966171168
      %v1753 = vunpack.c.0.s8 %v1752
      %v1754 = vlaneseq
      %v1755 = vshrl.u32 %v1754, 7
      %v1756 = vsub.s32 %v1753, %v1755
      %v1757 = vrot.slane %v1741, %v1756
      %v1759 = vunpack.c.l.s4 1966171168
      %v1760 = vunpack.c.0.s8 %v1759
      %v1761 = vlaneseq
      %v1762 = vshrl.u32 %v1761, 7
      %v1763 = vsub.s32 %v1760, %v1762
      %v1764 = vrot.slane %v1748, %v1763
      %v1766 = vunpack.c.l.s4 1966171168
      %v1767 = vunpack.c.0.s8 %v1766
      %v1768 = vlaneseq
      %v1769 = vshrl.u32 %v1768, 7
      %v1770 = vsub.s32 %v1767, %v1769
      %v1771 = vrot.slane %v1749, %v1770
      %v1773 = vunpack.c.l.s4 1966171168
      %v1774 = vunpack.c.0.s8 %v1773
      %v1775 = vlaneseq
      %v1776 = vshrl.u32 %v1775, 7
      %v1777 = vsub.s32 %v1774, %v1776
      %v1778 = vrot.slane %v1750, %v1777
      %v1779 = vcombine.high %v1757, %v1757
      %v1780 = vcombine.high %v1764, %v1764
      %v1781 = vcombine.high %v1771, %v1771
      %v1782 = vcombine.high %v1778, %v1778
      %v1783 = vcombine.high %v1655, %v1655
      %v1785 = vunpack.c.l.s4 1966171168
      %v1786 = vunpack.c.0.s8 %v1785
      %v1787 = vlaneseq
      %v1788 = vshrl.u32 %v1787, 7
      %v1789 = vsub.s32 %v1786, %v1788
      %v1790 = vrot.slane %v1655, %v1789
      %v1792 = vunpack.c.l.s4 1966171168
      %v1793 = vunpack.c.0.s8 %v1792
      %v1794 = vlaneseq
      %v1795 = vshrl.u32 %v1794, 7
      %v1796 = vsub.s32 %v1793, %v1795
      %v1797 = vrot.slane %v1783, %v1796
      %v1798 = vcombine.high %v1790, %v1790
      %v1799 = vcombine.high %v1797, %v1797
      %v1801 = vunpack.c.l.s4 1966171168
      %v1802 = vunpack.c.0.s8 %v1801
      %v1803 = vlaneseq
      %v1804 = vshrl.u32 %v1803, 7
      %v1805 = vsub.s32 %v1802, %v1804
      %v1806 = vrot.slane %v1790, %v1805
      %v1808 = vunpack.c.l.s4 1966171168
      %v1809 = vunpack.c.0.s8 %v1808
      %v1810 = vlaneseq
      %v1811 = vshrl.u32 %v1810, 7
      %v1812 = vsub.s32 %v1809, %v1811
      %v1813 = vrot.slane %v1797, %v1812
      %v1815 = vunpack.c.l.s4 1966171168
      %v1816 = vunpack.c.0.s8 %v1815
      %v1817 = vlaneseq
      %v1818 = vshrl.u32 %v1817, 7
      %v1819 = vsub.s32 %v1816, %v1818
      %v1820 = vrot.slane %v1798, %v1819
      %v1822 = vunpack.c.l.s4 1966171168
      %v1823 = vunpack.c.0.s8 %v1822
      %v1824 = vlaneseq
      %v1825 = vshrl.u32 %v1824, 7
      %v1826 = vsub.s32 %v1823, %v1825
      %v1827 = vrot.slane %v1799, %v1826
      %v1828 = vcombine.high %v1806, %v1806
      %v1829 = vcombine.high %v1813, %v1813
      %v1830 = vcombine.high %v1820, %v1820
      %v1831 = vcombine.high %v1827, %v1827
      %v1832 = vcombine.high %v1660, %v1660
      %v1834 = vunpack.c.l.s4 1966171168
      %v1835 = vunpack.c.0.s8 %v1834
      %v1836 = vlaneseq
      %v1837 = vshrl.u32 %v1836, 7
      %v1838 = vsub.s32 %v1835, %v1837
      %v1839 = vrot.slane %v1660, %v1838
      %v1841 = vunpack.c.l.s4 1966171168
      %v1842 = vunpack.c.0.s8 %v1841
      %v1843 = vlaneseq
      %v1844 = vshrl.u32 %v1843, 7
      %v1845 = vsub.s32 %v1842, %v1844
      %v1846 = vrot.slane %v1832, %v1845
      %v1847 = vcombine.high %v1839, %v1839
      %v1848 = vcombine.high %v1846, %v1846
      %v1850 = vunpack.c.l.s4 1966171168
      %v1851 = vunpack.c.0.s8 %v1850
      %v1852 = vlaneseq
      %v1853 = vshrl.u32 %v1852, 7
      %v1854 = vsub.s32 %v1851, %v1853
      %v1855 = vrot.slane %v1839, %v1854
      %v1857 = vunpack.c.l.s4 1966171168
      %v1858 = vunpack.c.0.s8 %v1857
      %v1859 = vlaneseq
      %v1860 = vshrl.u32 %v1859, 7
      %v1861 = vsub.s32 %v1858, %v1860
      %v1862 = vrot.slane %v1846, %v1861
      %v1864 = vunpack.c.l.s4 1966171168
      %v1865 = vunpack.c.0.s8 %v1864
      %v1866 = vlaneseq
      %v1867 = vshrl.u32 %v1866, 7
      %v1868 = vsub.s32 %v1865, %v1867
      %v1869 = vrot.slane %v1847, %v1868
      %v1871 = vunpack.c.l.s4 1966171168
      %v1872 = vunpack.c.0.s8 %v1871
      %v1873 = vlaneseq
      %v1874 = vshrl.u32 %v1873, 7
      %v1875 = vsub.s32 %v1872, %v1874
      %v1876 = vrot.slane %v1848, %v1875
      %v1877 = vcombine.high %v1855, %v1855
      %v1878 = vcombine.high %v1862, %v1862
      %v1879 = vcombine.high %v1869, %v1869
      %v1880 = vcombine.high %v1876, %v1876
      %v1881 = vcombine.high %v1665, %v1665
      %v1883 = vunpack.c.l.s4 1966171168
      %v1884 = vunpack.c.0.s8 %v1883
      %v1885 = vlaneseq
      %v1886 = vshrl.u32 %v1885, 7
      %v1887 = vsub.s32 %v1884, %v1886
      %v1888 = vrot.slane %v1665, %v1887
      %v1890 = vunpack.c.l.s4 1966171168
      %v1891 = vunpack.c.0.s8 %v1890
      %v1892 = vlaneseq
      %v1893 = vshrl.u32 %v1892, 7
      %v1894 = vsub.s32 %v1891, %v1893
      %v1895 = vrot.slane %v1881, %v1894
      %v1896 = vcombine.high %v1888, %v1888
      %v1897 = vcombine.high %v1895, %v1895
      %v1899 = vunpack.c.l.s4 1966171168
      %v1900 = vunpack.c.0.s8 %v1899
      %v1901 = vlaneseq
      %v1902 = vshrl.u32 %v1901, 7
      %v1903 = vsub.s32 %v1900, %v1902
      %v1904 = vrot.slane %v1888, %v1903
      %v1906 = vunpack.c.l.s4 1966171168
      %v1907 = vunpack.c.0.s8 %v1906
      %v1908 = vlaneseq
      %v1909 = vshrl.u32 %v1908, 7
      %v1910 = vsub.s32 %v1907, %v1909
      %v1911 = vrot.slane %v1895, %v1910
      %v1913 = vunpack.c.l.s4 1966171168
      %v1914 = vunpack.c.0.s8 %v1913
      %v1915 = vlaneseq
      %v1916 = vshrl.u32 %v1915, 7
      %v1917 = vsub.s32 %v1914, %v1916
      %v1918 = vrot.slane %v1896, %v1917
      %v1920 = vunpack.c.l.s4 1966171168
      %v1921 = vunpack.c.0.s8 %v1920
      %v1922 = vlaneseq
      %v1923 = vshrl.u32 %v1922, 7
      %v1924 = vsub.s32 %v1921, %v1923
      %v1925 = vrot.slane %v1897, %v1924
      %v1926 = vcombine.high %v1904, %v1904
      %v1927 = vcombine.high %v1911, %v1911
      %v1928 = vcombine.high %v1918, %v1918
      %v1929 = vcombine.high %v1925, %v1925
      %v1930 = vcombine.high %v1670, %v1670
      %v1932 = vunpack.c.l.s4 1966171168
      %v1933 = vunpack.c.0.s8 %v1932
      %v1934 = vlaneseq
      %v1935 = vshrl.u32 %v1934, 7
      %v1936 = vsub.s32 %v1933, %v1935
      %v1937 = vrot.slane %v1670, %v1936
      %v1939 = vunpack.c.l.s4 1966171168
      %v1940 = vunpack.c.0.s8 %v1939
      %v1941 = vlaneseq
      %v1942 = vshrl.u32 %v1941, 7
      %v1943 = vsub.s32 %v1940, %v1942
      %v1944 = vrot.slane %v1930, %v1943
      %v1945 = vcombine.high %v1937, %v1937
      %v1946 = vcombine.high %v1944, %v1944
      %v1948 = vunpack.c.l.s4 1966171168
      %v1949 = vunpack.c.0.s8 %v1948
      %v1950 = vlaneseq
      %v1951 = vshrl.u32 %v1950, 7
      %v1952 = vsub.s32 %v1949, %v1951
      %v1953 = vrot.slane %v1937, %v1952
      %v1955 = vunpack.c.l.s4 1966171168
      %v1956 = vunpack.c.0.s8 %v1955
      %v1957 = vlaneseq
      %v1958 = vshrl.u32 %v1957, 7
      %v1959 = vsub.s32 %v1956, %v1958
      %v1960 = vrot.slane %v1944, %v1959
      %v1962 = vunpack.c.l.s4 1966171168
      %v1963 = vunpack.c.0.s8 %v1962
      %v1964 = vlaneseq
      %v1965 = vshrl.u32 %v1964, 7
      %v1966 = vsub.s32 %v1963, %v1965
      %v1967 = vrot.slane %v1945, %v1966
      %v1969 = vunpack.c.l.s4 1966171168
      %v1970 = vunpack.c.0.s8 %v1969
      %v1971 = vlaneseq
      %v1972 = vshrl.u32 %v1971, 7
      %v1973 = vsub.s32 %v1970, %v1972
      %v1974 = vrot.slane %v1946, %v1973
      %v1975 = vcombine.high %v1953, %v1953
      %v1976 = vcombine.high %v1960, %v1960
      %v1977 = vcombine.high %v1967, %v1967
      %v1978 = vcombine.high %v1974, %v1974
      %v1979 = vcombine.high %v1675, %v1675
      %v1981 = vunpack.c.l.s4 1966171168
      %v1982 = vunpack.c.0.s8 %v1981
      %v1983 = vlaneseq
      %v1984 = vshrl.u32 %v1983, 7
      %v1985 = vsub.s32 %v1982, %v1984
      %v1986 = vrot.slane %v1675, %v1985
      %v1988 = vunpack.c.l.s4 1966171168
      %v1989 = vunpack.c.0.s8 %v1988
      %v1990 = vlaneseq
      %v1991 = vshrl.u32 %v1990, 7
      %v1992 = vsub.s32 %v1989, %v1991
      %v1993 = vrot.slane %v1979, %v1992
      %v1994 = vcombine.high %v1986, %v1986
      %v1995 = vcombine.high %v1993, %v1993
      %v1997 = vunpack.c.l.s4 1966171168
      %v1998 = vunpack.c.0.s8 %v1997
      %v1999 = vlaneseq
      %v2000 = vshrl.u32 %v1999, 7
      %v2001 = vsub.s32 %v1998, %v2000
      %v2002 = vrot.slane %v1986, %v2001
      %v2004 = vunpack.c.l.s4 1966171168
      %v2005 = vunpack.c.0.s8 %v2004
      %v2006 = vlaneseq
      %v2007 = vshrl.u32 %v2006, 7
      %v2008 = vsub.s32 %v2005, %v2007
      %v2009 = vrot.slane %v1993, %v2008
      %v2011 = vunpack.c.l.s4 1966171168
      %v2012 = vunpack.c.0.s8 %v2011
      %v2013 = vlaneseq
      %v2014 = vshrl.u32 %v2013, 7
      %v2015 = vsub.s32 %v2012, %v2014
      %v2016 = vrot.slane %v1994, %v2015
      %v2018 = vunpack.c.l.s4 1966171168
      %v2019 = vunpack.c.0.s8 %v2018
      %v2020 = vlaneseq
      %v2021 = vshrl.u32 %v2020, 7
      %v2022 = vsub.s32 %v2019, %v2021
      %v2023 = vrot.slane %v1995, %v2022
      %v2024 = vcombine.high %v2002, %v2002
      %v2025 = vcombine.high %v2009, %v2009
      %v2026 = vcombine.high %v2016, %v2016
      %v2027 = vcombine.high %v2023, %v2023
      %v2028 = vlaneseq
      %v2029 = vshrl.u32 %v2028, 7
      %v2030 = vsub.s32 0, %v2029
      %v2031 = vrot.slane %v1708, %v2030
      %v2032 = vlaneseq
      %v2033 = vshrl.u32 %v2032, 7
      %v2034 = vsub.s32 0, %v2033
      %v2035 = vrot.slane %v1722, %v2034
      %v2036 = vlaneseq
      %v2037 = vshrl.u32 %v2036, 7
      %v2038 = vsub.s32 0, %v2037
      %v2039 = vrot.slane %v1730, %v2038
      %v2040 = vlaneseq
      %v2041 = vshrl.u32 %v2040, 7
      %v2042 = vsub.s32 0, %v2041
      %v2043 = vrot.slane %v1732, %v2042
      %v2044 = vlaneseq
      %v2045 = vshrl.u32 %v2044, 7
      %v2046 = vsub.s32 0, %v2045
      %v2047 = vrot.slane %v1715, %v2046
      %v2048 = vlaneseq
      %v2049 = vshrl.u32 %v2048, 7
      %v2050 = vsub.s32 0, %v2049
      %v2051 = vrot.slane %v1729, %v2050
      %v2052 = vlaneseq
      %v2053 = vshrl.u32 %v2052, 7
      %v2054 = vsub.s32 0, %v2053
      %v2055 = vrot.slane %v1731, %v2054
      %v2056 = vlaneseq
      %v2057 = vshrl.u32 %v2056, 7
      %v2058 = vsub.s32 0, %v2057
      %v2059 = vrot.slane %v1733, %v2058
      %v2060 = vlaneseq
      %v2061 = vshrl.u32 %v2060, 7
      %v2062 = vsub.s32 0, %v2061
      %v2063 = vrot.slane %v1757, %v2062
      %v2064 = vlaneseq
      %v2065 = vshrl.u32 %v2064, 7
      %v2066 = vsub.s32 0, %v2065
      %v2067 = vrot.slane %v1771, %v2066
      %v2068 = vlaneseq
      %v2069 = vshrl.u32 %v2068, 7
      %v2070 = vsub.s32 0, %v2069
      %v2071 = vrot.slane %v1779, %v2070
      %v2072 = vlaneseq
      %v2073 = vshrl.u32 %v2072, 7
      %v2074 = vsub.s32 0, %v2073
      %v2075 = vrot.slane %v1781, %v2074
      %v2076 = vlaneseq
      %v2077 = vshrl.u32 %v2076, 7
      %v2078 = vsub.s32 0, %v2077
      %v2079 = vrot.slane %v1764, %v2078
      %v2080 = vlaneseq
      %v2081 = vshrl.u32 %v2080, 7
      %v2082 = vsub.s32 0, %v2081
      %v2083 = vrot.slane %v1778, %v2082
      %v2084 = vlaneseq
      %v2085 = vshrl.u32 %v2084, 7
      %v2086 = vsub.s32 0, %v2085
      %v2087 = vrot.slane %v1780, %v2086
      %v2088 = vlaneseq
      %v2089 = vshrl.u32 %v2088, 7
      %v2090 = vsub.s32 0, %v2089
      %v2091 = vrot.slane %v1782, %v2090
      %v2092 = vlaneseq
      %v2093 = vshrl.u32 %v2092, 7
      %v2094 = vsub.s32 0, %v2093
      %v2095 = vrot.slane %v1806, %v2094
      %v2096 = vlaneseq
      %v2097 = vshrl.u32 %v2096, 7
      %v2098 = vsub.s32 0, %v2097
      %v2099 = vrot.slane %v1820, %v2098
      %v2100 = vlaneseq
      %v2101 = vshrl.u32 %v2100, 7
      %v2102 = vsub.s32 0, %v2101
      %v2103 = vrot.slane %v1828, %v2102
      %v2104 = vlaneseq
      %v2105 = vshrl.u32 %v2104, 7
      %v2106 = vsub.s32 0, %v2105
      %v2107 = vrot.slane %v1830, %v2106
      %v2108 = vlaneseq
      %v2109 = vshrl.u32 %v2108, 7
      %v2110 = vsub.s32 0, %v2109
      %v2111 = vrot.slane %v1813, %v2110
      %v2112 = vlaneseq
      %v2113 = vshrl.u32 %v2112, 7
      %v2114 = vsub.s32 0, %v2113
      %v2115 = vrot.slane %v1827, %v2114
      %v2116 = vlaneseq
      %v2117 = vshrl.u32 %v2116, 7
      %v2118 = vsub.s32 0, %v2117
      %v2119 = vrot.slane %v1829, %v2118
      %v2120 = vlaneseq
      %v2121 = vshrl.u32 %v2120, 7
      %v2122 = vsub.s32 0, %v2121
      %v2123 = vrot.slane %v1831, %v2122
      %v2124 = vlaneseq
      %v2125 = vshrl.u32 %v2124, 7
      %v2126 = vsub.s32 0, %v2125
      %v2127 = vrot.slane %v1855, %v2126
      %v2128 = vlaneseq
      %v2129 = vshrl.u32 %v2128, 7
      %v2130 = vsub.s32 0, %v2129
      %v2131 = vrot.slane %v1869, %v2130
      %v2132 = vlaneseq
      %v2133 = vshrl.u32 %v2132, 7
      %v2134 = vsub.s32 0, %v2133
      %v2135 = vrot.slane %v1877, %v2134
      %v2136 = vlaneseq
      %v2137 = vshrl.u32 %v2136, 7
      %v2138 = vsub.s32 0, %v2137
      %v2139 = vrot.slane %v1879, %v2138
      %v2140 = vlaneseq
      %v2141 = vshrl.u32 %v2140, 7
      %v2142 = vsub.s32 0, %v2141
      %v2143 = vrot.slane %v1862, %v2142
      %v2144 = vlaneseq
      %v2145 = vshrl.u32 %v2144, 7
      %v2146 = vsub.s32 0, %v2145
      %v2147 = vrot.slane %v1876, %v2146
      %v2148 = vlaneseq
      %v2149 = vshrl.u32 %v2148, 7
      %v2150 = vsub.s32 0, %v2149
      %v2151 = vrot.slane %v1878, %v2150
      %v2152 = vlaneseq
      %v2153 = vshrl.u32 %v2152, 7
      %v2154 = vsub.s32 0, %v2153
      %v2155 = vrot.slane %v1880, %v2154
      %v2156 = vlaneseq
      %v2157 = vshrl.u32 %v2156, 7
      %v2158 = vsub.s32 0, %v2157
      %v2159 = vrot.slane %v1904, %v2158
      %v2160 = vlaneseq
      %v2161 = vshrl.u32 %v2160, 7
      %v2162 = vsub.s32 0, %v2161
      %v2163 = vrot.slane %v1918, %v2162
      %v2164 = vlaneseq
      %v2165 = vshrl.u32 %v2164, 7
      %v2166 = vsub.s32 0, %v2165
      %v2167 = vrot.slane %v1926, %v2166
      %v2168 = vlaneseq
      %v2169 = vshrl.u32 %v2168, 7
      %v2170 = vsub.s32 0, %v2169
      %v2171 = vrot.slane %v1928, %v2170
      %v2172 = vlaneseq
      %v2173 = vshrl.u32 %v2172, 7
      %v2174 = vsub.s32 0, %v2173
      %v2175 = vrot.slane %v1911, %v2174
      %v2176 = vlaneseq
      %v2177 = vshrl.u32 %v2176, 7
      %v2178 = vsub.s32 0, %v2177
      %v2179 = vrot.slane %v1925, %v2178
      %v2180 = vlaneseq
      %v2181 = vshrl.u32 %v2180, 7
      %v2182 = vsub.s32 0, %v2181
      %v2183 = vrot.slane %v1927, %v2182
      %v2184 = vlaneseq
      %v2185 = vshrl.u32 %v2184, 7
      %v2186 = vsub.s32 0, %v2185
      %v2187 = vrot.slane %v1929, %v2186
      %v2188 = vlaneseq
      %v2189 = vshrl.u32 %v2188, 7
      %v2190 = vsub.s32 0, %v2189
      %v2191 = vrot.slane %v1953, %v2190
      %v2192 = vlaneseq
      %v2193 = vshrl.u32 %v2192, 7
      %v2194 = vsub.s32 0, %v2193
      %v2195 = vrot.slane %v1967, %v2194
      %v2196 = vlaneseq
      %v2197 = vshrl.u32 %v2196, 7
      %v2198 = vsub.s32 0, %v2197
      %v2199 = vrot.slane %v1975, %v2198
      %v2200 = vlaneseq
      %v2201 = vshrl.u32 %v2200, 7
      %v2202 = vsub.s32 0, %v2201
      %v2203 = vrot.slane %v1977, %v2202
      %v2204 = vlaneseq
      %v2205 = vshrl.u32 %v2204, 7
      %v2206 = vsub.s32 0, %v2205
      %v2207 = vrot.slane %v1960, %v2206
      %v2208 = vlaneseq
      %v2209 = vshrl.u32 %v2208, 7
      %v2210 = vsub.s32 0, %v2209
      %v2211 = vrot.slane %v1974, %v2210
      %v2212 = vlaneseq
      %v2213 = vshrl.u32 %v2212, 7
      %v2214 = vsub.s32 0, %v2213
      %v2215 = vrot.slane %v1976, %v2214
      %v2216 = vlaneseq
      %v2217 = vshrl.u32 %v2216, 7
      %v2218 = vsub.s32 0, %v2217
      %v2219 = vrot.slane %v1978, %v2218
      %v2220 = vlaneseq
      %v2221 = vshrl.u32 %v2220, 7
      %v2222 = vsub.s32 0, %v2221
      %v2223 = vrot.slane %v2002, %v2222
      %v2224 = vlaneseq
      %v2225 = vshrl.u32 %v2224, 7
      %v2226 = vsub.s32 0, %v2225
      %v2227 = vrot.slane %v2016, %v2226
      %v2228 = vlaneseq
      %v2229 = vshrl.u32 %v2228, 7
      %v2230 = vsub.s32 0, %v2229
      %v2231 = vrot.slane %v2024, %v2230
      %v2232 = vlaneseq
      %v2233 = vshrl.u32 %v2232, 7
      %v2234 = vsub.s32 0, %v2233
      %v2235 = vrot.slane %v2026, %v2234
      %v2236 = vlaneseq
      %v2237 = vshrl.u32 %v2236, 7
      %v2238 = vsub.s32 0, %v2237
      %v2239 = vrot.slane %v2009, %v2238
      %v2240 = vlaneseq
      %v2241 = vshrl.u32 %v2240, 7
      %v2242 = vsub.s32 0, %v2241
      %v2243 = vrot.slane %v2023, %v2242
      %v2244 = vlaneseq
      %v2245 = vshrl.u32 %v2244, 7
      %v2246 = vsub.s32 0, %v2245
      %v2247 = vrot.slane %v2025, %v2246
      %v2248 = vlaneseq
      %v2249 = vshrl.u32 %v2248, 7
      %v2250 = vsub.s32 0, %v2249
      %v2251 = vrot.slane %v2027, %v2250
      %v2308 = vmul.f32 %v2031, %v793
      %v2309 = vmul.f32 %v2035, %v794
      %v2310 = vmul.f32 %v2039, %v795
      %v2311 = vmul.f32 %v2043, %v796
      %v2312 = vmul.f32 %v2047, %v797
      %v2313 = vmul.f32 %v2051, %v798
      %v2314 = vmul.f32 %v2055, %v799
      %v2315 = vmul.f32 %v2059, %v793
      %v2316 = vmul.f32 %v2063, %v794
      %v2317 = vmul.f32 %v2067, %v795
      %v2318 = vmul.f32 %v2071, %v796
      %v2319 = vmul.f32 %v2075, %v797
      %v2320 = vmul.f32 %v2079, %v798
      %v2321 = vmul.f32 %v2083, %v799
      %v2322 = vmul.f32 %v2087, %v793
      %v2323 = vmul.f32 %v2091, %v794
      %v2324 = vmul.f32 %v2095, %v795
      %v2325 = vmul.f32 %v2099, %v796
      %v2326 = vmul.f32 %v2103, %v797
      %v2327 = vmul.f32 %v2107, %v798
      %v2328 = vmul.f32 %v2111, %v799
      %v2329 = vmul.f32 %v2115, %v793
      %v2330 = vmul.f32 %v2119, %v794
      %v2331 = vmul.f32 %v2123, %v795
      %v2332 = vmul.f32 %v2127, %v796
      %v2333 = vmul.f32 %v2131, %v797
      %v2334 = vmul.f32 %v2135, %v798
      %v2335 = vmul.f32 %v2139, %v799
      %v2336 = vmul.f32 %v2143, %v793
      %v2337 = vmul.f32 %v2147, %v794
      %v2338 = vmul.f32 %v2151, %v795
      %v2339 = vmul.f32 %v2155, %v796
      %v2340 = vmul.f32 %v2159, %v797
      %v2341 = vmul.f32 %v2163, %v798
      %v2342 = vmul.f32 %v2167, %v799
      %v2343 = vmul.f32 %v2171, %v793
      %v2344 = vmul.f32 %v2175, %v794
      %v2345 = vmul.f32 %v2179, %v795
      %v2346 = vmul.f32 %v2183, %v796
      %v2347 = vmul.f32 %v2187, %v797
      %v2348 = vmul.f32 %v2191, %v798
      %v2349 = vmul.f32 %v2195, %v799
      %v2350 = vmul.f32 %v2199, %v793
      %v2351 = vmul.f32 %v2203, %v794
      %v2352 = vmul.f32 %v2207, %v795
      %v2353 = vmul.f32 %v2211, %v796
      %v2354 = vmul.f32 %v2215, %v797
      %v2355 = vmul.f32 %v2219, %v798
      %v2356 = vmul.f32 %v2223, %v799
      %v2357 = vmul.f32 %v2227, %v793
      %v2358 = vmul.f32 %v2231, %v794
      %v2359 = vmul.f32 %v2235, %v795
      %v2360 = vmul.f32 %v2239, %v796
      %v2361 = vmul.f32 %v2243, %v797
      %v2362 = vmul.f32 %v2247, %v798
      %v2363 = vmul.f32 %v2251, %v799
      %v2364 = vcombine.low %v1708, %v1722
      %v2365 = vcombine.low %v1730, %v1732
      %v2366 = vcombine.low %v1715, %v1729
      %v2368 = vunpack.c.l.s4 1966171168
      %v2369 = vunpack.c.0.s8 %v2368
      %v2370 = vlaneseq
      %v2371 = vshrl.u32 %v2370, 7
      %v2372 = vsub.s32 %v2369, %v2371
      %v2373 = vrot.slane %v2364, %v2372
      %v2375 = vunpack.c.l.s4 1966171168
      %v2376 = vunpack.c.0.s8 %v2375
      %v2377 = vlaneseq
      %v2378 = vshrl.u32 %v2377, 7
      %v2379 = vsub.s32 %v2376, %v2378
      %v2380 = vrot.slane %v2365, %v2379
      %v2382 = vunpack.c.l.s4 1966171168
      %v2383 = vunpack.c.0.s8 %v2382
      %v2384 = vlaneseq
      %v2385 = vshrl.u32 %v2384, 7
      %v2386 = vsub.s32 %v2383, %v2385
      %v2387 = vrot.slane %v2366, %v2386
      %v2389 = vunpack.c.l.s4 1966171168
      %v2390 = vunpack.c.0.s8 %v2389
      %v2391 = vlaneseq
      %v2392 = vshrl.u32 %v2391, 7
      %v2393 = vsub.s32 %v2390, %v2392
      %v2394 = vrot.slane %v1731, %v2393
      %v2395 = vcombine.low %v2373, %v2380
      %v2396 = vcombine.low %v2387, %v2394
      %v2398 = vunpack.c.l.s4 1966171168
      %v2399 = vunpack.c.0.s8 %v2398
      %v2400 = vlaneseq
      %v2401 = vshrl.u32 %v2400, 7
      %v2402 = vsub.s32 %v2399, %v2401
      %v2403 = vrot.slane %v2395, %v2402
      %v2405 = vunpack.c.l.s4 1966171168
      %v2406 = vunpack.c.0.s8 %v2405
      %v2407 = vlaneseq
      %v2408 = vshrl.u32 %v2407, 7
      %v2409 = vsub.s32 %v2406, %v2408
      %v2410 = vrot.slane %v2396, %v2409
      %v2411 = vcombine.low %v2403, %v2410
      %2412 = vrot.lane.b32.xlu0 %v2411, 96
      %v2413 = vpop.permute.xlu0 %2412
      %v2415 = vsel %vm1563, %v2308, 0
      %v2418 = vsel %vm1563, %v2309, 0
      %v2421 = vsel %vm1563, %v2310, 0
      %v2424 = vsel %vm1563, %v2311, 0
      %v2427 = vsel %vm1563, %v2312, 0
      %v2430 = vsel %vm1563, %v2313, 0
      %v2433 = vsel %vm1563, %v2314, 0
      %v2435 = vsel %vm1563, %v2413, 0
      %2437 = vmatprep.subr.mxu0 0.0
      %2438 = vmatpush1.xpose.msra.mxu0 %v2435
      %2439 = vmatprep.subr.mxu0 0.0
      %2440 = vmatpush1.xpose.msra.mxu0 0.0
      %2441 = vmatprep.subr.mxu0 0.0
      %2442 = vmatpush1.xpose.msra.mxu0 0.0
      %2443 = vmatprep.subr.mxu0 0.0
      %2444 = vmatpush1.xpose.msra.mxu0 0.0
      %2445 = vmatprep.subr.mxu0 0.0
      %2446 = vmatpush1.xpose.msra.mxu0 0.0
      %2447 = vmatprep.subr.mxu0 0.0
      %2448 = vmatpush1.xpose.msra.mxu0 0.0
      %2449 = vmatprep.subr.mxu0 0.0
      %2450 = vmatpush1.xpose.msra.mxu0 0.0
      %2451 = vmatprep.subr.mxu0 0.0
      %2452 = vmatpush1.xpose.msra.mxu0 0.0
      %2453 = vmatprep.subr.mxu0 0.0
      %2454 = vmatpush1.xpose.msra.mxu0 0.0
      %2455 = vmatprep.subr.mxu0 0.0
      %2456 = vmatpush1.xpose.msra.mxu0 0.0
      %2457 = vmatprep.subr.mxu0 0.0
      %2458 = vmatpush1.xpose.msra.mxu0 0.0
      %2459 = vmatprep.subr.mxu0 0.0
      %2460 = vmatpush1.xpose.msra.mxu0 0.0
      %2461 = vmatprep.subr.mxu0 0.0
      %2462 = vmatpush1.xpose.msra.mxu0 0.0
      %2463 = vmatprep.subr.mxu0 0.0
      %2464 = vmatpush1.xpose.msra.mxu0 0.0
      %2465 = vmatprep.subr.mxu0 0.0
      %2466 = vmatpush1.xpose.msra.mxu0 0.0
      %2467 = vmatprep.subr.mxu0 0.0
      %2468 = vmatpush1.xpose.msra.mxu0 0.0
      %2469 = vmatprep.subr.mxu0 0.0
      %2470 = vmatpush1.xpose.msra.mxu0 0.0
      %2471 = vmatprep.subr.mxu0 0.0
      %2472 = vmatpush1.xpose.msra.mxu0 0.0
      %2473 = vmatprep.subr.mxu0 0.0
      %2474 = vmatpush1.xpose.msra.mxu0 0.0
      %2475 = vmatprep.subr.mxu0 0.0
      %2476 = vmatpush1.xpose.msra.mxu0 0.0
      %2477 = vmatprep.subr.mxu0 0.0
      %2478 = vmatpush1.xpose.msra.mxu0 0.0
      %2479 = vmatprep.subr.mxu0 0.0
      %2480 = vmatpush1.xpose.msra.mxu0 0.0
      %2481 = vmatprep.subr.mxu0 0.0
      %2482 = vmatpush1.xpose.msra.mxu0 0.0
      %2483 = vmatprep.subr.mxu0 0.0
      %2484 = vmatpush1.xpose.msra.mxu0 0.0
      %2485 = vmatprep.subr.mxu0 0.0
      %2486 = vmatpush1.xpose.msra.mxu0 0.0
      %2487 = vmatprep.subr.mxu0 0.0
      %2488 = vmatpush1.xpose.msra.mxu0 0.0
      %2489 = vmatprep.subr.mxu0 0.0
      %2490 = vmatpush1.xpose.msra.mxu0 0.0
      %2491 = vmatprep.subr.mxu0 0.0
      %2492 = vmatpush1.xpose.msra.mxu0 0.0
      %2493 = vmatprep.subr.mxu0 0.0
      %2494 = vmatpush1.xpose.msra.mxu0 0.0
      %2495 = vmatprep.subr.mxu0 0.0
      %2496 = vmatpush1.xpose.msra.mxu0 0.0
      %2497 = vmatprep.subr.mxu0 0.0
      %2498 = vmatpush1.xpose.msra.mxu0 0.0
      %2499 = vmatprep.subr.mxu0 0.0
      %2500 = vmatpush1.xpose.msra.mxu0 0.0
      %2501 = vmatprep.mubr.f32.mxu0 0.0
      %2502 = vmatmul.mubr.f32.gmra.mrb[0].mxu0 %v2415
      %v2503 = vpop.f32.mrb[0].mxu0
      %v2504 = vadd.f32 0.0, %v2503
      %v2505 = vpop.f32.mrb[0].mxu0
      %2506 = vmatprep.mubr.f32.mxu0 0.0
      %2507 = vmatmul.mubr.f32.gmra.mrb[0].mxu0 %v2418
      %v2508 = vpop.f32.mrb[0].mxu0
      %v2509 = vadd.f32 0.0, %v2508
      %v2510 = vpop.f32.mrb[0].mxu0
      %2511 = vmatprep.mubr.f32.mxu0 0.0
      %2512 = vmatmul.mubr.f32.gmra.mrb[0].mxu0 %v2421
      %v2513 = vpop.f32.mrb[0].mxu0
      %v2514 = vadd.f32 0.0, %v2513
      %v2515 = vpop.f32.mrb[0].mxu0
      %2516 = vmatprep.mubr.f32.mxu0 0.0
      %2517 = vmatmul.mubr.f32.gmra.mrb[0].mxu0 %v2424
      %v2518 = vpop.f32.mrb[0].mxu0
      %v2519 = vadd.f32 0.0, %v2518
      %v2520 = vpop.f32.mrb[0].mxu0
      %2521 = vmatprep.mubr.f32.mxu0 0.0
      %2522 = vmatmul.mubr.f32.gmra.mrb[0].mxu0 %v2427
      %v2523 = vpop.f32.mrb[0].mxu0
      %v2524 = vadd.f32 0.0, %v2523
      %v2525 = vpop.f32.mrb[0].mxu0
      %2526 = vmatprep.mubr.f32.mxu0 0.0
      %2527 = vmatmul.mubr.f32.gmra.mrb[0].mxu0 %v2430
      %v2528 = vpop.f32.mrb[0].mxu0
      %v2529 = vadd.f32 0.0, %v2528
      %v2530 = vpop.f32.mrb[0].mxu0
      %2531 = vmatprep.mubr.f32.mxu0 0.0
      %2532 = vmatmul.mubr.f32.gmra.mrb[0].mxu0 %v2433
      %v2533 = vpop.f32.mrb[0].mxu0
      %v2534 = vadd.f32 0.0, %v2533
      %v2535 = vpop.f32.mrb[0].mxu0
      %2536 = vdwg.mxu0
      %v2537 = vcombine.low %v1733, %v1757
      %v2538 = vcombine.low %v1771, %v1779
      %v2539 = vcombine.low %v1781, %v1764
      %v2541 = vunpack.c.l.s4 1966171168
      %v2542 = vunpack.c.0.s8 %v2541
      %v2543 = vlaneseq
      %v2544 = vshrl.u32 %v2543, 7
      %v2545 = vsub.s32 %v2542, %v2544
      %v2546 = vrot.slane %v2537, %v2545
      %v2548 = vunpack.c.l.s4 1966171168
      %v2549 = vunpack.c.0.s8 %v2548
      %v2550 = vlaneseq
      %v2551 = vshrl.u32 %v2550, 7
      %v2552 = vsub.s32 %v2549, %v2551
      %v2553 = vrot.slane %v2538, %v2552
      %v2555 = vunpack.c.l.s4 1966171168
      %v2556 = vunpack.c.0.s8 %v2555
      %v2557 = vlaneseq
      %v2558 = vshrl.u32 %v2557, 7
      %v2559 = vsub.s32 %v2556, %v2558
      %v2560 = vrot.slane %v2539, %v2559
      %v2562 = vunpack.c.l.s4 1966171168
      %v2563 = vunpack.c.0.s8 %v2562
      %v2564 = vlaneseq
      %v2565 = vshrl.u32 %v2564, 7
      %v2566 = vsub.s32 %v2563, %v2565
      %v2567 = vrot.slane %v1778, %v2566
      %v2568 = vcombine.low %v2546, %v2553
      %v2569 = vcombine.low %v2560, %v2567
      %v2571 = vunpack.c.l.s4 1966171168
      %v2572 = vunpack.c.0.s8 %v2571
      %v2573 = vlaneseq
      %v2574 = vshrl.u32 %v2573, 7
      %v2575 = vsub.s32 %v2572, %v2574
      %v2576 = vrot.slane %v2568, %v2575
      %v2578 = vunpack.c.l.s4 1966171168
      %v2579 = vunpack.c.0.s8 %v2578
      %v2580 = vlaneseq
      %v2581 = vshrl.u32 %v2580, 7
      %v2582 = vsub.s32 %v2579, %v2581
      %v2583 = vrot.slane %v2569, %v2582
      %v2584 = vcombine.low %v2576, %v2583
      %2585 = vrot.lane.b32.xlu0 %v2584, 96
      %v2586 = vpop.permute.xlu0 %2585
      %v2588 = vsel %vm1563, %v2315, 0
      %v2591 = vsel %vm1563, %v2316, 0
      %v2594 = vsel %vm1563, %v2317, 0
      %v2597 = vsel %vm1563, %v2318, 0
      %v2600 = vsel %vm1563, %v2319, 0
      %v2603 = vsel %vm1563, %v2320, 0
      %v2606 = vsel %vm1563, %v2321, 0
      %v2608 = vsel %vm1563, %v2586, 0
      %2610 = vmatprep.subr.mxu0 0.0
      %2611 = vmatpush1.xpose.msra.mxu0 %v2608
      %2612 = vmatprep.subr.mxu0 0.0
      %2613 = vmatpush1.xpose.msra.mxu0 0.0
      %2614 = vmatprep.subr.mxu0 0.0
      %2615 = vmatpush1.xpose.msra.mxu0 0.0
      %2616 = vmatprep.subr.mxu0 0.0
      %2617 = vmatpush1.xpose.msra.mxu0 0.0
      %2618 = vmatprep.subr.mxu0 0.0
      %2619 = vmatpush1.xpose.msra.mxu0 0.0
      %2620 = vmatprep.subr.mxu0 0.0
      %2621 = vmatpush1.xpose.msra.mxu0 0.0
      %2622 = vmatprep.subr.mxu0 0.0
      %2623 = vmatpush1.xpose.msra.mxu0 0.0
      %2624 = vmatprep.subr.mxu0 0.0
      %2625 = vmatpush1.xpose.msra.mxu0 0.0
      %2626 = vmatprep.subr.mxu0 0.0
      %2627 = vmatpush1.xpose.msra.mxu0 0.0
      %2628 = vmatprep.subr.mxu0 0.0
      %2629 = vmatpush1.xpose.msra.mxu0 0.0
      %2630 = vmatprep.subr.mxu0 0.0
      %2631 = vmatpush1.xpose.msra.mxu0 0.0
      %2632 = vmatprep.subr.mxu0 0.0
      %2633 = vmatpush1.xpose.msra.mxu0 0.0
      %2634 = vmatprep.subr.mxu0 0.0
      %2635 = vmatpush1.xpose.msra.mxu0 0.0
      %2636 = vmatprep.subr.mxu0 0.0
      %2637 = vmatpush1.xpose.msra.mxu0 0.0
      %2638 = vmatprep.subr.mxu0 0.0
      %2639 = vmatpush1.xpose.msra.mxu0 0.0
      %2640 = vmatprep.subr.mxu0 0.0
      %2641 = vmatpush1.xpose.msra.mxu0 0.0
      %2642 = vmatprep.subr.mxu0 0.0
      %2643 = vmatpush1.xpose.msra.mxu0 0.0
      %2644 = vmatprep.subr.mxu0 0.0
      %2645 = vmatpush1.xpose.msra.mxu0 0.0
      %2646 = vmatprep.subr.mxu0 0.0
      %2647 = vmatpush1.xpose.msra.mxu0 0.0
      %2648 = vmatprep.subr.mxu0 0.0
      %2649 = vmatpush1.xpose.msra.mxu0 0.0
      %2650 = vmatprep.subr.mxu0 0.0
      %2651 = vmatpush1.xpose.msra.mxu0 0.0
      %2652 = vmatprep.subr.mxu0 0.0
      %2653 = vmatpush1.xpose.msra.mxu0 0.0
      %2654 = vmatprep.subr.mxu0 0.0
      %2655 = vmatpush1.xpose.msra.mxu0 0.0
      %2656 = vmatprep.subr.mxu0 0.0
      %2657 = vmatpush1.xpose.msra.mxu0 0.0
      %2658 = vmatprep.subr.mxu0 0.0
      %2659 = vmatpush1.xpose.msra.mxu0 0.0
      %2660 = vmatprep.subr.mxu0 0.0
      %2661 = vmatpush1.xpose.msra.mxu0 0.0
      %2662 = vmatprep.subr.mxu0 0.0
      %2663 = vmatpush1.xpose.msra.mxu0 0.0
      %2664 = vmatprep.subr.mxu0 0.0
      %2665 = vmatpush1.xpose.msra.mxu0 0.0
      %2666 = vmatprep.subr.mxu0 0.0
      %2667 = vmatpush1.xpose.msra.mxu0 0.0
      %2668 = vmatprep.subr.mxu0 0.0
      %2669 = vmatpush1.xpose.msra.mxu0 0.0
      %2670 = vmatprep.subr.mxu0 0.0
      %2671 = vmatpush1.xpose.msra.mxu0 0.0
      %2672 = vmatprep.subr.mxu0 0.0
      %2673 = vmatpush1.xpose.msra.mxu0 0.0
      %2674 = vmatprep.mubr.f32.mxu0 0.0
      %2675 = vmatmul.mubr.f32.gmra.mrb[0].mxu0 %v2588
      %v2676 = vpop.f32.mrb[0].mxu0
      %v2677 = vadd.f32 0.0, %v2676
      %v2678 = vpop.f32.mrb[0].mxu0
      %2679 = vmatprep.mubr.f32.mxu0 0.0
      %2680 = vmatmul.mubr.f32.gmra.mrb[0].mxu0 %v2591
      %v2681 = vpop.f32.mrb[0].mxu0
      %v2682 = vadd.f32 0.0, %v2681
      %v2683 = vpop.f32.mrb[0].mxu0
      %2684 = vmatprep.mubr.f32.mxu0 0.0
      %2685 = vmatmul.mubr.f32.gmra.mrb[0].mxu0 %v2594
      %v2686 = vpop.f32.mrb[0].mxu0
      %v2687 = vadd.f32 0.0, %v2686
      %v2688 = vpop.f32.mrb[0].mxu0
      %2689 = vmatprep.mubr.f32.mxu0 0.0
      %2690 = vmatmul.mubr.f32.gmra.mrb[0].mxu0 %v2597
      %v2691 = vpop.f32.mrb[0].mxu0
      %v2692 = vadd.f32 0.0, %v2691
      %v2693 = vpop.f32.mrb[0].mxu0
      %2694 = vmatprep.mubr.f32.mxu0 0.0
      %2695 = vmatmul.mubr.f32.gmra.mrb[0].mxu0 %v2600
      %v2696 = vpop.f32.mrb[0].mxu0
      %v2697 = vadd.f32 0.0, %v2696
      %v2698 = vpop.f32.mrb[0].mxu0
      %2699 = vmatprep.mubr.f32.mxu0 0.0
      %2700 = vmatmul.mubr.f32.gmra.mrb[0].mxu0 %v2603
      %v2701 = vpop.f32.mrb[0].mxu0
      %v2702 = vadd.f32 0.0, %v2701
      %v2703 = vpop.f32.mrb[0].mxu0
      %2704 = vmatprep.mubr.f32.mxu0 0.0
      %2705 = vmatmul.mubr.f32.gmra.mrb[0].mxu0 %v2606
      %v2706 = vpop.f32.mrb[0].mxu0
      %v2707 = vadd.f32 0.0, %v2706
      %v2708 = vpop.f32.mrb[0].mxu0
      %2709 = vdwg.mxu0
      %v2710 = vcombine.low %v1780, %v1782
      %v2711 = vcombine.low %v1806, %v1820
      %v2712 = vcombine.low %v1828, %v1830
      %v2714 = vunpack.c.l.s4 1966171168
      %v2715 = vunpack.c.0.s8 %v2714
      %v2716 = vlaneseq
      %v2717 = vshrl.u32 %v2716, 7
      %v2718 = vsub.s32 %v2715, %v2717
      %v2719 = vrot.slane %v2710, %v2718
      %v2721 = vunpack.c.l.s4 1966171168
      %v2722 = vunpack.c.0.s8 %v2721
      %v2723 = vlaneseq
      %v2724 = vshrl.u32 %v2723, 7
      %v2725 = vsub.s32 %v2722, %v2724
      %v2726 = vrot.slane %v2711, %v2725
      %v2728 = vunpack.c.l.s4 1966171168
      %v2729 = vunpack.c.0.s8 %v2728
      %v2730 = vlaneseq
      %v2731 = vshrl.u32 %v2730, 7
      %v2732 = vsub.s32 %v2729, %v2731
      %v2733 = vrot.slane %v2712, %v2732
      %v2735 = vunpack.c.l.s4 1966171168
      %v2736 = vunpack.c.0.s8 %v2735
      %v2737 = vlaneseq
      %v2738 = vshrl.u32 %v2737, 7
      %v2739 = vsub.s32 %v2736, %v2738
      %v2740 = vrot.slane %v1813, %v2739
      %v2741 = vcombine.low %v2719, %v2726
      %v2742 = vcombine.low %v2733, %v2740
      %v2744 = vunpack.c.l.s4 1966171168
      %v2745 = vunpack.c.0.s8 %v2744
      %v2746 = vlaneseq
      %v2747 = vshrl.u32 %v2746, 7
      %v2748 = vsub.s32 %v2745, %v2747
      %v2749 = vrot.slane %v2741, %v2748
      %v2751 = vunpack.c.l.s4 1966171168
      %v2752 = vunpack.c.0.s8 %v2751
      %v2753 = vlaneseq
      %v2754 = vshrl.u32 %v2753, 7
      %v2755 = vsub.s32 %v2752, %v2754
      %v2756 = vrot.slane %v2742, %v2755
      %v2757 = vcombine.low %v2749, %v2756
      %2758 = vrot.lane.b32.xlu0 %v2757, 96
      %v2759 = vpop.permute.xlu0 %2758
      %v2761 = vsel %vm1563, %v2322, 0
      %v2764 = vsel %vm1563, %v2323, 0
      %v2767 = vsel %vm1563, %v2324, 0
      %v2770 = vsel %vm1563, %v2325, 0
      %v2773 = vsel %vm1563, %v2326, 0
      %v2776 = vsel %vm1563, %v2327, 0
      %v2779 = vsel %vm1563, %v2328, 0
      %v2781 = vsel %vm1563, %v2759, 0
      %2783 = vmatprep.subr.mxu0 0.0
      %2784 = vmatpush1.xpose.msra.mxu0 %v2781
      %2785 = vmatprep.subr.mxu0 0.0
      %2786 = vmatpush1.xpose.msra.mxu0 0.0
      %2787 = vmatprep.subr.mxu0 0.0
      %2788 = vmatpush1.xpose.msra.mxu0 0.0
      %2789 = vmatprep.subr.mxu0 0.0
      %2790 = vmatpush1.xpose.msra.mxu0 0.0
      %2791 = vmatprep.subr.mxu0 0.0
      %2792 = vmatpush1.xpose.msra.mxu0 0.0
      %2793 = vmatprep.subr.mxu0 0.0
      %2794 = vmatpush1.xpose.msra.mxu0 0.0
      %2795 = vmatprep.subr.mxu0 0.0
      %2796 = vmatpush1.xpose.msra.mxu0 0.0
      %2797 = vmatprep.subr.mxu0 0.0
      %2798 = vmatpush1.xpose.msra.mxu0 0.0
      %2799 = vmatprep.subr.mxu0 0.0
      %2800 = vmatpush1.xpose.msra.mxu0 0.0
      %2801 = vmatprep.subr.mxu0 0.0
      %2802 = vmatpush1.xpose.msra.mxu0 0.0
      %2803 = vmatprep.subr.mxu0 0.0
      %2804 = vmatpush1.xpose.msra.mxu0 0.0
      %2805 = vmatprep.subr.mxu0 0.0
      %2806 = vmatpush1.xpose.msra.mxu0 0.0
      %2807 = vmatprep.subr.mxu0 0.0
      %2808 = vmatpush1.xpose.msra.mxu0 0.0
      %2809 = vmatprep.subr.mxu0 0.0
      %2810 = vmatpush1.xpose.msra.mxu0 0.0
      %2811 = vmatprep.subr.mxu0 0.0
      %2812 = vmatpush1.xpose.msra.mxu0 0.0
      %2813 = vmatprep.subr.mxu0 0.0
      %2814 = vmatpush1.xpose.msra.mxu0 0.0
      %2815 = vmatprep.subr.mxu0 0.0
      %2816 = vmatpush1.xpose.msra.mxu0 0.0
      %2817 = vmatprep.subr.mxu0 0.0
      %2818 = vmatpush1.xpose.msra.mxu0 0.0
      %2819 = vmatprep.subr.mxu0 0.0
      %2820 = vmatpush1.xpose.msra.mxu0 0.0
      %2821 = vmatprep.subr.mxu0 0.0
      %2822 = vmatpush1.xpose.msra.mxu0 0.0
      %2823 = vmatprep.subr.mxu0 0.0
      %2824 = vmatpush1.xpose.msra.mxu0 0.0
      %2825 = vmatprep.subr.mxu0 0.0
      %2826 = vmatpush1.xpose.msra.mxu0 0.0
      %2827 = vmatprep.subr.mxu0 0.0
      %2828 = vmatpush1.xpose.msra.mxu0 0.0
      %2829 = vmatprep.subr.mxu0 0.0
      %2830 = vmatpush1.xpose.msra.mxu0 0.0
      %2831 = vmatprep.subr.mxu0 0.0
      %2832 = vmatpush1.xpose.msra.mxu0 0.0
      %2833 = vmatprep.subr.mxu0 0.0
      %2834 = vmatpush1.xpose.msra.mxu0 0.0
      %2835 = vmatprep.subr.mxu0 0.0
      %2836 = vmatpush1.xpose.msra.mxu0 0.0
      %2837 = vmatprep.subr.mxu0 0.0
      %2838 = vmatpush1.xpose.msra.mxu0 0.0
      %2839 = vmatprep.subr.mxu0 0.0
      %2840 = vmatpush1.xpose.msra.mxu0 0.0
      %2841 = vmatprep.subr.mxu0 0.0
      %2842 = vmatpush1.xpose.msra.mxu0 0.0
      %2843 = vmatprep.subr.mxu0 0.0
      %2844 = vmatpush1.xpose.msra.mxu0 0.0
      %2845 = vmatprep.subr.mxu0 0.0
      %2846 = vmatpush1.xpose.msra.mxu0 0.0
      %2847 = vmatprep.mubr.f32.mxu0 0.0
      %2848 = vmatmul.mubr.f32.gmra.mrb[0].mxu0 %v2761
      %v2849 = vpop.f32.mrb[0].mxu0
      %v2850 = vadd.f32 0.0, %v2849
      %v2851 = vpop.f32.mrb[0].mxu0
      %2852 = vmatprep.mubr.f32.mxu0 0.0
      %2853 = vmatmul.mubr.f32.gmra.mrb[0].mxu0 %v2764
      %v2854 = vpop.f32.mrb[0].mxu0
      %v2855 = vadd.f32 0.0, %v2854
      %v2856 = vpop.f32.mrb[0].mxu0
      %2857 = vmatprep.mubr.f32.mxu0 0.0
      %2858 = vmatmul.mubr.f32.gmra.mrb[0].mxu0 %v2767
      %v2859 = vpop.f32.mrb[0].mxu0
      %v2860 = vadd.f32 0.0, %v2859
      %v2861 = vpop.f32.mrb[0].mxu0
      %2862 = vmatprep.mubr.f32.mxu0 0.0
      %2863 = vmatmul.mubr.f32.gmra.mrb[0].mxu0 %v2770
      %v2864 = vpop.f32.mrb[0].mxu0
      %v2865 = vadd.f32 0.0, %v2864
      %v2866 = vpop.f32.mrb[0].mxu0
      %2867 = vmatprep.mubr.f32.mxu0 0.0
      %2868 = vmatmul.mubr.f32.gmra.mrb[0].mxu0 %v2773
      %v2869 = vpop.f32.mrb[0].mxu0
      %v2870 = vadd.f32 0.0, %v2869
      %v2871 = vpop.f32.mrb[0].mxu0
      %2872 = vmatprep.mubr.f32.mxu0 0.0
      %2873 = vmatmul.mubr.f32.gmra.mrb[0].mxu0 %v2776
      %v2874 = vpop.f32.mrb[0].mxu0
      %v2875 = vadd.f32 0.0, %v2874
      %v2876 = vpop.f32.mrb[0].mxu0
      %2877 = vmatprep.mubr.f32.mxu0 0.0
      %2878 = vmatmul.mubr.f32.gmra.mrb[0].mxu0 %v2779
      %v2879 = vpop.f32.mrb[0].mxu0
      %v2880 = vadd.f32 0.0, %v2879
      %v2881 = vpop.f32.mrb[0].mxu0
      %2882 = vdwg.mxu0
      %v2883 = vcombine.low %v1827, %v1829
      %v2884 = vcombine.low %v1831, %v1855
      %v2885 = vcombine.low %v1869, %v1877
      %v2887 = vunpack.c.l.s4 1966171168
      %v2888 = vunpack.c.0.s8 %v2887
      %v2889 = vlaneseq
      %v2890 = vshrl.u32 %v2889, 7
      %v2891 = vsub.s32 %v2888, %v2890
      %v2892 = vrot.slane %v2883, %v2891
      %v2894 = vunpack.c.l.s4 1966171168
      %v2895 = vunpack.c.0.s8 %v2894
      %v2896 = vlaneseq
      %v2897 = vshrl.u32 %v2896, 7
      %v2898 = vsub.s32 %v2895, %v2897
      %v2899 = vrot.slane %v2884, %v2898
      %v2901 = vunpack.c.l.s4 1966171168
      %v2902 = vunpack.c.0.s8 %v2901
      %v2903 = vlaneseq
      %v2904 = vshrl.u32 %v2903, 7
      %v2905 = vsub.s32 %v2902, %v2904
      %v2906 = vrot.slane %v2885, %v2905
      %v2908 = vunpack.c.l.s4 1966171168
      %v2909 = vunpack.c.0.s8 %v2908
      %v2910 = vlaneseq
      %v2911 = vshrl.u32 %v2910, 7
      %v2912 = vsub.s32 %v2909, %v2911
      %v2913 = vrot.slane %v1879, %v2912
      %v2914 = vcombine.low %v2892, %v2899
      %v2915 = vcombine.low %v2906, %v2913
      %v2917 = vunpack.c.l.s4 1966171168
      %v2918 = vunpack.c.0.s8 %v2917
      %v2919 = vlaneseq
      %v2920 = vshrl.u32 %v2919, 7
      %v2921 = vsub.s32 %v2918, %v2920
      %v2922 = vrot.slane %v2914, %v2921
      %v2924 = vunpack.c.l.s4 1966171168
      %v2925 = vunpack.c.0.s8 %v2924
      %v2926 = vlaneseq
      %v2927 = vshrl.u32 %v2926, 7
      %v2928 = vsub.s32 %v2925, %v2927
      %v2929 = vrot.slane %v2915, %v2928
      %v2930 = vcombine.low %v2922, %v2929
      %2931 = vrot.lane.b32.xlu0 %v2930, 96
      %v2932 = vpop.permute.xlu0 %2931
      %v2934 = vsel %vm1563, %v2329, 0
      %v2937 = vsel %vm1563, %v2330, 0
      %v2940 = vsel %vm1563, %v2331, 0
      %v2943 = vsel %vm1563, %v2332, 0
      %v2946 = vsel %vm1563, %v2333, 0
      %v2949 = vsel %vm1563, %v2334, 0
      %v2952 = vsel %vm1563, %v2335, 0
      %v2954 = vsel %vm1563, %v2932, 0
      %2956 = vmatprep.subr.mxu0 0.0
      %2957 = vmatpush1.xpose.msra.mxu0 %v2954
      %2958 = vmatprep.subr.mxu0 0.0
      %2959 = vmatpush1.xpose.msra.mxu0 0.0
      %2960 = vmatprep.subr.mxu0 0.0
      %2961 = vmatpush1.xpose.msra.mxu0 0.0
      %2962 = vmatprep.subr.mxu0 0.0
      %2963 = vmatpush1.xpose.msra.mxu0 0.0
      %2964 = vmatprep.subr.mxu0 0.0
      %2965 = vmatpush1.xpose.msra.mxu0 0.0
      %2966 = vmatprep.subr.mxu0 0.0
      %2967 = vmatpush1.xpose.msra.mxu0 0.0
      %2968 = vmatprep.subr.mxu0 0.0
      %2969 = vmatpush1.xpose.msra.mxu0 0.0
      %2970 = vmatprep.subr.mxu0 0.0
      %2971 = vmatpush1.xpose.msra.mxu0 0.0
      %2972 = vmatprep.subr.mxu0 0.0
      %2973 = vmatpush1.xpose.msra.mxu0 0.0
      %2974 = vmatprep.subr.mxu0 0.0
      %2975 = vmatpush1.xpose.msra.mxu0 0.0
      %2976 = vmatprep.subr.mxu0 0.0
      %2977 = vmatpush1.xpose.msra.mxu0 0.0
      %2978 = vmatprep.subr.mxu0 0.0
      %2979 = vmatpush1.xpose.msra.mxu0 0.0
      %2980 = vmatprep.subr.mxu0 0.0
      %2981 = vmatpush1.xpose.msra.mxu0 0.0
      %2982 = vmatprep.subr.mxu0 0.0
      %2983 = vmatpush1.xpose.msra.mxu0 0.0
      %2984 = vmatprep.subr.mxu0 0.0
      %2985 = vmatpush1.xpose.msra.mxu0 0.0
      %2986 = vmatprep.subr.mxu0 0.0
      %2987 = vmatpush1.xpose.msra.mxu0 0.0
      %2988 = vmatprep.subr.mxu0 0.0
      %2989 = vmatpush1.xpose.msra.mxu0 0.0
      %2990 = vmatprep.subr.mxu0 0.0
      %2991 = vmatpush1.xpose.msra.mxu0 0.0
      %2992 = vmatprep.subr.mxu0 0.0
      %2993 = vmatpush1.xpose.msra.mxu0 0.0
      %2994 = vmatprep.subr.mxu0 0.0
      %2995 = vmatpush1.xpose.msra.mxu0 0.0
      %2996 = vmatprep.subr.mxu0 0.0
      %2997 = vmatpush1.xpose.msra.mxu0 0.0
      %2998 = vmatprep.subr.mxu0 0.0
      %2999 = vmatpush1.xpose.msra.mxu0 0.0
      %3000 = vmatprep.subr.mxu0 0.0
      %3001 = vmatpush1.xpose.msra.mxu0 0.0
      %3002 = vmatprep.subr.mxu0 0.0
      %3003 = vmatpush1.xpose.msra.mxu0 0.0
      %3004 = vmatprep.subr.mxu0 0.0
      %3005 = vmatpush1.xpose.msra.mxu0 0.0
      %3006 = vmatprep.subr.mxu0 0.0
      %3007 = vmatpush1.xpose.msra.mxu0 0.0
      %3008 = vmatprep.subr.mxu0 0.0
      %3009 = vmatpush1.xpose.msra.mxu0 0.0
      %3010 = vmatprep.subr.mxu0 0.0
      %3011 = vmatpush1.xpose.msra.mxu0 0.0
      %3012 = vmatprep.subr.mxu0 0.0
      %3013 = vmatpush1.xpose.msra.mxu0 0.0
      %3014 = vmatprep.subr.mxu0 0.0
      %3015 = vmatpush1.xpose.msra.mxu0 0.0
      %3016 = vmatprep.subr.mxu0 0.0
      %3017 = vmatpush1.xpose.msra.mxu0 0.0
      %3018 = vmatprep.subr.mxu0 0.0
      %3019 = vmatpush1.xpose.msra.mxu0 0.0
      %3020 = vmatprep.mubr.f32.mxu0 0.0
      %3021 = vmatmul.mubr.f32.gmra.mrb[0].mxu0 %v2934
      %v3022 = vpop.f32.mrb[0].mxu0
      %v3023 = vadd.f32 0.0, %v3022
      %v3024 = vpop.f32.mrb[0].mxu0
      %3025 = vmatprep.mubr.f32.mxu0 0.0
      %3026 = vmatmul.mubr.f32.gmra.mrb[0].mxu0 %v2937
      %v3027 = vpop.f32.mrb[0].mxu0
      %v3028 = vadd.f32 0.0, %v3027
      %v3029 = vpop.f32.mrb[0].mxu0
      %3030 = vmatprep.mubr.f32.mxu0 0.0
      %3031 = vmatmul.mubr.f32.gmra.mrb[0].mxu0 %v2940
      %v3032 = vpop.f32.mrb[0].mxu0
      %v3033 = vadd.f32 0.0, %v3032
      %v3034 = vpop.f32.mrb[0].mxu0
      %3035 = vmatprep.mubr.f32.mxu0 0.0
      %3036 = vmatmul.mubr.f32.gmra.mrb[0].mxu0 %v2943
      %v3037 = vpop.f32.mrb[0].mxu0
      %v3038 = vadd.f32 0.0, %v3037
      %v3039 = vpop.f32.mrb[0].mxu0
      %3040 = vmatprep.mubr.f32.mxu0 0.0
      %3041 = vmatmul.mubr.f32.gmra.mrb[0].mxu0 %v2946
      %v3042 = vpop.f32.mrb[0].mxu0
      %v3043 = vadd.f32 0.0, %v3042
      %v3044 = vpop.f32.mrb[0].mxu0
      %3045 = vmatprep.mubr.f32.mxu0 0.0
      %3046 = vmatmul.mubr.f32.gmra.mrb[0].mxu0 %v2949
      %v3047 = vpop.f32.mrb[0].mxu0
      %v3048 = vadd.f32 0.0, %v3047
      %v3049 = vpop.f32.mrb[0].mxu0
      %3050 = vmatprep.mubr.f32.mxu0 0.0
      %3051 = vmatmul.mubr.f32.gmra.mrb[0].mxu0 %v2952
      %v3052 = vpop.f32.mrb[0].mxu0
      %v3053 = vadd.f32 0.0, %v3052
      %v3054 = vpop.f32.mrb[0].mxu0
      %3055 = vdwg.mxu0
      %v3056 = vcombine.low %v1862, %v1876
      %v3057 = vcombine.low %v1878, %v1880
      %v3058 = vcombine.low %v1904, %v1918
      %v3060 = vunpack.c.l.s4 1966171168
      %v3061 = vunpack.c.0.s8 %v3060
      %v3062 = vlaneseq
      %v3063 = vshrl.u32 %v3062, 7
      %v3064 = vsub.s32 %v3061, %v3063
      %v3065 = vrot.slane %v3056, %v3064
      %v3067 = vunpack.c.l.s4 1966171168
      %v3068 = vunpack.c.0.s8 %v3067
      %v3069 = vlaneseq
      %v3070 = vshrl.u32 %v3069, 7
      %v3071 = vsub.s32 %v3068, %v3070
      %v3072 = vrot.slane %v3057, %v3071
      %v3074 = vunpack.c.l.s4 1966171168
      %v3075 = vunpack.c.0.s8 %v3074
      %v3076 = vlaneseq
      %v3077 = vshrl.u32 %v3076, 7
      %v3078 = vsub.s32 %v3075, %v3077
      %v3079 = vrot.slane %v3058, %v3078
      %v3081 = vunpack.c.l.s4 1966171168
      %v3082 = vunpack.c.0.s8 %v3081
      %v3083 = vlaneseq
      %v3084 = vshrl.u32 %v3083, 7
      %v3085 = vsub.s32 %v3082, %v3084
      %v3086 = vrot.slane %v1926, %v3085
      %v3087 = vcombine.low %v3065, %v3072
      %v3088 = vcombine.low %v3079, %v3086
      %v3090 = vunpack.c.l.s4 1966171168
      %v3091 = vunpack.c.0.s8 %v3090
      %v3092 = vlaneseq
      %v3093 = vshrl.u32 %v3092, 7
      %v3094 = vsub.s32 %v3091, %v3093
      %v3095 = vrot.slane %v3087, %v3094
      %v3097 = vunpack.c.l.s4 1966171168
      %v3098 = vunpack.c.0.s8 %v3097
      %v3099 = vlaneseq
      %v3100 = vshrl.u32 %v3099, 7
      %v3101 = vsub.s32 %v3098, %v3100
      %v3102 = vrot.slane %v3088, %v3101
      %v3103 = vcombine.low %v3095, %v3102
      %3104 = vrot.lane.b32.xlu0 %v3103, 96
      %v3105 = vpop.permute.xlu0 %3104
      %v3107 = vsel %vm1563, %v2336, 0
      %v3110 = vsel %vm1563, %v2337, 0
      %v3113 = vsel %vm1563, %v2338, 0
      %v3116 = vsel %vm1563, %v2339, 0
      %v3119 = vsel %vm1563, %v2340, 0
      %v3122 = vsel %vm1563, %v2341, 0
      %v3125 = vsel %vm1563, %v2342, 0
      %v3127 = vsel %vm1563, %v3105, 0
      %3129 = vmatprep.subr.mxu0 0.0
      %3130 = vmatpush1.xpose.msra.mxu0 %v3127
      %3131 = vmatprep.subr.mxu0 0.0
      %3132 = vmatpush1.xpose.msra.mxu0 0.0
      %3133 = vmatprep.subr.mxu0 0.0
      %3134 = vmatpush1.xpose.msra.mxu0 0.0
      %3135 = vmatprep.subr.mxu0 0.0
      %3136 = vmatpush1.xpose.msra.mxu0 0.0
      %3137 = vmatprep.subr.mxu0 0.0
      %3138 = vmatpush1.xpose.msra.mxu0 0.0
      %3139 = vmatprep.subr.mxu0 0.0
      %3140 = vmatpush1.xpose.msra.mxu0 0.0
      %3141 = vmatprep.subr.mxu0 0.0
      %3142 = vmatpush1.xpose.msra.mxu0 0.0
      %3143 = vmatprep.subr.mxu0 0.0
      %3144 = vmatpush1.xpose.msra.mxu0 0.0
      %3145 = vmatprep.subr.mxu0 0.0
      %3146 = vmatpush1.xpose.msra.mxu0 0.0
      %3147 = vmatprep.subr.mxu0 0.0
      %3148 = vmatpush1.xpose.msra.mxu0 0.0
      %3149 = vmatprep.subr.mxu0 0.0
      %3150 = vmatpush1.xpose.msra.mxu0 0.0
      %3151 = vmatprep.subr.mxu0 0.0
      %3152 = vmatpush1.xpose.msra.mxu0 0.0
      %3153 = vmatprep.subr.mxu0 0.0
      %3154 = vmatpush1.xpose.msra.mxu0 0.0
      %3155 = vmatprep.subr.mxu0 0.0
      %3156 = vmatpush1.xpose.msra.mxu0 0.0
      %3157 = vmatprep.subr.mxu0 0.0
      %3158 = vmatpush1.xpose.msra.mxu0 0.0
      %3159 = vmatprep.subr.mxu0 0.0
      %3160 = vmatpush1.xpose.msra.mxu0 0.0
      %3161 = vmatprep.subr.mxu0 0.0
      %3162 = vmatpush1.xpose.msra.mxu0 0.0
      %3163 = vmatprep.subr.mxu0 0.0
      %3164 = vmatpush1.xpose.msra.mxu0 0.0
      %3165 = vmatprep.subr.mxu0 0.0
      %3166 = vmatpush1.xpose.msra.mxu0 0.0
      %3167 = vmatprep.subr.mxu0 0.0
      %3168 = vmatpush1.xpose.msra.mxu0 0.0
      %3169 = vmatprep.subr.mxu0 0.0
      %3170 = vmatpush1.xpose.msra.mxu0 0.0
      %3171 = vmatprep.subr.mxu0 0.0
      %3172 = vmatpush1.xpose.msra.mxu0 0.0
      %3173 = vmatprep.subr.mxu0 0.0
      %3174 = vmatpush1.xpose.msra.mxu0 0.0
      %3175 = vmatprep.subr.mxu0 0.0
      %3176 = vmatpush1.xpose.msra.mxu0 0.0
      %3177 = vmatprep.subr.mxu0 0.0
      %3178 = vmatpush1.xpose.msra.mxu0 0.0
      %3179 = vmatprep.subr.mxu0 0.0
      %3180 = vmatpush1.xpose.msra.mxu0 0.0
      %3181 = vmatprep.subr.mxu0 0.0
      %3182 = vmatpush1.xpose.msra.mxu0 0.0
      %3183 = vmatprep.subr.mxu0 0.0
      %3184 = vmatpush1.xpose.msra.mxu0 0.0
      %3185 = vmatprep.subr.mxu0 0.0
      %3186 = vmatpush1.xpose.msra.mxu0 0.0
      %3187 = vmatprep.subr.mxu0 0.0
      %3188 = vmatpush1.xpose.msra.mxu0 0.0
      %3189 = vmatprep.subr.mxu0 0.0
      %3190 = vmatpush1.xpose.msra.mxu0 0.0
      %3191 = vmatprep.subr.mxu0 0.0
      %3192 = vmatpush1.xpose.msra.mxu0 0.0
      %3193 = vmatprep.mubr.f32.mxu0 0.0
      %3194 = vmatmul.mubr.f32.gmra.mrb[0].mxu0 %v3107
      %v3195 = vpop.f32.mrb[0].mxu0
      %v3196 = vadd.f32 0.0, %v3195
      %v3197 = vpop.f32.mrb[0].mxu0
      %3198 = vmatprep.mubr.f32.mxu0 0.0
      %3199 = vmatmul.mubr.f32.gmra.mrb[0].mxu0 %v3110
      %v3200 = vpop.f32.mrb[0].mxu0
      %v3201 = vadd.f32 0.0, %v3200
      %v3202 = vpop.f32.mrb[0].mxu0
      %3203 = vmatprep.mubr.f32.mxu0 0.0
      %3204 = vmatmul.mubr.f32.gmra.mrb[0].mxu0 %v3113
      %v3205 = vpop.f32.mrb[0].mxu0
      %v3206 = vadd.f32 0.0, %v3205
      %v3207 = vpop.f32.mrb[0].mxu0
      %3208 = vmatprep.mubr.f32.mxu0 0.0
      %3209 = vmatmul.mubr.f32.gmra.mrb[0].mxu0 %v3116
      %v3210 = vpop.f32.mrb[0].mxu0
      %v3211 = vadd.f32 0.0, %v3210
      %v3212 = vpop.f32.mrb[0].mxu0
      %3213 = vmatprep.mubr.f32.mxu0 0.0
      %3214 = vmatmul.mubr.f32.gmra.mrb[0].mxu0 %v3119
      %v3215 = vpop.f32.mrb[0].mxu0
      %v3216 = vadd.f32 0.0, %v3215
      %v3217 = vpop.f32.mrb[0].mxu0
      %3218 = vmatprep.mubr.f32.mxu0 0.0
      %3219 = vmatmul.mubr.f32.gmra.mrb[0].mxu0 %v3122
      %v3220 = vpop.f32.mrb[0].mxu0
      %v3221 = vadd.f32 0.0, %v3220
      %v3222 = vpop.f32.mrb[0].mxu0
      %3223 = vmatprep.mubr.f32.mxu0 0.0
      %3224 = vmatmul.mubr.f32.gmra.mrb[0].mxu0 %v3125
      %v3225 = vpop.f32.mrb[0].mxu0
      %v3226 = vadd.f32 0.0, %v3225
      %v3227 = vpop.f32.mrb[0].mxu0
      %3228 = vdwg.mxu0
      %v3229 = vcombine.low %v1928, %v1911
      %v3230 = vcombine.low %v1925, %v1927
      %v3231 = vcombine.low %v1929, %v1953
      %v3233 = vunpack.c.l.s4 1966171168
      %v3234 = vunpack.c.0.s8 %v3233
      %v3235 = vlaneseq
      %v3236 = vshrl.u32 %v3235, 7
      %v3237 = vsub.s32 %v3234, %v3236
      %v3238 = vrot.slane %v3229, %v3237
      %v3240 = vunpack.c.l.s4 1966171168
      %v3241 = vunpack.c.0.s8 %v3240
      %v3242 = vlaneseq
      %v3243 = vshrl.u32 %v3242, 7
      %v3244 = vsub.s32 %v3241, %v3243
      %v3245 = vrot.slane %v3230, %v3244
      %v3247 = vunpack.c.l.s4 1966171168
      %v3248 = vunpack.c.0.s8 %v3247
      %v3249 = vlaneseq
      %v3250 = vshrl.u32 %v3249, 7
      %v3251 = vsub.s32 %v3248, %v3250
      %v3252 = vrot.slane %v3231, %v3251
      %v3254 = vunpack.c.l.s4 1966171168
      %v3255 = vunpack.c.0.s8 %v3254
      %v3256 = vlaneseq
      %v3257 = vshrl.u32 %v3256, 7
      %v3258 = vsub.s32 %v3255, %v3257
      %v3259 = vrot.slane %v1967, %v3258
      %v3260 = vcombine.low %v3238, %v3245
      %v3261 = vcombine.low %v3252, %v3259
      %v3263 = vunpack.c.l.s4 1966171168
      %v3264 = vunpack.c.0.s8 %v3263
      %v3265 = vlaneseq
      %v3266 = vshrl.u32 %v3265, 7
      %v3267 = vsub.s32 %v3264, %v3266
      %v3268 = vrot.slane %v3260, %v3267
      %v3270 = vunpack.c.l.s4 1966171168
      %v3271 = vunpack.c.0.s8 %v3270
      %v3272 = vlaneseq
      %v3273 = vshrl.u32 %v3272, 7
      %v3274 = vsub.s32 %v3271, %v3273
      %v3275 = vrot.slane %v3261, %v3274
      %v3276 = vcombine.low %v3268, %v3275
      %3277 = vrot.lane.b32.xlu0 %v3276, 96
      %v3278 = vpop.permute.xlu0 %3277
      %v3280 = vsel %vm1563, %v2343, 0
      %v3283 = vsel %vm1563, %v2344, 0
      %v3286 = vsel %vm1563, %v2345, 0
      %v3289 = vsel %vm1563, %v2346, 0
      %v3292 = vsel %vm1563, %v2347, 0
      %v3295 = vsel %vm1563, %v2348, 0
      %v3298 = vsel %vm1563, %v2349, 0
      %v3300 = vsel %vm1563, %v3278, 0
      %3302 = vmatprep.subr.mxu0 0.0
      %3303 = vmatpush1.xpose.msra.mxu0 %v3300
      %3304 = vmatprep.subr.mxu0 0.0
      %3305 = vmatpush1.xpose.msra.mxu0 0.0
      %3306 = vmatprep.subr.mxu0 0.0
      %3307 = vmatpush1.xpose.msra.mxu0 0.0
      %3308 = vmatprep.subr.mxu0 0.0
      %3309 = vmatpush1.xpose.msra.mxu0 0.0
      %3310 = vmatprep.subr.mxu0 0.0
      %3311 = vmatpush1.xpose.msra.mxu0 0.0
      %3312 = vmatprep.subr.mxu0 0.0
      %3313 = vmatpush1.xpose.msra.mxu0 0.0
      %3314 = vmatprep.subr.mxu0 0.0
      %3315 = vmatpush1.xpose.msra.mxu0 0.0
      %3316 = vmatprep.subr.mxu0 0.0
      %3317 = vmatpush1.xpose.msra.mxu0 0.0
      %3318 = vmatprep.subr.mxu0 0.0
      %3319 = vmatpush1.xpose.msra.mxu0 0.0
      %3320 = vmatprep.subr.mxu0 0.0
      %3321 = vmatpush1.xpose.msra.mxu0 0.0
      %3322 = vmatprep.subr.mxu0 0.0
      %3323 = vmatpush1.xpose.msra.mxu0 0.0
      %3324 = vmatprep.subr.mxu0 0.0
      %3325 = vmatpush1.xpose.msra.mxu0 0.0
      %3326 = vmatprep.subr.mxu0 0.0
      %3327 = vmatpush1.xpose.msra.mxu0 0.0
      %3328 = vmatprep.subr.mxu0 0.0
      %3329 = vmatpush1.xpose.msra.mxu0 0.0
      %3330 = vmatprep.subr.mxu0 0.0
      %3331 = vmatpush1.xpose.msra.mxu0 0.0
      %3332 = vmatprep.subr.mxu0 0.0
      %3333 = vmatpush1.xpose.msra.mxu0 0.0
      %3334 = vmatprep.subr.mxu0 0.0
      %3335 = vmatpush1.xpose.msra.mxu0 0.0
      %3336 = vmatprep.subr.mxu0 0.0
      %3337 = vmatpush1.xpose.msra.mxu0 0.0
      %3338 = vmatprep.subr.mxu0 0.0
      %3339 = vmatpush1.xpose.msra.mxu0 0.0
      %3340 = vmatprep.subr.mxu0 0.0
      %3341 = vmatpush1.xpose.msra.mxu0 0.0
      %3342 = vmatprep.subr.mxu0 0.0
      %3343 = vmatpush1.xpose.msra.mxu0 0.0
      %3344 = vmatprep.subr.mxu0 0.0
      %3345 = vmatpush1.xpose.msra.mxu0 0.0
      %3346 = vmatprep.subr.mxu0 0.0
      %3347 = vmatpush1.xpose.msra.mxu0 0.0
      %3348 = vmatprep.subr.mxu0 0.0
      %3349 = vmatpush1.xpose.msra.mxu0 0.0
      %3350 = vmatprep.subr.mxu0 0.0
      %3351 = vmatpush1.xpose.msra.mxu0 0.0
      %3352 = vmatprep.subr.mxu0 0.0
      %3353 = vmatpush1.xpose.msra.mxu0 0.0
      %3354 = vmatprep.subr.mxu0 0.0
      %3355 = vmatpush1.xpose.msra.mxu0 0.0
      %3356 = vmatprep.subr.mxu0 0.0
      %3357 = vmatpush1.xpose.msra.mxu0 0.0
      %3358 = vmatprep.subr.mxu0 0.0
      %3359 = vmatpush1.xpose.msra.mxu0 0.0
      %3360 = vmatprep.subr.mxu0 0.0
      %3361 = vmatpush1.xpose.msra.mxu0 0.0
      %3362 = vmatprep.subr.mxu0 0.0
      %3363 = vmatpush1.xpose.msra.mxu0 0.0
      %3364 = vmatprep.subr.mxu0 0.0
      %3365 = vmatpush1.xpose.msra.mxu0 0.0
      %3366 = vmatprep.mubr.f32.mxu0 0.0
      %3367 = vmatmul.mubr.f32.gmra.mrb[0].mxu0 %v3280
      %v3368 = vpop.f32.mrb[0].mxu0
      %v3369 = vadd.f32 0.0, %v3368
      %v3370 = vpop.f32.mrb[0].mxu0
      %3371 = vmatprep.mubr.f32.mxu0 0.0
      %3372 = vmatmul.mubr.f32.gmra.mrb[0].mxu0 %v3283
      %v3373 = vpop.f32.mrb[0].mxu0
      %v3374 = vadd.f32 0.0, %v3373
      %v3375 = vpop.f32.mrb[0].mxu0
      %3376 = vmatprep.mubr.f32.mxu0 0.0
      %3377 = vmatmul.mubr.f32.gmra.mrb[0].mxu0 %v3286
      %v3378 = vpop.f32.mrb[0].mxu0
      %v3379 = vadd.f32 0.0, %v3378
      %v3380 = vpop.f32.mrb[0].mxu0
      %3381 = vmatprep.mubr.f32.mxu0 0.0
      %3382 = vmatmul.mubr.f32.gmra.mrb[0].mxu0 %v3289
      %v3383 = vpop.f32.mrb[0].mxu0
      %v3384 = vadd.f32 0.0, %v3383
      %v3385 = vpop.f32.mrb[0].mxu0
      %3386 = vmatprep.mubr.f32.mxu0 0.0
      %3387 = vmatmul.mubr.f32.gmra.mrb[0].mxu0 %v3292
      %v3388 = vpop.f32.mrb[0].mxu0
      %v3389 = vadd.f32 0.0, %v3388
      %v3390 = vpop.f32.mrb[0].mxu0
      %3391 = vmatprep.mubr.f32.mxu0 0.0
      %3392 = vmatmul.mubr.f32.gmra.mrb[0].mxu0 %v3295
      %v3393 = vpop.f32.mrb[0].mxu0
      %v3394 = vadd.f32 0.0, %v3393
      %v3395 = vpop.f32.mrb[0].mxu0
      %3396 = vmatprep.mubr.f32.mxu0 0.0
      %3397 = vmatmul.mubr.f32.gmra.mrb[0].mxu0 %v3298
      %v3398 = vpop.f32.mrb[0].mxu0
      %v3399 = vadd.f32 0.0, %v3398
      %v3400 = vpop.f32.mrb[0].mxu0
      %3401 = vdwg.mxu0
      %v3402 = vcombine.low %v1975, %v1977
      %v3403 = vcombine.low %v1960, %v1974
      %v3404 = vcombine.low %v1976, %v1978
      %v3406 = vunpack.c.l.s4 1966171168
      %v3407 = vunpack.c.0.s8 %v3406
      %v3408 = vlaneseq
      %v3409 = vshrl.u32 %v3408, 7
      %v3410 = vsub.s32 %v3407, %v3409
      %v3411 = vrot.slane %v3402, %v3410
      %v3413 = vunpack.c.l.s4 1966171168
      %v3414 = vunpack.c.0.s8 %v3413
      %v3415 = vlaneseq
      %v3416 = vshrl.u32 %v3415, 7
      %v3417 = vsub.s32 %v3414, %v3416
      %v3418 = vrot.slane %v3403, %v3417
      %v3420 = vunpack.c.l.s4 1966171168
      %v3421 = vunpack.c.0.s8 %v3420
      %v3422 = vlaneseq
      %v3423 = vshrl.u32 %v3422, 7
      %v3424 = vsub.s32 %v3421, %v3423
      %v3425 = vrot.slane %v3404, %v3424
      %v3427 = vunpack.c.l.s4 1966171168
      %v3428 = vunpack.c.0.s8 %v3427
      %v3429 = vlaneseq
      %v3430 = vshrl.u32 %v3429, 7
      %v3431 = vsub.s32 %v3428, %v3430
      %v3432 = vrot.slane %v2002, %v3431
      %v3433 = vcombine.low %v3411, %v3418
      %v3434 = vcombine.low %v3425, %v3432
      %v3436 = vunpack.c.l.s4 1966171168
      %v3437 = vunpack.c.0.s8 %v3436
      %v3438 = vlaneseq
      %v3439 = vshrl.u32 %v3438, 7
      %v3440 = vsub.s32 %v3437, %v3439
      %v3441 = vrot.slane %v3433, %v3440
      %v3443 = vunpack.c.l.s4 1966171168
      %v3444 = vunpack.c.0.s8 %v3443
      %v3445 = vlaneseq
      %v3446 = vshrl.u32 %v3445, 7
      %v3447 = vsub.s32 %v3444, %v3446
      %v3448 = vrot.slane %v3434, %v3447
      %v3449 = vcombine.low %v3441, %v3448
      %3450 = vrot.lane.b32.xlu0 %v3449, 96
      %v3451 = vpop.permute.xlu0 %3450
      %v3453 = vsel %vm1563, %v2350, 0
      %v3456 = vsel %vm1563, %v2351, 0
      %v3459 = vsel %vm1563, %v2352, 0
      %v3462 = vsel %vm1563, %v2353, 0
      %v3465 = vsel %vm1563, %v2354, 0
      %v3468 = vsel %vm1563, %v2355, 0
      %v3471 = vsel %vm1563, %v2356, 0
      %v3473 = vsel %vm1563, %v3451, 0
      %3475 = vmatprep.subr.mxu0 0.0
      %3476 = vmatpush1.xpose.msra.mxu0 %v3473
      %3477 = vmatprep.subr.mxu0 0.0
      %3478 = vmatpush1.xpose.msra.mxu0 0.0
      %3479 = vmatprep.subr.mxu0 0.0
      %3480 = vmatpush1.xpose.msra.mxu0 0.0
      %3481 = vmatprep.subr.mxu0 0.0
      %3482 = vmatpush1.xpose.msra.mxu0 0.0
      %3483 = vmatprep.subr.mxu0 0.0
      %3484 = vmatpush1.xpose.msra.mxu0 0.0
      %3485 = vmatprep.subr.mxu0 0.0
      %3486 = vmatpush1.xpose.msra.mxu0 0.0
      %3487 = vmatprep.subr.mxu0 0.0
      %3488 = vmatpush1.xpose.msra.mxu0 0.0
      %3489 = vmatprep.subr.mxu0 0.0
      %3490 = vmatpush1.xpose.msra.mxu0 0.0
      %3491 = vmatprep.subr.mxu0 0.0
      %3492 = vmatpush1.xpose.msra.mxu0 0.0
      %3493 = vmatprep.subr.mxu0 0.0
      %3494 = vmatpush1.xpose.msra.mxu0 0.0
      %3495 = vmatprep.subr.mxu0 0.0
      %3496 = vmatpush1.xpose.msra.mxu0 0.0
      %3497 = vmatprep.subr.mxu0 0.0
      %3498 = vmatpush1.xpose.msra.mxu0 0.0
      %3499 = vmatprep.subr.mxu0 0.0
      %3500 = vmatpush1.xpose.msra.mxu0 0.0
      %3501 = vmatprep.subr.mxu0 0.0
      %3502 = vmatpush1.xpose.msra.mxu0 0.0
      %3503 = vmatprep.subr.mxu0 0.0
      %3504 = vmatpush1.xpose.msra.mxu0 0.0
      %3505 = vmatprep.subr.mxu0 0.0
      %3506 = vmatpush1.xpose.msra.mxu0 0.0
      %3507 = vmatprep.subr.mxu0 0.0
      %3508 = vmatpush1.xpose.msra.mxu0 0.0
      %3509 = vmatprep.subr.mxu0 0.0
      %3510 = vmatpush1.xpose.msra.mxu0 0.0
      %3511 = vmatprep.subr.mxu0 0.0
      %3512 = vmatpush1.xpose.msra.mxu0 0.0
      %3513 = vmatprep.subr.mxu0 0.0
      %3514 = vmatpush1.xpose.msra.mxu0 0.0
      %3515 = vmatprep.subr.mxu0 0.0
      %3516 = vmatpush1.xpose.msra.mxu0 0.0
      %3517 = vmatprep.subr.mxu0 0.0
      %3518 = vmatpush1.xpose.msra.mxu0 0.0
      %3519 = vmatprep.subr.mxu0 0.0
      %3520 = vmatpush1.xpose.msra.mxu0 0.0
      %3521 = vmatprep.subr.mxu0 0.0
      %3522 = vmatpush1.xpose.msra.mxu0 0.0
      %3523 = vmatprep.subr.mxu0 0.0
      %3524 = vmatpush1.xpose.msra.mxu0 0.0
      %3525 = vmatprep.subr.mxu0 0.0
      %3526 = vmatpush1.xpose.msra.mxu0 0.0
      %3527 = vmatprep.subr.mxu0 0.0
      %3528 = vmatpush1.xpose.msra.mxu0 0.0
      %3529 = vmatprep.subr.mxu0 0.0
      %3530 = vmatpush1.xpose.msra.mxu0 0.0
      %3531 = vmatprep.subr.mxu0 0.0
      %3532 = vmatpush1.xpose.msra.mxu0 0.0
      %3533 = vmatprep.subr.mxu0 0.0
      %3534 = vmatpush1.xpose.msra.mxu0 0.0
      %3535 = vmatprep.subr.mxu0 0.0
      %3536 = vmatpush1.xpose.msra.mxu0 0.0
      %3537 = vmatprep.subr.mxu0 0.0
      %3538 = vmatpush1.xpose.msra.mxu0 0.0
      %3539 = vmatprep.mubr.f32.mxu0 0.0
      %3540 = vmatmul.mubr.f32.gmra.mrb[0].mxu0 %v3453
      %v3541 = vpop.f32.mrb[0].mxu0
      %v3542 = vadd.f32 0.0, %v3541
      %v3543 = vpop.f32.mrb[0].mxu0
      %3544 = vmatprep.mubr.f32.mxu0 0.0
      %3545 = vmatmul.mubr.f32.gmra.mrb[0].mxu0 %v3456
      %v3546 = vpop.f32.mrb[0].mxu0
      %v3547 = vadd.f32 0.0, %v3546
      %v3548 = vpop.f32.mrb[0].mxu0
      %3549 = vmatprep.mubr.f32.mxu0 0.0
      %3550 = vmatmul.mubr.f32.gmra.mrb[0].mxu0 %v3459
      %v3551 = vpop.f32.mrb[0].mxu0
      %v3552 = vadd.f32 0.0, %v3551
      %v3553 = vpop.f32.mrb[0].mxu0
      %3554 = vmatprep.mubr.f32.mxu0 0.0
      %3555 = vmatmul.mubr.f32.gmra.mrb[0].mxu0 %v3462
      %v3556 = vpop.f32.mrb[0].mxu0
      %v3557 = vadd.f32 0.0, %v3556
      %v3558 = vpop.f32.mrb[0].mxu0
      %3559 = vmatprep.mubr.f32.mxu0 0.0
      %3560 = vmatmul.mubr.f32.gmra.mrb[0].mxu0 %v3465
      %v3561 = vpop.f32.mrb[0].mxu0
      %v3562 = vadd.f32 0.0, %v3561
      %v3563 = vpop.f32.mrb[0].mxu0
      %3564 = vmatprep.mubr.f32.mxu0 0.0
      %3565 = vmatmul.mubr.f32.gmra.mrb[0].mxu0 %v3468
      %v3566 = vpop.f32.mrb[0].mxu0
      %v3567 = vadd.f32 0.0, %v3566
      %v3568 = vpop.f32.mrb[0].mxu0
      %3569 = vmatprep.mubr.f32.mxu0 0.0
      %3570 = vmatmul.mubr.f32.gmra.mrb[0].mxu0 %v3471
      %v3571 = vpop.f32.mrb[0].mxu0
      %v3572 = vadd.f32 0.0, %v3571
      %v3573 = vpop.f32.mrb[0].mxu0
      %3574 = vdwg.mxu0
      %v3575 = vcombine.low %v2016, %v2024
      %v3576 = vcombine.low %v2026, %v2009
      %v3577 = vcombine.low %v2023, %v2025
      %v3579 = vunpack.c.l.s4 1966171168
      %v3580 = vunpack.c.0.s8 %v3579
      %v3581 = vlaneseq
      %v3582 = vshrl.u32 %v3581, 7
      %v3583 = vsub.s32 %v3580, %v3582
      %v3584 = vrot.slane %v3575, %v3583
      %v3586 = vunpack.c.l.s4 1966171168
      %v3587 = vunpack.c.0.s8 %v3586
      %v3588 = vlaneseq
      %v3589 = vshrl.u32 %v3588, 7
      %v3590 = vsub.s32 %v3587, %v3589
      %v3591 = vrot.slane %v3576, %v3590
      %v3593 = vunpack.c.l.s4 1966171168
      %v3594 = vunpack.c.0.s8 %v3593
      %v3595 = vlaneseq
      %v3596 = vshrl.u32 %v3595, 7
      %v3597 = vsub.s32 %v3594, %v3596
      %v3598 = vrot.slane %v3577, %v3597
      %v3600 = vunpack.c.l.s4 1966171168
      %v3601 = vunpack.c.0.s8 %v3600
      %v3602 = vlaneseq
      %v3603 = vshrl.u32 %v3602, 7
      %v3604 = vsub.s32 %v3601, %v3603
      %v3605 = vrot.slane %v2027, %v3604
      %v3606 = vcombine.low %v3584, %v3591
      %v3607 = vcombine.low %v3598, %v3605
      %v3609 = vunpack.c.l.s4 1966171168
      %v3610 = vunpack.c.0.s8 %v3609
      %v3611 = vlaneseq
      %v3612 = vshrl.u32 %v3611, 7
      %v3613 = vsub.s32 %v3610, %v3612
      %v3614 = vrot.slane %v3606, %v3613
      %v3616 = vunpack.c.l.s4 1966171168
      %v3617 = vunpack.c.0.s8 %v3616
      %v3618 = vlaneseq
      %v3619 = vshrl.u32 %v3618, 7
      %v3620 = vsub.s32 %v3617, %v3619
      %v3621 = vrot.slane %v3607, %v3620
      %v3622 = vcombine.low %v3614, %v3621
      %3623 = vrot.lane.b32.xlu0 %v3622, 96
      %v3624 = vpop.permute.xlu0 %3623
      %v3626 = vsel %vm1563, %v2357, 0
      %v3629 = vsel %vm1563, %v2358, 0
      %v3632 = vsel %vm1563, %v2359, 0
      %v3635 = vsel %vm1563, %v2360, 0
      %v3638 = vsel %vm1563, %v2361, 0
      %v3641 = vsel %vm1563, %v2362, 0
      %v3644 = vsel %vm1563, %v2363, 0
      %v3646 = vsel %vm1563, %v3624, 0
      %3648 = vmatprep.subr.mxu0 0.0
      %3649 = vmatpush1.xpose.msra.mxu0 %v3646
      %3650 = vmatprep.subr.mxu0 0.0
      %3651 = vmatpush1.xpose.msra.mxu0 0.0
      %3652 = vmatprep.subr.mxu0 0.0
      %3653 = vmatpush1.xpose.msra.mxu0 0.0
      %3654 = vmatprep.subr.mxu0 0.0
      %3655 = vmatpush1.xpose.msra.mxu0 0.0
      %3656 = vmatprep.subr.mxu0 0.0
      %3657 = vmatpush1.xpose.msra.mxu0 0.0
      %3658 = vmatprep.subr.mxu0 0.0
      %3659 = vmatpush1.xpose.msra.mxu0 0.0
      %3660 = vmatprep.subr.mxu0 0.0
      %3661 = vmatpush1.xpose.msra.mxu0 0.0
      %3662 = vmatprep.subr.mxu0 0.0
      %3663 = vmatpush1.xpose.msra.mxu0 0.0
      %3664 = vmatprep.subr.mxu0 0.0
      %3665 = vmatpush1.xpose.msra.mxu0 0.0
      %3666 = vmatprep.subr.mxu0 0.0
      %3667 = vmatpush1.xpose.msra.mxu0 0.0
      %3668 = vmatprep.subr.mxu0 0.0
      %3669 = vmatpush1.xpose.msra.mxu0 0.0
      %3670 = vmatprep.subr.mxu0 0.0
      %3671 = vmatpush1.xpose.msra.mxu0 0.0
      %3672 = vmatprep.subr.mxu0 0.0
      %3673 = vmatpush1.xpose.msra.mxu0 0.0
      %3674 = vmatprep.subr.mxu0 0.0
      %3675 = vmatpush1.xpose.msra.mxu0 0.0
      %3676 = vmatprep.subr.mxu0 0.0
      %3677 = vmatpush1.xpose.msra.mxu0 0.0
      %3678 = vmatprep.subr.mxu0 0.0
      %3679 = vmatpush1.xpose.msra.mxu0 0.0
      %3680 = vmatprep.subr.mxu0 0.0
      %3681 = vmatpush1.xpose.msra.mxu0 0.0
      %3682 = vmatprep.subr.mxu0 0.0
      %3683 = vmatpush1.xpose.msra.mxu0 0.0
      %3684 = vmatprep.subr.mxu0 0.0
      %3685 = vmatpush1.xpose.msra.mxu0 0.0
      %3686 = vmatprep.subr.mxu0 0.0
      %3687 = vmatpush1.xpose.msra.mxu0 0.0
      %3688 = vmatprep.subr.mxu0 0.0
      %3689 = vmatpush1.xpose.msra.mxu0 0.0
      %3690 = vmatprep.subr.mxu0 0.0
      %3691 = vmatpush1.xpose.msra.mxu0 0.0
      %3692 = vmatprep.subr.mxu0 0.0
      %3693 = vmatpush1.xpose.msra.mxu0 0.0
      %3694 = vmatprep.subr.mxu0 0.0
      %3695 = vmatpush1.xpose.msra.mxu0 0.0
      %3696 = vmatprep.subr.mxu0 0.0
      %3697 = vmatpush1.xpose.msra.mxu0 0.0
      %3698 = vmatprep.subr.mxu0 0.0
      %3699 = vmatpush1.xpose.msra.mxu0 0.0
      %3700 = vmatprep.subr.mxu0 0.0
      %3701 = vmatpush1.xpose.msra.mxu0 0.0
      %3702 = vmatprep.subr.mxu0 0.0
      %3703 = vmatpush1.xpose.msra.mxu0 0.0
      %3704 = vmatprep.subr.mxu0 0.0
      %3705 = vmatpush1.xpose.msra.mxu0 0.0
      %3706 = vmatprep.subr.mxu0 0.0
      %3707 = vmatpush1.xpose.msra.mxu0 0.0
      %3708 = vmatprep.subr.mxu0 0.0
      %3709 = vmatpush1.xpose.msra.mxu0 0.0
      %3710 = vmatprep.subr.mxu0 0.0
      %3711 = vmatpush1.xpose.msra.mxu0 0.0
      %3712 = vmatprep.mubr.f32.mxu0 0.0
      %3713 = vmatmul.mubr.f32.gmra.mrb[0].mxu0 %v3626
      %v3714 = vpop.f32.mrb[0].mxu0
      %v3715 = vadd.f32 0.0, %v3714
      %v3716 = vpop.f32.mrb[0].mxu0
      %3717 = vmatprep.mubr.f32.mxu0 0.0
      %3718 = vmatmul.mubr.f32.gmra.mrb[0].mxu0 %v3629
      %v3719 = vpop.f32.mrb[0].mxu0
      %v3720 = vadd.f32 0.0, %v3719
      %v3721 = vpop.f32.mrb[0].mxu0
      %3722 = vmatprep.mubr.f32.mxu0 0.0
      %3723 = vmatmul.mubr.f32.gmra.mrb[0].mxu0 %v3632
      %v3724 = vpop.f32.mrb[0].mxu0
      %v3725 = vadd.f32 0.0, %v3724
      %v3726 = vpop.f32.mrb[0].mxu0
      %3727 = vmatprep.mubr.f32.mxu0 0.0
      %3728 = vmatmul.mubr.f32.gmra.mrb[0].mxu0 %v3635
      %v3729 = vpop.f32.mrb[0].mxu0
      %v3730 = vadd.f32 0.0, %v3729
      %v3731 = vpop.f32.mrb[0].mxu0
      %3732 = vmatprep.mubr.f32.mxu0 0.0
      %3733 = vmatmul.mubr.f32.gmra.mrb[0].mxu0 %v3638
      %v3734 = vpop.f32.mrb[0].mxu0
      %v3735 = vadd.f32 0.0, %v3734
      %v3736 = vpop.f32.mrb[0].mxu0
      %3737 = vmatprep.mubr.f32.mxu0 0.0
      %3738 = vmatmul.mubr.f32.gmra.mrb[0].mxu0 %v3641
      %v3739 = vpop.f32.mrb[0].mxu0
      %v3740 = vadd.f32 0.0, %v3739
      %v3741 = vpop.f32.mrb[0].mxu0
      %3742 = vmatprep.mubr.f32.mxu0 0.0
      %3743 = vmatmul.mubr.f32.gmra.mrb[0].mxu0 %v3644
      %v3744 = vpop.f32.mrb[0].mxu0
      %v3745 = vadd.f32 0.0, %v3744
      %v3746 = vpop.f32.mrb[0].mxu0
      %3747 = vdwg.mxu0
      %vm3748 = vcmask 56320
      %v3749 = vsel %vm3748, %v2504, -inf
      %3750 = vmax.xlane.f32.xlu0 %v3749
      %v3751 = vpop.xlane.xlu0 %3750
      %v3752 = vsel %vm3748, %v2509, -inf
      %3753 = vmax.xlane.f32.xlu0 %v3752
      %v3754 = vpop.xlane.xlu0 %3753
      %v3755 = vsel %vm3748, %v2514, -inf
      %3756 = vmax.xlane.f32.xlu0 %v3755
      %v3757 = vpop.xlane.xlu0 %3756
      %v3758 = vsel %vm3748, %v2519, -inf
      %3759 = vmax.xlane.f32.xlu0 %v3758
      %v3760 = vpop.xlane.xlu0 %3759
      %v3761 = vsel %vm3748, %v2524, -inf
      %3762 = vmax.xlane.f32.xlu0 %v3761
      %v3763 = vpop.xlane.xlu0 %3762
      %v3764 = vsel %vm3748, %v2529, -inf
      %3765 = vmax.xlane.f32.xlu0 %v3764
      %v3766 = vpop.xlane.xlu0 %3765
      %v3767 = vsel %vm3748, %v2534, -inf
      %3768 = vmax.xlane.f32.xlu0 %v3767
      %v3769 = vpop.xlane.xlu0 %3768
      %v3770 = vsel %vm3748, %v2677, -inf
      %3771 = vmax.xlane.f32.xlu0 %v3770
      %v3772 = vpop.xlane.xlu0 %3771
      %v3773 = vsel %vm3748, %v2682, -inf
      %3774 = vmax.xlane.f32.xlu0 %v3773
      %v3775 = vpop.xlane.xlu0 %3774
      %v3776 = vsel %vm3748, %v2687, -inf
      %3777 = vmax.xlane.f32.xlu0 %v3776
      %v3778 = vpop.xlane.xlu0 %3777
      %v3779 = vsel %vm3748, %v2692, -inf
      %3780 = vmax.xlane.f32.xlu0 %v3779
      %v3781 = vpop.xlane.xlu0 %3780
      %v3782 = vsel %vm3748, %v2697, -inf
      %3783 = vmax.xlane.f32.xlu0 %v3782
      %v3784 = vpop.xlane.xlu0 %3783
      %v3785 = vsel %vm3748, %v2702, -inf
      %3786 = vmax.xlane.f32.xlu0 %v3785
      %v3787 = vpop.xlane.xlu0 %3786
      %v3788 = vsel %vm3748, %v2707, -inf
      %3789 = vmax.xlane.f32.xlu0 %v3788
      %v3790 = vpop.xlane.xlu0 %3789
      %v3791 = vsel %vm3748, %v2850, -inf
      %3792 = vmax.xlane.f32.xlu0 %v3791
      %v3793 = vpop.xlane.xlu0 %3792
      %v3794 = vsel %vm3748, %v2855, -inf
      %3795 = vmax.xlane.f32.xlu0 %v3794
      %v3796 = vpop.xlane.xlu0 %3795
      %v3797 = vsel %vm3748, %v2860, -inf
      %3798 = vmax.xlane.f32.xlu0 %v3797
      %v3799 = vpop.xlane.xlu0 %3798
      %v3800 = vsel %vm3748, %v2865, -inf
      %3801 = vmax.xlane.f32.xlu0 %v3800
      %v3802 = vpop.xlane.xlu0 %3801
      %v3803 = vsel %vm3748, %v2870, -inf
      %3804 = vmax.xlane.f32.xlu0 %v3803
      %v3805 = vpop.xlane.xlu0 %3804
      %v3806 = vsel %vm3748, %v2875, -inf
      %3807 = vmax.xlane.f32.xlu0 %v3806
      %v3808 = vpop.xlane.xlu0 %3807
      %v3809 = vsel %vm3748, %v2880, -inf
      %3810 = vmax.xlane.f32.xlu0 %v3809
      %v3811 = vpop.xlane.xlu0 %3810
      %v3812 = vsel %vm3748, %v3023, -inf
      %3813 = vmax.xlane.f32.xlu0 %v3812
      %v3814 = vpop.xlane.xlu0 %3813
      %v3815 = vsel %vm3748, %v3028, -inf
      %3816 = vmax.xlane.f32.xlu0 %v3815
      %v3817 = vpop.xlane.xlu0 %3816
      %v3818 = vsel %vm3748, %v3033, -inf
      %3819 = vmax.xlane.f32.xlu0 %v3818
      %v3820 = vpop.xlane.xlu0 %3819
      %v3821 = vsel %vm3748, %v3038, -inf
      %3822 = vmax.xlane.f32.xlu0 %v3821
      %v3823 = vpop.xlane.xlu0 %3822
      %v3824 = vsel %vm3748, %v3043, -inf
      %3825 = vmax.xlane.f32.xlu0 %v3824
      %v3826 = vpop.xlane.xlu0 %3825
      %v3827 = vsel %vm3748, %v3048, -inf
      %3828 = vmax.xlane.f32.xlu0 %v3827
      %v3829 = vpop.xlane.xlu0 %3828
      %v3830 = vsel %vm3748, %v3053, -inf
      %3831 = vmax.xlane.f32.xlu0 %v3830
      %v3832 = vpop.xlane.xlu0 %3831
      %v3833 = vsel %vm3748, %v3196, -inf
      %3834 = vmax.xlane.f32.xlu0 %v3833
      %v3835 = vpop.xlane.xlu0 %3834
      %v3836 = vsel %vm3748, %v3201, -inf
      %3837 = vmax.xlane.f32.xlu0 %v3836
      %v3838 = vpop.xlane.xlu0 %3837
      %v3839 = vsel %vm3748, %v3206, -inf
      %3840 = vmax.xlane.f32.xlu0 %v3839
      %v3841 = vpop.xlane.xlu0 %3840
      %v3842 = vsel %vm3748, %v3211, -inf
      %3843 = vmax.xlane.f32.xlu0 %v3842
      %v3844 = vpop.xlane.xlu0 %3843
      %v3845 = vsel %vm3748, %v3216, -inf
      %3846 = vmax.xlane.f32.xlu0 %v3845
      %v3847 = vpop.xlane.xlu0 %3846
      %v3848 = vsel %vm3748, %v3221, -inf
      %3849 = vmax.xlane.f32.xlu0 %v3848
      %v3850 = vpop.xlane.xlu0 %3849
      %v3851 = vsel %vm3748, %v3226, -inf
      %3852 = vmax.xlane.f32.xlu0 %v3851
      %v3853 = vpop.xlane.xlu0 %3852
      %v3854 = vsel %vm3748, %v3369, -inf
      %3855 = vmax.xlane.f32.xlu0 %v3854
      %v3856 = vpop.xlane.xlu0 %3855
      %v3857 = vsel %vm3748, %v3374, -inf
      %3858 = vmax.xlane.f32.xlu0 %v3857
      %v3859 = vpop.xlane.xlu0 %3858
      %v3860 = vsel %vm3748, %v3379, -inf
      %3861 = vmax.xlane.f32.xlu0 %v3860
      %v3862 = vpop.xlane.xlu0 %3861
      %v3863 = vsel %vm3748, %v3384, -inf
      %3864 = vmax.xlane.f32.xlu0 %v3863
      %v3865 = vpop.xlane.xlu0 %3864
      %v3866 = vsel %vm3748, %v3389, -inf
      %3867 = vmax.xlane.f32.xlu0 %v3866
      %v3868 = vpop.xlane.xlu0 %3867
      %v3869 = vsel %vm3748, %v3394, -inf
      %3870 = vmax.xlane.f32.xlu0 %v3869
      %v3871 = vpop.xlane.xlu0 %3870
      %v3872 = vsel %vm3748, %v3399, -inf
      %3873 = vmax.xlane.f32.xlu0 %v3872
      %v3874 = vpop.xlane.xlu0 %3873
      %v3875 = vsel %vm3748, %v3542, -inf
      %3876 = vmax.xlane.f32.xlu0 %v3875
      %v3877 = vpop.xlane.xlu0 %3876
      %v3878 = vsel %vm3748, %v3547, -inf
      %3879 = vmax.xlane.f32.xlu0 %v3878
      %v3880 = vpop.xlane.xlu0 %3879
      %v3881 = vsel %vm3748, %v3552, -inf
      %3882 = vmax.xlane.f32.xlu0 %v3881
      %v3883 = vpop.xlane.xlu0 %3882
      %v3884 = vsel %vm3748, %v3557, -inf
      %3885 = vmax.xlane.f32.xlu0 %v3884
      %v3886 = vpop.xlane.xlu0 %3885
      %v3887 = vsel %vm3748, %v3562, -inf
      %3888 = vmax.xlane.f32.xlu0 %v3887
      %v3889 = vpop.xlane.xlu0 %3888
      %v3890 = vsel %vm3748, %v3567, -inf
      %3891 = vmax.xlane.f32.xlu0 %v3890
      %v3892 = vpop.xlane.xlu0 %3891
      %v3893 = vsel %vm3748, %v3572, -inf
      %3894 = vmax.xlane.f32.xlu0 %v3893
      %v3895 = vpop.xlane.xlu0 %3894
      %v3896 = vsel %vm3748, %v3715, -inf
      %3897 = vmax.xlane.f32.xlu0 %v3896
      %v3898 = vpop.xlane.xlu0 %3897
      %v3899 = vsel %vm3748, %v3720, -inf
      %3900 = vmax.xlane.f32.xlu0 %v3899
      %v3901 = vpop.xlane.xlu0 %3900
      %v3902 = vsel %vm3748, %v3725, -inf
      %3903 = vmax.xlane.f32.xlu0 %v3902
      %v3904 = vpop.xlane.xlu0 %3903
      %v3905 = vsel %vm3748, %v3730, -inf
      %3906 = vmax.xlane.f32.xlu0 %v3905
      %v3907 = vpop.xlane.xlu0 %3906
      %v3908 = vsel %vm3748, %v3735, -inf
      %3909 = vmax.xlane.f32.xlu0 %v3908
      %v3910 = vpop.xlane.xlu0 %3909
      %v3911 = vsel %vm3748, %v3740, -inf
      %3912 = vmax.xlane.f32.xlu0 %v3911
      %v3913 = vpop.xlane.xlu0 %3912
      %v3914 = vsel %vm3748, %v3745, -inf
      %3915 = vmax.xlane.f32.xlu0 %v3914
      %v3916 = vpop.xlane.xlu0 %3915
      %v3917 = vsub.f32 %v2504, %v3751
      %v3918 = vsub.f32 %v2509, %v3754
      %v3919 = vsub.f32 %v2514, %v3757
      %v3920 = vsub.f32 %v2519, %v3760
      %v3921 = vsub.f32 %v2524, %v3763
      %v3922 = vsub.f32 %v2529, %v3766
      %v3923 = vsub.f32 %v2534, %v3769
      %v3924 = vsub.f32 %v2677, %v3772
      %v3925 = vsub.f32 %v2682, %v3775
      %v3926 = vsub.f32 %v2687, %v3778
      %v3927 = vsub.f32 %v2692, %v3781
      %v3928 = vsub.f32 %v2697, %v3784
      %v3929 = vsub.f32 %v2702, %v3787
      %v3930 = vsub.f32 %v2707, %v3790
      %v3931 = vsub.f32 %v2850, %v3793
      %v3932 = vsub.f32 %v2855, %v3796
      %v3933 = vsub.f32 %v2860, %v3799
      %v3934 = vsub.f32 %v2865, %v3802
      %v3935 = vsub.f32 %v2870, %v3805
      %v3936 = vsub.f32 %v2875, %v3808
      %v3937 = vsub.f32 %v2880, %v3811
      %v3938 = vsub.f32 %v3023, %v3814
      %v3939 = vsub.f32 %v3028, %v3817
      %v3940 = vsub.f32 %v3033, %v3820
      %v3941 = vsub.f32 %v3038, %v3823
      %v3942 = vsub.f32 %v3043, %v3826
      %v3943 = vsub.f32 %v3048, %v3829
      %v3944 = vsub.f32 %v3053, %v3832
      %v3945 = vsub.f32 %v3196, %v3835
      %v3946 = vsub.f32 %v3201, %v3838
      %v3947 = vsub.f32 %v3206, %v3841
      %v3948 = vsub.f32 %v3211, %v3844
      %v3949 = vsub.f32 %v3216, %v3847
      %v3950 = vsub.f32 %v3221, %v3850
      %v3951 = vsub.f32 %v3226, %v3853
      %v3952 = vsub.f32 %v3369, %v3856
      %v3953 = vsub.f32 %v3374, %v3859
      %v3954 = vsub.f32 %v3379, %v3862
      %v3955 = vsub.f32 %v3384, %v3865
      %v3956 = vsub.f32 %v3389, %v3868
      %v3957 = vsub.f32 %v3394, %v3871
      %v3958 = vsub.f32 %v3399, %v3874
      %v3959 = vsub.f32 %v3542, %v3877
      %v3960 = vsub.f32 %v3547, %v3880
      %v3961 = vsub.f32 %v3552, %v3883
      %v3962 = vsub.f32 %v3557, %v3886
      %v3963 = vsub.f32 %v3562, %v3889
      %v3964 = vsub.f32 %v3567, %v3892
      %v3965 = vsub.f32 %v3572, %v3895
      %v3966 = vsub.f32 %v3715, %v3898
      %v3967 = vsub.f32 %v3720, %v3901
      %v3968 = vsub.f32 %v3725, %v3904
      %v3969 = vsub.f32 %v3730, %v3907
      %v3970 = vsub.f32 %v3735, %v3910
      %v3971 = vsub.f32 %v3740, %v3913
      %v3972 = vsub.f32 %v3745, %v3916
      %v3973 = vmul.f32 %v3917, 1.442695
      %v3974 = vpow.pop %v3973
      %v3975 = vmul.f32 %v3918, 1.442695
      %v3976 = vpow.pop %v3975
      %v3977 = vmul.f32 %v3919, 1.442695
      %v3978 = vpow.pop %v3977
      %v3979 = vmul.f32 %v3920, 1.442695
      %v3980 = vpow.pop %v3979
      %v3981 = vmul.f32 %v3921, 1.442695
      %v3982 = vpow.pop %v3981
      %v3983 = vmul.f32 %v3922, 1.442695
      %v3984 = vpow.pop %v3983
      %v3985 = vmul.f32 %v3923, 1.442695
      %v3986 = vpow.pop %v3985
      %v3987 = vmul.f32 %v3924, 1.442695
      %v3988 = vpow.pop %v3987
      %v3989 = vmul.f32 %v3925, 1.442695
      %v3990 = vpow.pop %v3989
      %v3991 = vmul.f32 %v3926, 1.442695
      %v3992 = vpow.pop %v3991
      %v3993 = vmul.f32 %v3927, 1.442695
      %v3994 = vpow.pop %v3993
      %v3995 = vmul.f32 %v3928, 1.442695
      %v3996 = vpow.pop %v3995
      %v3997 = vmul.f32 %v3929, 1.442695
      %v3998 = vpow.pop %v3997
      %v3999 = vmul.f32 %v3930, 1.442695
      %v4000 = vpow.pop %v3999
      %v4001 = vmul.f32 %v3931, 1.442695
      %v4002 = vpow.pop %v4001
      %v4003 = vmul.f32 %v3932, 1.442695
      %v4004 = vpow.pop %v4003
      %v4005 = vmul.f32 %v3933, 1.442695
      %v4006 = vpow.pop %v4005
      %v4007 = vmul.f32 %v3934, 1.442695
      %v4008 = vpow.pop %v4007
      %v4009 = vmul.f32 %v3935, 1.442695
      %v4010 = vpow.pop %v4009
      %v4011 = vmul.f32 %v3936, 1.442695
      %v4012 = vpow.pop %v4011
      %v4013 = vmul.f32 %v3937, 1.442695
      %v4014 = vpow.pop %v4013
      %v4015 = vmul.f32 %v3938, 1.442695
      %v4016 = vpow.pop %v4015
      %v4017 = vmul.f32 %v3939, 1.442695
      %v4018 = vpow.pop %v4017
      %v4019 = vmul.f32 %v3940, 1.442695
      %v4020 = vpow.pop %v4019
      %v4021 = vmul.f32 %v3941, 1.442695
      %v4022 = vpow.pop %v4021
      %v4023 = vmul.f32 %v3942, 1.442695
      %v4024 = vpow.pop %v4023
      %v4025 = vmul.f32 %v3943, 1.442695
      %v4026 = vpow.pop %v4025
      %v4027 = vmul.f32 %v3944, 1.442695
      %v4028 = vpow.pop %v4027
      %v4029 = vmul.f32 %v3945, 1.442695
      %v4030 = vpow.pop %v4029
      %v4031 = vmul.f32 %v3946, 1.442695
      %v4032 = vpow.pop %v4031
      %v4033 = vmul.f32 %v3947, 1.442695
      %v4034 = vpow.pop %v4033
      %v4035 = vmul.f32 %v3948, 1.442695
      %v4036 = vpow.pop %v4035
      %v4037 = vmul.f32 %v3949, 1.442695
      %v4038 = vpow.pop %v4037
      %v4039 = vmul.f32 %v3950, 1.442695
      %v4040 = vpow.pop %v4039
      %v4041 = vmul.f32 %v3951, 1.442695
      %v4042 = vpow.pop %v4041
      %v4043 = vmul.f32 %v3952, 1.442695
      %v4044 = vpow.pop %v4043
      %v4045 = vmul.f32 %v3953, 1.442695
      %v4046 = vpow.pop %v4045
      %v4047 = vmul.f32 %v3954, 1.442695
      %v4048 = vpow.pop %v4047
      %v4049 = vmul.f32 %v3955, 1.442695
      %v4050 = vpow.pop %v4049
      %v4051 = vmul.f32 %v3956, 1.442695
      %v4052 = vpow.pop %v4051
      %v4053 = vmul.f32 %v3957, 1.442695
      %v4054 = vpow.pop %v4053
      %v4055 = vmul.f32 %v3958, 1.442695
      %v4056 = vpow.pop %v4055
      %v4057 = vmul.f32 %v3959, 1.442695
      %v4058 = vpow.pop %v4057
      %v4059 = vmul.f32 %v3960, 1.442695
      %v4060 = vpow.pop %v4059
      %v4061 = vmul.f32 %v3961, 1.442695
      %v4062 = vpow.pop %v4061
      %v4063 = vmul.f32 %v3962, 1.442695
      %v4064 = vpow.pop %v4063
      %v4065 = vmul.f32 %v3963, 1.442695
      %v4066 = vpow.pop %v4065
      %v4067 = vmul.f32 %v3964, 1.442695
      %v4068 = vpow.pop %v4067
      %v4069 = vmul.f32 %v3965, 1.442695
      %v4070 = vpow.pop %v4069
      %v4071 = vmul.f32 %v3966, 1.442695
      %v4072 = vpow.pop %v4071
      %v4073 = vmul.f32 %v3967, 1.442695
      %v4074 = vpow.pop %v4073
      %v4075 = vmul.f32 %v3968, 1.442695
      %v4076 = vpow.pop %v4075
      %v4077 = vmul.f32 %v3969, 1.442695
      %v4078 = vpow.pop %v4077
      %v4079 = vmul.f32 %v3970, 1.442695
      %v4080 = vpow.pop %v4079
      %v4081 = vmul.f32 %v3971, 1.442695
      %v4082 = vpow.pop %v4081
      %v4083 = vmul.f32 %v3972, 1.442695
      %v4084 = vpow.pop %v4083
      %v4085 = vsel %vm3748, %v3974, 0.0
      %4086 = vadd.xlane.f32.xlu0 %v4085
      %v4087 = vpop.xlane.xlu0 %4086
      %v4088 = vsel %vm3748, %v3976, 0.0
      %4089 = vadd.xlane.f32.xlu0 %v4088
      %v4090 = vpop.xlane.xlu0 %4089
      %v4091 = vsel %vm3748, %v3978, 0.0
      %4092 = vadd.xlane.f32.xlu0 %v4091
      %v4093 = vpop.xlane.xlu0 %4092
      %v4094 = vsel %vm3748, %v3980, 0.0
      %4095 = vadd.xlane.f32.xlu0 %v4094
      %v4096 = vpop.xlane.xlu0 %4095
      %v4097 = vsel %vm3748, %v3982, 0.0
      %4098 = vadd.xlane.f32.xlu0 %v4097
      %v4099 = vpop.xlane.xlu0 %4098
      %v4100 = vsel %vm3748, %v3984, 0.0
      %4101 = vadd.xlane.f32.xlu0 %v4100
      %v4102 = vpop.xlane.xlu0 %4101
      %v4103 = vsel %vm3748, %v3986, 0.0
      %4104 = vadd.xlane.f32.xlu0 %v4103
      %v4105 = vpop.xlane.xlu0 %4104
      %v4106 = vsel %vm3748, %v3988, 0.0
      %4107 = vadd.xlane.f32.xlu0 %v4106
      %v4108 = vpop.xlane.xlu0 %4107
      %v4109 = vsel %vm3748, %v3990, 0.0
      %4110 = vadd.xlane.f32.xlu0 %v4109
      %v4111 = vpop.xlane.xlu0 %4110
      %v4112 = vsel %vm3748, %v3992, 0.0
      %4113 = vadd.xlane.f32.xlu0 %v4112
      %v4114 = vpop.xlane.xlu0 %4113
      %v4115 = vsel %vm3748, %v3994, 0.0
      %4116 = vadd.xlane.f32.xlu0 %v4115
      %v4117 = vpop.xlane.xlu0 %4116
      %v4118 = vsel %vm3748, %v3996, 0.0
      %4119 = vadd.xlane.f32.xlu0 %v4118
      %v4120 = vpop.xlane.xlu0 %4119
      %v4121 = vsel %vm3748, %v3998, 0.0
      %4122 = vadd.xlane.f32.xlu0 %v4121
      %v4123 = vpop.xlane.xlu0 %4122
      %v4124 = vsel %vm3748, %v4000, 0.0
      %4125 = vadd.xlane.f32.xlu0 %v4124
      %v4126 = vpop.xlane.xlu0 %4125
      %v4127 = vsel %vm3748, %v4002, 0.0
      %4128 = vadd.xlane.f32.xlu0 %v4127
      %v4129 = vpop.xlane.xlu0 %4128
      %v4130 = vsel %vm3748, %v4004, 0.0
      %4131 = vadd.xlane.f32.xlu0 %v4130
      %v4132 = vpop.xlane.xlu0 %4131
      %v4133 = vsel %vm3748, %v4006, 0.0
      %4134 = vadd.xlane.f32.xlu0 %v4133
      %v4135 = vpop.xlane.xlu0 %4134
      %v4136 = vsel %vm3748, %v4008, 0.0
      %4137 = vadd.xlane.f32.xlu0 %v4136
      %v4138 = vpop.xlane.xlu0 %4137
      %v4139 = vsel %vm3748, %v4010, 0.0
      %4140 = vadd.xlane.f32.xlu0 %v4139
      %v4141 = vpop.xlane.xlu0 %4140
      %v4142 = vsel %vm3748, %v4012, 0.0
      %4143 = vadd.xlane.f32.xlu0 %v4142
      %v4144 = vpop.xlane.xlu0 %4143
      %v4145 = vsel %vm3748, %v4014, 0.0
      %4146 = vadd.xlane.f32.xlu0 %v4145
      %v4147 = vpop.xlane.xlu0 %4146
      %v4148 = vsel %vm3748, %v4016, 0.0
      %4149 = vadd.xlane.f32.xlu0 %v4148
      %v4150 = vpop.xlane.xlu0 %4149
      %v4151 = vsel %vm3748, %v4018, 0.0
      %4152 = vadd.xlane.f32.xlu0 %v4151
      %v4153 = vpop.xlane.xlu0 %4152
      %v4154 = vsel %vm3748, %v4020, 0.0
      %4155 = vadd.xlane.f32.xlu0 %v4154
      %v4156 = vpop.xlane.xlu0 %4155
      %v4157 = vsel %vm3748, %v4022, 0.0
      %4158 = vadd.xlane.f32.xlu0 %v4157
      %v4159 = vpop.xlane.xlu0 %4158
      %v4160 = vsel %vm3748, %v4024, 0.0
      %4161 = vadd.xlane.f32.xlu0 %v4160
      %v4162 = vpop.xlane.xlu0 %4161
      %v4163 = vsel %vm3748, %v4026, 0.0
      %4164 = vadd.xlane.f32.xlu0 %v4163
      %v4165 = vpop.xlane.xlu0 %4164
      %v4166 = vsel %vm3748, %v4028, 0.0
      %4167 = vadd.xlane.f32.xlu0 %v4166
      %v4168 = vpop.xlane.xlu0 %4167
      %v4169 = vsel %vm3748, %v4030, 0.0
      %4170 = vadd.xlane.f32.xlu0 %v4169
      %v4171 = vpop.xlane.xlu0 %4170
      %v4172 = vsel %vm3748, %v4032, 0.0
      %4173 = vadd.xlane.f32.xlu0 %v4172
      %v4174 = vpop.xlane.xlu0 %4173
      %v4175 = vsel %vm3748, %v4034, 0.0
      %4176 = vadd.xlane.f32.xlu0 %v4175
      %v4177 = vpop.xlane.xlu0 %4176
      %v4178 = vsel %vm3748, %v4036, 0.0
      %4179 = vadd.xlane.f32.xlu0 %v4178
      %v4180 = vpop.xlane.xlu0 %4179
      %v4181 = vsel %vm3748, %v4038, 0.0
      %4182 = vadd.xlane.f32.xlu0 %v4181
      %v4183 = vpop.xlane.xlu0 %4182
      %v4184 = vsel %vm3748, %v4040, 0.0
      %4185 = vadd.xlane.f32.xlu0 %v4184
      %v4186 = vpop.xlane.xlu0 %4185
      %v4187 = vsel %vm3748, %v4042, 0.0
      %4188 = vadd.xlane.f32.xlu0 %v4187
      %v4189 = vpop.xlane.xlu0 %4188
      %v4190 = vsel %vm3748, %v4044, 0.0
      %4191 = vadd.xlane.f32.xlu0 %v4190
      %v4192 = vpop.xlane.xlu0 %4191
      %v4193 = vsel %vm3748, %v4046, 0.0
      %4194 = vadd.xlane.f32.xlu0 %v4193
      %v4195 = vpop.xlane.xlu0 %4194
      %v4196 = vsel %vm3748, %v4048, 0.0
      %4197 = vadd.xlane.f32.xlu0 %v4196
      %v4198 = vpop.xlane.xlu0 %4197
      %v4199 = vsel %vm3748, %v4050, 0.0
      %4200 = vadd.xlane.f32.xlu0 %v4199
      %v4201 = vpop.xlane.xlu0 %4200
      %v4202 = vsel %vm3748, %v4052, 0.0
      %4203 = vadd.xlane.f32.xlu0 %v4202
      %v4204 = vpop.xlane.xlu0 %4203
      %v4205 = vsel %vm3748, %v4054, 0.0
      %4206 = vadd.xlane.f32.xlu0 %v4205
      %v4207 = vpop.xlane.xlu0 %4206
      %v4208 = vsel %vm3748, %v4056, 0.0
      %4209 = vadd.xlane.f32.xlu0 %v4208
      %v4210 = vpop.xlane.xlu0 %4209
      %v4211 = vsel %vm3748, %v4058, 0.0
      %4212 = vadd.xlane.f32.xlu0 %v4211
      %v4213 = vpop.xlane.xlu0 %4212
      %v4214 = vsel %vm3748, %v4060, 0.0
      %4215 = vadd.xlane.f32.xlu0 %v4214
      %v4216 = vpop.xlane.xlu0 %4215
      %v4217 = vsel %vm3748, %v4062, 0.0
      %4218 = vadd.xlane.f32.xlu0 %v4217
      %v4219 = vpop.xlane.xlu0 %4218
      %v4220 = vsel %vm3748, %v4064, 0.0
      %4221 = vadd.xlane.f32.xlu0 %v4220
      %v4222 = vpop.xlane.xlu0 %4221
      %v4223 = vsel %vm3748, %v4066, 0.0
      %4224 = vadd.xlane.f32.xlu0 %v4223
      %v4225 = vpop.xlane.xlu0 %4224
      %v4226 = vsel %vm3748, %v4068, 0.0
      %4227 = vadd.xlane.f32.xlu0 %v4226
      %v4228 = vpop.xlane.xlu0 %4227
      %v4229 = vsel %vm3748, %v4070, 0.0
      %4230 = vadd.xlane.f32.xlu0 %v4229
      %v4231 = vpop.xlane.xlu0 %4230
      %v4232 = vsel %vm3748, %v4072, 0.0
      %4233 = vadd.xlane.f32.xlu0 %v4232
      %v4234 = vpop.xlane.xlu0 %4233
      %v4235 = vsel %vm3748, %v4074, 0.0
      %4236 = vadd.xlane.f32.xlu0 %v4235
      %v4237 = vpop.xlane.xlu0 %4236
      %v4238 = vsel %vm3748, %v4076, 0.0
      %4239 = vadd.xlane.f32.xlu0 %v4238
      %v4240 = vpop.xlane.xlu0 %4239
      %v4241 = vsel %vm3748, %v4078, 0.0
      %4242 = vadd.xlane.f32.xlu0 %v4241
      %v4243 = vpop.xlane.xlu0 %4242
      %v4244 = vsel %vm3748, %v4080, 0.0
      %4245 = vadd.xlane.f32.xlu0 %v4244
      %v4246 = vpop.xlane.xlu0 %4245
      %v4247 = vsel %vm3748, %v4082, 0.0
      %4248 = vadd.xlane.f32.xlu0 %v4247
      %v4249 = vpop.xlane.xlu0 %4248
      %v4250 = vsel %vm3748, %v4084, 0.0
      %4251 = vadd.xlane.f32.xlu0 %v4250
      %v4252 = vpop.xlane.xlu0 %4251
      %v4253 = vrcp.pop %v4087
      %v4254 = vrcp.pop %v4090
      %v4255 = vrcp.pop %v4093
      %v4256 = vrcp.pop %v4096
      %v4257 = vrcp.pop %v4099
      %v4258 = vrcp.pop %v4102
      %v4259 = vrcp.pop %v4105
      %v4260 = vrcp.pop %v4108
      %v4261 = vrcp.pop %v4111
      %v4262 = vrcp.pop %v4114
      %v4263 = vrcp.pop %v4117
      %v4264 = vrcp.pop %v4120
      %v4265 = vrcp.pop %v4123
      %v4266 = vrcp.pop %v4126
      %v4267 = vrcp.pop %v4129
      %v4268 = vrcp.pop %v4132
      %v4269 = vrcp.pop %v4135
      %v4270 = vrcp.pop %v4138
      %v4271 = vrcp.pop %v4141
      %v4272 = vrcp.pop %v4144
      %v4273 = vrcp.pop %v4147
      %v4274 = vrcp.pop %v4150
      %v4275 = vrcp.pop %v4153
      %v4276 = vrcp.pop %v4156
      %v4277 = vrcp.pop %v4159
      %v4278 = vrcp.pop %v4162
      %v4279 = vrcp.pop %v4165
      %v4280 = vrcp.pop %v4168
      %v4281 = vrcp.pop %v4171
      %v4282 = vrcp.pop %v4174
      %v4283 = vrcp.pop %v4177
      %v4284 = vrcp.pop %v4180
      %v4285 = vrcp.pop %v4183
      %v4286 = vrcp.pop %v4186
      %v4287 = vrcp.pop %v4189
      %v4288 = vrcp.pop %v4192
      %v4289 = vrcp.pop %v4195
      %v4290 = vrcp.pop %v4198
      %v4291 = vrcp.pop %v4201
      %v4292 = vrcp.pop %v4204
      %v4293 = vrcp.pop %v4207
      %v4294 = vrcp.pop %v4210
      %v4295 = vrcp.pop %v4213
      %v4296 = vrcp.pop %v4216
      %v4297 = vrcp.pop %v4219
      %v4298 = vrcp.pop %v4222
      %v4299 = vrcp.pop %v4225
      %v4300 = vrcp.pop %v4228
      %v4301 = vrcp.pop %v4231
      %v4302 = vrcp.pop %v4234
      %v4303 = vrcp.pop %v4237
      %v4304 = vrcp.pop %v4240
      %v4305 = vrcp.pop %v4243
      %v4306 = vrcp.pop %v4246
      %v4307 = vrcp.pop %v4249
      %v4308 = vrcp.pop %v4252
      %v4309 = vmul.f32 %v3974, %v4253
      %v4310 = vmul.f32 %v3976, %v4254
      %v4311 = vmul.f32 %v3978, %v4255
      %v4312 = vmul.f32 %v3980, %v4256
      %v4313 = vmul.f32 %v3982, %v4257
      %v4314 = vmul.f32 %v3984, %v4258
      %v4315 = vmul.f32 %v3986, %v4259
      %v4316 = vmul.f32 %v3988, %v4260
      %v4317 = vmul.f32 %v3990, %v4261
      %v4318 = vmul.f32 %v3992, %v4262
      %v4319 = vmul.f32 %v3994, %v4263
      %v4320 = vmul.f32 %v3996, %v4264
      %v4321 = vmul.f32 %v3998, %v4265
      %v4322 = vmul.f32 %v4000, %v4266
      %v4323 = vmul.f32 %v4002, %v4267
      %v4324 = vmul.f32 %v4004, %v4268
      %v4325 = vmul.f32 %v4006, %v4269
      %v4326 = vmul.f32 %v4008, %v4270
      %v4327 = vmul.f32 %v4010, %v4271
      %v4328 = vmul.f32 %v4012, %v4272
      %v4329 = vmul.f32 %v4014, %v4273
      %v4330 = vmul.f32 %v4016, %v4274
      %v4331 = vmul.f32 %v4018, %v4275
      %v4332 = vmul.f32 %v4020, %v4276
      %v4333 = vmul.f32 %v4022, %v4277
      %v4334 = vmul.f32 %v4024, %v4278
      %v4335 = vmul.f32 %v4026, %v4279
      %v4336 = vmul.f32 %v4028, %v4280
      %v4337 = vmul.f32 %v4030, %v4281
      %v4338 = vmul.f32 %v4032, %v4282
      %v4339 = vmul.f32 %v4034, %v4283
      %v4340 = vmul.f32 %v4036, %v4284
      %v4341 = vmul.f32 %v4038, %v4285
      %v4342 = vmul.f32 %v4040, %v4286
      %v4343 = vmul.f32 %v4042, %v4287
      %v4344 = vmul.f32 %v4044, %v4288
      %v4345 = vmul.f32 %v4046, %v4289
      %v4346 = vmul.f32 %v4048, %v4290
      %v4347 = vmul.f32 %v4050, %v4291
      %v4348 = vmul.f32 %v4052, %v4292
      %v4349 = vmul.f32 %v4054, %v4293
      %v4350 = vmul.f32 %v4056, %v4294
      %v4351 = vmul.f32 %v4058, %v4295
      %v4352 = vmul.f32 %v4060, %v4296
      %v4353 = vmul.f32 %v4062, %v4297
      %v4354 = vmul.f32 %v4064, %v4298
      %v4355 = vmul.f32 %v4066, %v4299
      %v4356 = vmul.f32 %v4068, %v4300
      %v4357 = vmul.f32 %v4070, %v4301
      %v4358 = vmul.f32 %v4072, %v4302
      %v4359 = vmul.f32 %v4074, %v4303
      %v4360 = vmul.f32 %v4076, %v4304
      %v4361 = vmul.f32 %v4078, %v4305
      %v4362 = vmul.f32 %v4080, %v4306
      %v4363 = vmul.f32 %v4082, %v4307
      %v4364 = vmul.f32 %v4084, %v4308
      %4365 = vrot.lane.b32.xlu0 %v2411, 64
      %v4366 = vpop.permute.xlu0 %4365
      %v4368 = vsel %vm3748, %v4309, 0
      %v4371 = vsel %vm3748, %v4310, 0
      %v4374 = vsel %vm3748, %v4311, 0
      %v4377 = vsel %vm3748, %v4312, 0
      %v4380 = vsel %vm3748, %v4313, 0
      %v4383 = vsel %vm3748, %v4314, 0
      %v4386 = vsel %vm3748, %v4315, 0
      %vm4388 = vcmask 1046528
      %v4389 = vsel %vm4388, %v4366, 0
      %4391 = vmatprep.subr.mxu0 0.0
      %4392 = vmatpush1.msra.mxu0 %v4389
      %4393 = vmatprep.subr.mxu0 0.0
      %4394 = vmatpush1.msra.mxu0 0.0
      %4395 = vmatprep.subr.mxu0 0.0
      %4396 = vmatpush1.msra.mxu0 0.0
      %4397 = vmatprep.subr.mxu0 0.0
      %4398 = vmatpush1.msra.mxu0 0.0
      %4399 = vmatprep.subr.mxu0 0.0
      %4400 = vmatpush1.msra.mxu0 0.0
      %4401 = vmatprep.subr.mxu0 0.0
      %4402 = vmatpush1.msra.mxu0 0.0
      %4403 = vmatprep.subr.mxu0 0.0
      %4404 = vmatpush1.msra.mxu0 0.0
      %4405 = vmatprep.subr.mxu0 0.0
      %4406 = vmatpush1.msra.mxu0 0.0
      %4407 = vmatprep.subr.mxu0 0.0
      %4408 = vmatpush1.msra.mxu0 0.0
      %4409 = vmatprep.subr.mxu0 0.0
      %4410 = vmatpush1.msra.mxu0 0.0
      %4411 = vmatprep.subr.mxu0 0.0
      %4412 = vmatpush1.msra.mxu0 0.0
      %4413 = vmatprep.subr.mxu0 0.0
      %4414 = vmatpush1.msra.mxu0 0.0
      %4415 = vmatprep.subr.mxu0 0.0
      %4416 = vmatpush1.msra.mxu0 0.0
      %4417 = vmatprep.subr.mxu0 0.0
      %4418 = vmatpush1.msra.mxu0 0.0
      %4419 = vmatprep.subr.mxu0 0.0
      %4420 = vmatpush1.msra.mxu0 0.0
      %4421 = vmatprep.subr.mxu0 0.0
      %4422 = vmatpush1.msra.mxu0 0.0
      %4423 = vmatprep.subr.mxu0 0.0
      %4424 = vmatpush1.msra.mxu0 0.0
      %4425 = vmatprep.subr.mxu0 0.0
      %4426 = vmatpush1.msra.mxu0 0.0
      %4427 = vmatprep.subr.mxu0 0.0
      %4428 = vmatpush1.msra.mxu0 0.0
      %4429 = vmatprep.subr.mxu0 0.0
      %4430 = vmatpush1.msra.mxu0 0.0
      %4431 = vmatprep.subr.mxu0 0.0
      %4432 = vmatpush1.msra.mxu0 0.0
      %4433 = vmatprep.subr.mxu0 0.0
      %4434 = vmatpush1.msra.mxu0 0.0
      %4435 = vmatprep.subr.mxu0 0.0
      %4436 = vmatpush1.msra.mxu0 0.0
      %4437 = vmatprep.subr.mxu0 0.0
      %4438 = vmatpush1.msra.mxu0 0.0
      %4439 = vmatprep.subr.mxu0 0.0
      %4440 = vmatpush1.msra.mxu0 0.0
      %4441 = vmatprep.subr.mxu0 0.0
      %4442 = vmatpush1.msra.mxu0 0.0
      %4443 = vmatprep.subr.mxu0 0.0
      %4444 = vmatpush1.msra.mxu0 0.0
      %4445 = vmatprep.subr.mxu0 0.0
      %4446 = vmatpush1.msra.mxu0 0.0
      %4447 = vmatprep.subr.mxu0 0.0
      %4448 = vmatpush1.msra.mxu0 0.0
      %4449 = vmatprep.subr.mxu0 0.0
      %4450 = vmatpush1.msra.mxu0 0.0
      %4451 = vmatprep.subr.mxu0 0.0
      %4452 = vmatpush1.msra.mxu0 0.0
      %4453 = vmatprep.subr.mxu0 0.0
      %4454 = vmatpush1.msra.mxu0 0.0
      %4455 = vmatprep.mubr.f32.mxu0 0.0
      %4456 = vmatmul.mubr.f32.gmra.mrb[0].mxu0 %v4368
      %v4457 = vpop.f32.mrb[0].mxu0
      %v4458 = vadd.f32 0.0, %v4457
      %v4459 = vpop.f32.mrb[0].mxu0
      %4460 = vmatprep.mubr.f32.mxu0 0.0
      %4461 = vmatmul.mubr.f32.gmra.mrb[0].mxu0 %v4371
      %v4462 = vpop.f32.mrb[0].mxu0
      %v4463 = vadd.f32 0.0, %v4462
      %v4464 = vpop.f32.mrb[0].mxu0
      %4465 = vmatprep.mubr.f32.mxu0 0.0
      %4466 = vmatmul.mubr.f32.gmra.mrb[0].mxu0 %v4374
      %v4467 = vpop.f32.mrb[0].mxu0
      %v4468 = vadd.f32 0.0, %v4467
      %v4469 = vpop.f32.mrb[0].mxu0
      %4470 = vmatprep.mubr.f32.mxu0 0.0
      %4471 = vmatmul.mubr.f32.gmra.mrb[0].mxu0 %v4377
      %v4472 = vpop.f32.mrb[0].mxu0
      %v4473 = vadd.f32 0.0, %v4472
      %v4474 = vpop.f32.mrb[0].mxu0
      %4475 = vmatprep.mubr.f32.mxu0 0.0
      %4476 = vmatmul.mubr.f32.gmra.mrb[0].mxu0 %v4380
      %v4477 = vpop.f32.mrb[0].mxu0
      %v4478 = vadd.f32 0.0, %v4477
      %v4479 = vpop.f32.mrb[0].mxu0
      %4480 = vmatprep.mubr.f32.mxu0 0.0
      %4481 = vmatmul.mubr.f32.gmra.mrb[0].mxu0 %v4383
      %v4482 = vpop.f32.mrb[0].mxu0
      %v4483 = vadd.f32 0.0, %v4482
      %v4484 = vpop.f32.mrb[0].mxu0
      %4485 = vmatprep.mubr.f32.mxu0 0.0
      %4486 = vmatmul.mubr.f32.gmra.mrb[0].mxu0 %v4386
      %v4487 = vpop.f32.mrb[0].mxu0
      %v4488 = vadd.f32 0.0, %v4487
      %v4489 = vpop.f32.mrb[0].mxu0
      %4490 = vdwg.mxu0
      %4491 = vrot.lane.b32.xlu0 %v2584, 64
      %v4492 = vpop.permute.xlu0 %4491
      %v4494 = vsel %vm3748, %v4316, 0
      %v4497 = vsel %vm3748, %v4317, 0
      %v4500 = vsel %vm3748, %v4318, 0
      %v4503 = vsel %vm3748, %v4319, 0
      %v4506 = vsel %vm3748, %v4320, 0
      %v4509 = vsel %vm3748, %v4321, 0
      %v4512 = vsel %vm3748, %v4322, 0
      %v4514 = vsel %vm4388, %v4492, 0
      %4516 = vmatprep.subr.mxu0 0.0
      %4517 = vmatpush1.msra.mxu0 %v4514
      %4518 = vmatprep.subr.mxu0 0.0
      %4519 = vmatpush1.msra.mxu0 0.0
      %4520 = vmatprep.subr.mxu0 0.0
      %4521 = vmatpush1.msra.mxu0 0.0
      %4522 = vmatprep.subr.mxu0 0.0
      %4523 = vmatpush1.msra.mxu0 0.0
      %4524 = vmatprep.subr.mxu0 0.0
      %4525 = vmatpush1.msra.mxu0 0.0
      %4526 = vmatprep.subr.mxu0 0.0
      %4527 = vmatpush1.msra.mxu0 0.0
      %4528 = vmatprep.subr.mxu0 0.0
      %4529 = vmatpush1.msra.mxu0 0.0
      %4530 = vmatprep.subr.mxu0 0.0
      %4531 = vmatpush1.msra.mxu0 0.0
      %4532 = vmatprep.subr.mxu0 0.0
      %4533 = vmatpush1.msra.mxu0 0.0
      %4534 = vmatprep.subr.mxu0 0.0
      %4535 = vmatpush1.msra.mxu0 0.0
      %4536 = vmatprep.subr.mxu0 0.0
      %4537 = vmatpush1.msra.mxu0 0.0
      %4538 = vmatprep.subr.mxu0 0.0
      %4539 = vmatpush1.msra.mxu0 0.0
      %4540 = vmatprep.subr.mxu0 0.0
      %4541 = vmatpush1.msra.mxu0 0.0
      %4542 = vmatprep.subr.mxu0 0.0
      %4543 = vmatpush1.msra.mxu0 0.0
      %4544 = vmatprep.subr.mxu0 0.0
      %4545 = vmatpush1.msra.mxu0 0.0
      %4546 = vmatprep.subr.mxu0 0.0
      %4547 = vmatpush1.msra.mxu0 0.0
      %4548 = vmatprep.subr.mxu0 0.0
      %4549 = vmatpush1.msra.mxu0 0.0
      %4550 = vmatprep.subr.mxu0 0.0
      %4551 = vmatpush1.msra.mxu0 0.0
      %4552 = vmatprep.subr.mxu0 0.0
      %4553 = vmatpush1.msra.mxu0 0.0
      %4554 = vmatprep.subr.mxu0 0.0
      %4555 = vmatpush1.msra.mxu0 0.0
      %4556 = vmatprep.subr.mxu0 0.0
      %4557 = vmatpush1.msra.mxu0 0.0
      %4558 = vmatprep.subr.mxu0 0.0
      %4559 = vmatpush1.msra.mxu0 0.0
      %4560 = vmatprep.subr.mxu0 0.0
      %4561 = vmatpush1.msra.mxu0 0.0
      %4562 = vmatprep.subr.mxu0 0.0
      %4563 = vmatpush1.msra.mxu0 0.0
      %4564 = vmatprep.subr.mxu0 0.0
      %4565 = vmatpush1.msra.mxu0 0.0
      %4566 = vmatprep.subr.mxu0 0.0
      %4567 = vmatpush1.msra.mxu0 0.0
      %4568 = vmatprep.subr.mxu0 0.0
      %4569 = vmatpush1.msra.mxu0 0.0
      %4570 = vmatprep.subr.mxu0 0.0
      %4571 = vmatpush1.msra.mxu0 0.0
      %4572 = vmatprep.subr.mxu0 0.0
      %4573 = vmatpush1.msra.mxu0 0.0
      %4574 = vmatprep.subr.mxu0 0.0
      %4575 = vmatpush1.msra.mxu0 0.0
      %4576 = vmatprep.subr.mxu0 0.0
      %4577 = vmatpush1.msra.mxu0 0.0
      %4578 = vmatprep.subr.mxu0 0.0
      %4579 = vmatpush1.msra.mxu0 0.0
      %4580 = vmatprep.mubr.f32.mxu0 0.0
      %4581 = vmatmul.mubr.f32.gmra.mrb[0].mxu0 %v4494
      %v4582 = vpop.f32.mrb[0].mxu0
      %v4583 = vadd.f32 0.0, %v4582
      %v4584 = vpop.f32.mrb[0].mxu0
      %4585 = vmatprep.mubr.f32.mxu0 0.0
      %4586 = vmatmul.mubr.f32.gmra.mrb[0].mxu0 %v4497
      %v4587 = vpop.f32.mrb[0].mxu0
      %v4588 = vadd.f32 0.0, %v4587
      %v4589 = vpop.f32.mrb[0].mxu0
      %4590 = vmatprep.mubr.f32.mxu0 0.0
      %4591 = vmatmul.mubr.f32.gmra.mrb[0].mxu0 %v4500
      %v4592 = vpop.f32.mrb[0].mxu0
      %v4593 = vadd.f32 0.0, %v4592
      %v4594 = vpop.f32.mrb[0].mxu0
      %4595 = vmatprep.mubr.f32.mxu0 0.0
      %4596 = vmatmul.mubr.f32.gmra.mrb[0].mxu0 %v4503
      %v4597 = vpop.f32.mrb[0].mxu0
      %v4598 = vadd.f32 0.0, %v4597
      %v4599 = vpop.f32.mrb[0].mxu0
      %4600 = vmatprep.mubr.f32.mxu0 0.0
      %4601 = vmatmul.mubr.f32.gmra.mrb[0].mxu0 %v4506
      %v4602 = vpop.f32.mrb[0].mxu0
      %v4603 = vadd.f32 0.0, %v4602
      %v4604 = vpop.f32.mrb[0].mxu0
      %4605 = vmatprep.mubr.f32.mxu0 0.0
      %4606 = vmatmul.mubr.f32.gmra.mrb[0].mxu0 %v4509
      %v4607 = vpop.f32.mrb[0].mxu0
      %v4608 = vadd.f32 0.0, %v4607
      %v4609 = vpop.f32.mrb[0].mxu0
      %4610 = vmatprep.mubr.f32.mxu0 0.0
      %4611 = vmatmul.mubr.f32.gmra.mrb[0].mxu0 %v4512
      %v4612 = vpop.f32.mrb[0].mxu0
      %v4613 = vadd.f32 0.0, %v4612
      %v4614 = vpop.f32.mrb[0].mxu0
      %4615 = vdwg.mxu0
      %4616 = vrot.lane.b32.xlu0 %v2757, 64
      %v4617 = vpop.permute.xlu0 %4616
      %v4619 = vsel %vm3748, %v4323, 0
      %v4622 = vsel %vm3748, %v4324, 0
      %v4625 = vsel %vm3748, %v4325, 0
      %v4628 = vsel %vm3748, %v4326, 0
      %v4631 = vsel %vm3748, %v4327, 0
      %v4634 = vsel %vm3748, %v4328, 0
      %v4637 = vsel %vm3748, %v4329, 0
      %v4639 = vsel %vm4388, %v4617, 0
      %4641 = vmatprep.subr.mxu0 0.0
      %4642 = vmatpush1.msra.mxu0 %v4639
      %4643 = vmatprep.subr.mxu0 0.0
      %4644 = vmatpush1.msra.mxu0 0.0
      %4645 = vmatprep.subr.mxu0 0.0
      %4646 = vmatpush1.msra.mxu0 0.0
      %4647 = vmatprep.subr.mxu0 0.0
      %4648 = vmatpush1.msra.mxu0 0.0
      %4649 = vmatprep.subr.mxu0 0.0
      %4650 = vmatpush1.msra.mxu0 0.0
      %4651 = vmatprep.subr.mxu0 0.0
      %4652 = vmatpush1.msra.mxu0 0.0
      %4653 = vmatprep.subr.mxu0 0.0
      %4654 = vmatpush1.msra.mxu0 0.0
      %4655 = vmatprep.subr.mxu0 0.0
      %4656 = vmatpush1.msra.mxu0 0.0
      %4657 = vmatprep.subr.mxu0 0.0
      %4658 = vmatpush1.msra.mxu0 0.0
      %4659 = vmatprep.subr.mxu0 0.0
      %4660 = vmatpush1.msra.mxu0 0.0
      %4661 = vmatprep.subr.mxu0 0.0
      %4662 = vmatpush1.msra.mxu0 0.0
      %4663 = vmatprep.subr.mxu0 0.0
      %4664 = vmatpush1.msra.mxu0 0.0
      %4665 = vmatprep.subr.mxu0 0.0
      %4666 = vmatpush1.msra.mxu0 0.0
      %4667 = vmatprep.subr.mxu0 0.0
      %4668 = vmatpush1.msra.mxu0 0.0
      %4669 = vmatprep.subr.mxu0 0.0
      %4670 = vmatpush1.msra.mxu0 0.0
      %4671 = vmatprep.subr.mxu0 0.0
      %4672 = vmatpush1.msra.mxu0 0.0
      %4673 = vmatprep.subr.mxu0 0.0
      %4674 = vmatpush1.msra.mxu0 0.0
      %4675 = vmatprep.subr.mxu0 0.0
      %4676 = vmatpush1.msra.mxu0 0.0
      %4677 = vmatprep.subr.mxu0 0.0
      %4678 = vmatpush1.msra.mxu0 0.0
      %4679 = vmatprep.subr.mxu0 0.0
      %4680 = vmatpush1.msra.mxu0 0.0
      %4681 = vmatprep.subr.mxu0 0.0
      %4682 = vmatpush1.msra.mxu0 0.0
      %4683 = vmatprep.subr.mxu0 0.0
      %4684 = vmatpush1.msra.mxu0 0.0
      %4685 = vmatprep.subr.mxu0 0.0
      %4686 = vmatpush1.msra.mxu0 0.0
      %4687 = vmatprep.subr.mxu0 0.0
      %4688 = vmatpush1.msra.mxu0 0.0
      %4689 = vmatprep.subr.mxu0 0.0
      %4690 = vmatpush1.msra.mxu0 0.0
      %4691 = vmatprep.subr.mxu0 0.0
      %4692 = vmatpush1.msra.mxu0 0.0
      %4693 = vmatprep.subr.mxu0 0.0
      %4694 = vmatpush1.msra.mxu0 0.0
      %4695 = vmatprep.subr.mxu0 0.0
      %4696 = vmatpush1.msra.mxu0 0.0
      %4697 = vmatprep.subr.mxu0 0.0
      %4698 = vmatpush1.msra.mxu0 0.0
      %4699 = vmatprep.subr.mxu0 0.0
      %4700 = vmatpush1.msra.mxu0 0.0
      %4701 = vmatprep.subr.mxu0 0.0
      %4702 = vmatpush1.msra.mxu0 0.0
      %4703 = vmatprep.subr.mxu0 0.0
      %4704 = vmatpush1.msra.mxu0 0.0
      %4705 = vmatprep.mubr.f32.mxu0 0.0
      %4706 = vmatmul.mubr.f32.gmra.mrb[0].mxu0 %v4619
      %v4707 = vpop.f32.mrb[0].mxu0
      %v4708 = vadd.f32 0.0, %v4707
      %v4709 = vpop.f32.mrb[0].mxu0
      %4710 = vmatprep.mubr.f32.mxu0 0.0
      %4711 = vmatmul.mubr.f32.gmra.mrb[0].mxu0 %v4622
      %v4712 = vpop.f32.mrb[0].mxu0
      %v4713 = vadd.f32 0.0, %v4712
      %v4714 = vpop.f32.mrb[0].mxu0
      %4715 = vmatprep.mubr.f32.mxu0 0.0
      %4716 = vmatmul.mubr.f32.gmra.mrb[0].mxu0 %v4625
      %v4717 = vpop.f32.mrb[0].mxu0
      %v4718 = vadd.f32 0.0, %v4717
      %v4719 = vpop.f32.mrb[0].mxu0
      %4720 = vmatprep.mubr.f32.mxu0 0.0
      %4721 = vmatmul.mubr.f32.gmra.mrb[0].mxu0 %v4628
      %v4722 = vpop.f32.mrb[0].mxu0
      %v4723 = vadd.f32 0.0, %v4722
      %v4724 = vpop.f32.mrb[0].mxu0
      %4725 = vmatprep.mubr.f32.mxu0 0.0
      %4726 = vmatmul.mubr.f32.gmra.mrb[0].mxu0 %v4631
      %v4727 = vpop.f32.mrb[0].mxu0
      %v4728 = vadd.f32 0.0, %v4727
      %v4729 = vpop.f32.mrb[0].mxu0
      %4730 = vmatprep.mubr.f32.mxu0 0.0
      %4731 = vmatmul.mubr.f32.gmra.mrb[0].mxu0 %v4634
      %v4732 = vpop.f32.mrb[0].mxu0
      %v4733 = vadd.f32 0.0, %v4732
      %v4734 = vpop.f32.mrb[0].mxu0
      %4735 = vmatprep.mubr.f32.mxu0 0.0
      %4736 = vmatmul.mubr.f32.gmra.mrb[0].mxu0 %v4637
      %v4737 = vpop.f32.mrb[0].mxu0
      %v4738 = vadd.f32 0.0, %v4737
      %v4739 = vpop.f32.mrb[0].mxu0
      %4740 = vdwg.mxu0
      %4741 = vrot.lane.b32.xlu0 %v2930, 64
      %v4742 = vpop.permute.xlu0 %4741
      %v4744 = vsel %vm3748, %v4330, 0
      %v4747 = vsel %vm3748, %v4331, 0
      %v4750 = vsel %vm3748, %v4332, 0
      %v4753 = vsel %vm3748, %v4333, 0
      %v4756 = vsel %vm3748, %v4334, 0
      %v4759 = vsel %vm3748, %v4335, 0
      %v4762 = vsel %vm3748, %v4336, 0
      %v4764 = vsel %vm4388, %v4742, 0
      %4766 = vmatprep.subr.mxu0 0.0
      %4767 = vmatpush1.msra.mxu0 %v4764
      %4768 = vmatprep.subr.mxu0 0.0
      %4769 = vmatpush1.msra.mxu0 0.0
      %4770 = vmatprep.subr.mxu0 0.0
      %4771 = vmatpush1.msra.mxu0 0.0
      %4772 = vmatprep.subr.mxu0 0.0
      %4773 = vmatpush1.msra.mxu0 0.0
      %4774 = vmatprep.subr.mxu0 0.0
      %4775 = vmatpush1.msra.mxu0 0.0
      %4776 = vmatprep.subr.mxu0 0.0
      %4777 = vmatpush1.msra.mxu0 0.0
      %4778 = vmatprep.subr.mxu0 0.0
      %4779 = vmatpush1.msra.mxu0 0.0
      %4780 = vmatprep.subr.mxu0 0.0
      %4781 = vmatpush1.msra.mxu0 0.0
      %4782 = vmatprep.subr.mxu0 0.0
      %4783 = vmatpush1.msra.mxu0 0.0
      %4784 = vmatprep.subr.mxu0 0.0
      %4785 = vmatpush1.msra.mxu0 0.0
      %4786 = vmatprep.subr.mxu0 0.0
      %4787 = vmatpush1.msra.mxu0 0.0
      %4788 = vmatprep.subr.mxu0 0.0
      %4789 = vmatpush1.msra.mxu0 0.0
      %4790 = vmatprep.subr.mxu0 0.0
      %4791 = vmatpush1.msra.mxu0 0.0
      %4792 = vmatprep.subr.mxu0 0.0
      %4793 = vmatpush1.msra.mxu0 0.0
      %4794 = vmatprep.subr.mxu0 0.0
      %4795 = vmatpush1.msra.mxu0 0.0
      %4796 = vmatprep.subr.mxu0 0.0
      %4797 = vmatpush1.msra.mxu0 0.0
      %4798 = vmatprep.subr.mxu0 0.0
      %4799 = vmatpush1.msra.mxu0 0.0
      %4800 = vmatprep.subr.mxu0 0.0
      %4801 = vmatpush1.msra.mxu0 0.0
      %4802 = vmatprep.subr.mxu0 0.0
      %4803 = vmatpush1.msra.mxu0 0.0
      %4804 = vmatprep.subr.mxu0 0.0
      %4805 = vmatpush1.msra.mxu0 0.0
      %4806 = vmatprep.subr.mxu0 0.0
      %4807 = vmatpush1.msra.mxu0 0.0
      %4808 = vmatprep.subr.mxu0 0.0
      %4809 = vmatpush1.msra.mxu0 0.0
      %4810 = vmatprep.subr.mxu0 0.0
      %4811 = vmatpush1.msra.mxu0 0.0
      %4812 = vmatprep.subr.mxu0 0.0
      %4813 = vmatpush1.msra.mxu0 0.0
      %4814 = vmatprep.subr.mxu0 0.0
      %4815 = vmatpush1.msra.mxu0 0.0
      %4816 = vmatprep.subr.mxu0 0.0
      %4817 = vmatpush1.msra.mxu0 0.0
      %4818 = vmatprep.subr.mxu0 0.0
      %4819 = vmatpush1.msra.mxu0 0.0
      %4820 = vmatprep.subr.mxu0 0.0
      %4821 = vmatpush1.msra.mxu0 0.0
      %4822 = vmatprep.subr.mxu0 0.0
      %4823 = vmatpush1.msra.mxu0 0.0
      %4824 = vmatprep.subr.mxu0 0.0
      %4825 = vmatpush1.msra.mxu0 0.0
      %4826 = vmatprep.subr.mxu0 0.0
      %4827 = vmatpush1.msra.mxu0 0.0
      %4828 = vmatprep.subr.mxu0 0.0
      %4829 = vmatpush1.msra.mxu0 0.0
      %4830 = vmatprep.mubr.f32.mxu0 0.0
      %4831 = vmatmul.mubr.f32.gmra.mrb[0].mxu0 %v4744
      %v4832 = vpop.f32.mrb[0].mxu0
      %v4833 = vadd.f32 0.0, %v4832
      %v4834 = vpop.f32.mrb[0].mxu0
      %4835 = vmatprep.mubr.f32.mxu0 0.0
      %4836 = vmatmul.mubr.f32.gmra.mrb[0].mxu0 %v4747
      %v4837 = vpop.f32.mrb[0].mxu0
      %v4838 = vadd.f32 0.0, %v4837
      %v4839 = vpop.f32.mrb[0].mxu0
      %4840 = vmatprep.mubr.f32.mxu0 0.0
      %4841 = vmatmul.mubr.f32.gmra.mrb[0].mxu0 %v4750
      %v4842 = vpop.f32.mrb[0].mxu0
      %v4843 = vadd.f32 0.0, %v4842
      %v4844 = vpop.f32.mrb[0].mxu0
      %4845 = vmatprep.mubr.f32.mxu0 0.0
      %4846 = vmatmul.mubr.f32.gmra.mrb[0].mxu0 %v4753
      %v4847 = vpop.f32.mrb[0].mxu0
      %v4848 = vadd.f32 0.0, %v4847
      %v4849 = vpop.f32.mrb[0].mxu0
      %4850 = vmatprep.mubr.f32.mxu0 0.0
      %4851 = vmatmul.mubr.f32.gmra.mrb[0].mxu0 %v4756
      %v4852 = vpop.f32.mrb[0].mxu0
      %v4853 = vadd.f32 0.0, %v4852
      %v4854 = vpop.f32.mrb[0].mxu0
      %4855 = vmatprep.mubr.f32.mxu0 0.0
      %4856 = vmatmul.mubr.f32.gmra.mrb[0].mxu0 %v4759
      %v4857 = vpop.f32.mrb[0].mxu0
      %v4858 = vadd.f32 0.0, %v4857
      %v4859 = vpop.f32.mrb[0].mxu0
      %4860 = vmatprep.mubr.f32.mxu0 0.0
      %4861 = vmatmul.mubr.f32.gmra.mrb[0].mxu0 %v4762
      %v4862 = vpop.f32.mrb[0].mxu0
      %v4863 = vadd.f32 0.0, %v4862
      %v4864 = vpop.f32.mrb[0].mxu0
      %4865 = vdwg.mxu0
      %4866 = vrot.lane.b32.xlu0 %v3103, 64
      %v4867 = vpop.permute.xlu0 %4866
      %v4869 = vsel %vm3748, %v4337, 0
      %v4872 = vsel %vm3748, %v4338, 0
      %v4875 = vsel %vm3748, %v4339, 0
      %v4878 = vsel %vm3748, %v4340, 0
      %v4881 = vsel %vm3748, %v4341, 0
      %v4884 = vsel %vm3748, %v4342, 0
      %v4887 = vsel %vm3748, %v4343, 0
      %v4889 = vsel %vm4388, %v4867, 0
      %4891 = vmatprep.subr.mxu0 0.0
      %4892 = vmatpush1.msra.mxu0 %v4889
      %4893 = vmatprep.subr.mxu0 0.0
      %4894 = vmatpush1.msra.mxu0 0.0
      %4895 = vmatprep.subr.mxu0 0.0
      %4896 = vmatpush1.msra.mxu0 0.0
      %4897 = vmatprep.subr.mxu0 0.0
      %4898 = vmatpush1.msra.mxu0 0.0
      %4899 = vmatprep.subr.mxu0 0.0
      %4900 = vmatpush1.msra.mxu0 0.0
      %4901 = vmatprep.subr.mxu0 0.0
      %4902 = vmatpush1.msra.mxu0 0.0
      %4903 = vmatprep.subr.mxu0 0.0
      %4904 = vmatpush1.msra.mxu0 0.0
      %4905 = vmatprep.subr.mxu0 0.0
      %4906 = vmatpush1.msra.mxu0 0.0
      %4907 = vmatprep.subr.mxu0 0.0
      %4908 = vmatpush1.msra.mxu0 0.0
      %4909 = vmatprep.subr.mxu0 0.0
      %4910 = vmatpush1.msra.mxu0 0.0
      %4911 = vmatprep.subr.mxu0 0.0
      %4912 = vmatpush1.msra.mxu0 0.0
      %4913 = vmatprep.subr.mxu0 0.0
      %4914 = vmatpush1.msra.mxu0 0.0
      %4915 = vmatprep.subr.mxu0 0.0
      %4916 = vmatpush1.msra.mxu0 0.0
      %4917 = vmatprep.subr.mxu0 0.0
      %4918 = vmatpush1.msra.mxu0 0.0
      %4919 = vmatprep.subr.mxu0 0.0
      %4920 = vmatpush1.msra.mxu0 0.0
      %4921 = vmatprep.subr.mxu0 0.0
      %4922 = vmatpush1.msra.mxu0 0.0
      %4923 = vmatprep.subr.mxu0 0.0
      %4924 = vmatpush1.msra.mxu0 0.0
      %4925 = vmatprep.subr.mxu0 0.0
      %4926 = vmatpush1.msra.mxu0 0.0
      %4927 = vmatprep.subr.mxu0 0.0
      %4928 = vmatpush1.msra.mxu0 0.0
      %4929 = vmatprep.subr.mxu0 0.0
      %4930 = vmatpush1.msra.mxu0 0.0
      %4931 = vmatprep.subr.mxu0 0.0
      %4932 = vmatpush1.msra.mxu0 0.0
      %4933 = vmatprep.subr.mxu0 0.0
      %4934 = vmatpush1.msra.mxu0 0.0
      %4935 = vmatprep.subr.mxu0 0.0
      %4936 = vmatpush1.msra.mxu0 0.0
      %4937 = vmatprep.subr.mxu0 0.0
      %4938 = vmatpush1.msra.mxu0 0.0
      %4939 = vmatprep.subr.mxu0 0.0
      %4940 = vmatpush1.msra.mxu0 0.0
      %4941 = vmatprep.subr.mxu0 0.0
      %4942 = vmatpush1.msra.mxu0 0.0
      %4943 = vmatprep.subr.mxu0 0.0
      %4944 = vmatpush1.msra.mxu0 0.0
      %4945 = vmatprep.subr.mxu0 0.0
      %4946 = vmatpush1.msra.mxu0 0.0
      %4947 = vmatprep.subr.mxu0 0.0
      %4948 = vmatpush1.msra.mxu0 0.0
      %4949 = vmatprep.subr.mxu0 0.0
      %4950 = vmatpush1.msra.mxu0 0.0
      %4951 = vmatprep.subr.mxu0 0.0
      %4952 = vmatpush1.msra.mxu0 0.0
      %4953 = vmatprep.subr.mxu0 0.0
      %4954 = vmatpush1.msra.mxu0 0.0
      %4955 = vmatprep.mubr.f32.mxu0 0.0
      %4956 = vmatmul.mubr.f32.gmra.mrb[0].mxu0 %v4869
      %v4957 = vpop.f32.mrb[0].mxu0
      %v4958 = vadd.f32 0.0, %v4957
      %v4959 = vpop.f32.mrb[0].mxu0
      %4960 = vmatprep.mubr.f32.mxu0 0.0
      %4961 = vmatmul.mubr.f32.gmra.mrb[0].mxu0 %v4872
      %v4962 = vpop.f32.mrb[0].mxu0
      %v4963 = vadd.f32 0.0, %v4962
      %v4964 = vpop.f32.mrb[0].mxu0
      %4965 = vmatprep.mubr.f32.mxu0 0.0
      %4966 = vmatmul.mubr.f32.gmra.mrb[0].mxu0 %v4875
      %v4967 = vpop.f32.mrb[0].mxu0
      %v4968 = vadd.f32 0.0, %v4967
      %v4969 = vpop.f32.mrb[0].mxu0
      %4970 = vmatprep.mubr.f32.mxu0 0.0
      %4971 = vmatmul.mubr.f32.gmra.mrb[0].mxu0 %v4878
      %v4972 = vpop.f32.mrb[0].mxu0
      %v4973 = vadd.f32 0.0, %v4972
      %v4974 = vpop.f32.mrb[0].mxu0
      %4975 = vmatprep.mubr.f32.mxu0 0.0
      %4976 = vmatmul.mubr.f32.gmra.mrb[0].mxu0 %v4881
      %v4977 = vpop.f32.mrb[0].mxu0
      %v4978 = vadd.f32 0.0, %v4977
      %v4979 = vpop.f32.mrb[0].mxu0
      %4980 = vmatprep.mubr.f32.mxu0 0.0
      %4981 = vmatmul.mubr.f32.gmra.mrb[0].mxu0 %v4884
      %v4982 = vpop.f32.mrb[0].mxu0
      %v4983 = vadd.f32 0.0, %v4982
      %v4984 = vpop.f32.mrb[0].mxu0
      %4985 = vmatprep.mubr.f32.mxu0 0.0
      %4986 = vmatmul.mubr.f32.gmra.mrb[0].mxu0 %v4887
      %v4987 = vpop.f32.mrb[0].mxu0
      %v4988 = vadd.f32 0.0, %v4987
      %v4989 = vpop.f32.mrb[0].mxu0
      %4990 = vdwg.mxu0
      %4991 = vrot.lane.b32.xlu0 %v3276, 64
      %v4992 = vpop.permute.xlu0 %4991
      %v4994 = vsel %vm3748, %v4344, 0
      %v4997 = vsel %vm3748, %v4345, 0
      %v5000 = vsel %vm3748, %v4346, 0
      %v5003 = vsel %vm3748, %v4347, 0
      %v5006 = vsel %vm3748, %v4348, 0
      %v5009 = vsel %vm3748, %v4349, 0
      %v5012 = vsel %vm3748, %v4350, 0
      %v5014 = vsel %vm4388, %v4992, 0
      %5016 = vmatprep.subr.mxu0 0.0
      %5017 = vmatpush1.msra.mxu0 %v5014
      %5018 = vmatprep.subr.mxu0 0.0
      %5019 = vmatpush1.msra.mxu0 0.0
      %5020 = vmatprep.subr.mxu0 0.0
      %5021 = vmatpush1.msra.mxu0 0.0
      %5022 = vmatprep.subr.mxu0 0.0
      %5023 = vmatpush1.msra.mxu0 0.0
      %5024 = vmatprep.subr.mxu0 0.0
      %5025 = vmatpush1.msra.mxu0 0.0
      %5026 = vmatprep.subr.mxu0 0.0
      %5027 = vmatpush1.msra.mxu0 0.0
      %5028 = vmatprep.subr.mxu0 0.0
      %5029 = vmatpush1.msra.mxu0 0.0
      %5030 = vmatprep.subr.mxu0 0.0
      %5031 = vmatpush1.msra.mxu0 0.0
      %5032 = vmatprep.subr.mxu0 0.0
      %5033 = vmatpush1.msra.mxu0 0.0
      %5034 = vmatprep.subr.mxu0 0.0
      %5035 = vmatpush1.msra.mxu0 0.0
      %5036 = vmatprep.subr.mxu0 0.0
      %5037 = vmatpush1.msra.mxu0 0.0
      %5038 = vmatprep.subr.mxu0 0.0
      %5039 = vmatpush1.msra.mxu0 0.0
      %5040 = vmatprep.subr.mxu0 0.0
      %5041 = vmatpush1.msra.mxu0 0.0
      %5042 = vmatprep.subr.mxu0 0.0
      %5043 = vmatpush1.msra.mxu0 0.0
      %5044 = vmatprep.subr.mxu0 0.0
      %5045 = vmatpush1.msra.mxu0 0.0
      %5046 = vmatprep.subr.mxu0 0.0
      %5047 = vmatpush1.msra.mxu0 0.0
      %5048 = vmatprep.subr.mxu0 0.0
      %5049 = vmatpush1.msra.mxu0 0.0
      %5050 = vmatprep.subr.mxu0 0.0
      %5051 = vmatpush1.msra.mxu0 0.0
      %5052 = vmatprep.subr.mxu0 0.0
      %5053 = vmatpush1.msra.mxu0 0.0
      %5054 = vmatprep.subr.mxu0 0.0
      %5055 = vmatpush1.msra.mxu0 0.0
      %5056 = vmatprep.subr.mxu0 0.0
      %5057 = vmatpush1.msra.mxu0 0.0
      %5058 = vmatprep.subr.mxu0 0.0
      %5059 = vmatpush1.msra.mxu0 0.0
      %5060 = vmatprep.subr.mxu0 0.0
      %5061 = vmatpush1.msra.mxu0 0.0
      %5062 = vmatprep.subr.mxu0 0.0
      %5063 = vmatpush1.msra.mxu0 0.0
      %5064 = vmatprep.subr.mxu0 0.0
      %5065 = vmatpush1.msra.mxu0 0.0
      %5066 = vmatprep.subr.mxu0 0.0
      %5067 = vmatpush1.msra.mxu0 0.0
      %5068 = vmatprep.subr.mxu0 0.0
      %5069 = vmatpush1.msra.mxu0 0.0
      %5070 = vmatprep.subr.mxu0 0.0
      %5071 = vmatpush1.msra.mxu0 0.0
      %5072 = vmatprep.subr.mxu0 0.0
      %5073 = vmatpush1.msra.mxu0 0.0
      %5074 = vmatprep.subr.mxu0 0.0
      %5075 = vmatpush1.msra.mxu0 0.0
      %5076 = vmatprep.subr.mxu0 0.0
      %5077 = vmatpush1.msra.mxu0 0.0
      %5078 = vmatprep.subr.mxu0 0.0
      %5079 = vmatpush1.msra.mxu0 0.0
      %5080 = vmatprep.mubr.f32.mxu0 0.0
      %5081 = vmatmul.mubr.f32.gmra.mrb[0].mxu0 %v4994
      %v5082 = vpop.f32.mrb[0].mxu0
      %v5083 = vadd.f32 0.0, %v5082
      %v5084 = vpop.f32.mrb[0].mxu0
      %5085 = vmatprep.mubr.f32.mxu0 0.0
      %5086 = vmatmul.mubr.f32.gmra.mrb[0].mxu0 %v4997
      %v5087 = vpop.f32.mrb[0].mxu0
      %v5088 = vadd.f32 0.0, %v5087
      %v5089 = vpop.f32.mrb[0].mxu0
      %5090 = vmatprep.mubr.f32.mxu0 0.0
      %5091 = vmatmul.mubr.f32.gmra.mrb[0].mxu0 %v5000
      %v5092 = vpop.f32.mrb[0].mxu0
      %v5093 = vadd.f32 0.0, %v5092
      %v5094 = vpop.f32.mrb[0].mxu0
      %5095 = vmatprep.mubr.f32.mxu0 0.0
      %5096 = vmatmul.mubr.f32.gmra.mrb[0].mxu0 %v5003
      %v5097 = vpop.f32.mrb[0].mxu0
      %v5098 = vadd.f32 0.0, %v5097
      %v5099 = vpop.f32.mrb[0].mxu0
      %5100 = vmatprep.mubr.f32.mxu0 0.0
      %5101 = vmatmul.mubr.f32.gmra.mrb[0].mxu0 %v5006
      %v5102 = vpop.f32.mrb[0].mxu0
      %v5103 = vadd.f32 0.0, %v5102
      %v5104 = vpop.f32.mrb[0].mxu0
      %5105 = vmatprep.mubr.f32.mxu0 0.0
      %5106 = vmatmul.mubr.f32.gmra.mrb[0].mxu0 %v5009
      %v5107 = vpop.f32.mrb[0].mxu0
      %v5108 = vadd.f32 0.0, %v5107
      %v5109 = vpop.f32.mrb[0].mxu0
      %5110 = vmatprep.mubr.f32.mxu0 0.0
      %5111 = vmatmul.mubr.f32.gmra.mrb[0].mxu0 %v5012
      %v5112 = vpop.f32.mrb[0].mxu0
      %v5113 = vadd.f32 0.0, %v5112
      %v5114 = vpop.f32.mrb[0].mxu0
      %5115 = vdwg.mxu0
      %5116 = vrot.lane.b32.xlu0 %v3449, 64
      %v5117 = vpop.permute.xlu0 %5116
      %v5119 = vsel %vm3748, %v4351, 0
      %v5122 = vsel %vm3748, %v4352, 0
      %v5125 = vsel %vm3748, %v4353, 0
      %v5128 = vsel %vm3748, %v4354, 0
      %v5131 = vsel %vm3748, %v4355, 0
      %v5134 = vsel %vm3748, %v4356, 0
      %v5137 = vsel %vm3748, %v4357, 0
      %v5139 = vsel %vm4388, %v5117, 0
      %5141 = vmatprep.subr.mxu0 0.0
      %5142 = vmatpush1.msra.mxu0 %v5139
      %5143 = vmatprep.subr.mxu0 0.0
      %5144 = vmatpush1.msra.mxu0 0.0
      %5145 = vmatprep.subr.mxu0 0.0
      %5146 = vmatpush1.msra.mxu0 0.0
      %5147 = vmatprep.subr.mxu0 0.0
      %5148 = vmatpush1.msra.mxu0 0.0
      %5149 = vmatprep.subr.mxu0 0.0
      %5150 = vmatpush1.msra.mxu0 0.0
      %5151 = vmatprep.subr.mxu0 0.0
      %5152 = vmatpush1.msra.mxu0 0.0
      %5153 = vmatprep.subr.mxu0 0.0
      %5154 = vmatpush1.msra.mxu0 0.0
      %5155 = vmatprep.subr.mxu0 0.0
      %5156 = vmatpush1.msra.mxu0 0.0
      %5157 = vmatprep.subr.mxu0 0.0
      %5158 = vmatpush1.msra.mxu0 0.0
      %5159 = vmatprep.subr.mxu0 0.0
      %5160 = vmatpush1.msra.mxu0 0.0
      %5161 = vmatprep.subr.mxu0 0.0
      %5162 = vmatpush1.msra.mxu0 0.0
      %5163 = vmatprep.subr.mxu0 0.0
      %5164 = vmatpush1.msra.mxu0 0.0
      %5165 = vmatprep.subr.mxu0 0.0
      %5166 = vmatpush1.msra.mxu0 0.0
      %5167 = vmatprep.subr.mxu0 0.0
      %5168 = vmatpush1.msra.mxu0 0.0
      %5169 = vmatprep.subr.mxu0 0.0
      %5170 = vmatpush1.msra.mxu0 0.0
      %5171 = vmatprep.subr.mxu0 0.0
      %5172 = vmatpush1.msra.mxu0 0.0
      %5173 = vmatprep.subr.mxu0 0.0
      %5174 = vmatpush1.msra.mxu0 0.0
      %5175 = vmatprep.subr.mxu0 0.0
      %5176 = vmatpush1.msra.mxu0 0.0
      %5177 = vmatprep.subr.mxu0 0.0
      %5178 = vmatpush1.msra.mxu0 0.0
      %5179 = vmatprep.subr.mxu0 0.0
      %5180 = vmatpush1.msra.mxu0 0.0
      %5181 = vmatprep.subr.mxu0 0.0
      %5182 = vmatpush1.msra.mxu0 0.0
      %5183 = vmatprep.subr.mxu0 0.0
      %5184 = vmatpush1.msra.mxu0 0.0
      %5185 = vmatprep.subr.mxu0 0.0
      %5186 = vmatpush1.msra.mxu0 0.0
      %5187 = vmatprep.subr.mxu0 0.0
      %5188 = vmatpush1.msra.mxu0 0.0
      %5189 = vmatprep.subr.mxu0 0.0
      %5190 = vmatpush1.msra.mxu0 0.0
      %5191 = vmatprep.subr.mxu0 0.0
      %5192 = vmatpush1.msra.mxu0 0.0
      %5193 = vmatprep.subr.mxu0 0.0
      %5194 = vmatpush1.msra.mxu0 0.0
      %5195 = vmatprep.subr.mxu0 0.0
      %5196 = vmatpush1.msra.mxu0 0.0
      %5197 = vmatprep.subr.mxu0 0.0
      %5198 = vmatpush1.msra.mxu0 0.0
      %5199 = vmatprep.subr.mxu0 0.0
      %5200 = vmatpush1.msra.mxu0 0.0
      %5201 = vmatprep.subr.mxu0 0.0
      %5202 = vmatpush1.msra.mxu0 0.0
      %5203 = vmatprep.subr.mxu0 0.0
      %5204 = vmatpush1.msra.mxu0 0.0
      %5205 = vmatprep.mubr.f32.mxu0 0.0
      %5206 = vmatmul.mubr.f32.gmra.mrb[0].mxu0 %v5119
      %v5207 = vpop.f32.mrb[0].mxu0
      %v5208 = vadd.f32 0.0, %v5207
      %v5209 = vpop.f32.mrb[0].mxu0
      %5210 = vmatprep.mubr.f32.mxu0 0.0
      %5211 = vmatmul.mubr.f32.gmra.mrb[0].mxu0 %v5122
      %v5212 = vpop.f32.mrb[0].mxu0
      %v5213 = vadd.f32 0.0, %v5212
      %v5214 = vpop.f32.mrb[0].mxu0
      %5215 = vmatprep.mubr.f32.mxu0 0.0
      %5216 = vmatmul.mubr.f32.gmra.mrb[0].mxu0 %v5125
      %v5217 = vpop.f32.mrb[0].mxu0
      %v5218 = vadd.f32 0.0, %v5217
      %v5219 = vpop.f32.mrb[0].mxu0
      %5220 = vmatprep.mubr.f32.mxu0 0.0
      %5221 = vmatmul.mubr.f32.gmra.mrb[0].mxu0 %v5128
      %v5222 = vpop.f32.mrb[0].mxu0
      %v5223 = vadd.f32 0.0, %v5222
      %v5224 = vpop.f32.mrb[0].mxu0
      %5225 = vmatprep.mubr.f32.mxu0 0.0
      %5226 = vmatmul.mubr.f32.gmra.mrb[0].mxu0 %v5131
      %v5227 = vpop.f32.mrb[0].mxu0
      %v5228 = vadd.f32 0.0, %v5227
      %v5229 = vpop.f32.mrb[0].mxu0
      %5230 = vmatprep.mubr.f32.mxu0 0.0
      %5231 = vmatmul.mubr.f32.gmra.mrb[0].mxu0 %v5134
      %v5232 = vpop.f32.mrb[0].mxu0
      %v5233 = vadd.f32 0.0, %v5232
      %v5234 = vpop.f32.mrb[0].mxu0
      %5235 = vmatprep.mubr.f32.mxu0 0.0
      %5236 = vmatmul.mubr.f32.gmra.mrb[0].mxu0 %v5137
      %v5237 = vpop.f32.mrb[0].mxu0
      %v5238 = vadd.f32 0.0, %v5237
      %v5239 = vpop.f32.mrb[0].mxu0
      %5240 = vdwg.mxu0
      %5241 = vrot.lane.b32.xlu0 %v3622, 64
      %v5242 = vpop.permute.xlu0 %5241
      %v5244 = vsel %vm3748, %v4358, 0
      %v5247 = vsel %vm3748, %v4359, 0
      %v5250 = vsel %vm3748, %v4360, 0
      %v5253 = vsel %vm3748, %v4361, 0
      %v5256 = vsel %vm3748, %v4362, 0
      %v5259 = vsel %vm3748, %v4363, 0
      %v5262 = vsel %vm3748, %v4364, 0
      %v5264 = vsel %vm4388, %v5242, 0
      %5266 = vmatprep.subr.mxu0 0.0
      %5267 = vmatpush1.msra.mxu0 %v5264
      %5268 = vmatprep.subr.mxu0 0.0
      %5269 = vmatpush1.msra.mxu0 0.0
      %5270 = vmatprep.subr.mxu0 0.0
      %5271 = vmatpush1.msra.mxu0 0.0
      %5272 = vmatprep.subr.mxu0 0.0
      %5273 = vmatpush1.msra.mxu0 0.0
      %5274 = vmatprep.subr.mxu0 0.0
      %5275 = vmatpush1.msra.mxu0 0.0
      %5276 = vmatprep.subr.mxu0 0.0
      %5277 = vmatpush1.msra.mxu0 0.0
      %5278 = vmatprep.subr.mxu0 0.0
      %5279 = vmatpush1.msra.mxu0 0.0
      %5280 = vmatprep.subr.mxu0 0.0
      %5281 = vmatpush1.msra.mxu0 0.0
      %5282 = vmatprep.subr.mxu0 0.0
      %5283 = vmatpush1.msra.mxu0 0.0
      %5284 = vmatprep.subr.mxu0 0.0
      %5285 = vmatpush1.msra.mxu0 0.0
      %5286 = vmatprep.subr.mxu0 0.0
      %5287 = vmatpush1.msra.mxu0 0.0
      %5288 = vmatprep.subr.mxu0 0.0
      %5289 = vmatpush1.msra.mxu0 0.0
      %5290 = vmatprep.subr.mxu0 0.0
      %5291 = vmatpush1.msra.mxu0 0.0
      %5292 = vmatprep.subr.mxu0 0.0
      %5293 = vmatpush1.msra.mxu0 0.0
      %5294 = vmatprep.subr.mxu0 0.0
      %5295 = vmatpush1.msra.mxu0 0.0
      %5296 = vmatprep.subr.mxu0 0.0
      %5297 = vmatpush1.msra.mxu0 0.0
      %5298 = vmatprep.subr.mxu0 0.0
      %5299 = vmatpush1.msra.mxu0 0.0
      %5300 = vmatprep.subr.mxu0 0.0
      %5301 = vmatpush1.msra.mxu0 0.0
      %5302 = vmatprep.subr.mxu0 0.0
      %5303 = vmatpush1.msra.mxu0 0.0
      %5304 = vmatprep.subr.mxu0 0.0
      %5305 = vmatpush1.msra.mxu0 0.0
      %5306 = vmatprep.subr.mxu0 0.0
      %5307 = vmatpush1.msra.mxu0 0.0
      %5308 = vmatprep.subr.mxu0 0.0
      %5309 = vmatpush1.msra.mxu0 0.0
      %5310 = vmatprep.subr.mxu0 0.0
      %5311 = vmatpush1.msra.mxu0 0.0
      %5312 = vmatprep.subr.mxu0 0.0
      %5313 = vmatpush1.msra.mxu0 0.0
      %5314 = vmatprep.subr.mxu0 0.0
      %5315 = vmatpush1.msra.mxu0 0.0
      %5316 = vmatprep.subr.mxu0 0.0
      %5317 = vmatpush1.msra.mxu0 0.0
      %5318 = vmatprep.subr.mxu0 0.0
      %5319 = vmatpush1.msra.mxu0 0.0
      %5320 = vmatprep.subr.mxu0 0.0
      %5321 = vmatpush1.msra.mxu0 0.0
      %5322 = vmatprep.subr.mxu0 0.0
      %5323 = vmatpush1.msra.mxu0 0.0
      %5324 = vmatprep.subr.mxu0 0.0
      %5325 = vmatpush1.msra.mxu0 0.0
      %5326 = vmatprep.subr.mxu0 0.0
      %5327 = vmatpush1.msra.mxu0 0.0
      %5328 = vmatprep.subr.mxu0 0.0
      %5329 = vmatpush1.msra.mxu0 0.0
      %5330 = vmatprep.mubr.f32.mxu0 0.0
      %5331 = vmatmul.mubr.f32.gmra.mrb[0].mxu0 %v5244
      %v5332 = vpop.f32.mrb[0].mxu0
      %v5333 = vadd.f32 0.0, %v5332
      %v5334 = vpop.f32.mrb[0].mxu0
      %5335 = vmatprep.mubr.f32.mxu0 0.0
      %5336 = vmatmul.mubr.f32.gmra.mrb[0].mxu0 %v5247
      %v5337 = vpop.f32.mrb[0].mxu0
      %v5338 = vadd.f32 0.0, %v5337
      %v5339 = vpop.f32.mrb[0].mxu0
      %5340 = vmatprep.mubr.f32.mxu0 0.0
      %5341 = vmatmul.mubr.f32.gmra.mrb[0].mxu0 %v5250
      %v5342 = vpop.f32.mrb[0].mxu0
      %v5343 = vadd.f32 0.0, %v5342
      %v5344 = vpop.f32.mrb[0].mxu0
      %5345 = vmatprep.mubr.f32.mxu0 0.0
      %5346 = vmatmul.mubr.f32.gmra.mrb[0].mxu0 %v5253
      %v5347 = vpop.f32.mrb[0].mxu0
      %v5348 = vadd.f32 0.0, %v5347
      %v5349 = vpop.f32.mrb[0].mxu0
      %5350 = vmatprep.mubr.f32.mxu0 0.0
      %5351 = vmatmul.mubr.f32.gmra.mrb[0].mxu0 %v5256
      %v5352 = vpop.f32.mrb[0].mxu0
      %v5353 = vadd.f32 0.0, %v5352
      %v5354 = vpop.f32.mrb[0].mxu0
      %5355 = vmatprep.mubr.f32.mxu0 0.0
      %5356 = vmatmul.mubr.f32.gmra.mrb[0].mxu0 %v5259
      %v5357 = vpop.f32.mrb[0].mxu0
      %v5358 = vadd.f32 0.0, %v5357
      %v5359 = vpop.f32.mrb[0].mxu0
      %5360 = vmatprep.mubr.f32.mxu0 0.0
      %5361 = vmatmul.mubr.f32.gmra.mrb[0].mxu0 %v5262
      %v5362 = vpop.f32.mrb[0].mxu0
      %v5363 = vadd.f32 0.0, %v5362
      %v5364 = vpop.f32.mrb[0].mxu0
      %5365 = vdwg.mxu0
      %v5366 = vmul.f32 %v4458, %v786
      %v5367 = vmul.f32 %v4463, %v787
      %v5368 = vmul.f32 %v4468, %v788
      %v5369 = vmul.f32 %v4473, %v789
      %v5370 = vmul.f32 %v4478, %v790
      %v5371 = vmul.f32 %v4483, %v791
      %v5372 = vmul.f32 %v4488, %v792
      %v5373 = vmul.f32 %v4583, %v786
      %v5374 = vmul.f32 %v4588, %v787
      %v5375 = vmul.f32 %v4593, %v788
      %v5376 = vmul.f32 %v4598, %v789
      %v5377 = vmul.f32 %v4603, %v790
      %v5378 = vmul.f32 %v4608, %v791
      %v5379 = vmul.f32 %v4613, %v792
      %v5380 = vmul.f32 %v4708, %v786
      %v5381 = vmul.f32 %v4713, %v787
      %v5382 = vmul.f32 %v4718, %v788
      %v5383 = vmul.f32 %v4723, %v789
      %v5384 = vmul.f32 %v4728, %v790
      %v5385 = vmul.f32 %v4733, %v791
      %v5386 = vmul.f32 %v4738, %v792
      %v5387 = vmul.f32 %v4833, %v786
      %v5388 = vmul.f32 %v4838, %v787
      %v5389 = vmul.f32 %v4843, %v788
      %v5390 = vmul.f32 %v4848, %v789
      %v5391 = vmul.f32 %v4853, %v790
      %v5392 = vmul.f32 %v4858, %v791
      %v5393 = vmul.f32 %v4863, %v792
      %v5394 = vmul.f32 %v4958, %v786
      %v5395 = vmul.f32 %v4963, %v787
      %v5396 = vmul.f32 %v4968, %v788
      %v5397 = vmul.f32 %v4973, %v789
      %v5398 = vmul.f32 %v4978, %v790
      %v5399 = vmul.f32 %v4983, %v791
      %v5400 = vmul.f32 %v4988, %v792
      %v5401 = vmul.f32 %v5083, %v786
      %v5402 = vmul.f32 %v5088, %v787
      %v5403 = vmul.f32 %v5093, %v788
      %v5404 = vmul.f32 %v5098, %v789
      %v5405 = vmul.f32 %v5103, %v790
      %v5406 = vmul.f32 %v5108, %v791
      %v5407 = vmul.f32 %v5113, %v792
      %v5408 = vmul.f32 %v5208, %v786
      %v5409 = vmul.f32 %v5213, %v787
      %v5410 = vmul.f32 %v5218, %v788
      %v5411 = vmul.f32 %v5223, %v789
      %v5412 = vmul.f32 %v5228, %v790
      %v5413 = vmul.f32 %v5233, %v791
      %v5414 = vmul.f32 %v5238, %v792
      %v5415 = vmul.f32 %v5333, %v786
      %v5416 = vmul.f32 %v5338, %v787
      %v5417 = vmul.f32 %v5343, %v788
      %v5418 = vmul.f32 %v5348, %v789
      %v5419 = vmul.f32 %v5353, %v790
      %v5420 = vmul.f32 %v5358, %v791
      %v5421 = vmul.f32 %v5363, %v792
      %s5422 = scalar_lea.vmem %s7, %s814
      %v5423 = vld [vmem:[%s5422] sm:$0xff]
      %v5424 = vld [vmem:[%s5422 + $0x8] sm:$0xff]
      %v5425 = vld [vmem:[%s5422 + $0x10] sm:$0xff]
      %v5426 = vld [vmem:[%s5422 + $0x18] sm:$0xff]
      %v5428 = vsel %vm1563, %v5366, 0
      %v5431 = vsel %vm1563, %v5367, 0
      %v5434 = vsel %vm1563, %v5368, 0
      %v5437 = vsel %vm1563, %v5369, 0
      %v5440 = vsel %vm1563, %v5370, 0
      %v5443 = vsel %vm1563, %v5371, 0
      %v5446 = vsel %vm1563, %v5372, 0
      %v5449 = vsel %vm1563, %v5373, 0
      %v5452 = vsel %vm1563, %v5374, 0
      %v5455 = vsel %vm1563, %v5375, 0
      %v5458 = vsel %vm1563, %v5376, 0
      %v5461 = vsel %vm1563, %v5377, 0
      %v5464 = vsel %vm1563, %v5378, 0
      %v5467 = vsel %vm1563, %v5379, 0
      %v5470 = vsel %vm1563, %v5380, 0
      %v5473 = vsel %vm1563, %v5381, 0
      %v5476 = vsel %vm1563, %v5382, 0
      %v5479 = vsel %vm1563, %v5383, 0
      %v5482 = vsel %vm1563, %v5384, 0
      %v5485 = vsel %vm1563, %v5385, 0
      %v5488 = vsel %vm1563, %v5386, 0
      %v5491 = vsel %vm1563, %v5387, 0
      %v5494 = vsel %vm1563, %v5388, 0
      %v5497 = vsel %vm1563, %v5389, 0
      %v5500 = vsel %vm1563, %v5390, 0
      %v5503 = vsel %vm1563, %v5391, 0
      %v5506 = vsel %vm1563, %v5392, 0
      %v5509 = vsel %vm1563, %v5393, 0
      %v5512 = vsel %vm1563, %v5394, 0
      %v5515 = vsel %vm1563, %v5395, 0
      %v5518 = vsel %vm1563, %v5396, 0
      %v5521 = vsel %vm1563, %v5397, 0
      %v5524 = vsel %vm1563, %v5398, 0
      %v5527 = vsel %vm1563, %v5399, 0
      %v5530 = vsel %vm1563, %v5400, 0
      %v5533 = vsel %vm1563, %v5401, 0
      %v5536 = vsel %vm1563, %v5402, 0
      %v5539 = vsel %vm1563, %v5403, 0
      %v5542 = vsel %vm1563, %v5404, 0
      %v5545 = vsel %vm1563, %v5405, 0
      %v5548 = vsel %vm1563, %v5406, 0
      %v5551 = vsel %vm1563, %v5407, 0
      %v5554 = vsel %vm1563, %v5408, 0
      %v5557 = vsel %vm1563, %v5409, 0
      %v5560 = vsel %vm1563, %v5410, 0
      %v5563 = vsel %vm1563, %v5411, 0
      %v5566 = vsel %vm1563, %v5412, 0
      %v5569 = vsel %vm1563, %v5413, 0
      %v5572 = vsel %vm1563, %v5414, 0
      %v5575 = vsel %vm1563, %v5415, 0
      %v5578 = vsel %vm1563, %v5416, 0
      %v5581 = vsel %vm1563, %v5417, 0
      %v5584 = vsel %vm1563, %v5418, 0
      %v5587 = vsel %vm1563, %v5419, 0
      %v5590 = vsel %vm1563, %v5420, 0
      %v5593 = vsel %vm1563, %v5421, 0
      %5595 = vmatprep.subr.mxu0 0.0
      %5596 = vmatpush1.msra.mxu0 %v5423
      %5597 = vmatprep.subr.mxu0 0.0
      %5598 = vmatpush1.msra.mxu0 %v5424
      %5599 = vmatprep.subr.mxu0 0.0
      %5600 = vmatpush1.msra.mxu0 %v5425
      %5601 = vmatprep.subr.mxu0 0.0
      %5602 = vmatpush1.msra.mxu0 %v5426
      %5603 = vmatprep.subr.mxu0 0.0
      %5604 = vmatpush1.msra.mxu0 0.0
      %5605 = vmatprep.subr.mxu0 0.0
      %5606 = vmatpush1.msra.mxu0 0.0
      %5607 = vmatprep.subr.mxu0 0.0
      %5608 = vmatpush1.msra.mxu0 0.0
      %5609 = vmatprep.subr.mxu0 0.0
      %5610 = vmatpush1.msra.mxu0 0.0
      %5611 = vmatprep.subr.mxu0 0.0
      %5612 = vmatpush1.msra.mxu0 0.0
      %5613 = vmatprep.subr.mxu0 0.0
      %5614 = vmatpush1.msra.mxu0 0.0
      %5615 = vmatprep.subr.mxu0 0.0
      %5616 = vmatpush1.msra.mxu0 0.0
      %5617 = vmatprep.subr.mxu0 0.0
      %5618 = vmatpush1.msra.mxu0 0.0
      %5619 = vmatprep.subr.mxu0 0.0
      %5620 = vmatpush1.msra.mxu0 0.0
      %5621 = vmatprep.subr.mxu0 0.0
      %5622 = vmatpush1.msra.mxu0 0.0
      %5623 = vmatprep.subr.mxu0 0.0
      %5624 = vmatpush1.msra.mxu0 0.0
      %5625 = vmatprep.subr.mxu0 0.0
      %5626 = vmatpush1.msra.mxu0 0.0
      %5627 = vmatprep.subr.mxu0 0.0
      %5628 = vmatpush1.msra.mxu0 0.0
      %5629 = vmatprep.subr.mxu0 0.0
      %5630 = vmatpush1.msra.mxu0 0.0
      %5631 = vmatprep.subr.mxu0 0.0
      %5632 = vmatpush1.msra.mxu0 0.0
      %5633 = vmatprep.subr.mxu0 0.0
      %5634 = vmatpush1.msra.mxu0 0.0
      %5635 = vmatprep.subr.mxu0 0.0
      %5636 = vmatpush1.msra.mxu0 0.0
      %5637 = vmatprep.subr.mxu0 0.0
      %5638 = vmatpush1.msra.mxu0 0.0
      %5639 = vmatprep.subr.mxu0 0.0
      %5640 = vmatpush1.msra.mxu0 0.0
      %5641 = vmatprep.subr.mxu0 0.0
      %5642 = vmatpush1.msra.mxu0 0.0
      %5643 = vmatprep.subr.mxu0 0.0
      %5644 = vmatpush1.msra.mxu0 0.0
      %5645 = vmatprep.subr.mxu0 0.0
      %5646 = vmatpush1.msra.mxu0 0.0
      %5647 = vmatprep.subr.mxu0 0.0
      %5648 = vmatpush1.msra.mxu0 0.0
      %5649 = vmatprep.subr.mxu0 0.0
      %5650 = vmatpush1.msra.mxu0 0.0
      %5651 = vmatprep.subr.mxu0 0.0
      %5652 = vmatpush1.msra.mxu0 0.0
      %5653 = vmatprep.subr.mxu0 0.0
      %5654 = vmatpush1.msra.mxu0 0.0
      %5655 = vmatprep.subr.mxu0 0.0
      %5656 = vmatpush1.msra.mxu0 0.0
      %5657 = vmatprep.subr.mxu0 0.0
      %5658 = vmatpush1.msra.mxu0 0.0
      %5659 = vmatprep.mubr.f32.mxu0 0.0
      %5660 = vmatmul.mubr.f32.gmra.mrb[0].mxu0 %v5428
      %v5661 = vpop.f32.mrb[0].mxu0
      %v5662 = vadd.f32 0.0, %v5661
      %v5663 = vpop.f32.mrb[0].mxu0
      %5664 = vmatprep.mubr.f32.mxu0 0.0
      %5665 = vmatmul.mubr.f32.gmra.mrb[0].mxu0 %v5431
      %v5666 = vpop.f32.mrb[0].mxu0
      %v5667 = vadd.f32 0.0, %v5666
      %v5668 = vpop.f32.mrb[0].mxu0
      %5669 = vmatprep.mubr.f32.mxu0 0.0
      %5670 = vmatmul.mubr.f32.gmra.mrb[0].mxu0 %v5434
      %v5671 = vpop.f32.mrb[0].mxu0
      %v5672 = vadd.f32 0.0, %v5671
      %v5673 = vpop.f32.mrb[0].mxu0
      %5674 = vmatprep.mubr.f32.mxu0 0.0
      %5675 = vmatmul.mubr.f32.gmra.mrb[0].mxu0 %v5437
      %v5676 = vpop.f32.mrb[0].mxu0
      %v5677 = vadd.f32 0.0, %v5676
      %v5678 = vpop.f32.mrb[0].mxu0
      %5679 = vmatprep.mubr.f32.mxu0 0.0
      %5680 = vmatmul.mubr.f32.gmra.mrb[0].mxu0 %v5440
      %v5681 = vpop.f32.mrb[0].mxu0
      %v5682 = vadd.f32 0.0, %v5681
      %v5683 = vpop.f32.mrb[0].mxu0
      %5684 = vmatprep.mubr.f32.mxu0 0.0
      %5685 = vmatmul.mubr.f32.gmra.mrb[0].mxu0 %v5443
      %v5686 = vpop.f32.mrb[0].mxu0
      %v5687 = vadd.f32 0.0, %v5686
      %v5688 = vpop.f32.mrb[0].mxu0
      %5689 = vmatprep.mubr.f32.mxu0 0.0
      %5690 = vmatmul.mubr.f32.gmra.mrb[0].mxu0 %v5446
      %v5691 = vpop.f32.mrb[0].mxu0
      %v5692 = vadd.f32 0.0, %v5691
      %v5693 = vpop.f32.mrb[0].mxu0
      %5694 = vmatprep.mubr.f32.mxu0 0.0
      %5695 = vmatmul.mubr.f32.gmra.mrb[0].mxu0 %v5449
      %v5696 = vpop.f32.mrb[0].mxu0
      %v5697 = vadd.f32 0.0, %v5696
      %v5698 = vpop.f32.mrb[0].mxu0
      %5699 = vmatprep.mubr.f32.mxu0 0.0
      %5700 = vmatmul.mubr.f32.gmra.mrb[0].mxu0 %v5452
      %v5701 = vpop.f32.mrb[0].mxu0
      %v5702 = vadd.f32 0.0, %v5701
      %v5703 = vpop.f32.mrb[0].mxu0
      %5704 = vmatprep.mubr.f32.mxu0 0.0
      %5705 = vmatmul.mubr.f32.gmra.mrb[0].mxu0 %v5455
      %v5706 = vpop.f32.mrb[0].mxu0
      %v5707 = vadd.f32 0.0, %v5706
      %v5708 = vpop.f32.mrb[0].mxu0
      %5709 = vmatprep.mubr.f32.mxu0 0.0
      %5710 = vmatmul.mubr.f32.gmra.mrb[0].mxu0 %v5458
      %v5711 = vpop.f32.mrb[0].mxu0
      %v5712 = vadd.f32 0.0, %v5711
      %v5713 = vpop.f32.mrb[0].mxu0
      %5714 = vmatprep.mubr.f32.mxu0 0.0
      %5715 = vmatmul.mubr.f32.gmra.mrb[0].mxu0 %v5461
      %v5716 = vpop.f32.mrb[0].mxu0
      %v5717 = vadd.f32 0.0, %v5716
      %v5718 = vpop.f32.mrb[0].mxu0
      %5719 = vmatprep.mubr.f32.mxu0 0.0
      %5720 = vmatmul.mubr.f32.gmra.mrb[0].mxu0 %v5464
      %v5721 = vpop.f32.mrb[0].mxu0
      %v5722 = vadd.f32 0.0, %v5721
      %v5723 = vpop.f32.mrb[0].mxu0
      %5724 = vmatprep.mubr.f32.mxu0 0.0
      %5725 = vmatmul.mubr.f32.gmra.mrb[0].mxu0 %v5467
      %v5726 = vpop.f32.mrb[0].mxu0
      %v5727 = vadd.f32 0.0, %v5726
      %v5728 = vpop.f32.mrb[0].mxu0
      %5729 = vmatprep.mubr.f32.mxu0 0.0
      %5730 = vmatmul.mubr.f32.gmra.mrb[0].mxu0 %v5470
      %v5731 = vpop.f32.mrb[0].mxu0
      %v5732 = vadd.f32 0.0, %v5731
      %v5733 = vpop.f32.mrb[0].mxu0
      %5734 = vmatprep.mubr.f32.mxu0 0.0
      %5735 = vmatmul.mubr.f32.gmra.mrb[0].mxu0 %v5473
      %v5736 = vpop.f32.mrb[0].mxu0
      %v5737 = vadd.f32 0.0, %v5736
      %v5738 = vpop.f32.mrb[0].mxu0
      %5739 = vmatprep.mubr.f32.mxu0 0.0
      %5740 = vmatmul.mubr.f32.gmra.mrb[0].mxu0 %v5476
      %v5741 = vpop.f32.mrb[0].mxu0
      %v5742 = vadd.f32 0.0, %v5741
      %v5743 = vpop.f32.mrb[0].mxu0
      %5744 = vmatprep.mubr.f32.mxu0 0.0
      %5745 = vmatmul.mubr.f32.gmra.mrb[0].mxu0 %v5479
      %v5746 = vpop.f32.mrb[0].mxu0
      %v5747 = vadd.f32 0.0, %v5746
      %v5748 = vpop.f32.mrb[0].mxu0
      %5749 = vmatprep.mubr.f32.mxu0 0.0
      %5750 = vmatmul.mubr.f32.gmra.mrb[0].mxu0 %v5482
      %v5751 = vpop.f32.mrb[0].mxu0
      %v5752 = vadd.f32 0.0, %v5751
      %v5753 = vpop.f32.mrb[0].mxu0
      %5754 = vmatprep.mubr.f32.mxu0 0.0
      %5755 = vmatmul.mubr.f32.gmra.mrb[0].mxu0 %v5485
      %v5756 = vpop.f32.mrb[0].mxu0
      %v5757 = vadd.f32 0.0, %v5756
      %v5758 = vpop.f32.mrb[0].mxu0
      %5759 = vmatprep.mubr.f32.mxu0 0.0
      %5760 = vmatmul.mubr.f32.gmra.mrb[0].mxu0 %v5488
      %v5761 = vpop.f32.mrb[0].mxu0
      %v5762 = vadd.f32 0.0, %v5761
      %v5763 = vpop.f32.mrb[0].mxu0
      %5764 = vmatprep.mubr.f32.mxu0 0.0
      %5765 = vmatmul.mubr.f32.gmra.mrb[0].mxu0 %v5491
      %v5766 = vpop.f32.mrb[0].mxu0
      %v5767 = vadd.f32 0.0, %v5766
      %v5768 = vpop.f32.mrb[0].mxu0
      %5769 = vmatprep.mubr.f32.mxu0 0.0
      %5770 = vmatmul.mubr.f32.gmra.mrb[0].mxu0 %v5494
      %v5771 = vpop.f32.mrb[0].mxu0
      %v5772 = vadd.f32 0.0, %v5771
      %v5773 = vpop.f32.mrb[0].mxu0
      %5774 = vmatprep.mubr.f32.mxu0 0.0
      %5775 = vmatmul.mubr.f32.gmra.mrb[0].mxu0 %v5497
      %v5776 = vpop.f32.mrb[0].mxu0
      %v5777 = vadd.f32 0.0, %v5776
      %v5778 = vpop.f32.mrb[0].mxu0
      %5779 = vmatprep.mubr.f32.mxu0 0.0
      %5780 = vmatmul.mubr.f32.gmra.mrb[0].mxu0 %v5500
      %v5781 = vpop.f32.mrb[0].mxu0
      %v5782 = vadd.f32 0.0, %v5781
      %v5783 = vpop.f32.mrb[0].mxu0
      %5784 = vmatprep.mubr.f32.mxu0 0.0
      %5785 = vmatmul.mubr.f32.gmra.mrb[0].mxu0 %v5503
      %v5786 = vpop.f32.mrb[0].mxu0
      %v5787 = vadd.f32 0.0, %v5786
      %v5788 = vpop.f32.mrb[0].mxu0
      %5789 = vmatprep.mubr.f32.mxu0 0.0
      %5790 = vmatmul.mubr.f32.gmra.mrb[0].mxu0 %v5506
      %v5791 = vpop.f32.mrb[0].mxu0
      %v5792 = vadd.f32 0.0, %v5791
      %v5793 = vpop.f32.mrb[0].mxu0
      %5794 = vmatprep.mubr.f32.mxu0 0.0
      %5795 = vmatmul.mubr.f32.gmra.mrb[0].mxu0 %v5509
      %v5796 = vpop.f32.mrb[0].mxu0
      %v5797 = vadd.f32 0.0, %v5796
      %v5798 = vpop.f32.mrb[0].mxu0
      %5799 = vmatprep.mubr.f32.mxu0 0.0
      %5800 = vmatmul.mubr.f32.gmra.mrb[0].mxu0 %v5512
      %v5801 = vpop.f32.mrb[0].mxu0
      %v5802 = vadd.f32 0.0, %v5801
      %v5803 = vpop.f32.mrb[0].mxu0
      %5804 = vmatprep.mubr.f32.mxu0 0.0
      %5805 = vmatmul.mubr.f32.gmra.mrb[0].mxu0 %v5515
      %v5806 = vpop.f32.mrb[0].mxu0
      %v5807 = vadd.f32 0.0, %v5806
      %v5808 = vpop.f32.mrb[0].mxu0
      %5809 = vmatprep.mubr.f32.mxu0 0.0
      %5810 = vmatmul.mubr.f32.gmra.mrb[0].mxu0 %v5518
      %v5811 = vpop.f32.mrb[0].mxu0
      %v5812 = vadd.f32 0.0, %v5811
      %v5813 = vpop.f32.mrb[0].mxu0
      %5814 = vmatprep.mubr.f32.mxu0 0.0
      %5815 = vmatmul.mubr.f32.gmra.mrb[0].mxu0 %v5521
      %v5816 = vpop.f32.mrb[0].mxu0
      %v5817 = vadd.f32 0.0, %v5816
      %v5818 = vpop.f32.mrb[0].mxu0
      %5819 = vmatprep.mubr.f32.mxu0 0.0
      %5820 = vmatmul.mubr.f32.gmra.mrb[0].mxu0 %v5524
      %v5821 = vpop.f32.mrb[0].mxu0
      %v5822 = vadd.f32 0.0, %v5821
      %v5823 = vpop.f32.mrb[0].mxu0
      %5824 = vmatprep.mubr.f32.mxu0 0.0
      %5825 = vmatmul.mubr.f32.gmra.mrb[0].mxu0 %v5527
      %v5826 = vpop.f32.mrb[0].mxu0
      %v5827 = vadd.f32 0.0, %v5826
      %v5828 = vpop.f32.mrb[0].mxu0
      %5829 = vmatprep.mubr.f32.mxu0 0.0
      %5830 = vmatmul.mubr.f32.gmra.mrb[0].mxu0 %v5530
      %v5831 = vpop.f32.mrb[0].mxu0
      %v5832 = vadd.f32 0.0, %v5831
      %v5833 = vpop.f32.mrb[0].mxu0
      %5834 = vmatprep.mubr.f32.mxu0 0.0
      %5835 = vmatmul.mubr.f32.gmra.mrb[0].mxu0 %v5533
      %v5836 = vpop.f32.mrb[0].mxu0
      %v5837 = vadd.f32 0.0, %v5836
      %v5838 = vpop.f32.mrb[0].mxu0
      %5839 = vmatprep.mubr.f32.mxu0 0.0
      %5840 = vmatmul.mubr.f32.gmra.mrb[0].mxu0 %v5536
      %v5841 = vpop.f32.mrb[0].mxu0
      %v5842 = vadd.f32 0.0, %v5841
      %v5843 = vpop.f32.mrb[0].mxu0
      %5844 = vmatprep.mubr.f32.mxu0 0.0
      %5845 = vmatmul.mubr.f32.gmra.mrb[0].mxu0 %v5539
      %v5846 = vpop.f32.mrb[0].mxu0
      %v5847 = vadd.f32 0.0, %v5846
      %v5848 = vpop.f32.mrb[0].mxu0
      %5849 = vmatprep.mubr.f32.mxu0 0.0
      %5850 = vmatmul.mubr.f32.gmra.mrb[0].mxu0 %v5542
      %v5851 = vpop.f32.mrb[0].mxu0
      %v5852 = vadd.f32 0.0, %v5851
      %v5853 = vpop.f32.mrb[0].mxu0
      %5854 = vmatprep.mubr.f32.mxu0 0.0
      %5855 = vmatmul.mubr.f32.gmra.mrb[0].mxu0 %v5545
      %v5856 = vpop.f32.mrb[0].mxu0
      %v5857 = vadd.f32 0.0, %v5856
      %v5858 = vpop.f32.mrb[0].mxu0
      %5859 = vmatprep.mubr.f32.mxu0 0.0
      %5860 = vmatmul.mubr.f32.gmra.mrb[0].mxu0 %v5548
      %v5861 = vpop.f32.mrb[0].mxu0
      %v5862 = vadd.f32 0.0, %v5861
      %v5863 = vpop.f32.mrb[0].mxu0
      %5864 = vmatprep.mubr.f32.mxu0 0.0
      %5865 = vmatmul.mubr.f32.gmra.mrb[0].mxu0 %v5551
      %v5866 = vpop.f32.mrb[0].mxu0
      %v5867 = vadd.f32 0.0, %v5866
      %v5868 = vpop.f32.mrb[0].mxu0
      %5869 = vmatprep.mubr.f32.mxu0 0.0
      %5870 = vmatmul.mubr.f32.gmra.mrb[0].mxu0 %v5554
      %v5871 = vpop.f32.mrb[0].mxu0
      %v5872 = vadd.f32 0.0, %v5871
      %v5873 = vpop.f32.mrb[0].mxu0
      %5874 = vmatprep.mubr.f32.mxu0 0.0
      %5875 = vmatmul.mubr.f32.gmra.mrb[0].mxu0 %v5557
      %v5876 = vpop.f32.mrb[0].mxu0
      %v5877 = vadd.f32 0.0, %v5876
      %v5878 = vpop.f32.mrb[0].mxu0
      %5879 = vmatprep.mubr.f32.mxu0 0.0
      %5880 = vmatmul.mubr.f32.gmra.mrb[0].mxu0 %v5560
      %v5881 = vpop.f32.mrb[0].mxu0
      %v5882 = vadd.f32 0.0, %v5881
      %v5883 = vpop.f32.mrb[0].mxu0
      %5884 = vmatprep.mubr.f32.mxu0 0.0
      %5885 = vmatmul.mubr.f32.gmra.mrb[0].mxu0 %v5563
      %v5886 = vpop.f32.mrb[0].mxu0
      %v5887 = vadd.f32 0.0, %v5886
      %v5888 = vpop.f32.mrb[0].mxu0
      %5889 = vmatprep.mubr.f32.mxu0 0.0
      %5890 = vmatmul.mubr.f32.gmra.mrb[0].mxu0 %v5566
      %v5891 = vpop.f32.mrb[0].mxu0
      %v5892 = vadd.f32 0.0, %v5891
      %v5893 = vpop.f32.mrb[0].mxu0
      %5894 = vmatprep.mubr.f32.mxu0 0.0
      %5895 = vmatmul.mubr.f32.gmra.mrb[0].mxu0 %v5569
      %v5896 = vpop.f32.mrb[0].mxu0
      %v5897 = vadd.f32 0.0, %v5896
      %v5898 = vpop.f32.mrb[0].mxu0
      %5899 = vmatprep.mubr.f32.mxu0 0.0
      %5900 = vmatmul.mubr.f32.gmra.mrb[0].mxu0 %v5572
      %v5901 = vpop.f32.mrb[0].mxu0
      %v5902 = vadd.f32 0.0, %v5901
      %v5903 = vpop.f32.mrb[0].mxu0
      %5904 = vmatprep.mubr.f32.mxu0 0.0
      %5905 = vmatmul.mubr.f32.gmra.mrb[0].mxu0 %v5575
      %v5906 = vpop.f32.mrb[0].mxu0
      %v5907 = vadd.f32 0.0, %v5906
      %v5908 = vpop.f32.mrb[0].mxu0
      %5909 = vmatprep.mubr.f32.mxu0 0.0
      %5910 = vmatmul.mubr.f32.gmra.mrb[0].mxu0 %v5578
      %v5911 = vpop.f32.mrb[0].mxu0
      %v5912 = vadd.f32 0.0, %v5911
      %v5913 = vpop.f32.mrb[0].mxu0
      %5914 = vmatprep.mubr.f32.mxu0 0.0
      %5915 = vmatmul.mubr.f32.gmra.mrb[0].mxu0 %v5581
      %v5916 = vpop.f32.mrb[0].mxu0
      %v5917 = vadd.f32 0.0, %v5916
      %v5918 = vpop.f32.mrb[0].mxu0
      %5919 = vmatprep.mubr.f32.mxu0 0.0
      %5920 = vmatmul.mubr.f32.gmra.mrb[0].mxu0 %v5584
      %v5921 = vpop.f32.mrb[0].mxu0
      %v5922 = vadd.f32 0.0, %v5921
      %v5923 = vpop.f32.mrb[0].mxu0
      %5924 = vmatprep.mubr.f32.mxu0 0.0
      %5925 = vmatmul.mubr.f32.gmra.mrb[0].mxu0 %v5587
      %v5926 = vpop.f32.mrb[0].mxu0
      %v5927 = vadd.f32 0.0, %v5926
      %v5928 = vpop.f32.mrb[0].mxu0
      %5929 = vmatprep.mubr.f32.mxu0 0.0
      %5930 = vmatmul.mubr.f32.gmra.mrb[0].mxu0 %v5590
      %v5931 = vpop.f32.mrb[0].mxu0
      %v5932 = vadd.f32 0.0, %v5931
      %v5933 = vpop.f32.mrb[0].mxu0
      %5934 = vmatprep.mubr.f32.mxu0 0.0
      %5935 = vmatmul.mubr.f32.gmra.mrb[0].mxu0 %v5593
      %v5936 = vpop.f32.mrb[0].mxu0
      %v5937 = vadd.f32 0.0, %v5936
      %v5938 = vpop.f32.mrb[0].mxu0
      %5939 = vdwg.mxu0
      %v5940 = vsel %vm1563, %v5662, 0.0
      %v5941 = vrot.slane %v5940, 4
      %v5942 = vadd.f32 %v5940, %v5941
      %v5943 = vrot.slane %v5942, 2
      %v5944 = vadd.f32 %v5942, %v5943
      %v5945 = vrot.slane %v5944, 1
      %v5946 = vadd.f32 %v5944, %v5945
      %v5947 = vsel %vm1563, %v5667, 0.0
      %v5948 = vrot.slane %v5947, 4
      %v5949 = vadd.f32 %v5947, %v5948
      %v5950 = vrot.slane %v5949, 2
      %v5951 = vadd.f32 %v5949, %v5950
      %v5952 = vrot.slane %v5951, 1
      %v5953 = vadd.f32 %v5951, %v5952
      %v5954 = vsel %vm1563, %v5672, 0.0
      %v5955 = vrot.slane %v5954, 4
      %v5956 = vadd.f32 %v5954, %v5955
      %v5957 = vrot.slane %v5956, 2
      %v5958 = vadd.f32 %v5956, %v5957
      %v5959 = vrot.slane %v5958, 1
      %v5960 = vadd.f32 %v5958, %v5959
      %v5961 = vsel %vm1563, %v5677, 0.0
      %v5962 = vrot.slane %v5961, 4
      %v5963 = vadd.f32 %v5961, %v5962
      %v5964 = vrot.slane %v5963, 2
      %v5965 = vadd.f32 %v5963, %v5964
      %v5966 = vrot.slane %v5965, 1
      %v5967 = vadd.f32 %v5965, %v5966
      %v5968 = vsel %vm1563, %v5682, 0.0
      %v5969 = vrot.slane %v5968, 4
      %v5970 = vadd.f32 %v5968, %v5969
      %v5971 = vrot.slane %v5970, 2
      %v5972 = vadd.f32 %v5970, %v5971
      %v5973 = vrot.slane %v5972, 1
      %v5974 = vadd.f32 %v5972, %v5973
      %v5975 = vsel %vm1563, %v5687, 0.0
      %v5976 = vrot.slane %v5975, 4
      %v5977 = vadd.f32 %v5975, %v5976
      %v5978 = vrot.slane %v5977, 2
      %v5979 = vadd.f32 %v5977, %v5978
      %v5980 = vrot.slane %v5979, 1
      %v5981 = vadd.f32 %v5979, %v5980
      %v5982 = vsel %vm1563, %v5692, 0.0
      %v5983 = vrot.slane %v5982, 4
      %v5984 = vadd.f32 %v5982, %v5983
      %v5985 = vrot.slane %v5984, 2
      %v5986 = vadd.f32 %v5984, %v5985
      %v5987 = vrot.slane %v5986, 1
      %v5988 = vadd.f32 %v5986, %v5987
      %v5989 = vsel %vm1563, %v5697, 0.0
      %v5990 = vrot.slane %v5989, 4
      %v5991 = vadd.f32 %v5989, %v5990
      %v5992 = vrot.slane %v5991, 2
      %v5993 = vadd.f32 %v5991, %v5992
      %v5994 = vrot.slane %v5993, 1
      %v5995 = vadd.f32 %v5993, %v5994
      %v5996 = vsel %vm1563, %v5702, 0.0
      %v5997 = vrot.slane %v5996, 4
      %v5998 = vadd.f32 %v5996, %v5997
      %v5999 = vrot.slane %v5998, 2
      %v6000 = vadd.f32 %v5998, %v5999
      %v6001 = vrot.slane %v6000, 1
      %v6002 = vadd.f32 %v6000, %v6001
      %v6003 = vsel %vm1563, %v5707, 0.0
      %v6004 = vrot.slane %v6003, 4
      %v6005 = vadd.f32 %v6003, %v6004
      %v6006 = vrot.slane %v6005, 2
      %v6007 = vadd.f32 %v6005, %v6006
      %v6008 = vrot.slane %v6007, 1
      %v6009 = vadd.f32 %v6007, %v6008
      %v6010 = vsel %vm1563, %v5712, 0.0
      %v6011 = vrot.slane %v6010, 4
      %v6012 = vadd.f32 %v6010, %v6011
      %v6013 = vrot.slane %v6012, 2
      %v6014 = vadd.f32 %v6012, %v6013
      %v6015 = vrot.slane %v6014, 1
      %v6016 = vadd.f32 %v6014, %v6015
      %v6017 = vsel %vm1563, %v5717, 0.0
      %v6018 = vrot.slane %v6017, 4
      %v6019 = vadd.f32 %v6017, %v6018
      %v6020 = vrot.slane %v6019, 2
      %v6021 = vadd.f32 %v6019, %v6020
      %v6022 = vrot.slane %v6021, 1
      %v6023 = vadd.f32 %v6021, %v6022
      %v6024 = vsel %vm1563, %v5722, 0.0
      %v6025 = vrot.slane %v6024, 4
      %v6026 = vadd.f32 %v6024, %v6025
      %v6027 = vrot.slane %v6026, 2
      %v6028 = vadd.f32 %v6026, %v6027
      %v6029 = vrot.slane %v6028, 1
      %v6030 = vadd.f32 %v6028, %v6029
      %v6031 = vsel %vm1563, %v5727, 0.0
      %v6032 = vrot.slane %v6031, 4
      %v6033 = vadd.f32 %v6031, %v6032
      %v6034 = vrot.slane %v6033, 2
      %v6035 = vadd.f32 %v6033, %v6034
      %v6036 = vrot.slane %v6035, 1
      %v6037 = vadd.f32 %v6035, %v6036
      %v6038 = vsel %vm1563, %v5732, 0.0
      %v6039 = vrot.slane %v6038, 4
      %v6040 = vadd.f32 %v6038, %v6039
      %v6041 = vrot.slane %v6040, 2
      %v6042 = vadd.f32 %v6040, %v6041
      %v6043 = vrot.slane %v6042, 1
      %v6044 = vadd.f32 %v6042, %v6043
      %v6045 = vsel %vm1563, %v5737, 0.0
      %v6046 = vrot.slane %v6045, 4
      %v6047 = vadd.f32 %v6045, %v6046
      %v6048 = vrot.slane %v6047, 2
      %v6049 = vadd.f32 %v6047, %v6048
      %v6050 = vrot.slane %v6049, 1
      %v6051 = vadd.f32 %v6049, %v6050
      %v6052 = vsel %vm1563, %v5742, 0.0
      %v6053 = vrot.slane %v6052, 4
      %v6054 = vadd.f32 %v6052, %v6053
      %v6055 = vrot.slane %v6054, 2
      %v6056 = vadd.f32 %v6054, %v6055
      %v6057 = vrot.slane %v6056, 1
      %v6058 = vadd.f32 %v6056, %v6057
      %v6059 = vsel %vm1563, %v5747, 0.0
      %v6060 = vrot.slane %v6059, 4
      %v6061 = vadd.f32 %v6059, %v6060
      %v6062 = vrot.slane %v6061, 2
      %v6063 = vadd.f32 %v6061, %v6062
      %v6064 = vrot.slane %v6063, 1
      %v6065 = vadd.f32 %v6063, %v6064
      %v6066 = vsel %vm1563, %v5752, 0.0
      %v6067 = vrot.slane %v6066, 4
      %v6068 = vadd.f32 %v6066, %v6067
      %v6069 = vrot.slane %v6068, 2
      %v6070 = vadd.f32 %v6068, %v6069
      %v6071 = vrot.slane %v6070, 1
      %v6072 = vadd.f32 %v6070, %v6071
      %v6073 = vsel %vm1563, %v5757, 0.0
      %v6074 = vrot.slane %v6073, 4
      %v6075 = vadd.f32 %v6073, %v6074
      %v6076 = vrot.slane %v6075, 2
      %v6077 = vadd.f32 %v6075, %v6076
      %v6078 = vrot.slane %v6077, 1
      %v6079 = vadd.f32 %v6077, %v6078
      %v6080 = vsel %vm1563, %v5762, 0.0
      %v6081 = vrot.slane %v6080, 4
      %v6082 = vadd.f32 %v6080, %v6081
      %v6083 = vrot.slane %v6082, 2
      %v6084 = vadd.f32 %v6082, %v6083
      %v6085 = vrot.slane %v6084, 1
      %v6086 = vadd.f32 %v6084, %v6085
      %v6087 = vsel %vm1563, %v5767, 0.0
      %v6088 = vrot.slane %v6087, 4
      %v6089 = vadd.f32 %v6087, %v6088
      %v6090 = vrot.slane %v6089, 2
      %v6091 = vadd.f32 %v6089, %v6090
      %v6092 = vrot.slane %v6091, 1
      %v6093 = vadd.f32 %v6091, %v6092
      %v6094 = vsel %vm1563, %v5772, 0.0
      %v6095 = vrot.slane %v6094, 4
      %v6096 = vadd.f32 %v6094, %v6095
      %v6097 = vrot.slane %v6096, 2
      %v6098 = vadd.f32 %v6096, %v6097
      %v6099 = vrot.slane %v6098, 1
      %v6100 = vadd.f32 %v6098, %v6099
      %v6101 = vsel %vm1563, %v5777, 0.0
      %v6102 = vrot.slane %v6101, 4
      %v6103 = vadd.f32 %v6101, %v6102
      %v6104 = vrot.slane %v6103, 2
      %v6105 = vadd.f32 %v6103, %v6104
      %v6106 = vrot.slane %v6105, 1
      %v6107 = vadd.f32 %v6105, %v6106
      %v6108 = vsel %vm1563, %v5782, 0.0
      %v6109 = vrot.slane %v6108, 4
      %v6110 = vadd.f32 %v6108, %v6109
      %v6111 = vrot.slane %v6110, 2
      %v6112 = vadd.f32 %v6110, %v6111
      %v6113 = vrot.slane %v6112, 1
      %v6114 = vadd.f32 %v6112, %v6113
      %v6115 = vsel %vm1563, %v5787, 0.0
      %v6116 = vrot.slane %v6115, 4
      %v6117 = vadd.f32 %v6115, %v6116
      %v6118 = vrot.slane %v6117, 2
      %v6119 = vadd.f32 %v6117, %v6118
      %v6120 = vrot.slane %v6119, 1
      %v6121 = vadd.f32 %v6119, %v6120
      %v6122 = vsel %vm1563, %v5792, 0.0
      %v6123 = vrot.slane %v6122, 4
      %v6124 = vadd.f32 %v6122, %v6123
      %v6125 = vrot.slane %v6124, 2
      %v6126 = vadd.f32 %v6124, %v6125
      %v6127 = vrot.slane %v6126, 1
      %v6128 = vadd.f32 %v6126, %v6127
      %v6129 = vsel %vm1563, %v5797, 0.0
      %v6130 = vrot.slane %v6129, 4
      %v6131 = vadd.f32 %v6129, %v6130
      %v6132 = vrot.slane %v6131, 2
      %v6133 = vadd.f32 %v6131, %v6132
      %v6134 = vrot.slane %v6133, 1
      %v6135 = vadd.f32 %v6133, %v6134
      %v6136 = vsel %vm1563, %v5802, 0.0
      %v6137 = vrot.slane %v6136, 4
      %v6138 = vadd.f32 %v6136, %v6137
      %v6139 = vrot.slane %v6138, 2
      %v6140 = vadd.f32 %v6138, %v6139
      %v6141 = vrot.slane %v6140, 1
      %v6142 = vadd.f32 %v6140, %v6141
      %v6143 = vsel %vm1563, %v5807, 0.0
      %v6144 = vrot.slane %v6143, 4
      %v6145 = vadd.f32 %v6143, %v6144
      %v6146 = vrot.slane %v6145, 2
      %v6147 = vadd.f32 %v6145, %v6146
      %v6148 = vrot.slane %v6147, 1
      %v6149 = vadd.f32 %v6147, %v6148
      %v6150 = vsel %vm1563, %v5812, 0.0
      %v6151 = vrot.slane %v6150, 4
      %v6152 = vadd.f32 %v6150, %v6151
      %v6153 = vrot.slane %v6152, 2
      %v6154 = vadd.f32 %v6152, %v6153
      %v6155 = vrot.slane %v6154, 1
      %v6156 = vadd.f32 %v6154, %v6155
      %v6157 = vsel %vm1563, %v5817, 0.0
      %v6158 = vrot.slane %v6157, 4
      %v6159 = vadd.f32 %v6157, %v6158
      %v6160 = vrot.slane %v6159, 2
      %v6161 = vadd.f32 %v6159, %v6160
      %v6162 = vrot.slane %v6161, 1
      %v6163 = vadd.f32 %v6161, %v6162
      %v6164 = vsel %vm1563, %v5822, 0.0
      %v6165 = vrot.slane %v6164, 4
      %v6166 = vadd.f32 %v6164, %v6165
      %v6167 = vrot.slane %v6166, 2
      %v6168 = vadd.f32 %v6166, %v6167
      %v6169 = vrot.slane %v6168, 1
      %v6170 = vadd.f32 %v6168, %v6169
      %v6171 = vsel %vm1563, %v5827, 0.0
      %v6172 = vrot.slane %v6171, 4
      %v6173 = vadd.f32 %v6171, %v6172
      %v6174 = vrot.slane %v6173, 2
      %v6175 = vadd.f32 %v6173, %v6174
      %v6176 = vrot.slane %v6175, 1
      %v6177 = vadd.f32 %v6175, %v6176
      %v6178 = vsel %vm1563, %v5832, 0.0
      %v6179 = vrot.slane %v6178, 4
      %v6180 = vadd.f32 %v6178, %v6179
      %v6181 = vrot.slane %v6180, 2
      %v6182 = vadd.f32 %v6180, %v6181
      %v6183 = vrot.slane %v6182, 1
      %v6184 = vadd.f32 %v6182, %v6183
      %v6185 = vsel %vm1563, %v5837, 0.0
      %v6186 = vrot.slane %v6185, 4
      %v6187 = vadd.f32 %v6185, %v6186
      %v6188 = vrot.slane %v6187, 2
      %v6189 = vadd.f32 %v6187, %v6188
      %v6190 = vrot.slane %v6189, 1
      %v6191 = vadd.f32 %v6189, %v6190
      %v6192 = vsel %vm1563, %v5842, 0.0
      %v6193 = vrot.slane %v6192, 4
      %v6194 = vadd.f32 %v6192, %v6193
      %v6195 = vrot.slane %v6194, 2
      %v6196 = vadd.f32 %v6194, %v6195
      %v6197 = vrot.slane %v6196, 1
      %v6198 = vadd.f32 %v6196, %v6197
      %v6199 = vsel %vm1563, %v5847, 0.0
      %v6200 = vrot.slane %v6199, 4
      %v6201 = vadd.f32 %v6199, %v6200
      %v6202 = vrot.slane %v6201, 2
      %v6203 = vadd.f32 %v6201, %v6202
      %v6204 = vrot.slane %v6203, 1
      %v6205 = vadd.f32 %v6203, %v6204
      %v6206 = vsel %vm1563, %v5852, 0.0
      %v6207 = vrot.slane %v6206, 4
      %v6208 = vadd.f32 %v6206, %v6207
      %v6209 = vrot.slane %v6208, 2
      %v6210 = vadd.f32 %v6208, %v6209
      %v6211 = vrot.slane %v6210, 1
      %v6212 = vadd.f32 %v6210, %v6211
      %v6213 = vsel %vm1563, %v5857, 0.0
      %v6214 = vrot.slane %v6213, 4
      %v6215 = vadd.f32 %v6213, %v6214
      %v6216 = vrot.slane %v6215, 2
      %v6217 = vadd.f32 %v6215, %v6216
      %v6218 = vrot.slane %v6217, 1
      %v6219 = vadd.f32 %v6217, %v6218
      %v6220 = vsel %vm1563, %v5862, 0.0
      %v6221 = vrot.slane %v6220, 4
      %v6222 = vadd.f32 %v6220, %v6221
      %v6223 = vrot.slane %v6222, 2
      %v6224 = vadd.f32 %v6222, %v6223
      %v6225 = vrot.slane %v6224, 1
      %v6226 = vadd.f32 %v6224, %v6225
      %v6227 = vsel %vm1563, %v5867, 0.0
      %v6228 = vrot.slane %v6227, 4
      %v6229 = vadd.f32 %v6227, %v6228
      %v6230 = vrot.slane %v6229, 2
      %v6231 = vadd.f32 %v6229, %v6230
      %v6232 = vrot.slane %v6231, 1
      %v6233 = vadd.f32 %v6231, %v6232
      %v6234 = vsel %vm1563, %v5872, 0.0
      %v6235 = vrot.slane %v6234, 4
      %v6236 = vadd.f32 %v6234, %v6235
      %v6237 = vrot.slane %v6236, 2
      %v6238 = vadd.f32 %v6236, %v6237
      %v6239 = vrot.slane %v6238, 1
      %v6240 = vadd.f32 %v6238, %v6239
      %v6241 = vsel %vm1563, %v5877, 0.0
      %v6242 = vrot.slane %v6241, 4
      %v6243 = vadd.f32 %v6241, %v6242
      %v6244 = vrot.slane %v6243, 2
      %v6245 = vadd.f32 %v6243, %v6244
      %v6246 = vrot.slane %v6245, 1
      %v6247 = vadd.f32 %v6245, %v6246
      %v6248 = vsel %vm1563, %v5882, 0.0
      %v6249 = vrot.slane %v6248, 4
      %v6250 = vadd.f32 %v6248, %v6249
      %v6251 = vrot.slane %v6250, 2
      %v6252 = vadd.f32 %v6250, %v6251
      %v6253 = vrot.slane %v6252, 1
      %v6254 = vadd.f32 %v6252, %v6253
      %v6255 = vsel %vm1563, %v5887, 0.0
      %v6256 = vrot.slane %v6255, 4
      %v6257 = vadd.f32 %v6255, %v6256
      %v6258 = vrot.slane %v6257, 2
      %v6259 = vadd.f32 %v6257, %v6258
      %v6260 = vrot.slane %v6259, 1
      %v6261 = vadd.f32 %v6259, %v6260
      %v6262 = vsel %vm1563, %v5892, 0.0
      %v6263 = vrot.slane %v6262, 4
      %v6264 = vadd.f32 %v6262, %v6263
      %v6265 = vrot.slane %v6264, 2
      %v6266 = vadd.f32 %v6264, %v6265
      %v6267 = vrot.slane %v6266, 1
      %v6268 = vadd.f32 %v6266, %v6267
      %v6269 = vsel %vm1563, %v5897, 0.0
      %v6270 = vrot.slane %v6269, 4
      %v6271 = vadd.f32 %v6269, %v6270
      %v6272 = vrot.slane %v6271, 2
      %v6273 = vadd.f32 %v6271, %v6272
      %v6274 = vrot.slane %v6273, 1
      %v6275 = vadd.f32 %v6273, %v6274
      %v6276 = vsel %vm1563, %v5902, 0.0
      %v6277 = vrot.slane %v6276, 4
      %v6278 = vadd.f32 %v6276, %v6277
      %v6279 = vrot.slane %v6278, 2
      %v6280 = vadd.f32 %v6278, %v6279
      %v6281 = vrot.slane %v6280, 1
      %v6282 = vadd.f32 %v6280, %v6281
      %v6283 = vsel %vm1563, %v5907, 0.0
      %v6284 = vrot.slane %v6283, 4
      %v6285 = vadd.f32 %v6283, %v6284
      %v6286 = vrot.slane %v6285, 2
      %v6287 = vadd.f32 %v6285, %v6286
      %v6288 = vrot.slane %v6287, 1
      %v6289 = vadd.f32 %v6287, %v6288
      %v6290 = vsel %vm1563, %v5912, 0.0
      %v6291 = vrot.slane %v6290, 4
      %v6292 = vadd.f32 %v6290, %v6291
      %v6293 = vrot.slane %v6292, 2
      %v6294 = vadd.f32 %v6292, %v6293
      %v6295 = vrot.slane %v6294, 1
      %v6296 = vadd.f32 %v6294, %v6295
      %v6297 = vsel %vm1563, %v5917, 0.0
      %v6298 = vrot.slane %v6297, 4
      %v6299 = vadd.f32 %v6297, %v6298
      %v6300 = vrot.slane %v6299, 2
      %v6301 = vadd.f32 %v6299, %v6300
      %v6302 = vrot.slane %v6301, 1
      %v6303 = vadd.f32 %v6301, %v6302
      %v6304 = vsel %vm1563, %v5922, 0.0
      %v6305 = vrot.slane %v6304, 4
      %v6306 = vadd.f32 %v6304, %v6305
      %v6307 = vrot.slane %v6306, 2
      %v6308 = vadd.f32 %v6306, %v6307
      %v6309 = vrot.slane %v6308, 1
      %v6310 = vadd.f32 %v6308, %v6309
      %v6311 = vsel %vm1563, %v5927, 0.0
      %v6312 = vrot.slane %v6311, 4
      %v6313 = vadd.f32 %v6311, %v6312
      %v6314 = vrot.slane %v6313, 2
      %v6315 = vadd.f32 %v6313, %v6314
      %v6316 = vrot.slane %v6315, 1
      %v6317 = vadd.f32 %v6315, %v6316
      %v6318 = vsel %vm1563, %v5932, 0.0
      %v6319 = vrot.slane %v6318, 4
      %v6320 = vadd.f32 %v6318, %v6319
      %v6321 = vrot.slane %v6320, 2
      %v6322 = vadd.f32 %v6320, %v6321
      %v6323 = vrot.slane %v6322, 1
      %v6324 = vadd.f32 %v6322, %v6323
      %v6325 = vsel %vm1563, %v5937, 0.0
      %v6326 = vrot.slane %v6325, 4
      %v6327 = vadd.f32 %v6325, %v6326
      %v6328 = vrot.slane %v6327, 2
      %v6329 = vadd.f32 %v6327, %v6328
      %v6330 = vrot.slane %v6329, 1
      %v6331 = vadd.f32 %v6329, %v6330
      %s6332 = scalar_lea.vmem %s8, %s801
      %v6333 = vld [vmem:[%s6332] sm:$0x1]
      %v6335 = vlaneseq
      %v6336 = vshrl.u32 %v6335, 7
      %v6337 = vsub.s32 0, %v6336
      %v6338 = vrot.slane %v6333, %v6337
      %v6340 = vadd.f32 %v5946, %v6338
      %v6341 = vadd.f32 %v5953, %v6338
      %v6342 = vadd.f32 %v5960, %v6338
      %v6343 = vadd.f32 %v5967, %v6338
      %v6344 = vadd.f32 %v5974, %v6338
      %v6345 = vadd.f32 %v5981, %v6338
      %v6346 = vadd.f32 %v5988, %v6338
      %v6347 = vadd.f32 %v5995, %v6338
      %v6348 = vadd.f32 %v6002, %v6338
      %v6349 = vadd.f32 %v6009, %v6338
      %v6350 = vadd.f32 %v6016, %v6338
      %v6351 = vadd.f32 %v6023, %v6338
      %v6352 = vadd.f32 %v6030, %v6338
      %v6353 = vadd.f32 %v6037, %v6338
      %v6354 = vadd.f32 %v6044, %v6338
      %v6355 = vadd.f32 %v6051, %v6338
      %v6356 = vadd.f32 %v6058, %v6338
      %v6357 = vadd.f32 %v6065, %v6338
      %v6358 = vadd.f32 %v6072, %v6338
      %v6359 = vadd.f32 %v6079, %v6338
      %v6360 = vadd.f32 %v6086, %v6338
      %v6361 = vadd.f32 %v6093, %v6338
      %v6362 = vadd.f32 %v6100, %v6338
      %v6363 = vadd.f32 %v6107, %v6338
      %v6364 = vadd.f32 %v6114, %v6338
      %v6365 = vadd.f32 %v6121, %v6338
      %v6366 = vadd.f32 %v6128, %v6338
      %v6367 = vadd.f32 %v6135, %v6338
      %v6368 = vadd.f32 %v6142, %v6338
      %v6369 = vadd.f32 %v6149, %v6338
      %v6370 = vadd.f32 %v6156, %v6338
      %v6371 = vadd.f32 %v6163, %v6338
      %v6372 = vadd.f32 %v6170, %v6338
      %v6373 = vadd.f32 %v6177, %v6338
      %v6374 = vadd.f32 %v6184, %v6338
      %v6375 = vadd.f32 %v6191, %v6338
      %v6376 = vadd.f32 %v6198, %v6338
      %v6377 = vadd.f32 %v6205, %v6338
      %v6378 = vadd.f32 %v6212, %v6338
      %v6379 = vadd.f32 %v6219, %v6338
      %v6380 = vadd.f32 %v6226, %v6338
      %v6381 = vadd.f32 %v6233, %v6338
      %v6382 = vadd.f32 %v6240, %v6338
      %v6383 = vadd.f32 %v6247, %v6338
      %v6384 = vadd.f32 %v6254, %v6338
      %v6385 = vadd.f32 %v6261, %v6338
      %v6386 = vadd.f32 %v6268, %v6338
      %v6387 = vadd.f32 %v6275, %v6338
      %v6388 = vadd.f32 %v6282, %v6338
      %v6389 = vadd.f32 %v6289, %v6338
      %v6390 = vadd.f32 %v6296, %v6338
      %v6391 = vadd.f32 %v6303, %v6338
      %v6392 = vadd.f32 %v6310, %v6338
      %v6393 = vadd.f32 %v6317, %v6338
      %v6394 = vadd.f32 %v6324, %v6338
      %v6395 = vadd.f32 %v6331, %v6338
      %v6452 = vrot.slane %v6341, 7
      %vm6453 = vcmask 1041409
      %v6454 = vsel %vm6453, %v6452, %v6340
      %v6455 = vrot.slane %v6342, 6
      %vm6456 = vcmask 1042434
      %v6457 = vsel %vm6456, %v6455, %v6454
      %v6458 = vrot.slane %v6343, 5
      %vm6459 = vcmask 1043459
      %v6460 = vsel %vm6459, %v6458, %v6457
      %v6461 = vrot.slane %v6344, 4
      %vm6462 = vcmask 1044484
      %v6463 = vsel %vm6462, %v6461, %v6460
      %v6464 = vrot.slane %v6345, 3
      %vm6465 = vcmask 1045509
      %v6466 = vsel %vm6465, %v6464, %v6463
      %v6467 = vrot.slane %v6346, 2
      %vm6468 = vcmask 1046534
      %v6469 = vsel %vm6468, %v6467, %v6466
      %v6470 = vrot.slane %v6348, 7
      %v6471 = vsel %vm6453, %v6470, %v6347
      %v6472 = vrot.slane %v6349, 6
      %v6473 = vsel %vm6456, %v6472, %v6471
      %v6474 = vrot.slane %v6350, 5
      %v6475 = vsel %vm6459, %v6474, %v6473
      %v6476 = vrot.slane %v6351, 4
      %v6477 = vsel %vm6462, %v6476, %v6475
      %v6478 = vrot.slane %v6352, 3
      %v6479 = vsel %vm6465, %v6478, %v6477
      %v6480 = vrot.slane %v6353, 2
      %v6481 = vsel %vm6468, %v6480, %v6479
      %v6482 = vrot.slane %v6355, 7
      %v6483 = vsel %vm6453, %v6482, %v6354
      %v6484 = vrot.slane %v6356, 6
      %v6485 = vsel %vm6456, %v6484, %v6483
      %v6486 = vrot.slane %v6357, 5
      %v6487 = vsel %vm6459, %v6486, %v6485
      %v6488 = vrot.slane %v6358, 4
      %v6489 = vsel %vm6462, %v6488, %v6487
      %v6490 = vrot.slane %v6359, 3
      %v6491 = vsel %vm6465, %v6490, %v6489
      %v6492 = vrot.slane %v6360, 2
      %v6493 = vsel %vm6468, %v6492, %v6491
      %v6494 = vrot.slane %v6362, 7
      %v6495 = vsel %vm6453, %v6494, %v6361
      %v6496 = vrot.slane %v6363, 6
      %v6497 = vsel %vm6456, %v6496, %v6495
      %v6498 = vrot.slane %v6364, 5
      %v6499 = vsel %vm6459, %v6498, %v6497
      %v6500 = vrot.slane %v6365, 4
      %v6501 = vsel %vm6462, %v6500, %v6499
      %v6502 = vrot.slane %v6366, 3
      %v6503 = vsel %vm6465, %v6502, %v6501
      %v6504 = vrot.slane %v6367, 2
      %v6505 = vsel %vm6468, %v6504, %v6503
      %v6506 = vrot.slane %v6369, 7
      %v6507 = vsel %vm6453, %v6506, %v6368
      %v6508 = vrot.slane %v6370, 6
      %v6509 = vsel %vm6456, %v6508, %v6507
      %v6510 = vrot.slane %v6371, 5
      %v6511 = vsel %vm6459, %v6510, %v6509
      %v6512 = vrot.slane %v6372, 4
      %v6513 = vsel %vm6462, %v6512, %v6511
      %v6514 = vrot.slane %v6373, 3
      %v6515 = vsel %vm6465, %v6514, %v6513
      %v6516 = vrot.slane %v6374, 2
      %v6517 = vsel %vm6468, %v6516, %v6515
      %v6518 = vrot.slane %v6376, 7
      %v6519 = vsel %vm6453, %v6518, %v6375
      %v6520 = vrot.slane %v6377, 6
      %v6521 = vsel %vm6456, %v6520, %v6519
      %v6522 = vrot.slane %v6378, 5
      %v6523 = vsel %vm6459, %v6522, %v6521
      %v6524 = vrot.slane %v6379, 4
      %v6525 = vsel %vm6462, %v6524, %v6523
      %v6526 = vrot.slane %v6380, 3
      %v6527 = vsel %vm6465, %v6526, %v6525
      %v6528 = vrot.slane %v6381, 2
      %v6529 = vsel %vm6468, %v6528, %v6527
      %v6530 = vrot.slane %v6383, 7
      %v6531 = vsel %vm6453, %v6530, %v6382
      %v6532 = vrot.slane %v6384, 6
      %v6533 = vsel %vm6456, %v6532, %v6531
      %v6534 = vrot.slane %v6385, 5
      %v6535 = vsel %vm6459, %v6534, %v6533
      %v6536 = vrot.slane %v6386, 4
      %v6537 = vsel %vm6462, %v6536, %v6535
      %v6538 = vrot.slane %v6387, 3
      %v6539 = vsel %vm6465, %v6538, %v6537
      %v6540 = vrot.slane %v6388, 2
      %v6541 = vsel %vm6468, %v6540, %v6539
      %v6542 = vrot.slane %v6390, 7
      %v6543 = vsel %vm6453, %v6542, %v6389
      %v6544 = vrot.slane %v6391, 6
      %v6545 = vsel %vm6456, %v6544, %v6543
      %v6546 = vrot.slane %v6392, 5
      %v6547 = vsel %vm6459, %v6546, %v6545
      %v6548 = vrot.slane %v6393, 4
      %v6549 = vsel %vm6462, %v6548, %v6547
      %v6550 = vrot.slane %v6394, 3
      %v6551 = vsel %vm6465, %v6550, %v6549
      %v6552 = vrot.slane %v6395, 2
      %v6553 = vsel %vm6468, %v6552, %v6551
      %v6562 = vadd.f32 %v806, %v6469
      %v6563 = vadd.f32 %v807, %v6481
      %v6564 = vadd.f32 %v808, %v6493
      %v6565 = vadd.f32 %v809, %v6505
      %v6566 = vadd.f32 %v810, %v6517
      %v6567 = vadd.f32 %v811, %v6529
      %v6568 = vadd.f32 %v812, %v6541
      %v6569 = vadd.f32 %v813, %v6553
      %s6570 = scalar_lea.vmem %s9, %s801
      %v6571 = vld [vmem:[%s6570] sm:$0x1]
      %s6572 = scalar_lea.vmem %s10, %s801
      %v6573 = vld [vmem:[%s6572] sm:$0x1]
      %vm6574 = vcmask 260096
      %v6575 = vsel %vm6574, %v6562, 0.0
      %6576 = vadd.xlane.f32.xlu0 %v6575
      %v6577 = vpop.xlane.xlu0 %6576
      %v6578 = vsel %vm6574, %v6563, 0.0
      %6579 = vadd.xlane.f32.xlu0 %v6578
      %v6580 = vpop.xlane.xlu0 %6579
      %v6581 = vsel %vm6574, %v6564, 0.0
      %6582 = vadd.xlane.f32.xlu0 %v6581
      %v6583 = vpop.xlane.xlu0 %6582
      %v6584 = vsel %vm6574, %v6565, 0.0
      %6585 = vadd.xlane.f32.xlu0 %v6584
      %v6586 = vpop.xlane.xlu0 %6585
      %v6587 = vsel %vm6574, %v6566, 0.0
      %6588 = vadd.xlane.f32.xlu0 %v6587
      %v6589 = vpop.xlane.xlu0 %6588
      %v6590 = vsel %vm6574, %v6567, 0.0
      %6591 = vadd.xlane.f32.xlu0 %v6590
      %v6592 = vpop.xlane.xlu0 %6591
      %v6593 = vsel %vm6574, %v6568, 0.0
      %6594 = vadd.xlane.f32.xlu0 %v6593
      %v6595 = vpop.xlane.xlu0 %6594
      %v6596 = vsel %vm6574, %v6569, 0.0
      %6597 = vadd.xlane.f32.xlu0 %v6596
      %v6598 = vpop.xlane.xlu0 %6597
      %v6599 = vrcp.pop 32.0
      %v6600 = vmul.f32 %v6577, %v6599
      %v6601 = vmul.f32 %v6580, %v6599
      %v6602 = vmul.f32 %v6583, %v6599
      %v6603 = vmul.f32 %v6586, %v6599
      %v6604 = vmul.f32 %v6589, %v6599
      %v6605 = vmul.f32 %v6592, %v6599
      %v6606 = vmul.f32 %v6595, %v6599
      %v6607 = vmul.f32 %v6598, %v6599
      %v6608 = vsub.f32 %v6562, %v6600
      %v6609 = vsub.f32 %v6563, %v6601
      %v6610 = vsub.f32 %v6564, %v6602
      %v6611 = vsub.f32 %v6565, %v6603
      %v6612 = vsub.f32 %v6566, %v6604
      %v6613 = vsub.f32 %v6567, %v6605
      %v6614 = vsub.f32 %v6568, %v6606
      %v6615 = vsub.f32 %v6569, %v6607
      %v6616 = vmul.f32 %v6608, %v6608
      %v6617 = vmul.f32 %v6609, %v6609
      %v6618 = vmul.f32 %v6610, %v6610
      %v6619 = vmul.f32 %v6611, %v6611
      %v6620 = vmul.f32 %v6612, %v6612
      %v6621 = vmul.f32 %v6613, %v6613
      %v6622 = vmul.f32 %v6614, %v6614
      %v6623 = vmul.f32 %v6615, %v6615
      %v6624 = vsel %vm6574, %v6616, 0.0
      %6625 = vadd.xlane.f32.xlu0 %v6624
      %v6626 = vpop.xlane.xlu0 %6625
      %v6627 = vsel %vm6574, %v6617, 0.0
      %6628 = vadd.xlane.f32.xlu0 %v6627
      %v6629 = vpop.xlane.xlu0 %6628
      %v6630 = vsel %vm6574, %v6618, 0.0
      %6631 = vadd.xlane.f32.xlu0 %v6630
      %v6632 = vpop.xlane.xlu0 %6631
      %v6633 = vsel %vm6574, %v6619, 0.0
      %6634 = vadd.xlane.f32.xlu0 %v6633
      %v6635 = vpop.xlane.xlu0 %6634
      %v6636 = vsel %vm6574, %v6620, 0.0
      %6637 = vadd.xlane.f32.xlu0 %v6636
      %v6638 = vpop.xlane.xlu0 %6637
      %v6639 = vsel %vm6574, %v6621, 0.0
      %6640 = vadd.xlane.f32.xlu0 %v6639
      %v6641 = vpop.xlane.xlu0 %6640
      %v6642 = vsel %vm6574, %v6622, 0.0
      %6643 = vadd.xlane.f32.xlu0 %v6642
      %v6644 = vpop.xlane.xlu0 %6643
      %v6645 = vsel %vm6574, %v6623, 0.0
      %6646 = vadd.xlane.f32.xlu0 %v6645
      %v6647 = vpop.xlane.xlu0 %6646
      %v6648 = vmul.f32 %v6626, %v6599
      %v6649 = vmul.f32 %v6629, %v6599
      %v6650 = vmul.f32 %v6632, %v6599
      %v6651 = vmul.f32 %v6635, %v6599
      %v6652 = vmul.f32 %v6638, %v6599
      %v6653 = vmul.f32 %v6641, %v6599
      %v6654 = vmul.f32 %v6644, %v6599
      %v6655 = vmul.f32 %v6647, %v6599
      %v6656 = vadd.f32 %v6648, 1e-05
      %v6657 = vadd.f32 %v6649, 1e-05
      %v6658 = vadd.f32 %v6650, 1e-05
      %v6659 = vadd.f32 %v6651, 1e-05
      %v6660 = vadd.f32 %v6652, 1e-05
      %v6661 = vadd.f32 %v6653, 1e-05
      %v6662 = vadd.f32 %v6654, 1e-05
      %v6663 = vadd.f32 %v6655, 1e-05
      %v6664 = vrsqrt.pop %v6656
      %v6665 = vrsqrt.pop %v6657
      %v6666 = vrsqrt.pop %v6658
      %v6667 = vrsqrt.pop %v6659
      %v6668 = vrsqrt.pop %v6660
      %v6669 = vrsqrt.pop %v6661
      %v6670 = vrsqrt.pop %v6662
      %v6671 = vrsqrt.pop %v6663
      %v6672 = vmul.f32 %v6608, %v6664
      %v6673 = vmul.f32 %v6609, %v6665
      %v6674 = vmul.f32 %v6610, %v6666
      %v6675 = vmul.f32 %v6611, %v6667
      %v6676 = vmul.f32 %v6612, %v6668
      %v6677 = vmul.f32 %v6613, %v6669
      %v6678 = vmul.f32 %v6614, %v6670
      %v6679 = vmul.f32 %v6615, %v6671
      %v6681 = vlaneseq
      %v6682 = vshrl.u32 %v6681, 7
      %v6683 = vsub.s32 0, %v6682
      %v6684 = vrot.slane %v6571, %v6683
      %v6686 = vmul.f32 %v6672, %v6684
      %v6687 = vmul.f32 %v6673, %v6684
      %v6688 = vmul.f32 %v6674, %v6684
      %v6689 = vmul.f32 %v6675, %v6684
      %v6690 = vmul.f32 %v6676, %v6684
      %v6691 = vmul.f32 %v6677, %v6684
      %v6692 = vmul.f32 %v6678, %v6684
      %v6693 = vmul.f32 %v6679, %v6684
      %v6695 = vlaneseq
      %v6696 = vshrl.u32 %v6695, 7
      %v6697 = vsub.s32 0, %v6696
      %v6698 = vrot.slane %v6573, %v6697
      %v6700 = vadd.f32 %v6686, %v6698
      %v6701 = vadd.f32 %v6687, %v6698
      %v6702 = vadd.f32 %v6688, %v6698
      %v6703 = vadd.f32 %v6689, %v6698
      %v6704 = vadd.f32 %v6690, %v6698
      %v6705 = vadd.f32 %v6691, %v6698
      %v6706 = vadd.f32 %v6692, %v6698
      %v6707 = vadd.f32 %v6693, %v6698
      %s6708 = scalar_lea.vmem %s11, %s801
      %v6709 = vld [vmem:[%s6708] sm:$0x1]
      %v6711 = vlaneseq
      %v6712 = vshrl.u32 %v6711, 7
      %v6713 = vsub.s32 0, %v6712
      %v6714 = vrot.slane %v6709, %v6713
      %v6716 = vmul.f32 %v6700, %v6714
      %v6717 = vmul.f32 %v6701, %v6714
      %v6718 = vmul.f32 %v6702, %v6714
      %v6719 = vmul.f32 %v6703, %v6714
      %v6720 = vmul.f32 %v6704, %v6714
      %v6721 = vmul.f32 %v6705, %v6714
      %v6722 = vmul.f32 %v6706, %v6714
      %v6723 = vmul.f32 %v6707, %v6714
      %v6724 = vsel %vm6574, %v6716, 0.0
      %6725 = vadd.xlane.f32.xlu0 %v6724
      %v6726 = vpop.xlane.xlu0 %6725
      %v6727 = vsel %vm6574, %v6717, 0.0
      %6728 = vadd.xlane.f32.xlu0 %v6727
      %v6729 = vpop.xlane.xlu0 %6728
      %v6730 = vsel %vm6574, %v6718, 0.0
      %6731 = vadd.xlane.f32.xlu0 %v6730
      %v6732 = vpop.xlane.xlu0 %6731
      %v6733 = vsel %vm6574, %v6719, 0.0
      %6734 = vadd.xlane.f32.xlu0 %v6733
      %v6735 = vpop.xlane.xlu0 %6734
      %v6736 = vsel %vm6574, %v6720, 0.0
      %6737 = vadd.xlane.f32.xlu0 %v6736
      %v6738 = vpop.xlane.xlu0 %6737
      %v6739 = vsel %vm6574, %v6721, 0.0
      %6740 = vadd.xlane.f32.xlu0 %v6739
      %v6741 = vpop.xlane.xlu0 %6740
      %v6742 = vsel %vm6574, %v6722, 0.0
      %6743 = vadd.xlane.f32.xlu0 %v6742
      %v6744 = vpop.xlane.xlu0 %6743
      %v6745 = vsel %vm6574, %v6723, 0.0
      %6746 = vadd.xlane.f32.xlu0 %v6745
      %v6747 = vpop.xlane.xlu0 %6746
      %v6748 = vxor.u32 %v6726, 2147483648
      %v6749 = vxor.u32 %v6729, 2147483648
      %v6750 = vxor.u32 %v6732, 2147483648
      %v6751 = vxor.u32 %v6735, 2147483648
      %v6752 = vxor.u32 %v6738, 2147483648
      %v6753 = vxor.u32 %v6741, 2147483648
      %v6754 = vxor.u32 %v6744, 2147483648
      %v6755 = vxor.u32 %v6747, 2147483648
      %v6756 = vmul.f32 %v6748, 1.442695
      %v6757 = vpow.pop %v6756
      %v6758 = vmul.f32 %v6749, 1.442695
      %v6759 = vpow.pop %v6758
      %v6760 = vmul.f32 %v6750, 1.442695
      %v6761 = vpow.pop %v6760
      %v6762 = vmul.f32 %v6751, 1.442695
      %v6763 = vpow.pop %v6762
      %v6764 = vmul.f32 %v6752, 1.442695
      %v6765 = vpow.pop %v6764
      %v6766 = vmul.f32 %v6753, 1.442695
      %v6767 = vpow.pop %v6766
      %v6768 = vmul.f32 %v6754, 1.442695
      %v6769 = vpow.pop %v6768
      %v6770 = vmul.f32 %v6755, 1.442695
      %v6771 = vpow.pop %v6770
      %v6772 = vadd.f32 %v6757, 1.0
      %v6773 = vadd.f32 %v6759, 1.0
      %v6774 = vadd.f32 %v6761, 1.0
      %v6775 = vadd.f32 %v6763, 1.0
      %v6776 = vadd.f32 %v6765, 1.0
      %v6777 = vadd.f32 %v6767, 1.0
      %v6778 = vadd.f32 %v6769, 1.0
      %v6779 = vadd.f32 %v6771, 1.0
      %v6780 = vrcp.pop %v6772
      %v6781 = vmul.f32 1.0, %v6780
      %v6782 = vrcp.pop %v6773
      %v6783 = vmul.f32 1.0, %v6782
      %v6784 = vrcp.pop %v6774
      %v6785 = vmul.f32 1.0, %v6784
      %v6786 = vrcp.pop %v6775
      %v6787 = vmul.f32 1.0, %v6786
      %v6788 = vrcp.pop %v6776
      %v6789 = vmul.f32 1.0, %v6788
      %v6790 = vrcp.pop %v6777
      %v6791 = vmul.f32 1.0, %v6790
      %v6792 = vrcp.pop %v6778
      %v6793 = vmul.f32 1.0, %v6792
      %v6794 = vrcp.pop %v6779
      %v6795 = vmul.f32 1.0, %v6794
      %s6796 = scalar_lea.vmem %s12, %s814
      %v6797 = vld [vmem:[%s6796] sm:$0xff]
      %v6798 = vld [vmem:[%s6796 + $0x8] sm:$0xff]
      %v6799 = vld [vmem:[%s6796 + $0x10] sm:$0xff]
      %v6800 = vld [vmem:[%s6796 + $0x18] sm:$0xff]
      %s6801 = scalar_lea.vmem %s13, %s801
      %v6802 = vld [vmem:[%s6801] sm:$0x1]
      %v6811 = vcombine.high %v6700, %v6700
      %v6813 = vunpack.c.l.s4 1966171168
      %v6814 = vunpack.c.0.s8 %v6813
      %v6815 = vlaneseq
      %v6816 = vshrl.u32 %v6815, 7
      %v6817 = vsub.s32 %v6814, %v6816
      %v6818 = vrot.slane %v6700, %v6817
      %v6820 = vunpack.c.l.s4 1966171168
      %v6821 = vunpack.c.0.s8 %v6820
      %v6822 = vlaneseq
      %v6823 = vshrl.u32 %v6822, 7
      %v6824 = vsub.s32 %v6821, %v6823
      %v6825 = vrot.slane %v6811, %v6824
      %v6826 = vcombine.high %v6818, %v6818
      %v6827 = vcombine.high %v6825, %v6825
      %v6829 = vunpack.c.l.s4 1966171168
      %v6830 = vunpack.c.0.s8 %v6829
      %v6831 = vlaneseq
      %v6832 = vshrl.u32 %v6831, 7
      %v6833 = vsub.s32 %v6830, %v6832
      %v6834 = vrot.slane %v6818, %v6833
      %v6836 = vunpack.c.l.s4 1966171168
      %v6837 = vunpack.c.0.s8 %v6836
      %v6838 = vlaneseq
      %v6839 = vshrl.u32 %v6838, 7
      %v6840 = vsub.s32 %v6837, %v6839
      %v6841 = vrot.slane %v6825, %v6840
      %v6843 = vunpack.c.l.s4 1966171168
      %v6844 = vunpack.c.0.s8 %v6843
      %v6845 = vlaneseq
      %v6846 = vshrl.u32 %v6845, 7
      %v6847 = vsub.s32 %v6844, %v6846
      %v6848 = vrot.slane %v6826, %v6847
      %v6850 = vunpack.c.l.s4 1966171168
      %v6851 = vunpack.c.0.s8 %v6850
      %v6852 = vlaneseq
      %v6853 = vshrl.u32 %v6852, 7
      %v6854 = vsub.s32 %v6851, %v6853
      %v6855 = vrot.slane %v6827, %v6854
      %v6856 = vcombine.high %v6834, %v6834
      %v6857 = vcombine.high %v6841, %v6841
      %v6858 = vcombine.high %v6848, %v6848
      %v6859 = vcombine.high %v6701, %v6701
      %v6861 = vunpack.c.l.s4 1966171168
      %v6862 = vunpack.c.0.s8 %v6861
      %v6863 = vlaneseq
      %v6864 = vshrl.u32 %v6863, 7
      %v6865 = vsub.s32 %v6862, %v6864
      %v6866 = vrot.slane %v6701, %v6865
      %v6868 = vunpack.c.l.s4 1966171168
      %v6869 = vunpack.c.0.s8 %v6868
      %v6870 = vlaneseq
      %v6871 = vshrl.u32 %v6870, 7
      %v6872 = vsub.s32 %v6869, %v6871
      %v6873 = vrot.slane %v6859, %v6872
      %v6874 = vcombine.high %v6866, %v6866
      %v6875 = vcombine.high %v6873, %v6873
      %v6877 = vunpack.c.l.s4 1966171168
      %v6878 = vunpack.c.0.s8 %v6877
      %v6879 = vlaneseq
      %v6880 = vshrl.u32 %v6879, 7
      %v6881 = vsub.s32 %v6878, %v6880
      %v6882 = vrot.slane %v6866, %v6881
      %v6884 = vunpack.c.l.s4 1966171168
      %v6885 = vunpack.c.0.s8 %v6884
      %v6886 = vlaneseq
      %v6887 = vshrl.u32 %v6886, 7
      %v6888 = vsub.s32 %v6885, %v6887
      %v6889 = vrot.slane %v6873, %v6888
      %v6891 = vunpack.c.l.s4 1966171168
      %v6892 = vunpack.c.0.s8 %v6891
      %v6893 = vlaneseq
      %v6894 = vshrl.u32 %v6893, 7
      %v6895 = vsub.s32 %v6892, %v6894
      %v6896 = vrot.slane %v6874, %v6895
      %v6898 = vunpack.c.l.s4 1966171168
      %v6899 = vunpack.c.0.s8 %v6898
      %v6900 = vlaneseq
      %v6901 = vshrl.u32 %v6900, 7
      %v6902 = vsub.s32 %v6899, %v6901
      %v6903 = vrot.slane %v6875, %v6902
      %v6904 = vcombine.high %v6882, %v6882
      %v6905 = vcombine.high %v6889, %v6889
      %v6906 = vcombine.high %v6896, %v6896
      %v6907 = vcombine.high %v6702, %v6702
      %v6909 = vunpack.c.l.s4 1966171168
      %v6910 = vunpack.c.0.s8 %v6909
      %v6911 = vlaneseq
      %v6912 = vshrl.u32 %v6911, 7
      %v6913 = vsub.s32 %v6910, %v6912
      %v6914 = vrot.slane %v6702, %v6913
      %v6916 = vunpack.c.l.s4 1966171168
      %v6917 = vunpack.c.0.s8 %v6916
      %v6918 = vlaneseq
      %v6919 = vshrl.u32 %v6918, 7
      %v6920 = vsub.s32 %v6917, %v6919
      %v6921 = vrot.slane %v6907, %v6920
      %v6922 = vcombine.high %v6914, %v6914
      %v6923 = vcombine.high %v6921, %v6921
      %v6925 = vunpack.c.l.s4 1966171168
      %v6926 = vunpack.c.0.s8 %v6925
      %v6927 = vlaneseq
      %v6928 = vshrl.u32 %v6927, 7
      %v6929 = vsub.s32 %v6926, %v6928
      %v6930 = vrot.slane %v6914, %v6929
      %v6932 = vunpack.c.l.s4 1966171168
      %v6933 = vunpack.c.0.s8 %v6932
      %v6934 = vlaneseq
      %v6935 = vshrl.u32 %v6934, 7
      %v6936 = vsub.s32 %v6933, %v6935
      %v6937 = vrot.slane %v6921, %v6936
      %v6939 = vunpack.c.l.s4 1966171168
      %v6940 = vunpack.c.0.s8 %v6939
      %v6941 = vlaneseq
      %v6942 = vshrl.u32 %v6941, 7
      %v6943 = vsub.s32 %v6940, %v6942
      %v6944 = vrot.slane %v6922, %v6943
      %v6946 = vunpack.c.l.s4 1966171168
      %v6947 = vunpack.c.0.s8 %v6946
      %v6948 = vlaneseq
      %v6949 = vshrl.u32 %v6948, 7
      %v6950 = vsub.s32 %v6947, %v6949
      %v6951 = vrot.slane %v6923, %v6950
      %v6952 = vcombine.high %v6930, %v6930
      %v6953 = vcombine.high %v6937, %v6937
      %v6954 = vcombine.high %v6944, %v6944
      %v6955 = vcombine.high %v6703, %v6703
      %v6957 = vunpack.c.l.s4 1966171168
      %v6958 = vunpack.c.0.s8 %v6957
      %v6959 = vlaneseq
      %v6960 = vshrl.u32 %v6959, 7
      %v6961 = vsub.s32 %v6958, %v6960
      %v6962 = vrot.slane %v6703, %v6961
      %v6964 = vunpack.c.l.s4 1966171168
      %v6965 = vunpack.c.0.s8 %v6964
      %v6966 = vlaneseq
      %v6967 = vshrl.u32 %v6966, 7
      %v6968 = vsub.s32 %v6965, %v6967
      %v6969 = vrot.slane %v6955, %v6968
      %v6970 = vcombine.high %v6962, %v6962
      %v6971 = vcombine.high %v6969, %v6969
      %v6973 = vunpack.c.l.s4 1966171168
      %v6974 = vunpack.c.0.s8 %v6973
      %v6975 = vlaneseq
      %v6976 = vshrl.u32 %v6975, 7
      %v6977 = vsub.s32 %v6974, %v6976
      %v6978 = vrot.slane %v6962, %v6977
      %v6980 = vunpack.c.l.s4 1966171168
      %v6981 = vunpack.c.0.s8 %v6980
      %v6982 = vlaneseq
      %v6983 = vshrl.u32 %v6982, 7
      %v6984 = vsub.s32 %v6981, %v6983
      %v6985 = vrot.slane %v6969, %v6984
      %v6987 = vunpack.c.l.s4 1966171168
      %v6988 = vunpack.c.0.s8 %v6987
      %v6989 = vlaneseq
      %v6990 = vshrl.u32 %v6989, 7
      %v6991 = vsub.s32 %v6988, %v6990
      %v6992 = vrot.slane %v6970, %v6991
      %v6994 = vunpack.c.l.s4 1966171168
      %v6995 = vunpack.c.0.s8 %v6994
      %v6996 = vlaneseq
      %v6997 = vshrl.u32 %v6996, 7
      %v6998 = vsub.s32 %v6995, %v6997
      %v6999 = vrot.slane %v6971, %v6998
      %v7000 = vcombine.high %v6978, %v6978
      %v7001 = vcombine.high %v6985, %v6985
      %v7002 = vcombine.high %v6992, %v6992
      %v7003 = vcombine.high %v6704, %v6704
      %v7005 = vunpack.c.l.s4 1966171168
      %v7006 = vunpack.c.0.s8 %v7005
      %v7007 = vlaneseq
      %v7008 = vshrl.u32 %v7007, 7
      %v7009 = vsub.s32 %v7006, %v7008
      %v7010 = vrot.slane %v6704, %v7009
      %v7012 = vunpack.c.l.s4 1966171168
      %v7013 = vunpack.c.0.s8 %v7012
      %v7014 = vlaneseq
      %v7015 = vshrl.u32 %v7014, 7
      %v7016 = vsub.s32 %v7013, %v7015
      %v7017 = vrot.slane %v7003, %v7016
      %v7018 = vcombine.high %v7010, %v7010
      %v7019 = vcombine.high %v7017, %v7017
      %v7021 = vunpack.c.l.s4 1966171168
      %v7022 = vunpack.c.0.s8 %v7021
      %v7023 = vlaneseq
      %v7024 = vshrl.u32 %v7023, 7
      %v7025 = vsub.s32 %v7022, %v7024
      %v7026 = vrot.slane %v7010, %v7025
      %v7028 = vunpack.c.l.s4 1966171168
      %v7029 = vunpack.c.0.s8 %v7028
      %v7030 = vlaneseq
      %v7031 = vshrl.u32 %v7030, 7
      %v7032 = vsub.s32 %v7029, %v7031
      %v7033 = vrot.slane %v7017, %v7032
      %v7035 = vunpack.c.l.s4 1966171168
      %v7036 = vunpack.c.0.s8 %v7035
      %v7037 = vlaneseq
      %v7038 = vshrl.u32 %v7037, 7
      %v7039 = vsub.s32 %v7036, %v7038
      %v7040 = vrot.slane %v7018, %v7039
      %v7042 = vunpack.c.l.s4 1966171168
      %v7043 = vunpack.c.0.s8 %v7042
      %v7044 = vlaneseq
      %v7045 = vshrl.u32 %v7044, 7
      %v7046 = vsub.s32 %v7043, %v7045
      %v7047 = vrot.slane %v7019, %v7046
      %v7048 = vcombine.high %v7026, %v7026
      %v7049 = vcombine.high %v7033, %v7033
      %v7050 = vcombine.high %v7040, %v7040
      %v7051 = vcombine.high %v6705, %v6705
      %v7053 = vunpack.c.l.s4 1966171168
      %v7054 = vunpack.c.0.s8 %v7053
      %v7055 = vlaneseq
      %v7056 = vshrl.u32 %v7055, 7
      %v7057 = vsub.s32 %v7054, %v7056
      %v7058 = vrot.slane %v6705, %v7057
      %v7060 = vunpack.c.l.s4 1966171168
      %v7061 = vunpack.c.0.s8 %v7060
      %v7062 = vlaneseq
      %v7063 = vshrl.u32 %v7062, 7
      %v7064 = vsub.s32 %v7061, %v7063
      %v7065 = vrot.slane %v7051, %v7064
      %v7066 = vcombine.high %v7058, %v7058
      %v7067 = vcombine.high %v7065, %v7065
      %v7069 = vunpack.c.l.s4 1966171168
      %v7070 = vunpack.c.0.s8 %v7069
      %v7071 = vlaneseq
      %v7072 = vshrl.u32 %v7071, 7
      %v7073 = vsub.s32 %v7070, %v7072
      %v7074 = vrot.slane %v7058, %v7073
      %v7076 = vunpack.c.l.s4 1966171168
      %v7077 = vunpack.c.0.s8 %v7076
      %v7078 = vlaneseq
      %v7079 = vshrl.u32 %v7078, 7
      %v7080 = vsub.s32 %v7077, %v7079
      %v7081 = vrot.slane %v7065, %v7080
      %v7083 = vunpack.c.l.s4 1966171168
      %v7084 = vunpack.c.0.s8 %v7083
      %v7085 = vlaneseq
      %v7086 = vshrl.u32 %v7085, 7
      %v7087 = vsub.s32 %v7084, %v7086
      %v7088 = vrot.slane %v7066, %v7087
      %v7090 = vunpack.c.l.s4 1966171168
      %v7091 = vunpack.c.0.s8 %v7090
      %v7092 = vlaneseq
      %v7093 = vshrl.u32 %v7092, 7
      %v7094 = vsub.s32 %v7091, %v7093
      %v7095 = vrot.slane %v7067, %v7094
      %v7096 = vcombine.high %v7074, %v7074
      %v7097 = vcombine.high %v7081, %v7081
      %v7098 = vcombine.high %v7088, %v7088
      %v7099 = vcombine.high %v6706, %v6706
      %v7101 = vunpack.c.l.s4 1966171168
      %v7102 = vunpack.c.0.s8 %v7101
      %v7103 = vlaneseq
      %v7104 = vshrl.u32 %v7103, 7
      %v7105 = vsub.s32 %v7102, %v7104
      %v7106 = vrot.slane %v6706, %v7105
      %v7108 = vunpack.c.l.s4 1966171168
      %v7109 = vunpack.c.0.s8 %v7108
      %v7110 = vlaneseq
      %v7111 = vshrl.u32 %v7110, 7
      %v7112 = vsub.s32 %v7109, %v7111
      %v7113 = vrot.slane %v7099, %v7112
      %v7114 = vcombine.high %v7106, %v7106
      %v7115 = vcombine.high %v7113, %v7113
      %v7117 = vunpack.c.l.s4 1966171168
      %v7118 = vunpack.c.0.s8 %v7117
      %v7119 = vlaneseq
      %v7120 = vshrl.u32 %v7119, 7
      %v7121 = vsub.s32 %v7118, %v7120
      %v7122 = vrot.slane %v7106, %v7121
      %v7124 = vunpack.c.l.s4 1966171168
      %v7125 = vunpack.c.0.s8 %v7124
      %v7126 = vlaneseq
      %v7127 = vshrl.u32 %v7126, 7
      %v7128 = vsub.s32 %v7125, %v7127
      %v7129 = vrot.slane %v7113, %v7128
      %v7131 = vunpack.c.l.s4 1966171168
      %v7132 = vunpack.c.0.s8 %v7131
      %v7133 = vlaneseq
      %v7134 = vshrl.u32 %v7133, 7
      %v7135 = vsub.s32 %v7132, %v7134
      %v7136 = vrot.slane %v7114, %v7135
      %v7138 = vunpack.c.l.s4 1966171168
      %v7139 = vunpack.c.0.s8 %v7138
      %v7140 = vlaneseq
      %v7141 = vshrl.u32 %v7140, 7
      %v7142 = vsub.s32 %v7139, %v7141
      %v7143 = vrot.slane %v7115, %v7142
      %v7144 = vcombine.high %v7122, %v7122
      %v7145 = vcombine.high %v7129, %v7129
      %v7146 = vcombine.high %v7136, %v7136
      %v7147 = vcombine.high %v6707, %v6707
      %v7149 = vunpack.c.l.s4 1966171168
      %v7150 = vunpack.c.0.s8 %v7149
      %v7151 = vlaneseq
      %v7152 = vshrl.u32 %v7151, 7
      %v7153 = vsub.s32 %v7150, %v7152
      %v7154 = vrot.slane %v6707, %v7153
      %v7156 = vunpack.c.l.s4 1966171168
      %v7157 = vunpack.c.0.s8 %v7156
      %v7158 = vlaneseq
      %v7159 = vshrl.u32 %v7158, 7
      %v7160 = vsub.s32 %v7157, %v7159
      %v7161 = vrot.slane %v7147, %v7160
      %v7162 = vcombine.high %v7154, %v7154
      %v7163 = vcombine.high %v7161, %v7161
      %v7165 = vunpack.c.l.s4 1966171168
      %v7166 = vunpack.c.0.s8 %v7165
      %v7167 = vlaneseq
      %v7168 = vshrl.u32 %v7167, 7
      %v7169 = vsub.s32 %v7166, %v7168
      %v7170 = vrot.slane %v7154, %v7169
      %v7172 = vunpack.c.l.s4 1966171168
      %v7173 = vunpack.c.0.s8 %v7172
      %v7174 = vlaneseq
      %v7175 = vshrl.u32 %v7174, 7
      %v7176 = vsub.s32 %v7173, %v7175
      %v7177 = vrot.slane %v7161, %v7176
      %v7179 = vunpack.c.l.s4 1966171168
      %v7180 = vunpack.c.0.s8 %v7179
      %v7181 = vlaneseq
      %v7182 = vshrl.u32 %v7181, 7
      %v7183 = vsub.s32 %v7180, %v7182
      %v7184 = vrot.slane %v7162, %v7183
      %v7186 = vunpack.c.l.s4 1966171168
      %v7187 = vunpack.c.0.s8 %v7186
      %v7188 = vlaneseq
      %v7189 = vshrl.u32 %v7188, 7
      %v7190 = vsub.s32 %v7187, %v7189
      %v7191 = vrot.slane %v7163, %v7190
      %v7192 = vcombine.high %v7170, %v7170
      %v7193 = vcombine.high %v7177, %v7177
      %v7194 = vcombine.high %v7184, %v7184
      %v7196 = vlaneseq
      %v7197 = vshrl.u32 %v7196, 7
      %v7198 = vsub.s32 0, %v7197
      %v7199 = vrot.slane %v6802, %v7198
      %v7201 = vcombine.low %v6834, %v6848
      %v7202 = vcombine.low %v6856, %v6858
      %v7203 = vcombine.low %v6841, %v6855
      %v7204 = vcombine.low %v6857, %v6882
      %v7206 = vunpack.c.l.s4 1966171168
      %v7207 = vunpack.c.0.s8 %v7206
      %v7208 = vlaneseq
      %v7209 = vshrl.u32 %v7208, 7
      %v7210 = vsub.s32 %v7207, %v7209
      %v7211 = vrot.slane %v7201, %v7210
      %v7213 = vunpack.c.l.s4 1966171168
      %v7214 = vunpack.c.0.s8 %v7213
      %v7215 = vlaneseq
      %v7216 = vshrl.u32 %v7215, 7
      %v7217 = vsub.s32 %v7214, %v7216
      %v7218 = vrot.slane %v7202, %v7217
      %v7220 = vunpack.c.l.s4 1966171168
      %v7221 = vunpack.c.0.s8 %v7220
      %v7222 = vlaneseq
      %v7223 = vshrl.u32 %v7222, 7
      %v7224 = vsub.s32 %v7221, %v7223
      %v7225 = vrot.slane %v7203, %v7224
      %v7227 = vunpack.c.l.s4 1966171168
      %v7228 = vunpack.c.0.s8 %v7227
      %v7229 = vlaneseq
      %v7230 = vshrl.u32 %v7229, 7
      %v7231 = vsub.s32 %v7228, %v7230
      %v7232 = vrot.slane %v7204, %v7231
      %v7233 = vcombine.low %v7211, %v7218
      %v7234 = vcombine.low %v7225, %v7232
      %v7236 = vunpack.c.l.s4 1966171168
      %v7237 = vunpack.c.0.s8 %v7236
      %v7238 = vlaneseq
      %v7239 = vshrl.u32 %v7238, 7
      %v7240 = vsub.s32 %v7237, %v7239
      %v7241 = vrot.slane %v7233, %v7240
      %v7243 = vunpack.c.l.s4 1966171168
      %v7244 = vunpack.c.0.s8 %v7243
      %v7245 = vlaneseq
      %v7246 = vshrl.u32 %v7245, 7
      %v7247 = vsub.s32 %v7244, %v7246
      %v7248 = vrot.slane %v7234, %v7247
      %v7249 = vcombine.low %v7241, %v7248
      %v7250 = vcombine.low %v6896, %v6904
      %v7251 = vcombine.low %v6906, %v6889
      %v7252 = vcombine.low %v6903, %v6905
      %v7253 = vcombine.low %v6930, %v6944
      %v7255 = vunpack.c.l.s4 1966171168
      %v7256 = vunpack.c.0.s8 %v7255
      %v7257 = vlaneseq
      %v7258 = vshrl.u32 %v7257, 7
      %v7259 = vsub.s32 %v7256, %v7258
      %v7260 = vrot.slane %v7250, %v7259
      %v7262 = vunpack.c.l.s4 1966171168
      %v7263 = vunpack.c.0.s8 %v7262
      %v7264 = vlaneseq
      %v7265 = vshrl.u32 %v7264, 7
      %v7266 = vsub.s32 %v7263, %v7265
      %v7267 = vrot.slane %v7251, %v7266
      %v7269 = vunpack.c.l.s4 1966171168
      %v7270 = vunpack.c.0.s8 %v7269
      %v7271 = vlaneseq
      %v7272 = vshrl.u32 %v7271, 7
      %v7273 = vsub.s32 %v7270, %v7272
      %v7274 = vrot.slane %v7252, %v7273
      %v7276 = vunpack.c.l.s4 1966171168
      %v7277 = vunpack.c.0.s8 %v7276
      %v7278 = vlaneseq
      %v7279 = vshrl.u32 %v7278, 7
      %v7280 = vsub.s32 %v7277, %v7279
      %v7281 = vrot.slane %v7253, %v7280
      %v7282 = vcombine.low %v7260, %v7267
      %v7283 = vcombine.low %v7274, %v7281
      %v7285 = vunpack.c.l.s4 1966171168
      %v7286 = vunpack.c.0.s8 %v7285
      %v7287 = vlaneseq
      %v7288 = vshrl.u32 %v7287, 7
      %v7289 = vsub.s32 %v7286, %v7288
      %v7290 = vrot.slane %v7282, %v7289
      %v7292 = vunpack.c.l.s4 1966171168
      %v7293 = vunpack.c.0.s8 %v7292
      %v7294 = vlaneseq
      %v7295 = vshrl.u32 %v7294, 7
      %v7296 = vsub.s32 %v7293, %v7295
      %v7297 = vrot.slane %v7283, %v7296
      %v7298 = vcombine.low %v7290, %v7297
      %v7299 = vcombine.low %v6952, %v6954
      %v7300 = vcombine.low %v6937, %v6951
      %v7301 = vcombine.low %v6953, %v6978
      %v7302 = vcombine.low %v6992, %v7000
      %v7304 = vunpack.c.l.s4 1966171168
      %v7305 = vunpack.c.0.s8 %v7304
      %v7306 = vlaneseq
      %v7307 = vshrl.u32 %v7306, 7
      %v7308 = vsub.s32 %v7305, %v7307
      %v7309 = vrot.slane %v7299, %v7308
      %v7311 = vunpack.c.l.s4 1966171168
      %v7312 = vunpack.c.0.s8 %v7311
      %v7313 = vlaneseq
      %v7314 = vshrl.u32 %v7313, 7
      %v7315 = vsub.s32 %v7312, %v7314
      %v7316 = vrot.slane %v7300, %v7315
      %v7318 = vunpack.c.l.s4 1966171168
      %v7319 = vunpack.c.0.s8 %v7318
      %v7320 = vlaneseq
      %v7321 = vshrl.u32 %v7320, 7
      %v7322 = vsub.s32 %v7319, %v7321
      %v7323 = vrot.slane %v7301, %v7322
      %v7325 = vunpack.c.l.s4 1966171168
      %v7326 = vunpack.c.0.s8 %v7325
      %v7327 = vlaneseq
      %v7328 = vshrl.u32 %v7327, 7
      %v7329 = vsub.s32 %v7326, %v7328
      %v7330 = vrot.slane %v7302, %v7329
      %v7331 = vcombine.low %v7309, %v7316
      %v7332 = vcombine.low %v7323, %v7330
      %v7334 = vunpack.c.l.s4 1966171168
      %v7335 = vunpack.c.0.s8 %v7334
      %v7336 = vlaneseq
      %v7337 = vshrl.u32 %v7336, 7
      %v7338 = vsub.s32 %v7335, %v7337
      %v7339 = vrot.slane %v7331, %v7338
      %v7341 = vunpack.c.l.s4 1966171168
      %v7342 = vunpack.c.0.s8 %v7341
      %v7343 = vlaneseq
      %v7344 = vshrl.u32 %v7343, 7
      %v7345 = vsub.s32 %v7342, %v7344
      %v7346 = vrot.slane %v7332, %v7345
      %v7347 = vcombine.low %v7339, %v7346
      %v7348 = vcombine.low %v7002, %v6985
      %v7349 = vcombine.low %v6999, %v7001
      %v7350 = vcombine.low %v7026, %v7040
      %v7351 = vcombine.low %v7048, %v7050
      %v7353 = vunpack.c.l.s4 1966171168
      %v7354 = vunpack.c.0.s8 %v7353
      %v7355 = vlaneseq
      %v7356 = vshrl.u32 %v7355, 7
      %v7357 = vsub.s32 %v7354, %v7356
      %v7358 = vrot.slane %v7348, %v7357
      %v7360 = vunpack.c.l.s4 1966171168
      %v7361 = vunpack.c.0.s8 %v7360
      %v7362 = vlaneseq
      %v7363 = vshrl.u32 %v7362, 7
      %v7364 = vsub.s32 %v7361, %v7363
      %v7365 = vrot.slane %v7349, %v7364
      %v7367 = vunpack.c.l.s4 1966171168
      %v7368 = vunpack.c.0.s8 %v7367
      %v7369 = vlaneseq
      %v7370 = vshrl.u32 %v7369, 7
      %v7371 = vsub.s32 %v7368, %v7370
      %v7372 = vrot.slane %v7350, %v7371
      %v7374 = vunpack.c.l.s4 1966171168
      %v7375 = vunpack.c.0.s8 %v7374
      %v7376 = vlaneseq
      %v7377 = vshrl.u32 %v7376, 7
      %v7378 = vsub.s32 %v7375, %v7377
      %v7379 = vrot.slane %v7351, %v7378
      %v7380 = vcombine.low %v7358, %v7365
      %v7381 = vcombine.low %v7372, %v7379
      %v7383 = vunpack.c.l.s4 1966171168
      %v7384 = vunpack.c.0.s8 %v7383
      %v7385 = vlaneseq
      %v7386 = vshrl.u32 %v7385, 7
      %v7387 = vsub.s32 %v7384, %v7386
      %v7388 = vrot.slane %v7380, %v7387
      %v7390 = vunpack.c.l.s4 1966171168
      %v7391 = vunpack.c.0.s8 %v7390
      %v7392 = vlaneseq
      %v7393 = vshrl.u32 %v7392, 7
      %v7394 = vsub.s32 %v7391, %v7393
      %v7395 = vrot.slane %v7381, %v7394
      %v7396 = vcombine.low %v7388, %v7395
      %v7397 = vcombine.low %v7033, %v7047
      %v7398 = vcombine.low %v7049, %v7074
      %v7399 = vcombine.low %v7088, %v7096
      %v7400 = vcombine.low %v7098, %v7081
      %v7402 = vunpack.c.l.s4 1966171168
      %v7403 = vunpack.c.0.s8 %v7402
      %v7404 = vlaneseq
      %v7405 = vshrl.u32 %v7404, 7
      %v7406 = vsub.s32 %v7403, %v7405
      %v7407 = vrot.slane %v7397, %v7406
      %v7409 = vunpack.c.l.s4 1966171168
      %v7410 = vunpack.c.0.s8 %v7409
      %v7411 = vlaneseq
      %v7412 = vshrl.u32 %v7411, 7
      %v7413 = vsub.s32 %v7410, %v7412
      %v7414 = vrot.slane %v7398, %v7413
      %v7416 = vunpack.c.l.s4 1966171168
      %v7417 = vunpack.c.0.s8 %v7416
      %v7418 = vlaneseq
      %v7419 = vshrl.u32 %v7418, 7
      %v7420 = vsub.s32 %v7417, %v7419
      %v7421 = vrot.slane %v7399, %v7420
      %v7423 = vunpack.c.l.s4 1966171168
      %v7424 = vunpack.c.0.s8 %v7423
      %v7425 = vlaneseq
      %v7426 = vshrl.u32 %v7425, 7
      %v7427 = vsub.s32 %v7424, %v7426
      %v7428 = vrot.slane %v7400, %v7427
      %v7429 = vcombine.low %v7407, %v7414
      %v7430 = vcombine.low %v7421, %v7428
      %v7432 = vunpack.c.l.s4 1966171168
      %v7433 = vunpack.c.0.s8 %v7432
      %v7434 = vlaneseq
      %v7435 = vshrl.u32 %v7434, 7
      %v7436 = vsub.s32 %v7433, %v7435
      %v7437 = vrot.slane %v7429, %v7436
      %v7439 = vunpack.c.l.s4 1966171168
      %v7440 = vunpack.c.0.s8 %v7439
      %v7441 = vlaneseq
      %v7442 = vshrl.u32 %v7441, 7
      %v7443 = vsub.s32 %v7440, %v7442
      %v7444 = vrot.slane %v7430, %v7443
      %v7445 = vcombine.low %v7437, %v7444
      %v7446 = vcombine.low %v7095, %v7097
      %v7447 = vcombine.low %v7122, %v7136
      %v7448 = vcombine.low %v7144, %v7146
      %v7449 = vcombine.low %v7129, %v7143
      %v7451 = vunpack.c.l.s4 1966171168
      %v7452 = vunpack.c.0.s8 %v7451
      %v7453 = vlaneseq
      %v7454 = vshrl.u32 %v7453, 7
      %v7455 = vsub.s32 %v7452, %v7454
      %v7456 = vrot.slane %v7446, %v7455
      %v7458 = vunpack.c.l.s4 1966171168
      %v7459 = vunpack.c.0.s8 %v7458
      %v7460 = vlaneseq
      %v7461 = vshrl.u32 %v7460, 7
      %v7462 = vsub.s32 %v7459, %v7461
      %v7463 = vrot.slane %v7447, %v7462
      %v7465 = vunpack.c.l.s4 1966171168
      %v7466 = vunpack.c.0.s8 %v7465
      %v7467 = vlaneseq
      %v7468 = vshrl.u32 %v7467, 7
      %v7469 = vsub.s32 %v7466, %v7468
      %v7470 = vrot.slane %v7448, %v7469
      %v7472 = vunpack.c.l.s4 1966171168
      %v7473 = vunpack.c.0.s8 %v7472
      %v7474 = vlaneseq
      %v7475 = vshrl.u32 %v7474, 7
      %v7476 = vsub.s32 %v7473, %v7475
      %v7477 = vrot.slane %v7449, %v7476
      %v7478 = vcombine.low %v7456, %v7463
      %v7479 = vcombine.low %v7470, %v7477
      %v7481 = vunpack.c.l.s4 1966171168
      %v7482 = vunpack.c.0.s8 %v7481
      %v7483 = vlaneseq
      %v7484 = vshrl.u32 %v7483, 7
      %v7485 = vsub.s32 %v7482, %v7484
      %v7486 = vrot.slane %v7478, %v7485
      %v7488 = vunpack.c.l.s4 1966171168
      %v7489 = vunpack.c.0.s8 %v7488
      %v7490 = vlaneseq
      %v7491 = vshrl.u32 %v7490, 7
      %v7492 = vsub.s32 %v7489, %v7491
      %v7493 = vrot.slane %v7479, %v7492
      %v7494 = vcombine.low %v7486, %v7493
      %v7495 = vcombine.low %v7145, %v7170
      %v7496 = vcombine.low %v7184, %v7192
      %v7497 = vcombine.low %v7194, %v7177
      %v7498 = vcombine.low %v7191, %v7193
      %v7500 = vunpack.c.l.s4 1966171168
      %v7501 = vunpack.c.0.s8 %v7500
      %v7502 = vlaneseq
      %v7503 = vshrl.u32 %v7502, 7
      %v7504 = vsub.s32 %v7501, %v7503
      %v7505 = vrot.slane %v7495, %v7504
      %v7507 = vunpack.c.l.s4 1966171168
      %v7508 = vunpack.c.0.s8 %v7507
      %v7509 = vlaneseq
      %v7510 = vshrl.u32 %v7509, 7
      %v7511 = vsub.s32 %v7508, %v7510
      %v7512 = vrot.slane %v7496, %v7511
      %v7514 = vunpack.c.l.s4 1966171168
      %v7515 = vunpack.c.0.s8 %v7514
      %v7516 = vlaneseq
      %v7517 = vshrl.u32 %v7516, 7
      %v7518 = vsub.s32 %v7515, %v7517
      %v7519 = vrot.slane %v7497, %v7518
      %v7521 = vunpack.c.l.s4 1966171168
      %v7522 = vunpack.c.0.s8 %v7521
      %v7523 = vlaneseq
      %v7524 = vshrl.u32 %v7523, 7
      %v7525 = vsub.s32 %v7522, %v7524
      %v7526 = vrot.slane %v7498, %v7525
      %v7527 = vcombine.low %v7505, %v7512
      %v7528 = vcombine.low %v7519, %v7526
      %v7530 = vunpack.c.l.s4 1966171168
      %v7531 = vunpack.c.0.s8 %v7530
      %v7532 = vlaneseq
      %v7533 = vshrl.u32 %v7532, 7
      %v7534 = vsub.s32 %v7531, %v7533
      %v7535 = vrot.slane %v7527, %v7534
      %v7537 = vunpack.c.l.s4 1966171168
      %v7538 = vunpack.c.0.s8 %v7537
      %v7539 = vlaneseq
      %v7540 = vshrl.u32 %v7539, 7
      %v7541 = vsub.s32 %v7538, %v7540
      %v7542 = vrot.slane %v7528, %v7541
      %v7543 = vcombine.low %v7535, %v7542
      %v7544 = vsel %vm1563, %v7249, 0
      %v7546 = vsel %vm1563, %v7298, 0
      %v7548 = vsel %vm1563, %v7347, 0
      %v7550 = vsel %vm1563, %v7396, 0
      %v7552 = vsel %vm1563, %v7445, 0
      %v7554 = vsel %vm1563, %v7494, 0
      %v7556 = vsel %vm1563, %v7543, 0
      %7558 = vmatprep.subr.mxu0 0.0
      %7559 = vmatpush1.msra.mxu0 %v6797
      %7560 = vmatprep.subr.mxu0 0.0
      %7561 = vmatpush1.msra.mxu0 %v6798
      %7562 = vmatprep.subr.mxu0 0.0
      %7563 = vmatpush1.msra.mxu0 %v6799
      %7564 = vmatprep.subr.mxu0 0.0
      %7565 = vmatpush1.msra.mxu0 %v6800
      %7566 = vmatprep.subr.mxu0 0.0
      %7567 = vmatpush1.msra.mxu0 0.0
      %7568 = vmatprep.subr.mxu0 0.0
      %7569 = vmatpush1.msra.mxu0 0.0
      %7570 = vmatprep.subr.mxu0 0.0
      %7571 = vmatpush1.msra.mxu0 0.0
      %7572 = vmatprep.subr.mxu0 0.0
      %7573 = vmatpush1.msra.mxu0 0.0
      %7574 = vmatprep.subr.mxu0 0.0
      %7575 = vmatpush1.msra.mxu0 0.0
      %7576 = vmatprep.subr.mxu0 0.0
      %7577 = vmatpush1.msra.mxu0 0.0
      %7578 = vmatprep.subr.mxu0 0.0
      %7579 = vmatpush1.msra.mxu0 0.0
      %7580 = vmatprep.subr.mxu0 0.0
      %7581 = vmatpush1.msra.mxu0 0.0
      %7582 = vmatprep.subr.mxu0 0.0
      %7583 = vmatpush1.msra.mxu0 0.0
      %7584 = vmatprep.subr.mxu0 0.0
      %7585 = vmatpush1.msra.mxu0 0.0
      %7586 = vmatprep.subr.mxu0 0.0
      %7587 = vmatpush1.msra.mxu0 0.0
      %7588 = vmatprep.subr.mxu0 0.0
      %7589 = vmatpush1.msra.mxu0 0.0
      %7590 = vmatprep.subr.mxu0 0.0
      %7591 = vmatpush1.msra.mxu0 0.0
      %7592 = vmatprep.subr.mxu0 0.0
      %7593 = vmatpush1.msra.mxu0 0.0
      %7594 = vmatprep.subr.mxu0 0.0
      %7595 = vmatpush1.msra.mxu0 0.0
      %7596 = vmatprep.subr.mxu0 0.0
      %7597 = vmatpush1.msra.mxu0 0.0
      %7598 = vmatprep.subr.mxu0 0.0
      %7599 = vmatpush1.msra.mxu0 0.0
      %7600 = vmatprep.subr.mxu0 0.0
      %7601 = vmatpush1.msra.mxu0 0.0
      %7602 = vmatprep.subr.mxu0 0.0
      %7603 = vmatpush1.msra.mxu0 0.0
      %7604 = vmatprep.subr.mxu0 0.0
      %7605 = vmatpush1.msra.mxu0 0.0
      %7606 = vmatprep.subr.mxu0 0.0
      %7607 = vmatpush1.msra.mxu0 0.0
      %7608 = vmatprep.subr.mxu0 0.0
      %7609 = vmatpush1.msra.mxu0 0.0
      %7610 = vmatprep.subr.mxu0 0.0
      %7611 = vmatpush1.msra.mxu0 0.0
      %7612 = vmatprep.subr.mxu0 0.0
      %7613 = vmatpush1.msra.mxu0 0.0
      %7614 = vmatprep.subr.mxu0 0.0
      %7615 = vmatpush1.msra.mxu0 0.0
      %7616 = vmatprep.subr.mxu0 0.0
      %7617 = vmatpush1.msra.mxu0 0.0
      %7618 = vmatprep.subr.mxu0 0.0
      %7619 = vmatpush1.msra.mxu0 0.0
      %7620 = vmatprep.subr.mxu0 0.0
      %7621 = vmatpush1.msra.mxu0 0.0
      %7622 = vmatprep.mubr.f32.mxu0 0.0
      %7623 = vmatmul.mubr.f32.gmra.mrb[0].mxu0 %v7544
      %v7624 = vpop.f32.mrb[0].mxu0
      %v7625 = vadd.f32 %v7199, %v7624
      %v7626 = vpop.f32.mrb[0].mxu0
      %7627 = vmatprep.mubr.f32.mxu0 0.0
      %7628 = vmatmul.mubr.f32.gmra.mrb[0].mxu0 %v7546
      %v7629 = vpop.f32.mrb[0].mxu0
      %v7630 = vadd.f32 %v7199, %v7629
      %v7631 = vpop.f32.mrb[0].mxu0
      %7632 = vmatprep.mubr.f32.mxu0 0.0
      %7633 = vmatmul.mubr.f32.gmra.mrb[0].mxu0 %v7548
      %v7634 = vpop.f32.mrb[0].mxu0
      %v7635 = vadd.f32 %v7199, %v7634
      %v7636 = vpop.f32.mrb[0].mxu0
      %7637 = vmatprep.mubr.f32.mxu0 0.0
      %7638 = vmatmul.mubr.f32.gmra.mrb[0].mxu0 %v7550
      %v7639 = vpop.f32.mrb[0].mxu0
      %v7640 = vadd.f32 %v7199, %v7639
      %v7641 = vpop.f32.mrb[0].mxu0
      %7642 = vmatprep.mubr.f32.mxu0 0.0
      %7643 = vmatmul.mubr.f32.gmra.mrb[0].mxu0 %v7552
      %v7644 = vpop.f32.mrb[0].mxu0
      %v7645 = vadd.f32 %v7199, %v7644
      %v7646 = vpop.f32.mrb[0].mxu0
      %7647 = vmatprep.mubr.f32.mxu0 0.0
      %7648 = vmatmul.mubr.f32.gmra.mrb[0].mxu0 %v7554
      %v7649 = vpop.f32.mrb[0].mxu0
      %v7650 = vadd.f32 %v7199, %v7649
      %v7651 = vpop.f32.mrb[0].mxu0
      %7652 = vmatprep.mubr.f32.mxu0 0.0
      %7653 = vmatmul.mubr.f32.gmra.mrb[0].mxu0 %v7556
      %v7654 = vpop.f32.mrb[0].mxu0
      %v7655 = vadd.f32 %v7199, %v7654
      %v7656 = vpop.f32.mrb[0].mxu0
      %7657 = vdwg.mxu0
      %v7665 = vcombine.high %v7625, %v7625
      %v7667 = vunpack.c.l.s4 1966171168
      %v7668 = vunpack.c.0.s8 %v7667
      %v7669 = vlaneseq
      %v7670 = vshrl.u32 %v7669, 7
      %v7671 = vsub.s32 %v7668, %v7670
      %v7672 = vrot.slane %v7625, %v7671
      %v7674 = vunpack.c.l.s4 1966171168
      %v7675 = vunpack.c.0.s8 %v7674
      %v7676 = vlaneseq
      %v7677 = vshrl.u32 %v7676, 7
      %v7678 = vsub.s32 %v7675, %v7677
      %v7679 = vrot.slane %v7665, %v7678
      %v7680 = vcombine.high %v7672, %v7672
      %v7681 = vcombine.high %v7679, %v7679
      %v7683 = vunpack.c.l.s4 1966171168
      %v7684 = vunpack.c.0.s8 %v7683
      %v7685 = vlaneseq
      %v7686 = vshrl.u32 %v7685, 7
      %v7687 = vsub.s32 %v7684, %v7686
      %v7688 = vrot.slane %v7672, %v7687
      %v7690 = vunpack.c.l.s4 1966171168
      %v7691 = vunpack.c.0.s8 %v7690
      %v7692 = vlaneseq
      %v7693 = vshrl.u32 %v7692, 7
      %v7694 = vsub.s32 %v7691, %v7693
      %v7695 = vrot.slane %v7679, %v7694
      %v7697 = vunpack.c.l.s4 1966171168
      %v7698 = vunpack.c.0.s8 %v7697
      %v7699 = vlaneseq
      %v7700 = vshrl.u32 %v7699, 7
      %v7701 = vsub.s32 %v7698, %v7700
      %v7702 = vrot.slane %v7680, %v7701
      %v7704 = vunpack.c.l.s4 1966171168
      %v7705 = vunpack.c.0.s8 %v7704
      %v7706 = vlaneseq
      %v7707 = vshrl.u32 %v7706, 7
      %v7708 = vsub.s32 %v7705, %v7707
      %v7709 = vrot.slane %v7681, %v7708
      %v7710 = vcombine.high %v7688, %v7688
      %v7711 = vcombine.high %v7695, %v7695
      %v7712 = vcombine.high %v7702, %v7702
      %v7713 = vcombine.high %v7709, %v7709
      %v7714 = vcombine.high %v7630, %v7630
      %v7716 = vunpack.c.l.s4 1966171168
      %v7717 = vunpack.c.0.s8 %v7716
      %v7718 = vlaneseq
      %v7719 = vshrl.u32 %v7718, 7
      %v7720 = vsub.s32 %v7717, %v7719
      %v7721 = vrot.slane %v7630, %v7720
      %v7723 = vunpack.c.l.s4 1966171168
      %v7724 = vunpack.c.0.s8 %v7723
      %v7725 = vlaneseq
      %v7726 = vshrl.u32 %v7725, 7
      %v7727 = vsub.s32 %v7724, %v7726
      %v7728 = vrot.slane %v7714, %v7727
      %v7729 = vcombine.high %v7721, %v7721
      %v7730 = vcombine.high %v7728, %v7728
      %v7732 = vunpack.c.l.s4 1966171168
      %v7733 = vunpack.c.0.s8 %v7732
      %v7734 = vlaneseq
      %v7735 = vshrl.u32 %v7734, 7
      %v7736 = vsub.s32 %v7733, %v7735
      %v7737 = vrot.slane %v7721, %v7736
      %v7739 = vunpack.c.l.s4 1966171168
      %v7740 = vunpack.c.0.s8 %v7739
      %v7741 = vlaneseq
      %v7742 = vshrl.u32 %v7741, 7
      %v7743 = vsub.s32 %v7740, %v7742
      %v7744 = vrot.slane %v7728, %v7743
      %v7746 = vunpack.c.l.s4 1966171168
      %v7747 = vunpack.c.0.s8 %v7746
      %v7748 = vlaneseq
      %v7749 = vshrl.u32 %v7748, 7
      %v7750 = vsub.s32 %v7747, %v7749
      %v7751 = vrot.slane %v7729, %v7750
      %v7753 = vunpack.c.l.s4 1966171168
      %v7754 = vunpack.c.0.s8 %v7753
      %v7755 = vlaneseq
      %v7756 = vshrl.u32 %v7755, 7
      %v7757 = vsub.s32 %v7754, %v7756
      %v7758 = vrot.slane %v7730, %v7757
      %v7759 = vcombine.high %v7737, %v7737
      %v7760 = vcombine.high %v7744, %v7744
      %v7761 = vcombine.high %v7751, %v7751
      %v7762 = vcombine.high %v7758, %v7758
      %v7763 = vcombine.high %v7635, %v7635
      %v7765 = vunpack.c.l.s4 1966171168
      %v7766 = vunpack.c.0.s8 %v7765
      %v7767 = vlaneseq
      %v7768 = vshrl.u32 %v7767, 7
      %v7769 = vsub.s32 %v7766, %v7768
      %v7770 = vrot.slane %v7635, %v7769
      %v7772 = vunpack.c.l.s4 1966171168
      %v7773 = vunpack.c.0.s8 %v7772
      %v7774 = vlaneseq
      %v7775 = vshrl.u32 %v7774, 7
      %v7776 = vsub.s32 %v7773, %v7775
      %v7777 = vrot.slane %v7763, %v7776
      %v7778 = vcombine.high %v7770, %v7770
      %v7779 = vcombine.high %v7777, %v7777
      %v7781 = vunpack.c.l.s4 1966171168
      %v7782 = vunpack.c.0.s8 %v7781
      %v7783 = vlaneseq
      %v7784 = vshrl.u32 %v7783, 7
      %v7785 = vsub.s32 %v7782, %v7784
      %v7786 = vrot.slane %v7770, %v7785
      %v7788 = vunpack.c.l.s4 1966171168
      %v7789 = vunpack.c.0.s8 %v7788
      %v7790 = vlaneseq
      %v7791 = vshrl.u32 %v7790, 7
      %v7792 = vsub.s32 %v7789, %v7791
      %v7793 = vrot.slane %v7777, %v7792
      %v7795 = vunpack.c.l.s4 1966171168
      %v7796 = vunpack.c.0.s8 %v7795
      %v7797 = vlaneseq
      %v7798 = vshrl.u32 %v7797, 7
      %v7799 = vsub.s32 %v7796, %v7798
      %v7800 = vrot.slane %v7778, %v7799
      %v7802 = vunpack.c.l.s4 1966171168
      %v7803 = vunpack.c.0.s8 %v7802
      %v7804 = vlaneseq
      %v7805 = vshrl.u32 %v7804, 7
      %v7806 = vsub.s32 %v7803, %v7805
      %v7807 = vrot.slane %v7779, %v7806
      %v7808 = vcombine.high %v7786, %v7786
      %v7809 = vcombine.high %v7793, %v7793
      %v7810 = vcombine.high %v7800, %v7800
      %v7811 = vcombine.high %v7807, %v7807
      %v7812 = vcombine.high %v7640, %v7640
      %v7814 = vunpack.c.l.s4 1966171168
      %v7815 = vunpack.c.0.s8 %v7814
      %v7816 = vlaneseq
      %v7817 = vshrl.u32 %v7816, 7
      %v7818 = vsub.s32 %v7815, %v7817
      %v7819 = vrot.slane %v7640, %v7818
      %v7821 = vunpack.c.l.s4 1966171168
      %v7822 = vunpack.c.0.s8 %v7821
      %v7823 = vlaneseq
      %v7824 = vshrl.u32 %v7823, 7
      %v7825 = vsub.s32 %v7822, %v7824
      %v7826 = vrot.slane %v7812, %v7825
      %v7827 = vcombine.high %v7819, %v7819
      %v7828 = vcombine.high %v7826, %v7826
      %v7830 = vunpack.c.l.s4 1966171168
      %v7831 = vunpack.c.0.s8 %v7830
      %v7832 = vlaneseq
      %v7833 = vshrl.u32 %v7832, 7
      %v7834 = vsub.s32 %v7831, %v7833
      %v7835 = vrot.slane %v7819, %v7834
      %v7837 = vunpack.c.l.s4 1966171168
      %v7838 = vunpack.c.0.s8 %v7837
      %v7839 = vlaneseq
      %v7840 = vshrl.u32 %v7839, 7
      %v7841 = vsub.s32 %v7838, %v7840
      %v7842 = vrot.slane %v7826, %v7841
      %v7844 = vunpack.c.l.s4 1966171168
      %v7845 = vunpack.c.0.s8 %v7844
      %v7846 = vlaneseq
      %v7847 = vshrl.u32 %v7846, 7
      %v7848 = vsub.s32 %v7845, %v7847
      %v7849 = vrot.slane %v7827, %v7848
      %v7851 = vunpack.c.l.s4 1966171168
      %v7852 = vunpack.c.0.s8 %v7851
      %v7853 = vlaneseq
      %v7854 = vshrl.u32 %v7853, 7
      %v7855 = vsub.s32 %v7852, %v7854
      %v7856 = vrot.slane %v7828, %v7855
      %v7857 = vcombine.high %v7835, %v7835
      %v7858 = vcombine.high %v7842, %v7842
      %v7859 = vcombine.high %v7849, %v7849
      %v7860 = vcombine.high %v7856, %v7856
      %v7861 = vcombine.high %v7645, %v7645
      %v7863 = vunpack.c.l.s4 1966171168
      %v7864 = vunpack.c.0.s8 %v7863
      %v7865 = vlaneseq
      %v7866 = vshrl.u32 %v7865, 7
      %v7867 = vsub.s32 %v7864, %v7866
      %v7868 = vrot.slane %v7645, %v7867
      %v7870 = vunpack.c.l.s4 1966171168
      %v7871 = vunpack.c.0.s8 %v7870
      %v7872 = vlaneseq
      %v7873 = vshrl.u32 %v7872, 7
      %v7874 = vsub.s32 %v7871, %v7873
      %v7875 = vrot.slane %v7861, %v7874
      %v7876 = vcombine.high %v7868, %v7868
      %v7877 = vcombine.high %v7875, %v7875
      %v7879 = vunpack.c.l.s4 1966171168
      %v7880 = vunpack.c.0.s8 %v7879
      %v7881 = vlaneseq
      %v7882 = vshrl.u32 %v7881, 7
      %v7883 = vsub.s32 %v7880, %v7882
      %v7884 = vrot.slane %v7868, %v7883
      %v7886 = vunpack.c.l.s4 1966171168
      %v7887 = vunpack.c.0.s8 %v7886
      %v7888 = vlaneseq
      %v7889 = vshrl.u32 %v7888, 7
      %v7890 = vsub.s32 %v7887, %v7889
      %v7891 = vrot.slane %v7875, %v7890
      %v7893 = vunpack.c.l.s4 1966171168
      %v7894 = vunpack.c.0.s8 %v7893
      %v7895 = vlaneseq
      %v7896 = vshrl.u32 %v7895, 7
      %v7897 = vsub.s32 %v7894, %v7896
      %v7898 = vrot.slane %v7876, %v7897
      %v7900 = vunpack.c.l.s4 1966171168
      %v7901 = vunpack.c.0.s8 %v7900
      %v7902 = vlaneseq
      %v7903 = vshrl.u32 %v7902, 7
      %v7904 = vsub.s32 %v7901, %v7903
      %v7905 = vrot.slane %v7877, %v7904
      %v7906 = vcombine.high %v7884, %v7884
      %v7907 = vcombine.high %v7891, %v7891
      %v7908 = vcombine.high %v7898, %v7898
      %v7909 = vcombine.high %v7905, %v7905
      %v7910 = vcombine.high %v7650, %v7650
      %v7912 = vunpack.c.l.s4 1966171168
      %v7913 = vunpack.c.0.s8 %v7912
      %v7914 = vlaneseq
      %v7915 = vshrl.u32 %v7914, 7
      %v7916 = vsub.s32 %v7913, %v7915
      %v7917 = vrot.slane %v7650, %v7916
      %v7919 = vunpack.c.l.s4 1966171168
      %v7920 = vunpack.c.0.s8 %v7919
      %v7921 = vlaneseq
      %v7922 = vshrl.u32 %v7921, 7
      %v7923 = vsub.s32 %v7920, %v7922
      %v7924 = vrot.slane %v7910, %v7923
      %v7925 = vcombine.high %v7917, %v7917
      %v7926 = vcombine.high %v7924, %v7924
      %v7928 = vunpack.c.l.s4 1966171168
      %v7929 = vunpack.c.0.s8 %v7928
      %v7930 = vlaneseq
      %v7931 = vshrl.u32 %v7930, 7
      %v7932 = vsub.s32 %v7929, %v7931
      %v7933 = vrot.slane %v7917, %v7932
      %v7935 = vunpack.c.l.s4 1966171168
      %v7936 = vunpack.c.0.s8 %v7935
      %v7937 = vlaneseq
      %v7938 = vshrl.u32 %v7937, 7
      %v7939 = vsub.s32 %v7936, %v7938
      %v7940 = vrot.slane %v7924, %v7939
      %v7942 = vunpack.c.l.s4 1966171168
      %v7943 = vunpack.c.0.s8 %v7942
      %v7944 = vlaneseq
      %v7945 = vshrl.u32 %v7944, 7
      %v7946 = vsub.s32 %v7943, %v7945
      %v7947 = vrot.slane %v7925, %v7946
      %v7949 = vunpack.c.l.s4 1966171168
      %v7950 = vunpack.c.0.s8 %v7949
      %v7951 = vlaneseq
      %v7952 = vshrl.u32 %v7951, 7
      %v7953 = vsub.s32 %v7950, %v7952
      %v7954 = vrot.slane %v7926, %v7953
      %v7955 = vcombine.high %v7933, %v7933
      %v7956 = vcombine.high %v7940, %v7940
      %v7957 = vcombine.high %v7947, %v7947
      %v7958 = vcombine.high %v7954, %v7954
      %v7959 = vcombine.high %v7655, %v7655
      %v7961 = vunpack.c.l.s4 1966171168
      %v7962 = vunpack.c.0.s8 %v7961
      %v7963 = vlaneseq
      %v7964 = vshrl.u32 %v7963, 7
      %v7965 = vsub.s32 %v7962, %v7964
      %v7966 = vrot.slane %v7655, %v7965
      %v7968 = vunpack.c.l.s4 1966171168
      %v7969 = vunpack.c.0.s8 %v7968
      %v7970 = vlaneseq
      %v7971 = vshrl.u32 %v7970, 7
      %v7972 = vsub.s32 %v7969, %v7971
      %v7973 = vrot.slane %v7959, %v7972
      %v7974 = vcombine.high %v7966, %v7966
      %v7975 = vcombine.high %v7973, %v7973
      %v7977 = vunpack.c.l.s4 1966171168
      %v7978 = vunpack.c.0.s8 %v7977
      %v7979 = vlaneseq
      %v7980 = vshrl.u32 %v7979, 7
      %v7981 = vsub.s32 %v7978, %v7980
      %v7982 = vrot.slane %v7966, %v7981
      %v7984 = vunpack.c.l.s4 1966171168
      %v7985 = vunpack.c.0.s8 %v7984
      %v7986 = vlaneseq
      %v7987 = vshrl.u32 %v7986, 7
      %v7988 = vsub.s32 %v7985, %v7987
      %v7989 = vrot.slane %v7973, %v7988
      %v7991 = vunpack.c.l.s4 1966171168
      %v7992 = vunpack.c.0.s8 %v7991
      %v7993 = vlaneseq
      %v7994 = vshrl.u32 %v7993, 7
      %v7995 = vsub.s32 %v7992, %v7994
      %v7996 = vrot.slane %v7974, %v7995
      %v7998 = vunpack.c.l.s4 1966171168
      %v7999 = vunpack.c.0.s8 %v7998
      %v8000 = vlaneseq
      %v8001 = vshrl.u32 %v8000, 7
      %v8002 = vsub.s32 %v7999, %v8001
      %v8003 = vrot.slane %v7975, %v8002
      %v8004 = vcombine.high %v7982, %v7982
      %v8005 = vcombine.high %v7989, %v7989
      %v8006 = vcombine.high %v7996, %v7996
      %v8007 = vcombine.high %v8003, %v8003
      %v8008 = vcombine.low %v7688, %v7702
      %v8009 = vcombine.low %v7710, %v7712
      %v8010 = vcombine.low %v7695, %v7709
      %v8012 = vunpack.c.l.s4 1966171168
      %v8013 = vunpack.c.0.s8 %v8012
      %v8014 = vlaneseq
      %v8015 = vshrl.u32 %v8014, 7
      %v8016 = vsub.s32 %v8013, %v8015
      %v8017 = vrot.slane %v8008, %v8016
      %v8019 = vunpack.c.l.s4 1966171168
      %v8020 = vunpack.c.0.s8 %v8019
      %v8021 = vlaneseq
      %v8022 = vshrl.u32 %v8021, 7
      %v8023 = vsub.s32 %v8020, %v8022
      %v8024 = vrot.slane %v8009, %v8023
      %v8026 = vunpack.c.l.s4 1966171168
      %v8027 = vunpack.c.0.s8 %v8026
      %v8028 = vlaneseq
      %v8029 = vshrl.u32 %v8028, 7
      %v8030 = vsub.s32 %v8027, %v8029
      %v8031 = vrot.slane %v8010, %v8030
      %v8033 = vunpack.c.l.s4 1966171168
      %v8034 = vunpack.c.0.s8 %v8033
      %v8035 = vlaneseq
      %v8036 = vshrl.u32 %v8035, 7
      %v8037 = vsub.s32 %v8034, %v8036
      %v8038 = vrot.slane %v7711, %v8037
      %v8039 = vcombine.low %v8017, %v8024
      %v8040 = vcombine.low %v8031, %v8038
      %v8042 = vunpack.c.l.s4 1966171168
      %v8043 = vunpack.c.0.s8 %v8042
      %v8044 = vlaneseq
      %v8045 = vshrl.u32 %v8044, 7
      %v8046 = vsub.s32 %v8043, %v8045
      %v8047 = vrot.slane %v8039, %v8046
      %v8049 = vunpack.c.l.s4 1966171168
      %v8050 = vunpack.c.0.s8 %v8049
      %v8051 = vlaneseq
      %v8052 = vshrl.u32 %v8051, 7
      %v8053 = vsub.s32 %v8050, %v8052
      %v8054 = vrot.slane %v8040, %v8053
      %v8055 = vcombine.low %v8047, %v8054
      %v8056 = vcombine.low %v7713, %v7737
      %v8057 = vcombine.low %v7751, %v7759
      %v8058 = vcombine.low %v7761, %v7744
      %v8060 = vunpack.c.l.s4 1966171168
      %v8061 = vunpack.c.0.s8 %v8060
      %v8062 = vlaneseq
      %v8063 = vshrl.u32 %v8062, 7
      %v8064 = vsub.s32 %v8061, %v8063
      %v8065 = vrot.slane %v8056, %v8064
      %v8067 = vunpack.c.l.s4 1966171168
      %v8068 = vunpack.c.0.s8 %v8067
      %v8069 = vlaneseq
      %v8070 = vshrl.u32 %v8069, 7
      %v8071 = vsub.s32 %v8068, %v8070
      %v8072 = vrot.slane %v8057, %v8071
      %v8074 = vunpack.c.l.s4 1966171168
      %v8075 = vunpack.c.0.s8 %v8074
      %v8076 = vlaneseq
      %v8077 = vshrl.u32 %v8076, 7
      %v8078 = vsub.s32 %v8075, %v8077
      %v8079 = vrot.slane %v8058, %v8078
      %v8081 = vunpack.c.l.s4 1966171168
      %v8082 = vunpack.c.0.s8 %v8081
      %v8083 = vlaneseq
      %v8084 = vshrl.u32 %v8083, 7
      %v8085 = vsub.s32 %v8082, %v8084
      %v8086 = vrot.slane %v7758, %v8085
      %v8087 = vcombine.low %v8065, %v8072
      %v8088 = vcombine.low %v8079, %v8086
      %v8090 = vunpack.c.l.s4 1966171168
      %v8091 = vunpack.c.0.s8 %v8090
      %v8092 = vlaneseq
      %v8093 = vshrl.u32 %v8092, 7
      %v8094 = vsub.s32 %v8091, %v8093
      %v8095 = vrot.slane %v8087, %v8094
      %v8097 = vunpack.c.l.s4 1966171168
      %v8098 = vunpack.c.0.s8 %v8097
      %v8099 = vlaneseq
      %v8100 = vshrl.u32 %v8099, 7
      %v8101 = vsub.s32 %v8098, %v8100
      %v8102 = vrot.slane %v8088, %v8101
      %v8103 = vcombine.low %v8095, %v8102
      %v8104 = vcombine.low %v7760, %v7762
      %v8105 = vcombine.low %v7786, %v7800
      %v8106 = vcombine.low %v7808, %v7810
      %v8108 = vunpack.c.l.s4 1966171168
      %v8109 = vunpack.c.0.s8 %v8108
      %v8110 = vlaneseq
      %v8111 = vshrl.u32 %v8110, 7
      %v8112 = vsub.s32 %v8109, %v8111
      %v8113 = vrot.slane %v8104, %v8112
      %v8115 = vunpack.c.l.s4 1966171168
      %v8116 = vunpack.c.0.s8 %v8115
      %v8117 = vlaneseq
      %v8118 = vshrl.u32 %v8117, 7
      %v8119 = vsub.s32 %v8116, %v8118
      %v8120 = vrot.slane %v8105, %v8119
      %v8122 = vunpack.c.l.s4 1966171168
      %v8123 = vunpack.c.0.s8 %v8122
      %v8124 = vlaneseq
      %v8125 = vshrl.u32 %v8124, 7
      %v8126 = vsub.s32 %v8123, %v8125
      %v8127 = vrot.slane %v8106, %v8126
      %v8129 = vunpack.c.l.s4 1966171168
      %v8130 = vunpack.c.0.s8 %v8129
      %v8131 = vlaneseq
      %v8132 = vshrl.u32 %v8131, 7
      %v8133 = vsub.s32 %v8130, %v8132
      %v8134 = vrot.slane %v7793, %v8133
      %v8135 = vcombine.low %v8113, %v8120
      %v8136 = vcombine.low %v8127, %v8134
      %v8138 = vunpack.c.l.s4 1966171168
      %v8139 = vunpack.c.0.s8 %v8138
      %v8140 = vlaneseq
      %v8141 = vshrl.u32 %v8140, 7
      %v8142 = vsub.s32 %v8139, %v8141
      %v8143 = vrot.slane %v8135, %v8142
      %v8145 = vunpack.c.l.s4 1966171168
      %v8146 = vunpack.c.0.s8 %v8145
      %v8147 = vlaneseq
      %v8148 = vshrl.u32 %v8147, 7
      %v8149 = vsub.s32 %v8146, %v8148
      %v8150 = vrot.slane %v8136, %v8149
      %v8151 = vcombine.low %v8143, %v8150
      %v8152 = vcombine.low %v7807, %v7809
      %v8153 = vcombine.low %v7811, %v7835
      %v8154 = vcombine.low %v7849, %v7857
      %v8156 = vunpack.c.l.s4 1966171168
      %v8157 = vunpack.c.0.s8 %v8156
      %v8158 = vlaneseq
      %v8159 = vshrl.u32 %v8158, 7
      %v8160 = vsub.s32 %v8157, %v8159
      %v8161 = vrot.slane %v8152, %v8160
      %v8163 = vunpack.c.l.s4 1966171168
      %v8164 = vunpack.c.0.s8 %v8163
      %v8165 = vlaneseq
      %v8166 = vshrl.u32 %v8165, 7
      %v8167 = vsub.s32 %v8164, %v8166
      %v8168 = vrot.slane %v8153, %v8167
      %v8170 = vunpack.c.l.s4 1966171168
      %v8171 = vunpack.c.0.s8 %v8170
      %v8172 = vlaneseq
      %v8173 = vshrl.u32 %v8172, 7
      %v8174 = vsub.s32 %v8171, %v8173
      %v8175 = vrot.slane %v8154, %v8174
      %v8177 = vunpack.c.l.s4 1966171168
      %v8178 = vunpack.c.0.s8 %v8177
      %v8179 = vlaneseq
      %v8180 = vshrl.u32 %v8179, 7
      %v8181 = vsub.s32 %v8178, %v8180
      %v8182 = vrot.slane %v7859, %v8181
      %v8183 = vcombine.low %v8161, %v8168
      %v8184 = vcombine.low %v8175, %v8182
      %v8186 = vunpack.c.l.s4 1966171168
      %v8187 = vunpack.c.0.s8 %v8186
      %v8188 = vlaneseq
      %v8189 = vshrl.u32 %v8188, 7
      %v8190 = vsub.s32 %v8187, %v8189
      %v8191 = vrot.slane %v8183, %v8190
      %v8193 = vunpack.c.l.s4 1966171168
      %v8194 = vunpack.c.0.s8 %v8193
      %v8195 = vlaneseq
      %v8196 = vshrl.u32 %v8195, 7
      %v8197 = vsub.s32 %v8194, %v8196
      %v8198 = vrot.slane %v8184, %v8197
      %v8199 = vcombine.low %v8191, %v8198
      %v8200 = vcombine.low %v7842, %v7856
      %v8201 = vcombine.low %v7858, %v7860
      %v8202 = vcombine.low %v7884, %v7898
      %v8204 = vunpack.c.l.s4 1966171168
      %v8205 = vunpack.c.0.s8 %v8204
      %v8206 = vlaneseq
      %v8207 = vshrl.u32 %v8206, 7
      %v8208 = vsub.s32 %v8205, %v8207
      %v8209 = vrot.slane %v8200, %v8208
      %v8211 = vunpack.c.l.s4 1966171168
      %v8212 = vunpack.c.0.s8 %v8211
      %v8213 = vlaneseq
      %v8214 = vshrl.u32 %v8213, 7
      %v8215 = vsub.s32 %v8212, %v8214
      %v8216 = vrot.slane %v8201, %v8215
      %v8218 = vunpack.c.l.s4 1966171168
      %v8219 = vunpack.c.0.s8 %v8218
      %v8220 = vlaneseq
      %v8221 = vshrl.u32 %v8220, 7
      %v8222 = vsub.s32 %v8219, %v8221
      %v8223 = vrot.slane %v8202, %v8222
      %v8225 = vunpack.c.l.s4 1966171168
      %v8226 = vunpack.c.0.s8 %v8225
      %v8227 = vlaneseq
      %v8228 = vshrl.u32 %v8227, 7
      %v8229 = vsub.s32 %v8226, %v8228
      %v8230 = vrot.slane %v7906, %v8229
      %v8231 = vcombine.low %v8209, %v8216
      %v8232 = vcombine.low %v8223, %v8230
      %v8234 = vunpack.c.l.s4 1966171168
      %v8235 = vunpack.c.0.s8 %v8234
      %v8236 = vlaneseq
      %v8237 = vshrl.u32 %v8236, 7
      %v8238 = vsub.s32 %v8235, %v8237
      %v8239 = vrot.slane %v8231, %v8238
      %v8241 = vunpack.c.l.s4 1966171168
      %v8242 = vunpack.c.0.s8 %v8241
      %v8243 = vlaneseq
      %v8244 = vshrl.u32 %v8243, 7
      %v8245 = vsub.s32 %v8242, %v8244
      %v8246 = vrot.slane %v8232, %v8245
      %v8247 = vcombine.low %v8239, %v8246
      %v8248 = vcombine.low %v7908, %v7891
      %v8249 = vcombine.low %v7905, %v7907
      %v8250 = vcombine.low %v7909, %v7933
      %v8252 = vunpack.c.l.s4 1966171168
      %v8253 = vunpack.c.0.s8 %v8252
      %v8254 = vlaneseq
      %v8255 = vshrl.u32 %v8254, 7
      %v8256 = vsub.s32 %v8253, %v8255
      %v8257 = vrot.slane %v8248, %v8256
      %v8259 = vunpack.c.l.s4 1966171168
      %v8260 = vunpack.c.0.s8 %v8259
      %v8261 = vlaneseq
      %v8262 = vshrl.u32 %v8261, 7
      %v8263 = vsub.s32 %v8260, %v8262
      %v8264 = vrot.slane %v8249, %v8263
      %v8266 = vunpack.c.l.s4 1966171168
      %v8267 = vunpack.c.0.s8 %v8266
      %v8268 = vlaneseq
      %v8269 = vshrl.u32 %v8268, 7
      %v8270 = vsub.s32 %v8267, %v8269
      %v8271 = vrot.slane %v8250, %v8270
      %v8273 = vunpack.c.l.s4 1966171168
      %v8274 = vunpack.c.0.s8 %v8273
      %v8275 = vlaneseq
      %v8276 = vshrl.u32 %v8275, 7
      %v8277 = vsub.s32 %v8274, %v8276
      %v8278 = vrot.slane %v7947, %v8277
      %v8279 = vcombine.low %v8257, %v8264
      %v8280 = vcombine.low %v8271, %v8278
      %v8282 = vunpack.c.l.s4 1966171168
      %v8283 = vunpack.c.0.s8 %v8282
      %v8284 = vlaneseq
      %v8285 = vshrl.u32 %v8284, 7
      %v8286 = vsub.s32 %v8283, %v8285
      %v8287 = vrot.slane %v8279, %v8286
      %v8289 = vunpack.c.l.s4 1966171168
      %v8290 = vunpack.c.0.s8 %v8289
      %v8291 = vlaneseq
      %v8292 = vshrl.u32 %v8291, 7
      %v8293 = vsub.s32 %v8290, %v8292
      %v8294 = vrot.slane %v8280, %v8293
      %v8295 = vcombine.low %v8287, %v8294
      %v8296 = vcombine.low %v7955, %v7957
      %v8297 = vcombine.low %v7940, %v7954
      %v8298 = vcombine.low %v7956, %v7958
      %v8300 = vunpack.c.l.s4 1966171168
      %v8301 = vunpack.c.0.s8 %v8300
      %v8302 = vlaneseq
      %v8303 = vshrl.u32 %v8302, 7
      %v8304 = vsub.s32 %v8301, %v8303
      %v8305 = vrot.slane %v8296, %v8304
      %v8307 = vunpack.c.l.s4 1966171168
      %v8308 = vunpack.c.0.s8 %v8307
      %v8309 = vlaneseq
      %v8310 = vshrl.u32 %v8309, 7
      %v8311 = vsub.s32 %v8308, %v8310
      %v8312 = vrot.slane %v8297, %v8311
      %v8314 = vunpack.c.l.s4 1966171168
      %v8315 = vunpack.c.0.s8 %v8314
      %v8316 = vlaneseq
      %v8317 = vshrl.u32 %v8316, 7
      %v8318 = vsub.s32 %v8315, %v8317
      %v8319 = vrot.slane %v8298, %v8318
      %v8321 = vunpack.c.l.s4 1966171168
      %v8322 = vunpack.c.0.s8 %v8321
      %v8323 = vlaneseq
      %v8324 = vshrl.u32 %v8323, 7
      %v8325 = vsub.s32 %v8322, %v8324
      %v8326 = vrot.slane %v7982, %v8325
      %v8327 = vcombine.low %v8305, %v8312
      %v8328 = vcombine.low %v8319, %v8326
      %v8330 = vunpack.c.l.s4 1966171168
      %v8331 = vunpack.c.0.s8 %v8330
      %v8332 = vlaneseq
      %v8333 = vshrl.u32 %v8332, 7
      %v8334 = vsub.s32 %v8331, %v8333
      %v8335 = vrot.slane %v8327, %v8334
      %v8337 = vunpack.c.l.s4 1966171168
      %v8338 = vunpack.c.0.s8 %v8337
      %v8339 = vlaneseq
      %v8340 = vshrl.u32 %v8339, 7
      %v8341 = vsub.s32 %v8338, %v8340
      %v8342 = vrot.slane %v8328, %v8341
      %v8343 = vcombine.low %v8335, %v8342
      %v8344 = vcombine.low %v7996, %v8004
      %v8345 = vcombine.low %v8006, %v7989
      %v8346 = vcombine.low %v8003, %v8005
      %v8348 = vunpack.c.l.s4 1966171168
      %v8349 = vunpack.c.0.s8 %v8348
      %v8350 = vlaneseq
      %v8351 = vshrl.u32 %v8350, 7
      %v8352 = vsub.s32 %v8349, %v8351
      %v8353 = vrot.slane %v8344, %v8352
      %v8355 = vunpack.c.l.s4 1966171168
      %v8356 = vunpack.c.0.s8 %v8355
      %v8357 = vlaneseq
      %v8358 = vshrl.u32 %v8357, 7
      %v8359 = vsub.s32 %v8356, %v8358
      %v8360 = vrot.slane %v8345, %v8359
      %v8362 = vunpack.c.l.s4 1966171168
      %v8363 = vunpack.c.0.s8 %v8362
      %v8364 = vlaneseq
      %v8365 = vshrl.u32 %v8364, 7
      %v8366 = vsub.s32 %v8363, %v8365
      %v8367 = vrot.slane %v8346, %v8366
      %v8369 = vunpack.c.l.s4 1966171168
      %v8370 = vunpack.c.0.s8 %v8369
      %v8371 = vlaneseq
      %v8372 = vshrl.u32 %v8371, 7
      %v8373 = vsub.s32 %v8370, %v8372
      %v8374 = vrot.slane %v8007, %v8373
      %v8375 = vcombine.low %v8353, %v8360
      %v8376 = vcombine.low %v8367, %v8374
      %v8378 = vunpack.c.l.s4 1966171168
      %v8379 = vunpack.c.0.s8 %v8378
      %v8380 = vlaneseq
      %v8381 = vshrl.u32 %v8380, 7
      %v8382 = vsub.s32 %v8379, %v8381
      %v8383 = vrot.slane %v8375, %v8382
      %v8385 = vunpack.c.l.s4 1966171168
      %v8386 = vunpack.c.0.s8 %v8385
      %v8387 = vlaneseq
      %v8388 = vshrl.u32 %v8387, 7
      %v8389 = vsub.s32 %v8386, %v8388
      %v8390 = vrot.slane %v8376, %v8389
      %v8391 = vcombine.low %v8383, %v8390
      %v8400 = vmul.f32 %v6781, %v8055
      %v8401 = vmul.f32 %v6783, %v8103
      %v8402 = vmul.f32 %v6785, %v8151
      %v8403 = vmul.f32 %v6787, %v8199
      %v8404 = vmul.f32 %v6789, %v8247
      %v8405 = vmul.f32 %v6791, %v8295
      %v8406 = vmul.f32 %v6793, %v8343
      %v8407 = vmul.f32 %v6795, %v8391
      %v8408 = vmax.f32 %v8400, 0.0
      %v8409 = vmax.f32 %v8401, 0.0
      %v8410 = vmax.f32 %v8402, 0.0
      %v8411 = vmax.f32 %v8403, 0.0
      %v8412 = vmax.f32 %v8404, 0.0
      %v8413 = vmax.f32 %v8405, 0.0
      %v8414 = vmax.f32 %v8406, 0.0
      %v8415 = vmax.f32 %v8407, 0.0
      %s8416 = smul.u32 %s801, 64
      %s8417 = scalar_lea.vmem %s14, %s8416
      %v8418 = vld [vmem:[%s8417] sm:$0xff]
      %v8419 = vld [vmem:[%s8417 + $0x8] sm:$0xff]
      %v8420 = vld [vmem:[%s8417 + $0x10] sm:$0xff]
      %v8421 = vld [vmem:[%s8417 + $0x18] sm:$0xff]
      %v8422 = vld [vmem:[%s8417 + $0x20] sm:$0xff]
      %v8423 = vld [vmem:[%s8417 + $0x28] sm:$0xff]
      %v8424 = vld [vmem:[%s8417 + $0x30] sm:$0xff]
      %v8425 = vld [vmem:[%s8417 + $0x38] sm:$0xff]
      %s8426 = scalar_lea.vmem %s15, %s801
      %v8427 = vld [vmem:[%s8426] sm:$0x1]
      %v8436 = vcombine.high %v8408, %v8408
      %v8438 = vunpack.c.l.s4 1966171168
      %v8439 = vunpack.c.0.s8 %v8438
      %v8440 = vlaneseq
      %v8441 = vshrl.u32 %v8440, 7
      %v8442 = vsub.s32 %v8439, %v8441
      %v8443 = vrot.slane %v8408, %v8442
      %v8445 = vunpack.c.l.s4 1966171168
      %v8446 = vunpack.c.0.s8 %v8445
      %v8447 = vlaneseq
      %v8448 = vshrl.u32 %v8447, 7
      %v8449 = vsub.s32 %v8446, %v8448
      %v8450 = vrot.slane %v8436, %v8449
      %v8451 = vcombine.high %v8443, %v8443
      %v8452 = vcombine.high %v8450, %v8450
      %v8454 = vunpack.c.l.s4 1966171168
      %v8455 = vunpack.c.0.s8 %v8454
      %v8456 = vlaneseq
      %v8457 = vshrl.u32 %v8456, 7
      %v8458 = vsub.s32 %v8455, %v8457
      %v8459 = vrot.slane %v8443, %v8458
      %v8461 = vunpack.c.l.s4 1966171168
      %v8462 = vunpack.c.0.s8 %v8461
      %v8463 = vlaneseq
      %v8464 = vshrl.u32 %v8463, 7
      %v8465 = vsub.s32 %v8462, %v8464
      %v8466 = vrot.slane %v8450, %v8465
      %v8468 = vunpack.c.l.s4 1966171168
      %v8469 = vunpack.c.0.s8 %v8468
      %v8470 = vlaneseq
      %v8471 = vshrl.u32 %v8470, 7
      %v8472 = vsub.s32 %v8469, %v8471
      %v8473 = vrot.slane %v8451, %v8472
      %v8475 = vunpack.c.l.s4 1966171168
      %v8476 = vunpack.c.0.s8 %v8475
      %v8477 = vlaneseq
      %v8478 = vshrl.u32 %v8477, 7
      %v8479 = vsub.s32 %v8476, %v8478
      %v8480 = vrot.slane %v8452, %v8479
      %v8481 = vcombine.high %v8459, %v8459
      %v8482 = vcombine.high %v8466, %v8466
      %v8483 = vcombine.high %v8473, %v8473
      %v8484 = vcombine.high %v8409, %v8409
      %v8486 = vunpack.c.l.s4 1966171168
      %v8487 = vunpack.c.0.s8 %v8486
      %v8488 = vlaneseq
      %v8489 = vshrl.u32 %v8488, 7
      %v8490 = vsub.s32 %v8487, %v8489
      %v8491 = vrot.slane %v8409, %v8490
      %v8493 = vunpack.c.l.s4 1966171168
      %v8494 = vunpack.c.0.s8 %v8493
      %v8495 = vlaneseq
      %v8496 = vshrl.u32 %v8495, 7
      %v8497 = vsub.s32 %v8494, %v8496
      %v8498 = vrot.slane %v8484, %v8497
      %v8499 = vcombine.high %v8491, %v8491
      %v8500 = vcombine.high %v8498, %v8498
      %v8502 = vunpack.c.l.s4 1966171168
      %v8503 = vunpack.c.0.s8 %v8502
      %v8504 = vlaneseq
      %v8505 = vshrl.u32 %v8504, 7
      %v8506 = vsub.s32 %v8503, %v8505
      %v8507 = vrot.slane %v8491, %v8506
      %v8509 = vunpack.c.l.s4 1966171168
      %v8510 = vunpack.c.0.s8 %v8509
      %v8511 = vlaneseq
      %v8512 = vshrl.u32 %v8511, 7
      %v8513 = vsub.s32 %v8510, %v8512
      %v8514 = vrot.slane %v8498, %v8513
      %v8516 = vunpack.c.l.s4 1966171168
      %v8517 = vunpack.c.0.s8 %v8516
      %v8518 = vlaneseq
      %v8519 = vshrl.u32 %v8518, 7
      %v8520 = vsub.s32 %v8517, %v8519
      %v8521 = vrot.slane %v8499, %v8520
      %v8523 = vunpack.c.l.s4 1966171168
      %v8524 = vunpack.c.0.s8 %v8523
      %v8525 = vlaneseq
      %v8526 = vshrl.u32 %v8525, 7
      %v8527 = vsub.s32 %v8524, %v8526
      %v8528 = vrot.slane %v8500, %v8527
      %v8529 = vcombine.high %v8507, %v8507
      %v8530 = vcombine.high %v8514, %v8514
      %v8531 = vcombine.high %v8521, %v8521
      %v8532 = vcombine.high %v8410, %v8410
      %v8534 = vunpack.c.l.s4 1966171168
      %v8535 = vunpack.c.0.s8 %v8534
      %v8536 = vlaneseq
      %v8537 = vshrl.u32 %v8536, 7
      %v8538 = vsub.s32 %v8535, %v8537
      %v8539 = vrot.slane %v8410, %v8538
      %v8541 = vunpack.c.l.s4 1966171168
      %v8542 = vunpack.c.0.s8 %v8541
      %v8543 = vlaneseq
      %v8544 = vshrl.u32 %v8543, 7
      %v8545 = vsub.s32 %v8542, %v8544
      %v8546 = vrot.slane %v8532, %v8545
      %v8547 = vcombine.high %v8539, %v8539
      %v8548 = vcombine.high %v8546, %v8546
      %v8550 = vunpack.c.l.s4 1966171168
      %v8551 = vunpack.c.0.s8 %v8550
      %v8552 = vlaneseq
      %v8553 = vshrl.u32 %v8552, 7
      %v8554 = vsub.s32 %v8551, %v8553
      %v8555 = vrot.slane %v8539, %v8554
      %v8557 = vunpack.c.l.s4 1966171168
      %v8558 = vunpack.c.0.s8 %v8557
      %v8559 = vlaneseq
      %v8560 = vshrl.u32 %v8559, 7
      %v8561 = vsub.s32 %v8558, %v8560
      %v8562 = vrot.slane %v8546, %v8561
      %v8564 = vunpack.c.l.s4 1966171168
      %v8565 = vunpack.c.0.s8 %v8564
      %v8566 = vlaneseq
      %v8567 = vshrl.u32 %v8566, 7
      %v8568 = vsub.s32 %v8565, %v8567
      %v8569 = vrot.slane %v8547, %v8568
      %v8571 = vunpack.c.l.s4 1966171168
      %v8572 = vunpack.c.0.s8 %v8571
      %v8573 = vlaneseq
      %v8574 = vshrl.u32 %v8573, 7
      %v8575 = vsub.s32 %v8572, %v8574
      %v8576 = vrot.slane %v8548, %v8575
      %v8577 = vcombine.high %v8555, %v8555
      %v8578 = vcombine.high %v8562, %v8562
      %v8579 = vcombine.high %v8569, %v8569
      %v8580 = vcombine.high %v8411, %v8411
      %v8582 = vunpack.c.l.s4 1966171168
      %v8583 = vunpack.c.0.s8 %v8582
      %v8584 = vlaneseq
      %v8585 = vshrl.u32 %v8584, 7
      %v8586 = vsub.s32 %v8583, %v8585
      %v8587 = vrot.slane %v8411, %v8586
      %v8589 = vunpack.c.l.s4 1966171168
      %v8590 = vunpack.c.0.s8 %v8589
      %v8591 = vlaneseq
      %v8592 = vshrl.u32 %v8591, 7
      %v8593 = vsub.s32 %v8590, %v8592
      %v8594 = vrot.slane %v8580, %v8593
      %v8595 = vcombine.high %v8587, %v8587
      %v8596 = vcombine.high %v8594, %v8594
      %v8598 = vunpack.c.l.s4 1966171168
      %v8599 = vunpack.c.0.s8 %v8598
      %v8600 = vlaneseq
      %v8601 = vshrl.u32 %v8600, 7
      %v8602 = vsub.s32 %v8599, %v8601
      %v8603 = vrot.slane %v8587, %v8602
      %v8605 = vunpack.c.l.s4 1966171168
      %v8606 = vunpack.c.0.s8 %v8605
      %v8607 = vlaneseq
      %v8608 = vshrl.u32 %v8607, 7
      %v8609 = vsub.s32 %v8606, %v8608
      %v8610 = vrot.slane %v8594, %v8609
      %v8612 = vunpack.c.l.s4 1966171168
      %v8613 = vunpack.c.0.s8 %v8612
      %v8614 = vlaneseq
      %v8615 = vshrl.u32 %v8614, 7
      %v8616 = vsub.s32 %v8613, %v8615
      %v8617 = vrot.slane %v8595, %v8616
      %v8619 = vunpack.c.l.s4 1966171168
      %v8620 = vunpack.c.0.s8 %v8619
      %v8621 = vlaneseq
      %v8622 = vshrl.u32 %v8621, 7
      %v8623 = vsub.s32 %v8620, %v8622
      %v8624 = vrot.slane %v8596, %v8623
      %v8625 = vcombine.high %v8603, %v8603
      %v8626 = vcombine.high %v8610, %v8610
      %v8627 = vcombine.high %v8617, %v8617
      %v8628 = vcombine.high %v8412, %v8412
      %v8630 = vunpack.c.l.s4 1966171168
      %v8631 = vunpack.c.0.s8 %v8630
      %v8632 = vlaneseq
      %v8633 = vshrl.u32 %v8632, 7
      %v8634 = vsub.s32 %v8631, %v8633
      %v8635 = vrot.slane %v8412, %v8634
      %v8637 = vunpack.c.l.s4 1966171168
      %v8638 = vunpack.c.0.s8 %v8637
      %v8639 = vlaneseq
      %v8640 = vshrl.u32 %v8639, 7
      %v8641 = vsub.s32 %v8638, %v8640
      %v8642 = vrot.slane %v8628, %v8641
      %v8643 = vcombine.high %v8635, %v8635
      %v8644 = vcombine.high %v8642, %v8642
      %v8646 = vunpack.c.l.s4 1966171168
      %v8647 = vunpack.c.0.s8 %v8646
      %v8648 = vlaneseq
      %v8649 = vshrl.u32 %v8648, 7
      %v8650 = vsub.s32 %v8647, %v8649
      %v8651 = vrot.slane %v8635, %v8650
      %v8653 = vunpack.c.l.s4 1966171168
      %v8654 = vunpack.c.0.s8 %v8653
      %v8655 = vlaneseq
      %v8656 = vshrl.u32 %v8655, 7
      %v8657 = vsub.s32 %v8654, %v8656
      %v8658 = vrot.slane %v8642, %v8657
      %v8660 = vunpack.c.l.s4 1966171168
      %v8661 = vunpack.c.0.s8 %v8660
      %v8662 = vlaneseq
      %v8663 = vshrl.u32 %v8662, 7
      %v8664 = vsub.s32 %v8661, %v8663
      %v8665 = vrot.slane %v8643, %v8664
      %v8667 = vunpack.c.l.s4 1966171168
      %v8668 = vunpack.c.0.s8 %v8667
      %v8669 = vlaneseq
      %v8670 = vshrl.u32 %v8669, 7
      %v8671 = vsub.s32 %v8668, %v8670
      %v8672 = vrot.slane %v8644, %v8671
      %v8673 = vcombine.high %v8651, %v8651
      %v8674 = vcombine.high %v8658, %v8658
      %v8675 = vcombine.high %v8665, %v8665
      %v8676 = vcombine.high %v8413, %v8413
      %v8678 = vunpack.c.l.s4 1966171168
      %v8679 = vunpack.c.0.s8 %v8678
      %v8680 = vlaneseq
      %v8681 = vshrl.u32 %v8680, 7
      %v8682 = vsub.s32 %v8679, %v8681
      %v8683 = vrot.slane %v8413, %v8682
      %v8685 = vunpack.c.l.s4 1966171168
      %v8686 = vunpack.c.0.s8 %v8685
      %v8687 = vlaneseq
      %v8688 = vshrl.u32 %v8687, 7
      %v8689 = vsub.s32 %v8686, %v8688
      %v8690 = vrot.slane %v8676, %v8689
      %v8691 = vcombine.high %v8683, %v8683
      %v8692 = vcombine.high %v8690, %v8690
      %v8694 = vunpack.c.l.s4 1966171168
      %v8695 = vunpack.c.0.s8 %v8694
      %v8696 = vlaneseq
      %v8697 = vshrl.u32 %v8696, 7
      %v8698 = vsub.s32 %v8695, %v8697
      %v8699 = vrot.slane %v8683, %v8698
      %v8701 = vunpack.c.l.s4 1966171168
      %v8702 = vunpack.c.0.s8 %v8701
      %v8703 = vlaneseq
      %v8704 = vshrl.u32 %v8703, 7
      %v8705 = vsub.s32 %v8702, %v8704
      %v8706 = vrot.slane %v8690, %v8705
      %v8708 = vunpack.c.l.s4 1966171168
      %v8709 = vunpack.c.0.s8 %v8708
      %v8710 = vlaneseq
      %v8711 = vshrl.u32 %v8710, 7
      %v8712 = vsub.s32 %v8709, %v8711
      %v8713 = vrot.slane %v8691, %v8712
      %v8715 = vunpack.c.l.s4 1966171168
      %v8716 = vunpack.c.0.s8 %v8715
      %v8717 = vlaneseq
      %v8718 = vshrl.u32 %v8717, 7
      %v8719 = vsub.s32 %v8716, %v8718
      %v8720 = vrot.slane %v8692, %v8719
      %v8721 = vcombine.high %v8699, %v8699
      %v8722 = vcombine.high %v8706, %v8706
      %v8723 = vcombine.high %v8713, %v8713
      %v8724 = vcombine.high %v8414, %v8414
      %v8726 = vunpack.c.l.s4 1966171168
      %v8727 = vunpack.c.0.s8 %v8726
      %v8728 = vlaneseq
      %v8729 = vshrl.u32 %v8728, 7
      %v8730 = vsub.s32 %v8727, %v8729
      %v8731 = vrot.slane %v8414, %v8730
      %v8733 = vunpack.c.l.s4 1966171168
      %v8734 = vunpack.c.0.s8 %v8733
      %v8735 = vlaneseq
      %v8736 = vshrl.u32 %v8735, 7
      %v8737 = vsub.s32 %v8734, %v8736
      %v8738 = vrot.slane %v8724, %v8737
      %v8739 = vcombine.high %v8731, %v8731
      %v8740 = vcombine.high %v8738, %v8738
      %v8742 = vunpack.c.l.s4 1966171168
      %v8743 = vunpack.c.0.s8 %v8742
      %v8744 = vlaneseq
      %v8745 = vshrl.u32 %v8744, 7
      %v8746 = vsub.s32 %v8743, %v8745
      %v8747 = vrot.slane %v8731, %v8746
      %v8749 = vunpack.c.l.s4 1966171168
      %v8750 = vunpack.c.0.s8 %v8749
      %v8751 = vlaneseq
      %v8752 = vshrl.u32 %v8751, 7
      %v8753 = vsub.s32 %v8750, %v8752
      %v8754 = vrot.slane %v8738, %v8753
      %v8756 = vunpack.c.l.s4 1966171168
      %v8757 = vunpack.c.0.s8 %v8756
      %v8758 = vlaneseq
      %v8759 = vshrl.u32 %v8758, 7
      %v8760 = vsub.s32 %v8757, %v8759
      %v8761 = vrot.slane %v8739, %v8760
      %v8763 = vunpack.c.l.s4 1966171168
      %v8764 = vunpack.c.0.s8 %v8763
      %v8765 = vlaneseq
      %v8766 = vshrl.u32 %v8765, 7
      %v8767 = vsub.s32 %v8764, %v8766
      %v8768 = vrot.slane %v8740, %v8767
      %v8769 = vcombine.high %v8747, %v8747
      %v8770 = vcombine.high %v8754, %v8754
      %v8771 = vcombine.high %v8761, %v8761
      %v8772 = vcombine.high %v8415, %v8415
      %v8774 = vunpack.c.l.s4 1966171168
      %v8775 = vunpack.c.0.s8 %v8774
      %v8776 = vlaneseq
      %v8777 = vshrl.u32 %v8776, 7
      %v8778 = vsub.s32 %v8775, %v8777
      %v8779 = vrot.slane %v8415, %v8778
      %v8781 = vunpack.c.l.s4 1966171168
      %v8782 = vunpack.c.0.s8 %v8781
      %v8783 = vlaneseq
      %v8784 = vshrl.u32 %v8783, 7
      %v8785 = vsub.s32 %v8782, %v8784
      %v8786 = vrot.slane %v8772, %v8785
      %v8787 = vcombine.high %v8779, %v8779
      %v8788 = vcombine.high %v8786, %v8786
      %v8790 = vunpack.c.l.s4 1966171168
      %v8791 = vunpack.c.0.s8 %v8790
      %v8792 = vlaneseq
      %v8793 = vshrl.u32 %v8792, 7
      %v8794 = vsub.s32 %v8791, %v8793
      %v8795 = vrot.slane %v8779, %v8794
      %v8797 = vunpack.c.l.s4 1966171168
      %v8798 = vunpack.c.0.s8 %v8797
      %v8799 = vlaneseq
      %v8800 = vshrl.u32 %v8799, 7
      %v8801 = vsub.s32 %v8798, %v8800
      %v8802 = vrot.slane %v8786, %v8801
      %v8804 = vunpack.c.l.s4 1966171168
      %v8805 = vunpack.c.0.s8 %v8804
      %v8806 = vlaneseq
      %v8807 = vshrl.u32 %v8806, 7
      %v8808 = vsub.s32 %v8805, %v8807
      %v8809 = vrot.slane %v8787, %v8808
      %v8811 = vunpack.c.l.s4 1966171168
      %v8812 = vunpack.c.0.s8 %v8811
      %v8813 = vlaneseq
      %v8814 = vshrl.u32 %v8813, 7
      %v8815 = vsub.s32 %v8812, %v8814
      %v8816 = vrot.slane %v8788, %v8815
      %v8817 = vcombine.high %v8795, %v8795
      %v8818 = vcombine.high %v8802, %v8802
      %v8819 = vcombine.high %v8809, %v8809
      %v8821 = vlaneseq
      %v8822 = vshrl.u32 %v8821, 7
      %v8823 = vsub.s32 0, %v8822
      %v8824 = vrot.slane %v8427, %v8823
      %v8826 = vcombine.low %v8459, %v8473
      %v8827 = vcombine.low %v8481, %v8483
      %v8828 = vcombine.low %v8466, %v8480
      %v8829 = vcombine.low %v8482, %v8507
      %v8831 = vunpack.c.l.s4 1966171168
      %v8832 = vunpack.c.0.s8 %v8831
      %v8833 = vlaneseq
      %v8834 = vshrl.u32 %v8833, 7
      %v8835 = vsub.s32 %v8832, %v8834
      %v8836 = vrot.slane %v8826, %v8835
      %v8838 = vunpack.c.l.s4 1966171168
      %v8839 = vunpack.c.0.s8 %v8838
      %v8840 = vlaneseq
      %v8841 = vshrl.u32 %v8840, 7
      %v8842 = vsub.s32 %v8839, %v8841
      %v8843 = vrot.slane %v8827, %v8842
      %v8845 = vunpack.c.l.s4 1966171168
      %v8846 = vunpack.c.0.s8 %v8845
      %v8847 = vlaneseq
      %v8848 = vshrl.u32 %v8847, 7
      %v8849 = vsub.s32 %v8846, %v8848
      %v8850 = vrot.slane %v8828, %v8849
      %v8852 = vunpack.c.l.s4 1966171168
      %v8853 = vunpack.c.0.s8 %v8852
      %v8854 = vlaneseq
      %v8855 = vshrl.u32 %v8854, 7
      %v8856 = vsub.s32 %v8853, %v8855
      %v8857 = vrot.slane %v8829, %v8856
      %v8858 = vcombine.low %v8836, %v8843
      %v8859 = vcombine.low %v8850, %v8857
      %v8861 = vunpack.c.l.s4 1966171168
      %v8862 = vunpack.c.0.s8 %v8861
      %v8863 = vlaneseq
      %v8864 = vshrl.u32 %v8863, 7
      %v8865 = vsub.s32 %v8862, %v8864
      %v8866 = vrot.slane %v8858, %v8865
      %v8868 = vunpack.c.l.s4 1966171168
      %v8869 = vunpack.c.0.s8 %v8868
      %v8870 = vlaneseq
      %v8871 = vshrl.u32 %v8870, 7
      %v8872 = vsub.s32 %v8869, %v8871
      %v8873 = vrot.slane %v8859, %v8872
      %v8874 = vcombine.low %v8866, %v8873
      %v8875 = vcombine.low %v8521, %v8529
      %v8876 = vcombine.low %v8531, %v8514
      %v8877 = vcombine.low %v8528, %v8530
      %v8878 = vcombine.low %v8555, %v8569
      %v8880 = vunpack.c.l.s4 1966171168
      %v8881 = vunpack.c.0.s8 %v8880
      %v8882 = vlaneseq
      %v8883 = vshrl.u32 %v8882, 7
      %v8884 = vsub.s32 %v8881, %v8883
      %v8885 = vrot.slane %v8875, %v8884
      %v8887 = vunpack.c.l.s4 1966171168
      %v8888 = vunpack.c.0.s8 %v8887
      %v8889 = vlaneseq
      %v8890 = vshrl.u32 %v8889, 7
      %v8891 = vsub.s32 %v8888, %v8890
      %v8892 = vrot.slane %v8876, %v8891
      %v8894 = vunpack.c.l.s4 1966171168
      %v8895 = vunpack.c.0.s8 %v8894
      %v8896 = vlaneseq
      %v8897 = vshrl.u32 %v8896, 7
      %v8898 = vsub.s32 %v8895, %v8897
      %v8899 = vrot.slane %v8877, %v8898
      %v8901 = vunpack.c.l.s4 1966171168
      %v8902 = vunpack.c.0.s8 %v8901
      %v8903 = vlaneseq
      %v8904 = vshrl.u32 %v8903, 7
      %v8905 = vsub.s32 %v8902, %v8904
      %v8906 = vrot.slane %v8878, %v8905
      %v8907 = vcombine.low %v8885, %v8892
      %v8908 = vcombine.low %v8899, %v8906
      %v8910 = vunpack.c.l.s4 1966171168
      %v8911 = vunpack.c.0.s8 %v8910
      %v8912 = vlaneseq
      %v8913 = vshrl.u32 %v8912, 7
      %v8914 = vsub.s32 %v8911, %v8913
      %v8915 = vrot.slane %v8907, %v8914
      %v8917 = vunpack.c.l.s4 1966171168
      %v8918 = vunpack.c.0.s8 %v8917
      %v8919 = vlaneseq
      %v8920 = vshrl.u32 %v8919, 7
      %v8921 = vsub.s32 %v8918, %v8920
      %v8922 = vrot.slane %v8908, %v8921
      %v8923 = vcombine.low %v8915, %v8922
      %v8924 = vcombine.low %v8577, %v8579
      %v8925 = vcombine.low %v8562, %v8576
      %v8926 = vcombine.low %v8578, %v8603
      %v8927 = vcombine.low %v8617, %v8625
      %v8929 = vunpack.c.l.s4 1966171168
      %v8930 = vunpack.c.0.s8 %v8929
      %v8931 = vlaneseq
      %v8932 = vshrl.u32 %v8931, 7
      %v8933 = vsub.s32 %v8930, %v8932
      %v8934 = vrot.slane %v8924, %v8933
      %v8936 = vunpack.c.l.s4 1966171168
      %v8937 = vunpack.c.0.s8 %v8936
      %v8938 = vlaneseq
      %v8939 = vshrl.u32 %v8938, 7
      %v8940 = vsub.s32 %v8937, %v8939
      %v8941 = vrot.slane %v8925, %v8940
      %v8943 = vunpack.c.l.s4 1966171168
      %v8944 = vunpack.c.0.s8 %v8943
      %v8945 = vlaneseq
      %v8946 = vshrl.u32 %v8945, 7
      %v8947 = vsub.s32 %v8944, %v8946
      %v8948 = vrot.slane %v8926, %v8947
      %v8950 = vunpack.c.l.s4 1966171168
      %v8951 = vunpack.c.0.s8 %v8950
      %v8952 = vlaneseq
      %v8953 = vshrl.u32 %v8952, 7
      %v8954 = vsub.s32 %v8951, %v8953
      %v8955 = vrot.slane %v8927, %v8954
      %v8956 = vcombine.low %v8934, %v8941
      %v8957 = vcombine.low %v8948, %v8955
      %v8959 = vunpack.c.l.s4 1966171168
      %v8960 = vunpack.c.0.s8 %v8959
      %v8961 = vlaneseq
      %v8962 = vshrl.u32 %v8961, 7
      %v8963 = vsub.s32 %v8960, %v8962
      %v8964 = vrot.slane %v8956, %v8963
      %v8966 = vunpack.c.l.s4 1966171168
      %v8967 = vunpack.c.0.s8 %v8966
      %v8968 = vlaneseq
      %v8969 = vshrl.u32 %v8968, 7
      %v8970 = vsub.s32 %v8967, %v8969
      %v8971 = vrot.slane %v8957, %v8970
      %v8972 = vcombine.low %v8964, %v8971
      %v8973 = vcombine.low %v8627, %v8610
      %v8974 = vcombine.low %v8624, %v8626
      %v8975 = vcombine.low %v8651, %v8665
      %v8976 = vcombine.low %v8673, %v8675
      %v8978 = vunpack.c.l.s4 1966171168
      %v8979 = vunpack.c.0.s8 %v8978
      %v8980 = vlaneseq
      %v8981 = vshrl.u32 %v8980, 7
      %v8982 = vsub.s32 %v8979, %v8981
      %v8983 = vrot.slane %v8973, %v8982
      %v8985 = vunpack.c.l.s4 1966171168
      %v8986 = vunpack.c.0.s8 %v8985
      %v8987 = vlaneseq
      %v8988 = vshrl.u32 %v8987, 7
      %v8989 = vsub.s32 %v8986, %v8988
      %v8990 = vrot.slane %v8974, %v8989
      %v8992 = vunpack.c.l.s4 1966171168
      %v8993 = vunpack.c.0.s8 %v8992
      %v8994 = vlaneseq
      %v8995 = vshrl.u32 %v8994, 7
      %v8996 = vsub.s32 %v8993, %v8995
      %v8997 = vrot.slane %v8975, %v8996
      %v8999 = vunpack.c.l.s4 1966171168
      %v9000 = vunpack.c.0.s8 %v8999
      %v9001 = vlaneseq
      %v9002 = vshrl.u32 %v9001, 7
      %v9003 = vsub.s32 %v9000, %v9002
      %v9004 = vrot.slane %v8976, %v9003
      %v9005 = vcombine.low %v8983, %v8990
      %v9006 = vcombine.low %v8997, %v9004
      %v9008 = vunpack.c.l.s4 1966171168
      %v9009 = vunpack.c.0.s8 %v9008
      %v9010 = vlaneseq
      %v9011 = vshrl.u32 %v9010, 7
      %v9012 = vsub.s32 %v9009, %v9011
      %v9013 = vrot.slane %v9005, %v9012
      %v9015 = vunpack.c.l.s4 1966171168
      %v9016 = vunpack.c.0.s8 %v9015
      %v9017 = vlaneseq
      %v9018 = vshrl.u32 %v9017, 7
      %v9019 = vsub.s32 %v9016, %v9018
      %v9020 = vrot.slane %v9006, %v9019
      %v9021 = vcombine.low %v9013, %v9020
      %v9022 = vcombine.low %v8658, %v8672
      %v9023 = vcombine.low %v8674, %v8699
      %v9024 = vcombine.low %v8713, %v8721
      %v9025 = vcombine.low %v8723, %v8706
      %v9027 = vunpack.c.l.s4 1966171168
      %v9028 = vunpack.c.0.s8 %v9027
      %v9029 = vlaneseq
      %v9030 = vshrl.u32 %v9029, 7
      %v9031 = vsub.s32 %v9028, %v9030
      %v9032 = vrot.slane %v9022, %v9031
      %v9034 = vunpack.c.l.s4 1966171168
      %v9035 = vunpack.c.0.s8 %v9034
      %v9036 = vlaneseq
      %v9037 = vshrl.u32 %v9036, 7
      %v9038 = vsub.s32 %v9035, %v9037
      %v9039 = vrot.slane %v9023, %v9038
      %v9041 = vunpack.c.l.s4 1966171168
      %v9042 = vunpack.c.0.s8 %v9041
      %v9043 = vlaneseq
      %v9044 = vshrl.u32 %v9043, 7
      %v9045 = vsub.s32 %v9042, %v9044
      %v9046 = vrot.slane %v9024, %v9045
      %v9048 = vunpack.c.l.s4 1966171168
      %v9049 = vunpack.c.0.s8 %v9048
      %v9050 = vlaneseq
      %v9051 = vshrl.u32 %v9050, 7
      %v9052 = vsub.s32 %v9049, %v9051
      %v9053 = vrot.slane %v9025, %v9052
      %v9054 = vcombine.low %v9032, %v9039
      %v9055 = vcombine.low %v9046, %v9053
      %v9057 = vunpack.c.l.s4 1966171168
      %v9058 = vunpack.c.0.s8 %v9057
      %v9059 = vlaneseq
      %v9060 = vshrl.u32 %v9059, 7
      %v9061 = vsub.s32 %v9058, %v9060
      %v9062 = vrot.slane %v9054, %v9061
      %v9064 = vunpack.c.l.s4 1966171168
      %v9065 = vunpack.c.0.s8 %v9064
      %v9066 = vlaneseq
      %v9067 = vshrl.u32 %v9066, 7
      %v9068 = vsub.s32 %v9065, %v9067
      %v9069 = vrot.slane %v9055, %v9068
      %v9070 = vcombine.low %v9062, %v9069
      %v9071 = vcombine.low %v8720, %v8722
      %v9072 = vcombine.low %v8747, %v8761
      %v9073 = vcombine.low %v8769, %v8771
      %v9074 = vcombine.low %v8754, %v8768
      %v9076 = vunpack.c.l.s4 1966171168
      %v9077 = vunpack.c.0.s8 %v9076
      %v9078 = vlaneseq
      %v9079 = vshrl.u32 %v9078, 7
      %v9080 = vsub.s32 %v9077, %v9079
      %v9081 = vrot.slane %v9071, %v9080
      %v9083 = vunpack.c.l.s4 1966171168
      %v9084 = vunpack.c.0.s8 %v9083
      %v9085 = vlaneseq
      %v9086 = vshrl.u32 %v9085, 7
      %v9087 = vsub.s32 %v9084, %v9086
      %v9088 = vrot.slane %v9072, %v9087
      %v9090 = vunpack.c.l.s4 1966171168
      %v9091 = vunpack.c.0.s8 %v9090
      %v9092 = vlaneseq
      %v9093 = vshrl.u32 %v9092, 7
      %v9094 = vsub.s32 %v9091, %v9093
      %v9095 = vrot.slane %v9073, %v9094
      %v9097 = vunpack.c.l.s4 1966171168
      %v9098 = vunpack.c.0.s8 %v9097
      %v9099 = vlaneseq
      %v9100 = vshrl.u32 %v9099, 7
      %v9101 = vsub.s32 %v9098, %v9100
      %v9102 = vrot.slane %v9074, %v9101
      %v9103 = vcombine.low %v9081, %v9088
      %v9104 = vcombine.low %v9095, %v9102
      %v9106 = vunpack.c.l.s4 1966171168
      %v9107 = vunpack.c.0.s8 %v9106
      %v9108 = vlaneseq
      %v9109 = vshrl.u32 %v9108, 7
      %v9110 = vsub.s32 %v9107, %v9109
      %v9111 = vrot.slane %v9103, %v9110
      %v9113 = vunpack.c.l.s4 1966171168
      %v9114 = vunpack.c.0.s8 %v9113
      %v9115 = vlaneseq
      %v9116 = vshrl.u32 %v9115, 7
      %v9117 = vsub.s32 %v9114, %v9116
      %v9118 = vrot.slane %v9104, %v9117
      %v9119 = vcombine.low %v9111, %v9118
      %v9120 = vcombine.low %v8770, %v8795
      %v9121 = vcombine.low %v8809, %v8817
      %v9122 = vcombine.low %v8819, %v8802
      %v9123 = vcombine.low %v8816, %v8818
      %v9125 = vunpack.c.l.s4 1966171168
      %v9126 = vunpack.c.0.s8 %v9125
      %v9127 = vlaneseq
      %v9128 = vshrl.u32 %v9127, 7
      %v9129 = vsub.s32 %v9126, %v9128
      %v9130 = vrot.slane %v9120, %v9129
      %v9132 = vunpack.c.l.s4 1966171168
      %v9133 = vunpack.c.0.s8 %v9132
      %v9134 = vlaneseq
      %v9135 = vshrl.u32 %v9134, 7
      %v9136 = vsub.s32 %v9133, %v9135
      %v9137 = vrot.slane %v9121, %v9136
      %v9139 = vunpack.c.l.s4 1966171168
      %v9140 = vunpack.c.0.s8 %v9139
      %v9141 = vlaneseq
      %v9142 = vshrl.u32 %v9141, 7
      %v9143 = vsub.s32 %v9140, %v9142
      %v9144 = vrot.slane %v9122, %v9143
      %v9146 = vunpack.c.l.s4 1966171168
      %v9147 = vunpack.c.0.s8 %v9146
      %v9148 = vlaneseq
      %v9149 = vshrl.u32 %v9148, 7
      %v9150 = vsub.s32 %v9147, %v9149
      %v9151 = vrot.slane %v9123, %v9150
      %v9152 = vcombine.low %v9130, %v9137
      %v9153 = vcombine.low %v9144, %v9151
      %v9155 = vunpack.c.l.s4 1966171168
      %v9156 = vunpack.c.0.s8 %v9155
      %v9157 = vlaneseq
      %v9158 = vshrl.u32 %v9157, 7
      %v9159 = vsub.s32 %v9156, %v9158
      %v9160 = vrot.slane %v9152, %v9159
      %v9162 = vunpack.c.l.s4 1966171168
      %v9163 = vunpack.c.0.s8 %v9162
      %v9164 = vlaneseq
      %v9165 = vshrl.u32 %v9164, 7
      %v9166 = vsub.s32 %v9163, %v9165
      %v9167 = vrot.slane %v9153, %v9166
      %v9168 = vcombine.low %v9160, %v9167
      %vm9169 = vcmask 523264
      %v9170 = vsel %vm9169, %v8874, 0
      %v9172 = vsel %vm9169, %v8923, 0
      %v9174 = vsel %vm9169, %v8972, 0
      %v9176 = vsel %vm9169, %v9021, 0
      %v9178 = vsel %vm9169, %v9070, 0
      %v9180 = vsel %vm9169, %v9119, 0
      %v9182 = vsel %vm9169, %v9168, 0
      %9184 = vmatprep.subr.mxu0 0.0
      %9185 = vmatpush1.msra.mxu0 %v8418
      %9186 = vmatprep.subr.mxu0 0.0
      %9187 = vmatpush1.msra.mxu0 %v8419
      %9188 = vmatprep.subr.mxu0 0.0
      %9189 = vmatpush1.msra.mxu0 %v8420
      %9190 = vmatprep.subr.mxu0 0.0
      %9191 = vmatpush1.msra.mxu0 %v8421
      %9192 = vmatprep.subr.mxu0 0.0
      %9193 = vmatpush1.msra.mxu0 %v8422
      %9194 = vmatprep.subr.mxu0 0.0
      %9195 = vmatpush1.msra.mxu0 %v8423
      %9196 = vmatprep.subr.mxu0 0.0
      %9197 = vmatpush1.msra.mxu0 %v8424
      %9198 = vmatprep.subr.mxu0 0.0
      %9199 = vmatpush1.msra.mxu0 %v8425
      %9200 = vmatprep.subr.mxu0 0.0
      %9201 = vmatpush1.msra.mxu0 0.0
      %9202 = vmatprep.subr.mxu0 0.0
      %9203 = vmatpush1.msra.mxu0 0.0
      %9204 = vmatprep.subr.mxu0 0.0
      %9205 = vmatpush1.msra.mxu0 0.0
      %9206 = vmatprep.subr.mxu0 0.0
      %9207 = vmatpush1.msra.mxu0 0.0
      %9208 = vmatprep.subr.mxu0 0.0
      %9209 = vmatpush1.msra.mxu0 0.0
      %9210 = vmatprep.subr.mxu0 0.0
      %9211 = vmatpush1.msra.mxu0 0.0
      %9212 = vmatprep.subr.mxu0 0.0
      %9213 = vmatpush1.msra.mxu0 0.0
      %9214 = vmatprep.subr.mxu0 0.0
      %9215 = vmatpush1.msra.mxu0 0.0
      %9216 = vmatprep.subr.mxu0 0.0
      %9217 = vmatpush1.msra.mxu0 0.0
      %9218 = vmatprep.subr.mxu0 0.0
      %9219 = vmatpush1.msra.mxu0 0.0
      %9220 = vmatprep.subr.mxu0 0.0
      %9221 = vmatpush1.msra.mxu0 0.0
      %9222 = vmatprep.subr.mxu0 0.0
      %9223 = vmatpush1.msra.mxu0 0.0
      %9224 = vmatprep.subr.mxu0 0.0
      %9225 = vmatpush1.msra.mxu0 0.0
      %9226 = vmatprep.subr.mxu0 0.0
      %9227 = vmatpush1.msra.mxu0 0.0
      %9228 = vmatprep.subr.mxu0 0.0
      %9229 = vmatpush1.msra.mxu0 0.0
      %9230 = vmatprep.subr.mxu0 0.0
      %9231 = vmatpush1.msra.mxu0 0.0
      %9232 = vmatprep.subr.mxu0 0.0
      %9233 = vmatpush1.msra.mxu0 0.0
      %9234 = vmatprep.subr.mxu0 0.0
      %9235 = vmatpush1.msra.mxu0 0.0
      %9236 = vmatprep.subr.mxu0 0.0
      %9237 = vmatpush1.msra.mxu0 0.0
      %9238 = vmatprep.subr.mxu0 0.0
      %9239 = vmatpush1.msra.mxu0 0.0
      %9240 = vmatprep.subr.mxu0 0.0
      %9241 = vmatpush1.msra.mxu0 0.0
      %9242 = vmatprep.subr.mxu0 0.0
      %9243 = vmatpush1.msra.mxu0 0.0
      %9244 = vmatprep.subr.mxu0 0.0
      %9245 = vmatpush1.msra.mxu0 0.0
      %9246 = vmatprep.subr.mxu0 0.0
      %9247 = vmatpush1.msra.mxu0 0.0
      %9248 = vmatprep.mubr.f32.mxu0 0.0
      %9249 = vmatmul.mubr.f32.gmra.mrb[0].mxu0 %v9170
      %v9250 = vpop.f32.mrb[0].mxu0
      %v9251 = vadd.f32 %v8824, %v9250
      %v9252 = vpop.f32.mrb[0].mxu0
      %9253 = vmatprep.mubr.f32.mxu0 0.0
      %9254 = vmatmul.mubr.f32.gmra.mrb[0].mxu0 %v9172
      %v9255 = vpop.f32.mrb[0].mxu0
      %v9256 = vadd.f32 %v8824, %v9255
      %v9257 = vpop.f32.mrb[0].mxu0
      %9258 = vmatprep.mubr.f32.mxu0 0.0
      %9259 = vmatmul.mubr.f32.gmra.mrb[0].mxu0 %v9174
      %v9260 = vpop.f32.mrb[0].mxu0
      %v9261 = vadd.f32 %v8824, %v9260
      %v9262 = vpop.f32.mrb[0].mxu0
      %9263 = vmatprep.mubr.f32.mxu0 0.0
      %9264 = vmatmul.mubr.f32.gmra.mrb[0].mxu0 %v9176
      %v9265 = vpop.f32.mrb[0].mxu0
      %v9266 = vadd.f32 %v8824, %v9265
      %v9267 = vpop.f32.mrb[0].mxu0
      %9268 = vmatprep.mubr.f32.mxu0 0.0
      %9269 = vmatmul.mubr.f32.gmra.mrb[0].mxu0 %v9178
      %v9270 = vpop.f32.mrb[0].mxu0
      %v9271 = vadd.f32 %v8824, %v9270
      %v9272 = vpop.f32.mrb[0].mxu0
      %9273 = vmatprep.mubr.f32.mxu0 0.0
      %9274 = vmatmul.mubr.f32.gmra.mrb[0].mxu0 %v9180
      %v9275 = vpop.f32.mrb[0].mxu0
      %v9276 = vadd.f32 %v8824, %v9275
      %v9277 = vpop.f32.mrb[0].mxu0
      %9278 = vmatprep.mubr.f32.mxu0 0.0
      %9279 = vmatmul.mubr.f32.gmra.mrb[0].mxu0 %v9182
      %v9280 = vpop.f32.mrb[0].mxu0
      %v9281 = vadd.f32 %v8824, %v9280
      %v9282 = vpop.f32.mrb[0].mxu0
      %9283 = vdwg.mxu0
      %v9291 = vcombine.high %v9251, %v9251
      %v9293 = vunpack.c.l.s4 1966171168
      %v9294 = vunpack.c.0.s8 %v9293
      %v9295 = vlaneseq
      %v9296 = vshrl.u32 %v9295, 7
      %v9297 = vsub.s32 %v9294, %v9296
      %v9298 = vrot.slane %v9251, %v9297
      %v9300 = vunpack.c.l.s4 1966171168
      %v9301 = vunpack.c.0.s8 %v9300
      %v9302 = vlaneseq
      %v9303 = vshrl.u32 %v9302, 7
      %v9304 = vsub.s32 %v9301, %v9303
      %v9305 = vrot.slane %v9291, %v9304
      %v9306 = vcombine.high %v9298, %v9298
      %v9307 = vcombine.high %v9305, %v9305
      %v9309 = vunpack.c.l.s4 1966171168
      %v9310 = vunpack.c.0.s8 %v9309
      %v9311 = vlaneseq
      %v9312 = vshrl.u32 %v9311, 7
      %v9313 = vsub.s32 %v9310, %v9312
      %v9314 = vrot.slane %v9298, %v9313
      %v9316 = vunpack.c.l.s4 1966171168
      %v9317 = vunpack.c.0.s8 %v9316
      %v9318 = vlaneseq
      %v9319 = vshrl.u32 %v9318, 7
      %v9320 = vsub.s32 %v9317, %v9319
      %v9321 = vrot.slane %v9305, %v9320
      %v9323 = vunpack.c.l.s4 1966171168
      %v9324 = vunpack.c.0.s8 %v9323
      %v9325 = vlaneseq
      %v9326 = vshrl.u32 %v9325, 7
      %v9327 = vsub.s32 %v9324, %v9326
      %v9328 = vrot.slane %v9306, %v9327
      %v9330 = vunpack.c.l.s4 1966171168
      %v9331 = vunpack.c.0.s8 %v9330
      %v9332 = vlaneseq
      %v9333 = vshrl.u32 %v9332, 7
      %v9334 = vsub.s32 %v9331, %v9333
      %v9335 = vrot.slane %v9307, %v9334
      %v9336 = vcombine.high %v9314, %v9314
      %v9337 = vcombine.high %v9321, %v9321
      %v9338 = vcombine.high %v9328, %v9328
      %v9339 = vcombine.high %v9335, %v9335
      %v9340 = vcombine.high %v9256, %v9256
      %v9342 = vunpack.c.l.s4 1966171168
      %v9343 = vunpack.c.0.s8 %v9342
      %v9344 = vlaneseq
      %v9345 = vshrl.u32 %v9344, 7
      %v9346 = vsub.s32 %v9343, %v9345
      %v9347 = vrot.slane %v9256, %v9346
      %v9349 = vunpack.c.l.s4 1966171168
      %v9350 = vunpack.c.0.s8 %v9349
      %v9351 = vlaneseq
      %v9352 = vshrl.u32 %v9351, 7
      %v9353 = vsub.s32 %v9350, %v9352
      %v9354 = vrot.slane %v9340, %v9353
      %v9355 = vcombine.high %v9347, %v9347
      %v9356 = vcombine.high %v9354, %v9354
      %v9358 = vunpack.c.l.s4 1966171168
      %v9359 = vunpack.c.0.s8 %v9358
      %v9360 = vlaneseq
      %v9361 = vshrl.u32 %v9360, 7
      %v9362 = vsub.s32 %v9359, %v9361
      %v9363 = vrot.slane %v9347, %v9362
      %v9365 = vunpack.c.l.s4 1966171168
      %v9366 = vunpack.c.0.s8 %v9365
      %v9367 = vlaneseq
      %v9368 = vshrl.u32 %v9367, 7
      %v9369 = vsub.s32 %v9366, %v9368
      %v9370 = vrot.slane %v9354, %v9369
      %v9372 = vunpack.c.l.s4 1966171168
      %v9373 = vunpack.c.0.s8 %v9372
      %v9374 = vlaneseq
      %v9375 = vshrl.u32 %v9374, 7
      %v9376 = vsub.s32 %v9373, %v9375
      %v9377 = vrot.slane %v9355, %v9376
      %v9379 = vunpack.c.l.s4 1966171168
      %v9380 = vunpack.c.0.s8 %v9379
      %v9381 = vlaneseq
      %v9382 = vshrl.u32 %v9381, 7
      %v9383 = vsub.s32 %v9380, %v9382
      %v9384 = vrot.slane %v9356, %v9383
      %v9385 = vcombine.high %v9363, %v9363
      %v9386 = vcombine.high %v9370, %v9370
      %v9387 = vcombine.high %v9377, %v9377
      %v9388 = vcombine.high %v9384, %v9384
      %v9389 = vcombine.high %v9261, %v9261
      %v9391 = vunpack.c.l.s4 1966171168
      %v9392 = vunpack.c.0.s8 %v9391
      %v9393 = vlaneseq
      %v9394 = vshrl.u32 %v9393, 7
      %v9395 = vsub.s32 %v9392, %v9394
      %v9396 = vrot.slane %v9261, %v9395
      %v9398 = vunpack.c.l.s4 1966171168
      %v9399 = vunpack.c.0.s8 %v9398
      %v9400 = vlaneseq
      %v9401 = vshrl.u32 %v9400, 7
      %v9402 = vsub.s32 %v9399, %v9401
      %v9403 = vrot.slane %v9389, %v9402
      %v9404 = vcombine.high %v9396, %v9396
      %v9405 = vcombine.high %v9403, %v9403
      %v9407 = vunpack.c.l.s4 1966171168
      %v9408 = vunpack.c.0.s8 %v9407
      %v9409 = vlaneseq
      %v9410 = vshrl.u32 %v9409, 7
      %v9411 = vsub.s32 %v9408, %v9410
      %v9412 = vrot.slane %v9396, %v9411
      %v9414 = vunpack.c.l.s4 1966171168
      %v9415 = vunpack.c.0.s8 %v9414
      %v9416 = vlaneseq
      %v9417 = vshrl.u32 %v9416, 7
      %v9418 = vsub.s32 %v9415, %v9417
      %v9419 = vrot.slane %v9403, %v9418
      %v9421 = vunpack.c.l.s4 1966171168
      %v9422 = vunpack.c.0.s8 %v9421
      %v9423 = vlaneseq
      %v9424 = vshrl.u32 %v9423, 7
      %v9425 = vsub.s32 %v9422, %v9424
      %v9426 = vrot.slane %v9404, %v9425
      %v9428 = vunpack.c.l.s4 1966171168
      %v9429 = vunpack.c.0.s8 %v9428
      %v9430 = vlaneseq
      %v9431 = vshrl.u32 %v9430, 7
      %v9432 = vsub.s32 %v9429, %v9431
      %v9433 = vrot.slane %v9405, %v9432
      %v9434 = vcombine.high %v9412, %v9412
      %v9435 = vcombine.high %v9419, %v9419
      %v9436 = vcombine.high %v9426, %v9426
      %v9437 = vcombine.high %v9433, %v9433
      %v9438 = vcombine.high %v9266, %v9266
      %v9440 = vunpack.c.l.s4 1966171168
      %v9441 = vunpack.c.0.s8 %v9440
      %v9442 = vlaneseq
      %v9443 = vshrl.u32 %v9442, 7
      %v9444 = vsub.s32 %v9441, %v9443
      %v9445 = vrot.slane %v9266, %v9444
      %v9447 = vunpack.c.l.s4 1966171168
      %v9448 = vunpack.c.0.s8 %v9447
      %v9449 = vlaneseq
      %v9450 = vshrl.u32 %v9449, 7
      %v9451 = vsub.s32 %v9448, %v9450
      %v9452 = vrot.slane %v9438, %v9451
      %v9453 = vcombine.high %v9445, %v9445
      %v9454 = vcombine.high %v9452, %v9452
      %v9456 = vunpack.c.l.s4 1966171168
      %v9457 = vunpack.c.0.s8 %v9456
      %v9458 = vlaneseq
      %v9459 = vshrl.u32 %v9458, 7
      %v9460 = vsub.s32 %v9457, %v9459
      %v9461 = vrot.slane %v9445, %v9460
      %v9463 = vunpack.c.l.s4 1966171168
      %v9464 = vunpack.c.0.s8 %v9463
      %v9465 = vlaneseq
      %v9466 = vshrl.u32 %v9465, 7
      %v9467 = vsub.s32 %v9464, %v9466
      %v9468 = vrot.slane %v9452, %v9467
      %v9470 = vunpack.c.l.s4 1966171168
      %v9471 = vunpack.c.0.s8 %v9470
      %v9472 = vlaneseq
      %v9473 = vshrl.u32 %v9472, 7
      %v9474 = vsub.s32 %v9471, %v9473
      %v9475 = vrot.slane %v9453, %v9474
      %v9477 = vunpack.c.l.s4 1966171168
      %v9478 = vunpack.c.0.s8 %v9477
      %v9479 = vlaneseq
      %v9480 = vshrl.u32 %v9479, 7
      %v9481 = vsub.s32 %v9478, %v9480
      %v9482 = vrot.slane %v9454, %v9481
      %v9483 = vcombine.high %v9461, %v9461
      %v9484 = vcombine.high %v9468, %v9468
      %v9485 = vcombine.high %v9475, %v9475
      %v9486 = vcombine.high %v9482, %v9482
      %v9487 = vcombine.high %v9271, %v9271
      %v9489 = vunpack.c.l.s4 1966171168
      %v9490 = vunpack.c.0.s8 %v9489
      %v9491 = vlaneseq
      %v9492 = vshrl.u32 %v9491, 7
      %v9493 = vsub.s32 %v9490, %v9492
      %v9494 = vrot.slane %v9271, %v9493
      %v9496 = vunpack.c.l.s4 1966171168
      %v9497 = vunpack.c.0.s8 %v9496
      %v9498 = vlaneseq
      %v9499 = vshrl.u32 %v9498, 7
      %v9500 = vsub.s32 %v9497, %v9499
      %v9501 = vrot.slane %v9487, %v9500
      %v9502 = vcombine.high %v9494, %v9494
      %v9503 = vcombine.high %v9501, %v9501
      %v9505 = vunpack.c.l.s4 1966171168
      %v9506 = vunpack.c.0.s8 %v9505
      %v9507 = vlaneseq
      %v9508 = vshrl.u32 %v9507, 7
      %v9509 = vsub.s32 %v9506, %v9508
      %v9510 = vrot.slane %v9494, %v9509
      %v9512 = vunpack.c.l.s4 1966171168
      %v9513 = vunpack.c.0.s8 %v9512
      %v9514 = vlaneseq
      %v9515 = vshrl.u32 %v9514, 7
      %v9516 = vsub.s32 %v9513, %v9515
      %v9517 = vrot.slane %v9501, %v9516
      %v9519 = vunpack.c.l.s4 1966171168
      %v9520 = vunpack.c.0.s8 %v9519
      %v9521 = vlaneseq
      %v9522 = vshrl.u32 %v9521, 7
      %v9523 = vsub.s32 %v9520, %v9522
      %v9524 = vrot.slane %v9502, %v9523
      %v9526 = vunpack.c.l.s4 1966171168
      %v9527 = vunpack.c.0.s8 %v9526
      %v9528 = vlaneseq
      %v9529 = vshrl.u32 %v9528, 7
      %v9530 = vsub.s32 %v9527, %v9529
      %v9531 = vrot.slane %v9503, %v9530
      %v9532 = vcombine.high %v9510, %v9510
      %v9533 = vcombine.high %v9517, %v9517
      %v9534 = vcombine.high %v9524, %v9524
      %v9535 = vcombine.high %v9531, %v9531
      %v9536 = vcombine.high %v9276, %v9276
      %v9538 = vunpack.c.l.s4 1966171168
      %v9539 = vunpack.c.0.s8 %v9538
      %v9540 = vlaneseq
      %v9541 = vshrl.u32 %v9540, 7
      %v9542 = vsub.s32 %v9539, %v9541
      %v9543 = vrot.slane %v9276, %v9542
      %v9545 = vunpack.c.l.s4 1966171168
      %v9546 = vunpack.c.0.s8 %v9545
      %v9547 = vlaneseq
      %v9548 = vshrl.u32 %v9547, 7
      %v9549 = vsub.s32 %v9546, %v9548
      %v9550 = vrot.slane %v9536, %v9549
      %v9551 = vcombine.high %v9543, %v9543
      %v9552 = vcombine.high %v9550, %v9550
      %v9554 = vunpack.c.l.s4 1966171168
      %v9555 = vunpack.c.0.s8 %v9554
      %v9556 = vlaneseq
      %v9557 = vshrl.u32 %v9556, 7
      %v9558 = vsub.s32 %v9555, %v9557
      %v9559 = vrot.slane %v9543, %v9558
      %v9561 = vunpack.c.l.s4 1966171168
      %v9562 = vunpack.c.0.s8 %v9561
      %v9563 = vlaneseq
      %v9564 = vshrl.u32 %v9563, 7
      %v9565 = vsub.s32 %v9562, %v9564
      %v9566 = vrot.slane %v9550, %v9565
      %v9568 = vunpack.c.l.s4 1966171168
      %v9569 = vunpack.c.0.s8 %v9568
      %v9570 = vlaneseq
      %v9571 = vshrl.u32 %v9570, 7
      %v9572 = vsub.s32 %v9569, %v9571
      %v9573 = vrot.slane %v9551, %v9572
      %v9575 = vunpack.c.l.s4 1966171168
      %v9576 = vunpack.c.0.s8 %v9575
      %v9577 = vlaneseq
      %v9578 = vshrl.u32 %v9577, 7
      %v9579 = vsub.s32 %v9576, %v9578
      %v9580 = vrot.slane %v9552, %v9579
      %v9581 = vcombine.high %v9559, %v9559
      %v9582 = vcombine.high %v9566, %v9566
      %v9583 = vcombine.high %v9573, %v9573
      %v9584 = vcombine.high %v9580, %v9580
      %v9585 = vcombine.high %v9281, %v9281
      %v9587 = vunpack.c.l.s4 1966171168
      %v9588 = vunpack.c.0.s8 %v9587
      %v9589 = vlaneseq
      %v9590 = vshrl.u32 %v9589, 7
      %v9591 = vsub.s32 %v9588, %v9590
      %v9592 = vrot.slane %v9281, %v9591
      %v9594 = vunpack.c.l.s4 1966171168
      %v9595 = vunpack.c.0.s8 %v9594
      %v9596 = vlaneseq
      %v9597 = vshrl.u32 %v9596, 7
      %v9598 = vsub.s32 %v9595, %v9597
      %v9599 = vrot.slane %v9585, %v9598
      %v9600 = vcombine.high %v9592, %v9592
      %v9601 = vcombine.high %v9599, %v9599
      %v9603 = vunpack.c.l.s4 1966171168
      %v9604 = vunpack.c.0.s8 %v9603
      %v9605 = vlaneseq
      %v9606 = vshrl.u32 %v9605, 7
      %v9607 = vsub.s32 %v9604, %v9606
      %v9608 = vrot.slane %v9592, %v9607
      %v9610 = vunpack.c.l.s4 1966171168
      %v9611 = vunpack.c.0.s8 %v9610
      %v9612 = vlaneseq
      %v9613 = vshrl.u32 %v9612, 7
      %v9614 = vsub.s32 %v9611, %v9613
      %v9615 = vrot.slane %v9599, %v9614
      %v9617 = vunpack.c.l.s4 1966171168
      %v9618 = vunpack.c.0.s8 %v9617
      %v9619 = vlaneseq
      %v9620 = vshrl.u32 %v9619, 7
      %v9621 = vsub.s32 %v9618, %v9620
      %v9622 = vrot.slane %v9600, %v9621
      %v9624 = vunpack.c.l.s4 1966171168
      %v9625 = vunpack.c.0.s8 %v9624
      %v9626 = vlaneseq
      %v9627 = vshrl.u32 %v9626, 7
      %v9628 = vsub.s32 %v9625, %v9627
      %v9629 = vrot.slane %v9601, %v9628
      %v9630 = vcombine.high %v9608, %v9608
      %v9631 = vcombine.high %v9615, %v9615
      %v9632 = vcombine.high %v9622, %v9622
      %v9633 = vcombine.high %v9629, %v9629
      %v9634 = vcombine.low %v9314, %v9328
      %v9635 = vcombine.low %v9336, %v9338
      %v9636 = vcombine.low %v9321, %v9335
      %v9638 = vunpack.c.l.s4 1966171168
      %v9639 = vunpack.c.0.s8 %v9638
      %v9640 = vlaneseq
      %v9641 = vshrl.u32 %v9640, 7
      %v9642 = vsub.s32 %v9639, %v9641
      %v9643 = vrot.slane %v9634, %v9642
      %v9645 = vunpack.c.l.s4 1966171168
      %v9646 = vunpack.c.0.s8 %v9645
      %v9647 = vlaneseq
      %v9648 = vshrl.u32 %v9647, 7
      %v9649 = vsub.s32 %v9646, %v9648
      %v9650 = vrot.slane %v9635, %v9649
      %v9652 = vunpack.c.l.s4 1966171168
      %v9653 = vunpack.c.0.s8 %v9652
      %v9654 = vlaneseq
      %v9655 = vshrl.u32 %v9654, 7
      %v9656 = vsub.s32 %v9653, %v9655
      %v9657 = vrot.slane %v9636, %v9656
      %v9659 = vunpack.c.l.s4 1966171168
      %v9660 = vunpack.c.0.s8 %v9659
      %v9661 = vlaneseq
      %v9662 = vshrl.u32 %v9661, 7
      %v9663 = vsub.s32 %v9660, %v9662
      %v9664 = vrot.slane %v9337, %v9663
      %v9665 = vcombine.low %v9643, %v9650
      %v9666 = vcombine.low %v9657, %v9664
      %v9668 = vunpack.c.l.s4 1966171168
      %v9669 = vunpack.c.0.s8 %v9668
      %v9670 = vlaneseq
      %v9671 = vshrl.u32 %v9670, 7
      %v9672 = vsub.s32 %v9669, %v9671
      %v9673 = vrot.slane %v9665, %v9672
      %v9675 = vunpack.c.l.s4 1966171168
      %v9676 = vunpack.c.0.s8 %v9675
      %v9677 = vlaneseq
      %v9678 = vshrl.u32 %v9677, 7
      %v9679 = vsub.s32 %v9676, %v9678
      %v9680 = vrot.slane %v9666, %v9679
      %v9681 = vcombine.low %v9673, %v9680
      %v9682 = vcombine.low %v9339, %v9363
      %v9683 = vcombine.low %v9377, %v9385
      %v9684 = vcombine.low %v9387, %v9370
      %v9686 = vunpack.c.l.s4 1966171168
      %v9687 = vunpack.c.0.s8 %v9686
      %v9688 = vlaneseq
      %v9689 = vshrl.u32 %v9688, 7
      %v9690 = vsub.s32 %v9687, %v9689
      %v9691 = vrot.slane %v9682, %v9690
      %v9693 = vunpack.c.l.s4 1966171168
      %v9694 = vunpack.c.0.s8 %v9693
      %v9695 = vlaneseq
      %v9696 = vshrl.u32 %v9695, 7
      %v9697 = vsub.s32 %v9694, %v9696
      %v9698 = vrot.slane %v9683, %v9697
      %v9700 = vunpack.c.l.s4 1966171168
      %v9701 = vunpack.c.0.s8 %v9700
      %v9702 = vlaneseq
      %v9703 = vshrl.u32 %v9702, 7
      %v9704 = vsub.s32 %v9701, %v9703
      %v9705 = vrot.slane %v9684, %v9704
      %v9707 = vunpack.c.l.s4 1966171168
      %v9708 = vunpack.c.0.s8 %v9707
      %v9709 = vlaneseq
      %v9710 = vshrl.u32 %v9709, 7
      %v9711 = vsub.s32 %v9708, %v9710
      %v9712 = vrot.slane %v9384, %v9711
      %v9713 = vcombine.low %v9691, %v9698
      %v9714 = vcombine.low %v9705, %v9712
      %v9716 = vunpack.c.l.s4 1966171168
      %v9717 = vunpack.c.0.s8 %v9716
      %v9718 = vlaneseq
      %v9719 = vshrl.u32 %v9718, 7
      %v9720 = vsub.s32 %v9717, %v9719
      %v9721 = vrot.slane %v9713, %v9720
      %v9723 = vunpack.c.l.s4 1966171168
      %v9724 = vunpack.c.0.s8 %v9723
      %v9725 = vlaneseq
      %v9726 = vshrl.u32 %v9725, 7
      %v9727 = vsub.s32 %v9724, %v9726
      %v9728 = vrot.slane %v9714, %v9727
      %v9729 = vcombine.low %v9721, %v9728
      %v9730 = vcombine.low %v9386, %v9388
      %v9731 = vcombine.low %v9412, %v9426
      %v9732 = vcombine.low %v9434, %v9436
      %v9734 = vunpack.c.l.s4 1966171168
      %v9735 = vunpack.c.0.s8 %v9734
      %v9736 = vlaneseq
      %v9737 = vshrl.u32 %v9736, 7
      %v9738 = vsub.s32 %v9735, %v9737
      %v9739 = vrot.slane %v9730, %v9738
      %v9741 = vunpack.c.l.s4 1966171168
      %v9742 = vunpack.c.0.s8 %v9741
      %v9743 = vlaneseq
      %v9744 = vshrl.u32 %v9743, 7
      %v9745 = vsub.s32 %v9742, %v9744
      %v9746 = vrot.slane %v9731, %v9745
      %v9748 = vunpack.c.l.s4 1966171168
      %v9749 = vunpack.c.0.s8 %v9748
      %v9750 = vlaneseq
      %v9751 = vshrl.u32 %v9750, 7
      %v9752 = vsub.s32 %v9749, %v9751
      %v9753 = vrot.slane %v9732, %v9752
      %v9755 = vunpack.c.l.s4 1966171168
      %v9756 = vunpack.c.0.s8 %v9755
      %v9757 = vlaneseq
      %v9758 = vshrl.u32 %v9757, 7
      %v9759 = vsub.s32 %v9756, %v9758
      %v9760 = vrot.slane %v9419, %v9759
      %v9761 = vcombine.low %v9739, %v9746
      %v9762 = vcombine.low %v9753, %v9760
      %v9764 = vunpack.c.l.s4 1966171168
      %v9765 = vunpack.c.0.s8 %v9764
      %v9766 = vlaneseq
      %v9767 = vshrl.u32 %v9766, 7
      %v9768 = vsub.s32 %v9765, %v9767
      %v9769 = vrot.slane %v9761, %v9768
      %v9771 = vunpack.c.l.s4 1966171168
      %v9772 = vunpack.c.0.s8 %v9771
      %v9773 = vlaneseq
      %v9774 = vshrl.u32 %v9773, 7
      %v9775 = vsub.s32 %v9772, %v9774
      %v9776 = vrot.slane %v9762, %v9775
      %v9777 = vcombine.low %v9769, %v9776
      %v9778 = vcombine.low %v9433, %v9435
      %v9779 = vcombine.low %v9437, %v9461
      %v9780 = vcombine.low %v9475, %v9483
      %v9782 = vunpack.c.l.s4 1966171168
      %v9783 = vunpack.c.0.s8 %v9782
      %v9784 = vlaneseq
      %v9785 = vshrl.u32 %v9784, 7
      %v9786 = vsub.s32 %v9783, %v9785
      %v9787 = vrot.slane %v9778, %v9786
      %v9789 = vunpack.c.l.s4 1966171168
      %v9790 = vunpack.c.0.s8 %v9789
      %v9791 = vlaneseq
      %v9792 = vshrl.u32 %v9791, 7
      %v9793 = vsub.s32 %v9790, %v9792
      %v9794 = vrot.slane %v9779, %v9793
      %v9796 = vunpack.c.l.s4 1966171168
      %v9797 = vunpack.c.0.s8 %v9796
      %v9798 = vlaneseq
      %v9799 = vshrl.u32 %v9798, 7
      %v9800 = vsub.s32 %v9797, %v9799
      %v9801 = vrot.slane %v9780, %v9800
      %v9803 = vunpack.c.l.s4 1966171168
      %v9804 = vunpack.c.0.s8 %v9803
      %v9805 = vlaneseq
      %v9806 = vshrl.u32 %v9805, 7
      %v9807 = vsub.s32 %v9804, %v9806
      %v9808 = vrot.slane %v9485, %v9807
      %v9809 = vcombine.low %v9787, %v9794
      %v9810 = vcombine.low %v9801, %v9808
      %v9812 = vunpack.c.l.s4 1966171168
      %v9813 = vunpack.c.0.s8 %v9812
      %v9814 = vlaneseq
      %v9815 = vshrl.u32 %v9814, 7
      %v9816 = vsub.s32 %v9813, %v9815
      %v9817 = vrot.slane %v9809, %v9816
      %v9819 = vunpack.c.l.s4 1966171168
      %v9820 = vunpack.c.0.s8 %v9819
      %v9821 = vlaneseq
      %v9822 = vshrl.u32 %v9821, 7
      %v9823 = vsub.s32 %v9820, %v9822
      %v9824 = vrot.slane %v9810, %v9823
      %v9825 = vcombine.low %v9817, %v9824
      %v9826 = vcombine.low %v9468, %v9482
      %v9827 = vcombine.low %v9484, %v9486
      %v9828 = vcombine.low %v9510, %v9524
      %v9830 = vunpack.c.l.s4 1966171168
      %v9831 = vunpack.c.0.s8 %v9830
      %v9832 = vlaneseq
      %v9833 = vshrl.u32 %v9832, 7
      %v9834 = vsub.s32 %v9831, %v9833
      %v9835 = vrot.slane %v9826, %v9834
      %v9837 = vunpack.c.l.s4 1966171168
      %v9838 = vunpack.c.0.s8 %v9837
      %v9839 = vlaneseq
      %v9840 = vshrl.u32 %v9839, 7
      %v9841 = vsub.s32 %v9838, %v9840
      %v9842 = vrot.slane %v9827, %v9841
      %v9844 = vunpack.c.l.s4 1966171168
      %v9845 = vunpack.c.0.s8 %v9844
      %v9846 = vlaneseq
      %v9847 = vshrl.u32 %v9846, 7
      %v9848 = vsub.s32 %v9845, %v9847
      %v9849 = vrot.slane %v9828, %v9848
      %v9851 = vunpack.c.l.s4 1966171168
      %v9852 = vunpack.c.0.s8 %v9851
      %v9853 = vlaneseq
      %v9854 = vshrl.u32 %v9853, 7
      %v9855 = vsub.s32 %v9852, %v9854
      %v9856 = vrot.slane %v9532, %v9855
      %v9857 = vcombine.low %v9835, %v9842
      %v9858 = vcombine.low %v9849, %v9856
      %v9860 = vunpack.c.l.s4 1966171168
      %v9861 = vunpack.c.0.s8 %v9860
      %v9862 = vlaneseq
      %v9863 = vshrl.u32 %v9862, 7
      %v9864 = vsub.s32 %v9861, %v9863
      %v9865 = vrot.slane %v9857, %v9864
      %v9867 = vunpack.c.l.s4 1966171168
      %v9868 = vunpack.c.0.s8 %v9867
      %v9869 = vlaneseq
      %v9870 = vshrl.u32 %v9869, 7
      %v9871 = vsub.s32 %v9868, %v9870
      %v9872 = vrot.slane %v9858, %v9871
      %v9873 = vcombine.low %v9865, %v9872
      %v9874 = vcombine.low %v9534, %v9517
      %v9875 = vcombine.low %v9531, %v9533
      %v9876 = vcombine.low %v9535, %v9559
      %v9878 = vunpack.c.l.s4 1966171168
      %v9879 = vunpack.c.0.s8 %v9878
      %v9880 = vlaneseq
      %v9881 = vshrl.u32 %v9880, 7
      %v9882 = vsub.s32 %v9879, %v9881
      %v9883 = vrot.slane %v9874, %v9882
      %v9885 = vunpack.c.l.s4 1966171168
      %v9886 = vunpack.c.0.s8 %v9885
      %v9887 = vlaneseq
      %v9888 = vshrl.u32 %v9887, 7
      %v9889 = vsub.s32 %v9886, %v9888
      %v9890 = vrot.slane %v9875, %v9889
      %v9892 = vunpack.c.l.s4 1966171168
      %v9893 = vunpack.c.0.s8 %v9892
      %v9894 = vlaneseq
      %v9895 = vshrl.u32 %v9894, 7
      %v9896 = vsub.s32 %v9893, %v9895
      %v9897 = vrot.slane %v9876, %v9896
      %v9899 = vunpack.c.l.s4 1966171168
      %v9900 = vunpack.c.0.s8 %v9899
      %v9901 = vlaneseq
      %v9902 = vshrl.u32 %v9901, 7
      %v9903 = vsub.s32 %v9900, %v9902
      %v9904 = vrot.slane %v9573, %v9903
      %v9905 = vcombine.low %v9883, %v9890
      %v9906 = vcombine.low %v9897, %v9904
      %v9908 = vunpack.c.l.s4 1966171168
      %v9909 = vunpack.c.0.s8 %v9908
      %v9910 = vlaneseq
      %v9911 = vshrl.u32 %v9910, 7
      %v9912 = vsub.s32 %v9909, %v9911
      %v9913 = vrot.slane %v9905, %v9912
      %v9915 = vunpack.c.l.s4 1966171168
      %v9916 = vunpack.c.0.s8 %v9915
      %v9917 = vlaneseq
      %v9918 = vshrl.u32 %v9917, 7
      %v9919 = vsub.s32 %v9916, %v9918
      %v9920 = vrot.slane %v9906, %v9919
      %v9921 = vcombine.low %v9913, %v9920
      %v9922 = vcombine.low %v9581, %v9583
      %v9923 = vcombine.low %v9566, %v9580
      %v9924 = vcombine.low %v9582, %v9584
      %v9926 = vunpack.c.l.s4 1966171168
      %v9927 = vunpack.c.0.s8 %v9926
      %v9928 = vlaneseq
      %v9929 = vshrl.u32 %v9928, 7
      %v9930 = vsub.s32 %v9927, %v9929
      %v9931 = vrot.slane %v9922, %v9930
      %v9933 = vunpack.c.l.s4 1966171168
      %v9934 = vunpack.c.0.s8 %v9933
      %v9935 = vlaneseq
      %v9936 = vshrl.u32 %v9935, 7
      %v9937 = vsub.s32 %v9934, %v9936
      %v9938 = vrot.slane %v9923, %v9937
      %v9940 = vunpack.c.l.s4 1966171168
      %v9941 = vunpack.c.0.s8 %v9940
      %v9942 = vlaneseq
      %v9943 = vshrl.u32 %v9942, 7
      %v9944 = vsub.s32 %v9941, %v9943
      %v9945 = vrot.slane %v9924, %v9944
      %v9947 = vunpack.c.l.s4 1966171168
      %v9948 = vunpack.c.0.s8 %v9947
      %v9949 = vlaneseq
      %v9950 = vshrl.u32 %v9949, 7
      %v9951 = vsub.s32 %v9948, %v9950
      %v9952 = vrot.slane %v9608, %v9951
      %v9953 = vcombine.low %v9931, %v9938
      %v9954 = vcombine.low %v9945, %v9952
      %v9956 = vunpack.c.l.s4 1966171168
      %v9957 = vunpack.c.0.s8 %v9956
      %v9958 = vlaneseq
      %v9959 = vshrl.u32 %v9958, 7
      %v9960 = vsub.s32 %v9957, %v9959
      %v9961 = vrot.slane %v9953, %v9960
      %v9963 = vunpack.c.l.s4 1966171168
      %v9964 = vunpack.c.0.s8 %v9963
      %v9965 = vlaneseq
      %v9966 = vshrl.u32 %v9965, 7
      %v9967 = vsub.s32 %v9964, %v9966
      %v9968 = vrot.slane %v9954, %v9967
      %v9969 = vcombine.low %v9961, %v9968
      %v9970 = vcombine.low %v9622, %v9630
      %v9971 = vcombine.low %v9632, %v9615
      %v9972 = vcombine.low %v9629, %v9631
      %v9974 = vunpack.c.l.s4 1966171168
      %v9975 = vunpack.c.0.s8 %v9974
      %v9976 = vlaneseq
      %v9977 = vshrl.u32 %v9976, 7
      %v9978 = vsub.s32 %v9975, %v9977
      %v9979 = vrot.slane %v9970, %v9978
      %v9981 = vunpack.c.l.s4 1966171168
      %v9982 = vunpack.c.0.s8 %v9981
      %v9983 = vlaneseq
      %v9984 = vshrl.u32 %v9983, 7
      %v9985 = vsub.s32 %v9982, %v9984
      %v9986 = vrot.slane %v9971, %v9985
      %v9988 = vunpack.c.l.s4 1966171168
      %v9989 = vunpack.c.0.s8 %v9988
      %v9990 = vlaneseq
      %v9991 = vshrl.u32 %v9990, 7
      %v9992 = vsub.s32 %v9989, %v9991
      %v9993 = vrot.slane %v9972, %v9992
      %v9995 = vunpack.c.l.s4 1966171168
      %v9996 = vunpack.c.0.s8 %v9995
      %v9997 = vlaneseq
      %v9998 = vshrl.u32 %v9997, 7
      %v9999 = vsub.s32 %v9996, %v9998
      %v10000 = vrot.slane %v9633, %v9999
      %v10001 = vcombine.low %v9979, %v9986
      %v10002 = vcombine.low %v9993, %v10000
      %v10004 = vunpack.c.l.s4 1966171168
      %v10005 = vunpack.c.0.s8 %v10004
      %v10006 = vlaneseq
      %v10007 = vshrl.u32 %v10006, 7
      %v10008 = vsub.s32 %v10005, %v10007
      %v10009 = vrot.slane %v10001, %v10008
      %v10011 = vunpack.c.l.s4 1966171168
      %v10012 = vunpack.c.0.s8 %v10011
      %v10013 = vlaneseq
      %v10014 = vshrl.u32 %v10013, 7
      %v10015 = vsub.s32 %v10012, %v10014
      %v10016 = vrot.slane %v10002, %v10015
      %v10017 = vcombine.low %v10009, %v10016
      %v10026 = vadd.f32 %v6700, %v9681
      %v10027 = vadd.f32 %v6701, %v9729
      %v10028 = vadd.f32 %v6702, %v9777
      %v10029 = vadd.f32 %v6703, %v9825
      %v10030 = vadd.f32 %v6704, %v9873
      %v10031 = vadd.f32 %v6705, %v9921
      %v10032 = vadd.f32 %v6706, %v9969
      %v10033 = vadd.f32 %v6707, %v10017
      %s10034 = scalar_lea.vmem %s16, %s801
      %v10035 = vld [vmem:[%s10034] sm:$0x1]
      %s10036 = scalar_lea.vmem %s17, %s801
      %v10037 = vld [vmem:[%s10036] sm:$0x1]
      %v10038 = vsel %vm6574, %v10026, 0.0
      %10039 = vadd.xlane.f32.xlu0 %v10038
      %v10040 = vpop.xlane.xlu0 %10039
      %v10041 = vsel %vm6574, %v10027, 0.0
      %10042 = vadd.xlane.f32.xlu0 %v10041
      %v10043 = vpop.xlane.xlu0 %10042
      %v10044 = vsel %vm6574, %v10028, 0.0
      %10045 = vadd.xlane.f32.xlu0 %v10044
      %v10046 = vpop.xlane.xlu0 %10045
      %v10047 = vsel %vm6574, %v10029, 0.0
      %10048 = vadd.xlane.f32.xlu0 %v10047
      %v10049 = vpop.xlane.xlu0 %10048
      %v10050 = vsel %vm6574, %v10030, 0.0
      %10051 = vadd.xlane.f32.xlu0 %v10050
      %v10052 = vpop.xlane.xlu0 %10051
      %v10053 = vsel %vm6574, %v10031, 0.0
      %10054 = vadd.xlane.f32.xlu0 %v10053
      %v10055 = vpop.xlane.xlu0 %10054
      %v10056 = vsel %vm6574, %v10032, 0.0
      %10057 = vadd.xlane.f32.xlu0 %v10056
      %v10058 = vpop.xlane.xlu0 %10057
      %v10059 = vsel %vm6574, %v10033, 0.0
      %10060 = vadd.xlane.f32.xlu0 %v10059
      %v10061 = vpop.xlane.xlu0 %10060
      %v10062 = vmul.f32 %v10040, %v6599
      %v10063 = vmul.f32 %v10043, %v6599
      %v10064 = vmul.f32 %v10046, %v6599
      %v10065 = vmul.f32 %v10049, %v6599
      %v10066 = vmul.f32 %v10052, %v6599
      %v10067 = vmul.f32 %v10055, %v6599
      %v10068 = vmul.f32 %v10058, %v6599
      %v10069 = vmul.f32 %v10061, %v6599
      %v10070 = vsub.f32 %v10026, %v10062
      %v10071 = vsub.f32 %v10027, %v10063
      %v10072 = vsub.f32 %v10028, %v10064
      %v10073 = vsub.f32 %v10029, %v10065
      %v10074 = vsub.f32 %v10030, %v10066
      %v10075 = vsub.f32 %v10031, %v10067
      %v10076 = vsub.f32 %v10032, %v10068
      %v10077 = vsub.f32 %v10033, %v10069
      %v10078 = vmul.f32 %v10070, %v10070
      %v10079 = vmul.f32 %v10071, %v10071
      %v10080 = vmul.f32 %v10072, %v10072
      %v10081 = vmul.f32 %v10073, %v10073
      %v10082 = vmul.f32 %v10074, %v10074
      %v10083 = vmul.f32 %v10075, %v10075
      %v10084 = vmul.f32 %v10076, %v10076
      %v10085 = vmul.f32 %v10077, %v10077
      %v10086 = vsel %vm6574, %v10078, 0.0
      %10087 = vadd.xlane.f32.xlu0 %v10086
      %v10088 = vpop.xlane.xlu0 %10087
      %v10089 = vsel %vm6574, %v10079, 0.0
      %10090 = vadd.xlane.f32.xlu0 %v10089
      %v10091 = vpop.xlane.xlu0 %10090
      %v10092 = vsel %vm6574, %v10080, 0.0
      %10093 = vadd.xlane.f32.xlu0 %v10092
      %v10094 = vpop.xlane.xlu0 %10093
      %v10095 = vsel %vm6574, %v10081, 0.0
      %10096 = vadd.xlane.f32.xlu0 %v10095
      %v10097 = vpop.xlane.xlu0 %10096
      %v10098 = vsel %vm6574, %v10082, 0.0
      %10099 = vadd.xlane.f32.xlu0 %v10098
      %v10100 = vpop.xlane.xlu0 %10099
      %v10101 = vsel %vm6574, %v10083, 0.0
      %10102 = vadd.xlane.f32.xlu0 %v10101
      %v10103 = vpop.xlane.xlu0 %10102
      %v10104 = vsel %vm6574, %v10084, 0.0
      %10105 = vadd.xlane.f32.xlu0 %v10104
      %v10106 = vpop.xlane.xlu0 %10105
      %v10107 = vsel %vm6574, %v10085, 0.0
      %10108 = vadd.xlane.f32.xlu0 %v10107
      %v10109 = vpop.xlane.xlu0 %10108
      %v10110 = vmul.f32 %v10088, %v6599
      %v10111 = vmul.f32 %v10091, %v6599
      %v10112 = vmul.f32 %v10094, %v6599
      %v10113 = vmul.f32 %v10097, %v6599
      %v10114 = vmul.f32 %v10100, %v6599
      %v10115 = vmul.f32 %v10103, %v6599
      %v10116 = vmul.f32 %v10106, %v6599
      %v10117 = vmul.f32 %v10109, %v6599
      %v10118 = vadd.f32 %v10110, 1e-05
      %v10119 = vadd.f32 %v10111, 1e-05
      %v10120 = vadd.f32 %v10112, 1e-05
      %v10121 = vadd.f32 %v10113, 1e-05
      %v10122 = vadd.f32 %v10114, 1e-05
      %v10123 = vadd.f32 %v10115, 1e-05
      %v10124 = vadd.f32 %v10116, 1e-05
      %v10125 = vadd.f32 %v10117, 1e-05
      %v10126 = vrsqrt.pop %v10118
      %v10127 = vrsqrt.pop %v10119
      %v10128 = vrsqrt.pop %v10120
      %v10129 = vrsqrt.pop %v10121
      %v10130 = vrsqrt.pop %v10122
      %v10131 = vrsqrt.pop %v10123
      %v10132 = vrsqrt.pop %v10124
      %v10133 = vrsqrt.pop %v10125
      %v10134 = vmul.f32 %v10070, %v10126
      %v10135 = vmul.f32 %v10071, %v10127
      %v10136 = vmul.f32 %v10072, %v10128
      %v10137 = vmul.f32 %v10073, %v10129
      %v10138 = vmul.f32 %v10074, %v10130
      %v10139 = vmul.f32 %v10075, %v10131
      %v10140 = vmul.f32 %v10076, %v10132
      %v10141 = vmul.f32 %v10077, %v10133
      %v10143 = vlaneseq
      %v10144 = vshrl.u32 %v10143, 7
      %v10145 = vsub.s32 0, %v10144
      %v10146 = vrot.slane %v10035, %v10145
      %v10148 = vmul.f32 %v10134, %v10146
      %v10149 = vmul.f32 %v10135, %v10146
      %v10150 = vmul.f32 %v10136, %v10146
      %v10151 = vmul.f32 %v10137, %v10146
      %v10152 = vmul.f32 %v10138, %v10146
      %v10153 = vmul.f32 %v10139, %v10146
      %v10154 = vmul.f32 %v10140, %v10146
      %v10155 = vmul.f32 %v10141, %v10146
      %v10157 = vlaneseq
      %v10158 = vshrl.u32 %v10157, 7
      %v10159 = vsub.s32 0, %v10158
      %v10160 = vrot.slane %v10037, %v10159
      %v10162 = vadd.f32 %v10148, %v10160
      %v10163 = vadd.f32 %v10149, %v10160
      %v10164 = vadd.f32 %v10150, %v10160
      %v10165 = vadd.f32 %v10151, %v10160
      %v10166 = vadd.f32 %v10152, %v10160
      %v10167 = vadd.f32 %v10153, %v10160
      %v10168 = vadd.f32 %v10154, %v10160
      %v10169 = vadd.f32 %v10155, %v10160
    $region94: #{tpu_custom_call.1} parent=1 // loop_footer
      %s805 = sadd.s32 1, %s801
    $region95: #{tpu_custom_call.1} parent=1 // loop_footer_branch
      %800 = sbr.rel target = $region91
    $region96: #{tpu_custom_call.1} parent=1 // loop_exit
      _
    %v10170 = vld [vmem:[%s18] sm:$0x1]
    %v10171 = vld [vmem:[%s19] sm:$0x1]
    %v10180 = vrot.slane %v807, 7
    %vm10181 = vcmask 1041409
    %v10182 = vsel %vm10181, %v10180, %v806
    %v10183 = vrot.slane %v808, 6
    %vm10184 = vcmask 1042434
    %v10185 = vsel %vm10184, %v10183, %v10182
    %v10186 = vrot.slane %v809, 5
    %vm10187 = vcmask 1043459
    %v10188 = vsel %vm10187, %v10186, %v10185
    %v10189 = vrot.slane %v810, 4
    %vm10190 = vcmask 1044484
    %v10191 = vsel %vm10190, %v10189, %v10188
    %v10192 = vrot.slane %v811, 3
    %vm10193 = vcmask 1045509
    %v10194 = vsel %vm10193, %v10192, %v10191
    %v10195 = vrot.slane %v812, 2
    %vm10196 = vcmask 1046534
    %v10197 = vsel %vm10196, %v10195, %v10194
    %v10198 = vrot.slane %v813, 1
    %vm10199 = vcmask 1047559
    %v10200 = vsel %vm10199, %v10198, %v10197
    %vm10202 = vcmask 261120
    %v10203 = vsel %vm10202, %v10200, 0.0
    %10204 = vadd.xlane.f32.xlu0 %v10203
    %v10205 = vpop.xlane.xlu0 %10204
    %v10206 = vrcp.pop 32.0
    %v10207 = vmul.f32 %v10205, %v10206
    %v10209 = vrot.slane %v10207, 1
    %v10210 = vrot.slane %v10207, 2
    %v10211 = vrot.slane %v10207, 3
    %v10212 = vrot.slane %v10207, 4
    %v10213 = vrot.slane %v10207, 5
    %v10214 = vrot.slane %v10207, 6
    %v10215 = vrot.slane %v10207, 7
    %v10224 = vsub.f32 %v806, %v10207
    %v10225 = vsub.f32 %v807, %v10209
    %v10226 = vsub.f32 %v808, %v10210
    %v10227 = vsub.f32 %v809, %v10211
    %v10228 = vsub.f32 %v810, %v10212
    %v10229 = vsub.f32 %v811, %v10213
    %v10230 = vsub.f32 %v812, %v10214
    %v10231 = vsub.f32 %v813, %v10215
    %v10232 = vmul.f32 %v10224, %v10224
    %v10233 = vmul.f32 %v10225, %v10225
    %v10234 = vmul.f32 %v10226, %v10226
    %v10235 = vmul.f32 %v10227, %v10227
    %v10236 = vmul.f32 %v10228, %v10228
    %v10237 = vmul.f32 %v10229, %v10229
    %v10238 = vmul.f32 %v10230, %v10230
    %v10239 = vmul.f32 %v10231, %v10231
    %v10248 = vrot.slane %v10233, 7
    %v10249 = vsel %vm10181, %v10248, %v10232
    %v10250 = vrot.slane %v10234, 6
    %v10251 = vsel %vm10184, %v10250, %v10249
    %v10252 = vrot.slane %v10235, 5
    %v10253 = vsel %vm10187, %v10252, %v10251
    %v10254 = vrot.slane %v10236, 4
    %v10255 = vsel %vm10190, %v10254, %v10253
    %v10256 = vrot.slane %v10237, 3
    %v10257 = vsel %vm10193, %v10256, %v10255
    %v10258 = vrot.slane %v10238, 2
    %v10259 = vsel %vm10196, %v10258, %v10257
    %v10260 = vrot.slane %v10239, 1
    %v10261 = vsel %vm10199, %v10260, %v10259
    %v10263 = vsel %vm10202, %v10261, 0.0
    %10264 = vadd.xlane.f32.xlu0 %v10263
    %v10265 = vpop.xlane.xlu0 %10264
    %v10266 = vmul.f32 %v10265, %v10206
    %v10267 = vadd.f32 %v10266, 1e-05
    %v10268 = vrsqrt.pop %v10267
    %v10270 = vrot.slane %v10268, 1
    %v10271 = vrot.slane %v10268, 2
    %v10272 = vrot.slane %v10268, 3
    %v10273 = vrot.slane %v10268, 4
    %v10274 = vrot.slane %v10268, 5
    %v10275 = vrot.slane %v10268, 6
    %v10276 = vrot.slane %v10268, 7
    %v10285 = vmul.f32 %v10224, %v10268
    %v10286 = vmul.f32 %v10225, %v10270
    %v10287 = vmul.f32 %v10226, %v10271
    %v10288 = vmul.f32 %v10227, %v10272
    %v10289 = vmul.f32 %v10228, %v10273
    %v10290 = vmul.f32 %v10229, %v10274
    %v10291 = vmul.f32 %v10230, %v10275
    %v10292 = vmul.f32 %v10231, %v10276
    %v10294 = vlaneseq
    %v10295 = vshrl.u32 %v10294, 7
    %v10296 = vsub.s32 0, %v10295
    %v10297 = vrot.slane %v10170, %v10296
    %v10299 = vmul.f32 %v10285, %v10297
    %v10300 = vmul.f32 %v10286, %v10297
    %v10301 = vmul.f32 %v10287, %v10297
    %v10302 = vmul.f32 %v10288, %v10297
    %v10303 = vmul.f32 %v10289, %v10297
    %v10304 = vmul.f32 %v10290, %v10297
    %v10305 = vmul.f32 %v10291, %v10297
    %v10306 = vmul.f32 %v10292, %v10297
    %v10308 = vlaneseq
    %v10309 = vshrl.u32 %v10308, 7
    %v10310 = vsub.s32 0, %v10309
    %v10311 = vrot.slane %v10171, %v10310
    %v10313 = vadd.f32 %v10299, %v10311
    %v10314 = vadd.f32 %v10300, %v10311
    %v10315 = vadd.f32 %v10301, %v10311
    %v10316 = vadd.f32 %v10302, %v10311
    %v10317 = vadd.f32 %v10303, %v10311
    %v10318 = vadd.f32 %v10304, %v10311
    %v10319 = vadd.f32 %v10305, %v10311
    %v10320 = vadd.f32 %v10306, %v10311
    %v10321 = vld [vmem:[%s20] sm:$0x1]
    %v10323 = vlaneseq
    %v10324 = vshrl.u32 %v10323, 7
    %v10325 = vsub.s32 0, %v10324
    %v10326 = vrot.slane %v10321, %v10325
    %v10328 = vmul.f32 %v10313, %v10326
    %v10329 = vmul.f32 %v10314, %v10326
    %v10330 = vmul.f32 %v10315, %v10326
    %v10331 = vmul.f32 %v10316, %v10326
    %v10332 = vmul.f32 %v10317, %v10326
    %v10333 = vmul.f32 %v10318, %v10326
    %v10334 = vmul.f32 %v10319, %v10326
    %v10335 = vmul.f32 %v10320, %v10326
    %v10344 = vrot.slane %v10329, 7
    %v10345 = vsel %vm10181, %v10344, %v10328
    %v10346 = vrot.slane %v10330, 6
    %v10347 = vsel %vm10184, %v10346, %v10345
    %v10348 = vrot.slane %v10331, 5
    %v10349 = vsel %vm10187, %v10348, %v10347
    %v10350 = vrot.slane %v10332, 4
    %v10351 = vsel %vm10190, %v10350, %v10349
    %v10352 = vrot.slane %v10333, 3
    %v10353 = vsel %vm10193, %v10352, %v10351
    %v10354 = vrot.slane %v10334, 2
    %v10355 = vsel %vm10196, %v10354, %v10353
    %v10356 = vrot.slane %v10335, 1
    %v10357 = vsel %vm10199, %v10356, %v10355
    %v10359 = vsel %vm10202, %v10357, 0.0
    %10360 = vadd.xlane.f32.xlu0 %v10359
    %v10361 = vpop.xlane.xlu0 %10360
    %v10362 = vld [vmem:[#allocation2] sm:$0x1]
    %v10364 = vlaneseq
    %v10365 = vshrl.u32 %v10364, 7
    %v10366 = vsub.s32 0, %v10365
    %v10367 = vrot.slane %v10362, %v10366
    %v10369 = vadd.f32 %v10361, %v10367
    %10370 = vxpose.xlu0.b32.start [1/16] %v10369, 128
    %10371 = vxpose.xlu0.b32.cont [2/16] 0.0, 128
    %10372 = vxpose.xlu0.b32.cont [3/16] 0.0, 128
    %10373 = vxpose.xlu0.b32.cont [4/16] 0.0, 128
    %10374 = vxpose.xlu0.b32.cont [5/16] 0.0, 128
    %10375 = vxpose.xlu0.b32.cont [6/16] 0.0, 128
    %10376 = vxpose.xlu0.b32.cont [7/16] 0.0, 128
    %10377 = vxpose.xlu0.b32.cont [8/16] 0.0, 128
    %10378 = vxpose.xlu0.b32.cont [9/16] 0.0, 128
    %10379 = vxpose.xlu0.b32.cont [10/16] 0.0, 128
    %10380 = vxpose.xlu0.b32.cont [11/16] 0.0, 128
    %10381 = vxpose.xlu0.b32.cont [12/16] 0.0, 128
    %10382 = vxpose.xlu0.b32.cont [13/16] 0.0, 128
    %10383 = vxpose.xlu0.b32.cont [14/16] 0.0, 128
    %10384 = vxpose.xlu0.b32.cont [15/16] 0.0, 128
    %10385 = vxpose.xlu0.b32.end [16/16] 0.0, 128
    %v10386 = vpop.trf.xlu0
    %v10387 = vpop.trf.xlu0
    %v10388 = vpop.trf.xlu0
    %v10389 = vpop.trf.xlu0
    %v10390 = vpop.trf.xlu0
    %v10391 = vpop.trf.xlu0
    %v10392 = vpop.trf.xlu0
    %v10393 = vpop.trf.xlu0
    %v10394 = vpop.trf.xlu0
    %v10395 = vpop.trf.xlu0
    %v10396 = vpop.trf.xlu0
    %v10397 = vpop.trf.xlu0
    %v10398 = vpop.trf.xlu0
    %v10399 = vpop.trf.xlu0
    %v10400 = vpop.trf.xlu0
    %v10401 = vpop.trf.xlu0
    %vm10402 = vcmask 57344
    %10403 = vst.msk [vmem:[#allocation3] sm:$0x1] %vm10402, %v10386
    // Predicated region
    $region97: #{tpu_custom_call.1} parent=1 // pred_check
      _
    $region98: #{tpu_custom_call.1} parent=1 // pred_check_branch
      %10405 = sbr.rel (0) target = $region100
    $region99: #{tpu_custom_call.1} parent=1 // pred_region
      %s10407 = ssub.s32 16, 16
      %10408 = vsyncadd [#allocation4], %s10407
      %s10410 = sshll.u32 [#allocation3], 4
      %s10411 = int_to_ptr.vmem [resolvable:$true] %s10410
      %10413 = dma.vmem_to_hbm [thread:$0]  %s10411, 16, %s22, [#allocation4]
    $region100: #{tpu_custom_call.1} parent=1 // pred_fallthru
      _
    // Predicated region
    $region101: #{tpu_custom_call.1} parent=1 // pred_check
      _
    $region102: #{tpu_custom_call.1} parent=1 // pred_check_branch
      %10415 = sbr.rel (0) target = $region104
    $region103: #{tpu_custom_call.1} parent=1 // pred_region
      %10416 = dma.done [#allocation4], 16
    $region104: #{tpu_custom_call.1} parent=1 // pred_fallthru
      _
    %10417 = vsyncpa [#allocation4], 1

</llo_original>
